<compile_context>
chip_gen: v5e
topology: v5e:2x2
jax: 0.10.0
libtpu: 0.0.40
codegen_flags: <defaults>
</compile_context>

<pallas_src>
import functools
import math

import jax
import jax.numpy as jnp
from jax.experimental import pallas as pl
from jax.experimental.pallas import tpu as pltpu

N_H = 8                                  # |p4m| = 4 rotations x 2 mirror states
BN_EPS = 2e-5                            # eps used by the original module
VMEM_LIMIT = 48 * 1024 * 1024            # scoped-VMEM budget (fits v7x's 64 MiB physical)
MATMUL_VMEM_BUDGET = 24 * 1024 * 1024    # per-call budget used to pick 1x1-matmul row tiles
GCONV_CHUNK_M = 2048                     # M-chunk inside the 3x3 conv kernel


# ---------------------------------------------------------------------------
# Pallas kernels
# ---------------------------------------------------------------------------
def _gconv3x3_kernel(x_ref, s_ref, b_ref, w_ref, o_ref, nrm_ref, *,
                     shifts, m_valid, chunk, fuse_bn):
    """Implicit-im2col p4m group conv on one flattened image.

    x_ref : [H*W, CG_in]  bf16 raw activation (flattened spatial, CG on lanes)
    s_ref,b_ref : [1, CG_in] f32 BN scale / bias (ignored when fuse_bn=False)
    w_ref : [T, CG_in, NPAD] bf16 per-tap weights
    o_ref : [H*W, NPAD] bf16 full-plane output (invalid rows zero / garbage, cropped in XLA)
    nrm_ref : [H*W, CG_in] bf16 VMEM scratch holding relu(bn(x))
    """
    hw, npad = o_ref.shape

    # 1) BN apply + ReLU + bf16 cast ONCE per activation element (not per tap).
    if fuse_bn:
        for c0 in range(0, hw, chunk):
            csz = min(chunk, hw - c0)
            xb = x_ref[c0:c0 + csz, :].astype(jnp.float32)
            nrm_ref[c0:c0 + csz, :] = jnp.maximum(
                xb * s_ref[...] + b_ref[...], 0.0).astype(nrm_ref.dtype)
    else:
        nrm_ref[...] = x_ref[...]

    # 2) implicit im2col: per M-chunk, 9 row-shifted slices -> 9 accumulating MXU dots.
    for c0 in range(0, m_valid, chunk):
        csz = min(chunk, m_valid - c0)
        s0 = shifts[0] + c0
        acc = jnp.dot(nrm_ref[s0:s0 + csz, :], w_ref[0],
                      preferred_element_type=jnp.float32)
        for t in range(1, len(shifts)):
            st = shifts[t] + c0
            acc = acc + jnp.dot(nrm_ref[st:st + csz, :], w_ref[t],
                                preferred_element_type=jnp.float32)
        o_ref[c0:c0 + csz, :] = acc.astype(o_ref.dtype)

    # 3) zero-fill the discarded tail rows so the output block is fully defined.
    if m_valid < hw:
        o_ref[m_valid:, :] = jnp.zeros((hw - m_valid, npad), o_ref.dtype)


def _matmul_kernel(a_ref, w_ref, o_ref):
    # a: [TM, K] bf16, w: [K, NPAD] bf16 -> o: [TM, NPAD] bf16 (f32 accumulation)
    o_ref[...] = jnp.dot(a_ref[...], w_ref[...],
                         preferred_element_type=jnp.float32).astype(o_ref.dtype)


def _matmul_bn_relu_kernel(a_ref, s_ref, b_ref, w_ref, o_ref):
    # 1x1 group conv fused with BN+ReLU (each element appears in exactly one column).
    a = jnp.maximum(a_ref[...].astype(jnp.float32) * s_ref[...] + b_ref[...], 0.0)
    o_ref[...] = jnp.dot(a.astype(jnp.bfloat16), w_ref[...],
                         preferred_element_type=jnp.float32).astype(o_ref.dtype)


def _bn_stats_kernel(x_ref, o_ref):
    # x: [TR, CG] bf16 -> per-tile partials [1, 2, CG] f32 (row 0 = sum, row 1 = sumsq)
    x = x_ref[...].astype(jnp.float32)
    s1 = jnp.sum(x, axis=0, keepdims=True)
    s2 = jnp.sum(x * x, axis=0, keepdims=True)
    o_ref[0] = jnp.concatenate([s1, s2], axis=0)


def _bn_relu_pool2_kernel(x_ref, s_ref, b_ref, o_ref):
    # x: [H, W/2, 2*CG] bf16 (adjacent x-pixel pairs fused on lanes); s,b: [1, 2*CG] f32
    # o: [H/2, W/2, CG] bf16 = 2x2 average pool of relu(bn(x))
    h2, w2, cg = o_ref.shape
    x = x_ref[...].astype(jnp.float32)
    y = jnp.maximum(x * s_ref[...] + b_ref[...], 0.0)
    yc = y[:, :, :cg] + y[:, :, cg:]              # horizontal pair sum (lane halves)
    yr = yc.reshape(h2, 2, w2, cg)                # split rows (leading dim only)
    o_ref[...] = ((yr[:, 0] + yr[:, 1]) * 0.25).astype(o_ref.dtype)


def _global_pool_kernel(x_ref, o_ref):
    # x: [B, HW, NC] bf16 -> o: [B, NC] f32 (mean over spatial)
    o_ref[...] = jnp.mean(x_ref[...].astype(jnp.float32), axis=1)


# ---------------------------------------------------------------------------
# Pallas wrappers
# ---------------------------------------------------------------------------
def _cparams():
    return pltpu.CompilerParams(dimension_semantics=("parallel",),
                                vmem_limit_bytes=VMEM_LIMIT)


def gconv3x3(h, w9, scale_cg=None, bias_cg=None):
    """h: [B, H, W, CG_in] bf16, w9: [T=9, CG_in, NPAD] bf16.  Returns [B, Ho, Wo, NPAD] bf16."""
    b, hh, ww, cg = h.shape
    taps, _, npad = w9.shape
    k = int(round(math.sqrt(taps)))
    assert k * k == taps
    ho, wo = hh - k + 1, ww - k + 1
    hw = hh * ww
    shifts = tuple(dy * ww + dx for dy in range(k) for dx in range(k))
    m_valid = hw - shifts[-1]

    fuse = scale_cg is not None
    if not fuse:
        scale_cg = jnp.ones((1, cg), jnp.float32)
        bias_cg = jnp.zeros((1, cg), jnp.float32)

    x2 = h.reshape(b, hw, cg).astype(jnp.bfloat16)
    kern = functools.partial(_gconv3x3_kernel, shifts=shifts, m_valid=m_valid,
                             chunk=GCONV_CHUNK_M, fuse_bn=fuse)
    out = pl.pallas_call(
        kern,
        out_shape=jax.ShapeDtypeStruct((b, hw, npad), jnp.bfloat16),
        grid=(b,),
        in_specs=[pl.BlockSpec((None, hw, cg), lambda i: (i, 0, 0)),
                  pl.BlockSpec((1, cg), lambda i: (0, 0)),
                  pl.BlockSpec((1, cg), lambda i: (0, 0)),
                  pl.BlockSpec((taps, cg, npad), lambda i: (0, 0, 0))],
        out_specs=pl.BlockSpec((None, hw, npad), lambda i: (i, 0, 0)),
        scratch_shapes=[pltpu.VMEM((hw, cg), jnp.bfloat16)],
        compiler_params=_cparams(),
    )(x2, scale_cg, bias_cg, w9)
    # crop the valid (non-wrapping) spatial region
    return out.reshape(b, hh, ww, npad)[:, :ho, :wo, :]


def _pick_tile_m(m, k, n):
    # per-layer row-tile from a VMEM budget: dbl-buffered bf16 A + dbl bf16 out + f32 acc
    bytes_per_row = 4 * k + 8 * n
    tm = MATMUL_VMEM_BUDGET // max(bytes_per_row, 1)
    tm = max(256, min(8192, (tm // 256) * 256))
    if m <= tm:
        return m, m
    m_pad = pl.cdiv(m, tm) * tm
    return tm, m_pad


def matmul1x1(a, w_mat, scale=None, bias=None):
    """a: [M, K] bf16, w_mat: [K, NPAD] bf16, optional BN scale/bias [1, K] f32."""
    m, k = a.shape
    npad = w_mat.shape[1]
    tm, m_pad = _pick_tile_m(m, k, npad)
    if m_pad != m:
        a = jnp.pad(a, ((0, m_pad - m), (0, 0)))
    grid = (m_pad // tm,)

    if scale is None:
        out = pl.pallas_call(
            _matmul_kernel,
            out_shape=jax.ShapeDtypeStruct((m_pad, npad), jnp.bfloat16),
            grid=grid,
            in_specs=[pl.BlockSpec((tm, k), lambda i: (i, 0)),
                      pl.BlockSpec((k, npad), lambda i: (0, 0))],
            out_specs=pl.BlockSpec((tm, npad), lambda i: (i, 0)),
            compiler_params=_cparams(),
        )(a, w_mat)
    else:
        out = pl.pallas_call(
            _matmul_bn_relu_kernel,
            out_shape=jax.ShapeDtypeStruct((m_pad, npad), jnp.bfloat16),
            grid=grid,
            in_specs=[pl.BlockSpec((tm, k), lambda i: (i, 0)),
                      pl.BlockSpec((1, k), lambda i: (0, 0)),
                      pl.BlockSpec((1, k), lambda i: (0, 0)),
                      pl.BlockSpec((k, npad), lambda i: (0, 0))],
            out_specs=pl.BlockSpec((tm, npad), lambda i: (i, 0)),
            compiler_params=_cparams(),
        )(a, scale, bias, w_mat)
    return out[:m] if m_pad != m else out


def bn_stats(x2d):
    # x2d: [R, CG] bf16 -> [2, CG] f32 (sum, sumsq); per-tile partials, parallel grid.
    r, cg = x2d.shape
    tr = 2048
    if r <= tr:
        nt, tr = 1, r
    else:
        nt = pl.cdiv(r, tr)
        rp = nt * tr
        if rp != r:
            x2d = jnp.pad(x2d, ((0, rp - r), (0, 0)))     # zero rows do not bias sums
    partials = pl.pallas_call(
        _bn_stats_kernel,
        out_shape=jax.ShapeDtypeStruct((nt, 2, cg), jnp.float32),
        grid=(nt,),
        in_specs=[pl.BlockSpec((tr, cg), lambda i: (i, 0))],
        out_specs=pl.BlockSpec((1, 2, cg), lambda i: (i, 0, 0)),
        compiler_params=_cparams(),
    )(x2d)
    return jnp.sum(partials, axis=0)


def bn_scale_bias(h, eps=BN_EPS):
    # h: [B, H, W, C*8] bf16 -> per channel-group column scale / bias [1, C*8] f32
    b, hh, ww, cg = h.shape
    c = cg // N_H
    sums = bn_stats(h.reshape(b * hh * ww, cg))            # [2, C*8]
    s = sums.reshape(2, c, N_H).sum(axis=-1)               # [2, C] (BN3d: stats over group too)
    count = float(b * hh * ww * N_H)
    mean = s[0] / count
    var = s[1] / count - mean * mean
    scale_c = jax.lax.rsqrt(jnp.maximum(var, 0.0) + eps)
    bias_c = -mean * scale_c
    scale_cg = jnp.repeat(scale_c, N_H)[None, :].astype(jnp.float32)
    bias_cg = jnp.repeat(bias_c, N_H)[None, :].astype(jnp.float32)
    return scale_cg, bias_cg


def bn_relu_pool2(h, scale_cg, bias_cg):
    # h: [B, H, W, CG] bf16 -> 2x2 average pool of relu(bn(h)): [B, H/2, W/2, CG] bf16
    b, hh, ww, cg = h.shape
    h2, w2 = hh // 2, ww // 2
    x2 = h.reshape(b, hh, w2, 2 * cg)                      # fuse x-pixel pairs on lanes (free)
    s2 = jnp.concatenate([scale_cg, scale_cg], axis=-1)
    b2 = jnp.concatenate([bias_cg, bias_cg], axis=-1)
    return pl.pallas_call(
        _bn_relu_pool2_kernel,
        out_shape=jax.ShapeDtypeStruct((b, h2, w2, cg), jnp.bfloat16),
        grid=(b,),
        in_specs=[pl.BlockSpec((None, hh, w2, 2 * cg), lambda i: (i, 0, 0, 0)),
                  pl.BlockSpec((1, 2 * cg), lambda i: (0, 0)),
                  pl.BlockSpec((1, 2 * cg), lambda i: (0, 0))],
        out_specs=pl.BlockSpec((None, h2, w2, cg), lambda i: (i, 0, 0, 0)),
        compiler_params=_cparams(),
    )(x2, s2, b2)


def global_pool(feat):
    # feat: [B, HW, NC] bf16 -> [B, NC] f32
    b, hw, nc = feat.shape
    vmem = pl.BlockSpec(memory_space=pltpu.MemorySpace.VMEM)
    return pl.pallas_call(
        _global_pool_kernel,
        out_shape=jax.ShapeDtypeStruct((b, nc), jnp.float32),
        in_specs=[vmem],
        out_specs=vmem,
    )(feat)


# ---------------------------------------------------------------------------
# p4m (D4) group machinery + weight precomputation (hoisted to init)
# ---------------------------------------------------------------------------
def _d4_compose(e1, e2):
    m1, r1 = e1 // 4, e1 % 4
    m2, r2 = e2 // 4, e2 % 4
    m = (m1 + m2) % 2
    r = ((r1 if m2 == 0 else -r1) + r2) % 4
    return 4 * m + r


def _d4_inverse(e):
    m, r = e // 4, e % 4
    return 4 * m + (r if m == 1 else (-r) % 4)


def _spatial_transform(w, e):
    m, r = e // 4, e % 4
    wg = jnp.rot90(w, r, axes=(-2, -1))
    if m:
        wg = jnp.flip(wg, axis=-1)
    return wg


def _round_up128(n):
    return max(128, ((n + 127) // 128) * 128)


def _pad_last(w, npad):
    n = w.shape[-1]
    if npad > n:
        w = jnp.pad(w, [(0, 0)] * (w.ndim - 1) + [(0, npad - n)])
    return w


def make_lifting_weight(key, cin, cout, k, wscale):
    # ConvRnG: w [Cout, Cin, k, k] -> per-tap matrix [k*k, Cin, NPAD] (N = Cout*8, group fast)
    w = jax.random.normal(key, (cout, cin, k, k), jnp.float32) * (wscale / math.sqrt(cin * k * k))
    cols = []
    for e in range(N_H):
        wg = _spatial_transform(w, e)
        cols.append(jnp.transpose(wg, (2, 3, 1, 0)).reshape(k * k, cin, cout))
    wt = jnp.stack(cols, axis=-1).reshape(k * k, cin, cout * N_H)
    return _pad_last(wt, _round_up128(cout * N_H)).astype(jnp.bfloat16)


def make_gg_weight(key, cin, cout, k, wscale):
    # ConvGG: w [Cout, Cin, 8, k, k] -> per-tap matrix [k*k, Cin*8, NPAD]
    w = jax.random.normal(key, (cout, cin, N_H, k, k), jnp.float32) * (
        wscale / math.sqrt(cin * N_H * k * k))
    cols = []
    for e in range(N_H):
        inv = _d4_inverse(e)
        perm = jnp.array([_d4_compose(inv, hidx) for hidx in range(N_H)])
        wg = w[:, :, perm, :, :]                           # regular-rep permutation
        wg = _spatial_transform(wg, e)
        cols.append(jnp.transpose(wg, (3, 4, 1, 2, 0)).reshape(k * k, cin * N_H, cout))
    wt = jnp.stack(cols, axis=-1).reshape(k * k, cin * N_H, cout * N_H)
    return _pad_last(wt, _round_up128(cout * N_H)).astype(jnp.bfloat16)


def init_params(key, num_blocks=5, n_channels=24):
    wscale = math.sqrt(2.0)
    keys = iter(jax.random.split(key, 2 * num_blocks + 2))
    params = {"c1": make_lifting_weight(next(keys), 3, n_channels, 3, wscale)}
    grow, nc = n_channels, n_channels
    blocks, trans = [], []
    for _ in range(num_blocks - 1):
        blocks.append(make_gg_weight(next(keys), nc, grow, 3, wscale))
        nc += grow
        trans.append(make_gg_weight(next(keys), nc, nc, 1, wscale)[0])   # [Cin*8, NPAD]
    blocks.append(make_gg_weight(next(keys), nc, grow, 3, wscale))
    nc += grow
    params["blocks"] = blocks
    params["trans"] = trans
    params["c_out"] = make_gg_weight(next(keys), nc, 2, 1, wscale)[0]
    return params


# ---------------------------------------------------------------------------
# Network blocks / forward (channels-last [B, H, W, C*8] bf16 internally)
# ---------------------------------------------------------------------------
def dense_block(h, w9, n_out_true):
    scale_cg, bias_cg = bn_scale_bias(h)
    y = gconv3x3(h, w9, scale_cg, bias_cg)[..., :n_out_true]
    return jnp.concatenate([y, h[:, 1:-1, 1:-1, :]], axis=-1)


def transition_block(h, w1):
    # conv1x1(avgpool2(relu(bn(h)))) == avgpool2(conv1x1(relu(bn(h)))): 4x fewer matmul rows
    cg = h.shape[-1]
    scale_cg, bias_cg = bn_scale_bias(h)
    pooled = bn_relu_pool2(h, scale_cg, bias_cg)           # [B, H/2, W/2, CG] bf16
    b, h2, w2, _ = pooled.shape
    y = matmul1x1(pooled.reshape(b * h2 * w2, cg), w1)
    return y.reshape(b, h2, w2, -1)[..., :cg]              # transitions keep channel count


def p4m_densenet_forward(params, x, *, num_blocks, n_channels):
    # x: [B, 3, H, W] (NCHW, PyTorch interface) -> logits [B, 2] f32
    b = x.shape[0]
    grow = n_channels
    h = jnp.transpose(x, (0, 2, 3, 1)).astype(jnp.bfloat16)        # channels-last bf16

    # c1: lifting convolution (no BN/ReLU before it)
    h = gconv3x3(h, params["c1"])[..., : n_channels * N_H]

    for i in range(num_blocks - 1):
        h = dense_block(h, params["blocks"][i], grow * N_H)
        h = transition_block(h, params["trans"][i])
    h = dense_block(h, params["blocks"][-1], grow * N_H)

    # relu(bn_out(.)) fused into the 1x1 c_out group conv
    scale_cg, bias_cg = bn_scale_bias(h)
    bb, hh, ww, cg = h.shape
    y = matmul1x1(h.reshape(bb * hh * ww, cg), params["c_out"], scale_cg, bias_cg)
    feat = y.reshape(b, hh * ww, -1)                       # [B, HW, NPAD]

    pooled = global_pool(feat)                             # spatial mean -> [B, NPAD] f32
    return pooled[:, : 2 * N_H].reshape(b, 2, N_H).mean(axis=-1)   # group mean -> [B, 2]


# ---------------------------------------------------------------------------
if __name__ == "__main__":
    key = jax.random.PRNGKey(0)
    kp, kx = jax.random.split(key)

    num_blocks, n_channels = 2, 8                          # small config for the test
    params = init_params(kp, num_blocks=num_blocks, n_channels=n_channels)
    x = jax.random.normal(kx, (2, 3, 16, 16), jnp.float32)  # NCHW input

    fwd = jax.jit(functools.partial(p4m_densenet_forward,
                                    num_blocks=num_blocks, n_channels=n_channels))
    out = jax.block_until_ready(fwd(params, x))

    assert out.shape == (2, 2) and out.dtype == jnp.float32
    assert bool(jnp.all(jnp.isfinite(out)))
    print("KERNEL_OK")
</pallas_src>

<mosaic_0001>
module attributes {stable_mosaic.version = 11 : i64} {
  func.func @_gconv3x3_kernel(%arg0: i32, %arg1: memref<1x256x3xbf16, #tpu.memory_space<vmem>>, %arg2: memref<1x3xf32, #tpu.memory_space<vmem>>, %arg3: memref<1x3xf32, #tpu.memory_space<vmem>>, %arg4: memref<9x3x128xbf16, #tpu.memory_space<vmem>>, %arg5: memref<1x256x128xbf16, #tpu.memory_space<vmem>>, %arg6: memref<256x3xbf16, #tpu.memory_space<vmem>>) attributes {dimension_semantics = [#tpu.dimension_semantics<parallel>], iteration_bounds = array<i64: 2>, scalar_prefetch = 0 : i64, scratch_operands = 1 : i64, tpu.core_type = #tpu.core_type<tc>, window_params = [{transform_indices = @transform_0, window_bounds = array<i64: 1, 256, 3>}, {pipeline_mode = #tpu.pipeline_mode<synchronous>, transform_indices = @transform_1, window_bounds = array<i64: 1, 3>}, {pipeline_mode = #tpu.pipeline_mode<synchronous>, transform_indices = @transform_2, window_bounds = array<i64: 1, 3>}, {pipeline_mode = #tpu.pipeline_mode<synchronous>, transform_indices = @transform_3, window_bounds = array<i64: 9, 3, 128>}, {transform_indices = @transform_4, window_bounds = array<i64: 1, 256, 128>}]} {
    %c0 = arith.constant 0 : index
    %c0_0 = arith.constant 0 : index
    %c0_1 = arith.constant 0 : index
    %0 = vector.load %arg1[%c0, %c0_0, %c0_1] : memref<1x256x3xbf16, #tpu.memory_space<vmem>>, vector<1x256x3xbf16>
    %1 = vector.shape_cast %0 : vector<1x256x3xbf16> to vector<256x3xbf16>
    %c0_2 = arith.constant 0 : index
    %c0_3 = arith.constant 0 : index
    %2 = vector.load %arg6[%c0_2, %c0_3] : memref<256x3xbf16, #tpu.memory_space<vmem>>, vector<256x3xbf16>
    tpu.vector_store %arg6[%c0_2, %c0_3], %1 {strides = array<i32>} : memref<256x3xbf16, #tpu.memory_space<vmem>>, vector<256x3xbf16>,
    %c0_4 = arith.constant 0 : index
    %c0_5 = arith.constant 0 : index
    %3 = vector.load %arg6[%c0_4, %c0_5] : memref<256x3xbf16, #tpu.memory_space<vmem>>, vector<222x3xbf16>
    %c0_6 = arith.constant 0 : index
    %c0_7 = arith.constant 0 : index
    %c0_8 = arith.constant 0 : index
    %4 = vector.load %arg4[%c0_6, %c0_7, %c0_8] : memref<9x3x128xbf16, #tpu.memory_space<vmem>>, vector<1x3x128xbf16>
    %5 = vector.shape_cast %4 : vector<1x3x128xbf16> to vector<3x128xbf16>
    %cst = arith.constant dense<0.000000e+00> : vector<222x128xf32>
    %6 = tpu.matmul %3, %5, %cst {dimension_numbers = #tpu.dot_dimension_numbers<[1], [0], [0], [1], [0, 0, 1, 1], [], []>} : vector<222x3xbf16>, vector<3x128xbf16>, vector<222x128xf32> -> vector<222x128xf32>
    %c1 = arith.constant 1 : index
    %c0_9 = arith.constant 0 : index
    %7 = vector.load %arg6[%c1, %c0_9] : memref<256x3xbf16, #tpu.memory_space<vmem>>, vector<222x3xbf16>
    %c1_10 = arith.constant 1 : index
    %c0_11 = arith.constant 0 : index
    %c0_12 = arith.constant 0 : index
    %8 = vector.load %arg4[%c1_10, %c0_11, %c0_12] : memref<9x3x128xbf16, #tpu.memory_space<vmem>>, vector<1x3x128xbf16>
    %9 = vector.shape_cast %8 : vector<1x3x128xbf16> to vector<3x128xbf16>
    %cst_13 = arith.constant dense<0.000000e+00> : vector<222x128xf32>
    %10 = tpu.matmul %7, %9, %cst_13 {dimension_numbers = #tpu.dot_dimension_numbers<[1], [0], [0], [1], [0, 0, 1, 1], [], []>} : vector<222x3xbf16>, vector<3x128xbf16>, vector<222x128xf32> -> vector<222x128xf32>
    %11 = arith.addf %6, %10 : vector<222x128xf32>
    %c2 = arith.constant 2 : index
    %c0_14 = arith.constant 0 : index
    %12 = vector.load %arg6[%c2, %c0_14] : memref<256x3xbf16, #tpu.memory_space<vmem>>, vector<222x3xbf16>
    %c2_15 = arith.constant 2 : index
    %c0_16 = arith.constant 0 : index
    %c0_17 = arith.constant 0 : index
    %13 = vector.load %arg4[%c2_15, %c0_16, %c0_17] : memref<9x3x128xbf16, #tpu.memory_space<vmem>>, vector<1x3x128xbf16>
    %14 = vector.shape_cast %13 : vector<1x3x128xbf16> to vector<3x128xbf16>
    %cst_18 = arith.constant dense<0.000000e+00> : vector<222x128xf32>
    %15 = tpu.matmul %12, %14, %cst_18 {dimension_numbers = #tpu.dot_dimension_numbers<[1], [0], [0], [1], [0, 0, 1, 1], [], []>} : vector<222x3xbf16>, vector<3x128xbf16>, vector<222x128xf32> -> vector<222x128xf32>
    %16 = arith.addf %11, %15 : vector<222x128xf32>
    %c16 = arith.constant 16 : index
    %c0_19 = arith.constant 0 : index
    %17 = vector.load %arg6[%c16, %c0_19] : memref<256x3xbf16, #tpu.memory_space<vmem>>, vector<222x3xbf16>
    %c3 = arith.constant 3 : index
    %c0_20 = arith.constant 0 : index
    %c0_21 = arith.constant 0 : index
    %18 = vector.load %arg4[%c3, %c0_20, %c0_21] : memref<9x3x128xbf16, #tpu.memory_space<vmem>>, vector<1x3x128xbf16>
    %19 = vector.shape_cast %18 : vector<1x3x128xbf16> to vector<3x128xbf16>
    %cst_22 = arith.constant dense<0.000000e+00> : vector<222x128xf32>
    %20 = tpu.matmul %17, %19, %cst_22 {dimension_numbers = #tpu.dot_dimension_numbers<[1], [0], [0], [1], [0, 0, 1, 1], [], []>} : vector<222x3xbf16>, vector<3x128xbf16>, vector<222x128xf32> -> vector<222x128xf32>
    %21 = arith.addf %16, %20 : vector<222x128xf32>
    %c17 = arith.constant 17 : index
    %c0_23 = arith.constant 0 : index
    %22 = vector.load %arg6[%c17, %c0_23] : memref<256x3xbf16, #tpu.memory_space<vmem>>, vector<222x3xbf16>
    %c4 = arith.constant 4 : index
    %c0_24 = arith.constant 0 : index
    %c0_25 = arith.constant 0 : index
    %23 = vector.load %arg4[%c4, %c0_24, %c0_25] : memref<9x3x128xbf16, #tpu.memory_space<vmem>>, vector<1x3x128xbf16>
    %24 = vector.shape_cast %23 : vector<1x3x128xbf16> to vector<3x128xbf16>
    %cst_26 = arith.constant dense<0.000000e+00> : vector<222x128xf32>
    %25 = tpu.matmul %22, %24, %cst_26 {dimension_numbers = #tpu.dot_dimension_numbers<[1], [0], [0], [1], [0, 0, 1, 1], [], []>} : vector<222x3xbf16>, vector<3x128xbf16>, vector<222x128xf32> -> vector<222x128xf32>
    %26 = arith.addf %21, %25 : vector<222x128xf32>
    %c18 = arith.constant 18 : index
    %c0_27 = arith.constant 0 : index
    %27 = vector.load %arg6[%c18, %c0_27] : memref<256x3xbf16, #tpu.memory_space<vmem>>, vector<222x3xbf16>
    %c5 = arith.constant 5 : index
    %c0_28 = arith.constant 0 : index
    %c0_29 = arith.constant 0 : index
    %28 = vector.load %arg4[%c5, %c0_28, %c0_29] : memref<9x3x128xbf16, #tpu.memory_space<vmem>>, vector<1x3x128xbf16>
    %29 = vector.shape_cast %28 : vector<1x3x128xbf16> to vector<3x128xbf16>
    %cst_30 = arith.constant dense<0.000000e+00> : vector<222x128xf32>
    %30 = tpu.matmul %27, %29, %cst_30 {dimension_numbers = #tpu.dot_dimension_numbers<[1], [0], [0], [1], [0, 0, 1, 1], [], []>} : vector<222x3xbf16>, vector<3x128xbf16>, vector<222x128xf32> -> vector<222x128xf32>
    %31 = arith.addf %26, %30 : vector<222x128xf32>
    %c32 = arith.constant 32 : index
    %c0_31 = arith.constant 0 : index
    %32 = vector.load %arg6[%c32, %c0_31] : memref<256x3xbf16, #tpu.memory_space<vmem>>, vector<222x3xbf16>
    %c6 = arith.constant 6 : index
    %c0_32 = arith.constant 0 : index
    %c0_33 = arith.constant 0 : index
    %33 = vector.load %arg4[%c6, %c0_32, %c0_33] : memref<9x3x128xbf16, #tpu.memory_space<vmem>>, vector<1x3x128xbf16>
    %34 = vector.shape_cast %33 : vector<1x3x128xbf16> to vector<3x128xbf16>
    %cst_34 = arith.constant dense<0.000000e+00> : vector<222x128xf32>
    %35 = tpu.matmul %32, %34, %cst_34 {dimension_numbers = #tpu.dot_dimension_numbers<[1], [0], [0], [1], [0, 0, 1, 1], [], []>} : vector<222x3xbf16>, vector<3x128xbf16>, vector<222x128xf32> -> vector<222x128xf32>
    %36 = arith.addf %31, %35 : vector<222x128xf32>
    %c33 = arith.constant 33 : index
    %c0_35 = arith.constant 0 : index
    %37 = vector.load %arg6[%c33, %c0_35] : memref<256x3xbf16, #tpu.memory_space<vmem>>, vector<222x3xbf16>
    %c7 = arith.constant 7 : index
    %c0_36 = arith.constant 0 : index
    %c0_37 = arith.constant 0 : index
    %38 = vector.load %arg4[%c7, %c0_36, %c0_37] : memref<9x3x128xbf16, #tpu.memory_space<vmem>>, vector<1x3x128xbf16>
    %39 = vector.shape_cast %38 : vector<1x3x128xbf16> to vector<3x128xbf16>
    %cst_38 = arith.constant dense<0.000000e+00> : vector<222x128xf32>
    %40 = tpu.matmul %37, %39, %cst_38 {dimension_numbers = #tpu.dot_dimension_numbers<[1], [0], [0], [1], [0, 0, 1, 1], [], []>} : vector<222x3xbf16>, vector<3x128xbf16>, vector<222x128xf32> -> vector<222x128xf32>
    %41 = arith.addf %36, %40 : vector<222x128xf32>
    %c34 = arith.constant 34 : index
    %c0_39 = arith.constant 0 : index
    %42 = vector.load %arg6[%c34, %c0_39] : memref<256x3xbf16, #tpu.memory_space<vmem>>, vector<222x3xbf16>
    %c8 = arith.constant 8 : index
    %c0_40 = arith.constant 0 : index
    %c0_41 = arith.constant 0 : index
    %43 = vector.load %arg4[%c8, %c0_40, %c0_41] : memref<9x3x128xbf16, #tpu.memory_space<vmem>>, vector<1x3x128xbf16>
    %44 = vector.shape_cast %43 : vector<1x3x128xbf16> to vector<3x128xbf16>
    %cst_42 = arith.constant dense<0.000000e+00> : vector<222x128xf32>
    %45 = tpu.matmul %42, %44, %cst_42 {dimension_numbers = #tpu.dot_dimension_numbers<[1], [0], [0], [1], [0, 0, 1, 1], [], []>} : vector<222x3xbf16>, vector<3x128xbf16>, vector<222x128xf32> -> vector<222x128xf32>
    %46 = arith.addf %41, %45 : vector<222x128xf32>
    %47 = arith.truncf %46 : vector<222x128xf32> to vector<222x128xbf16>
    %c0_43 = arith.constant 0 : index
    %c0_44 = arith.constant 0 : index
    %c0_45 = arith.constant 0 : index
    %48 = vector.load %arg5[%c0_43, %c0_44, %c0_45] : memref<1x256x128xbf16, #tpu.memory_space<vmem>>, vector<1x222x128xbf16>
    %49 = vector.shape_cast %48 : vector<1x222x128xbf16> to vector<222x128xbf16>
    %50 = vector.shape_cast %47 : vector<222x128xbf16> to vector<1x222x128xbf16>
    tpu.vector_store %arg5[%c0_43, %c0_44, %c0_45], %50 {strides = array<i32>} : memref<1x256x128xbf16, #tpu.memory_space<vmem>>, vector<1x222x128xbf16>,
    %cst_46 = arith.constant 0.000000e+00 : bf16
    %51 = vector.broadcast %cst_46 : bf16 to vector<34x128xbf16>
    %c0_47 = arith.constant 0 : index
    %c222 = arith.constant 222 : index
    %c0_48 = arith.constant 0 : index
    %52 = vector.load %arg5[%c0_47, %c222, %c0_48] : memref<1x256x128xbf16, #tpu.memory_space<vmem>>, vector<1x34x128xbf16>
    %53 = vector.shape_cast %52 : vector<1x34x128xbf16> to vector<34x128xbf16>
    %54 = vector.shape_cast %51 : vector<34x128xbf16> to vector<1x34x128xbf16>
    tpu.vector_store %arg5[%c0_47, %c222, %c0_48], %54 {strides = array<i32>} : memref<1x256x128xbf16, #tpu.memory_space<vmem>>, vector<1x34x128xbf16>,
    return
  }
  func.func @transform_0(%arg0: i32) -> (i32, i32, i32) {
    %c0_i32 = arith.constant 0 : i32
    %c0_i32_0 = arith.constant 0 : i32
    %c0_i32_1 = arith.constant 0 : i32
    return %arg0, %c0_i32, %c0_i32_0 : i32, i32, i32
  }
  func.func @transform_1(%arg0: i32) -> (i32, i32) {
    %c0_i32 = arith.constant 0 : i32
    %c0_i32_0 = arith.constant 0 : i32
    %c0_i32_1 = arith.constant 0 : i32
    return %c0_i32, %c0_i32_0 : i32, i32
  }
  func.func @transform_2(%arg0: i32) -> (i32, i32) {
    %c0_i32 = arith.constant 0 : i32
    %c0_i32_0 = arith.constant 0 : i32
    %c0_i32_1 = arith.constant 0 : i32
    return %c0_i32, %c0_i32_0 : i32, i32
  }
  func.func @transform_3(%arg0: i32) -> (i32, i32, i32) {
    %c0_i32 = arith.constant 0 : i32
    %c0_i32_0 = arith.constant 0 : i32
    %c0_i32_1 = arith.constant 0 : i32
    %c0_i32_2 = arith.constant 0 : i32
    return %c0_i32, %c0_i32_0, %c0_i32_1 : i32, i32, i32
  }
  func.func @transform_4(%arg0: i32) -> (i32, i32, i32) {
    %c0_i32 = arith.constant 0 : i32
    %c0_i32_0 = arith.constant 0 : i32
    %c0_i32_1 = arith.constant 0 : i32
    return %arg0, %c0_i32, %c0_i32_0 : i32, i32, i32
  }
}

module attributes {stable_mosaic.version = 11 : i64} {
  func.func @_bn_stats_kernel(%arg0: i32, %arg1: memref<392x64xbf16, #tpu.memory_space<vmem>>, %arg2: memref<1x2x64xf32, #tpu.memory_space<vmem>>) attributes {dimension_semantics = [#tpu.dimension_semantics<parallel>], iteration_bounds = array<i64: 1>, scalar_prefetch = 0 : i64, scratch_operands = 0 : i64, tpu.core_type = #tpu.core_type<tc>, window_params = [{transform_indices = @transform_0, window_bounds = array<i64: 392, 64>}, {transform_indices = @transform_1, window_bounds = array<i64: 1, 2, 64>}]} {
    %c0 = arith.constant 0 : index
    %c0_0 = arith.constant 0 : index
    %0 = vector.load %arg1[%c0, %c0_0] : memref<392x64xbf16, #tpu.memory_space<vmem>>, vector<392x64xbf16>
    %1 = arith.extf %0 : vector<392x64xbf16> to vector<392x64xf32>
    %cst = arith.constant dense<0.000000e+00> : vector<64xf32>
    %2 = vector.multi_reduction <add>, %1, %cst [0] : vector<392x64xf32> to vector<64xf32>
    %3 = vector.shape_cast %2 : vector<64xf32> to vector<1x64xf32>
    %4 = arith.mulf %1, %1 : vector<392x64xf32>
    %cst_1 = arith.constant dense<0.000000e+00> : vector<64xf32>
    %5 = vector.multi_reduction <add>, %4, %cst_1 [0] : vector<392x64xf32> to vector<64xf32>
    %6 = vector.shape_cast %5 : vector<64xf32> to vector<1x64xf32>
    %7 = tpu.concatenate %3, %6 in 0 : vector<1x64xf32>, vector<1x64xf32> -> vector<2x64xf32>
    %c0_2 = arith.constant 0 : index
    %c0_3 = arith.constant 0 : index
    %c0_4 = arith.constant 0 : index
    %8 = vector.load %arg2[%c0_2, %c0_3, %c0_4] : memref<1x2x64xf32, #tpu.memory_space<vmem>>, vector<1x2x64xf32>
    %9 = vector.shape_cast %8 : vector<1x2x64xf32> to vector<2x64xf32>
    %10 = vector.shape_cast %7 : vector<2x64xf32> to vector<1x2x64xf32>
    tpu.vector_store %arg2[%c0_2, %c0_3, %c0_4], %10 {strides = array<i32>} : memref<1x2x64xf32, #tpu.memory_space<vmem>>, vector<1x2x64xf32>,
    return
  }
  func.func @transform_0(%arg0: i32) -> (i32, i32) {
    %c0_i32 = arith.constant 0 : i32
    %c0_i32_0 = arith.constant 0 : i32
    return %arg0, %c0_i32 : i32, i32
  }
  func.func @transform_1(%arg0: i32) -> (i32, i32, i32) {
    %c0_i32 = arith.constant 0 : i32
    %c0_i32_0 = arith.constant 0 : i32
    %c0_i32_1 = arith.constant 0 : i32
    return %arg0, %c0_i32, %c0_i32_0 : i32, i32, i32
  }
}

module attributes {stable_mosaic.version = 11 : i64} {
  func.func @_gconv3x3_kernel(%arg0: i32, %arg1: memref<1x196x64xbf16, #tpu.memory_space<vmem>>, %arg2: memref<1x64xf32, #tpu.memory_space<vmem>>, %arg3: memref<1x64xf32, #tpu.memory_space<vmem>>, %arg4: memref<9x64x128xbf16, #tpu.memory_space<vmem>>, %arg5: memref<1x196x128xbf16, #tpu.memory_space<vmem>>, %arg6: memref<196x64xbf16, #tpu.memory_space<vmem>>) attributes {dimension_semantics = [#tpu.dimension_semantics<parallel>], iteration_bounds = array<i64: 2>, scalar_prefetch = 0 : i64, scratch_operands = 1 : i64, tpu.core_type = #tpu.core_type<tc>, window_params = [{transform_indices = @transform_0, window_bounds = array<i64: 1, 196, 64>}, {pipeline_mode = #tpu.pipeline_mode<synchronous>, transform_indices = @transform_1, window_bounds = array<i64: 1, 64>}, {pipeline_mode = #tpu.pipeline_mode<synchronous>, transform_indices = @transform_2, window_bounds = array<i64: 1, 64>}, {pipeline_mode = #tpu.pipeline_mode<synchronous>, transform_indices = @transform_3, window_bounds = array<i64: 9, 64, 128>}, {transform_indices = @transform_4, window_bounds = array<i64: 1, 196, 128>}]} {
    %c0 = arith.constant 0 : index
    %c0_0 = arith.constant 0 : index
    %c0_1 = arith.constant 0 : index
    %0 = vector.load %arg1[%c0, %c0_0, %c0_1] : memref<1x196x64xbf16, #tpu.memory_space<vmem>>, vector<1x196x64xbf16>
    %1 = vector.shape_cast %0 : vector<1x196x64xbf16> to vector<196x64xbf16>
    %2 = arith.extf %1 : vector<196x64xbf16> to vector<196x64xf32>
    %c0_2 = arith.constant 0 : index
    %c0_3 = arith.constant 0 : index
    %3 = vector.load %arg2[%c0_2, %c0_3] : memref<1x64xf32, #tpu.memory_space<vmem>>, vector<1x64xf32>
    %4 = vector.broadcast %3 : vector<1x64xf32> to vector<196x64xf32>
    %5 = arith.mulf %2, %4 : vector<196x64xf32>
    %c0_4 = arith.constant 0 : index
    %c0_5 = arith.constant 0 : index
    %6 = vector.load %arg3[%c0_4, %c0_5] : memref<1x64xf32, #tpu.memory_space<vmem>>, vector<1x64xf32>
    %7 = vector.broadcast %6 : vector<1x64xf32> to vector<196x64xf32>
    %8 = arith.addf %5, %7 : vector<196x64xf32>
    %cst = arith.constant 0.000000e+00 : f32
    %9 = vector.broadcast %cst : f32 to vector<196x64xf32>
    %10 = arith.maximumf %8, %9 : vector<196x64xf32>
    %11 = arith.truncf %10 : vector<196x64xf32> to vector<196x64xbf16>
    %c0_6 = arith.constant 0 : index
    %c0_7 = arith.constant 0 : index
    %12 = vector.load %arg6[%c0_6, %c0_7] : memref<196x64xbf16, #tpu.memory_space<vmem>>, vector<196x64xbf16>
    tpu.vector_store %arg6[%c0_6, %c0_7], %11 {strides = array<i32>} : memref<196x64xbf16, #tpu.memory_space<vmem>>, vector<196x64xbf16>,
    %c0_8 = arith.constant 0 : index
    %c0_9 = arith.constant 0 : index
    %13 = vector.load %arg6[%c0_8, %c0_9] : memref<196x64xbf16, #tpu.memory_space<vmem>>, vector<166x64xbf16>
    %c0_10 = arith.constant 0 : index
    %c0_11 = arith.constant 0 : index
    %c0_12 = arith.constant 0 : index
    %14 = vector.load %arg4[%c0_10, %c0_11, %c0_12] : memref<9x64x128xbf16, #tpu.memory_space<vmem>>, vector<1x64x128xbf16>
    %15 = vector.shape_cast %14 : vector<1x64x128xbf16> to vector<64x128xbf16>
    %cst_13 = arith.constant dense<0.000000e+00> : vector<166x128xf32>
    %16 = tpu.matmul %13, %15, %cst_13 {dimension_numbers = #tpu.dot_dimension_numbers<[1], [0], [0], [1], [0, 0, 1, 1], [], []>} : vector<166x64xbf16>, vector<64x128xbf16>, vector<166x128xf32> -> vector<166x128xf32>
    %c1 = arith.constant 1 : index
    %c0_14 = arith.constant 0 : index
    %17 = vector.load %arg6[%c1, %c0_14] : memref<196x64xbf16, #tpu.memory_space<vmem>>, vector<166x64xbf16>
    %c1_15 = arith.constant 1 : index
    %c0_16 = arith.constant 0 : index
    %c0_17 = arith.constant 0 : index
    %18 = vector.load %arg4[%c1_15, %c0_16, %c0_17] : memref<9x64x128xbf16, #tpu.memory_space<vmem>>, vector<1x64x128xbf16>
    %19 = vector.shape_cast %18 : vector<1x64x128xbf16> to vector<64x128xbf16>
    %cst_18 = arith.constant dense<0.000000e+00> : vector<166x128xf32>
    %20 = tpu.matmul %17, %19, %cst_18 {dimension_numbers = #tpu.dot_dimension_numbers<[1], [0], [0], [1], [0, 0, 1, 1], [], []>} : vector<166x64xbf16>, vector<64x128xbf16>, vector<166x128xf32> -> vector<166x128xf32>
    %21 = arith.addf %16, %20 : vector<166x128xf32>
    %c2 = arith.constant 2 : index
    %c0_19 = arith.constant 0 : index
    %22 = vector.load %arg6[%c2, %c0_19] : memref<196x64xbf16, #tpu.memory_space<vmem>>, vector<166x64xbf16>
    %c2_20 = arith.constant 2 : index
    %c0_21 = arith.constant 0 : index
    %c0_22 = arith.constant 0 : index
    %23 = vector.load %arg4[%c2_20, %c0_21, %c0_22] : memref<9x64x128xbf16, #tpu.memory_space<vmem>>, vector<1x64x128xbf16>
    %24 = vector.shape_cast %23 : vector<1x64x128xbf16> to vector<64x128xbf16>
    %cst_23 = arith.constant dense<0.000000e+00> : vector<166x128xf32>
    %25 = tpu.matmul %22, %24, %cst_23 {dimension_numbers = #tpu.dot_dimension_numbers<[1], [0], [0], [1], [0, 0, 1, 1], [], []>} : vector<166x64xbf16>, vector<64x128xbf16>, vector<166x128xf32> -> vector<166x128xf32>
    %26 = arith.addf %21, %25 : vector<166x128xf32>
    %c14 = arith.constant 14 : index
    %c0_24 = arith.constant 0 : index
    %27 = vector.load %arg6[%c14, %c0_24] : memref<196x64xbf16, #tpu.memory_space<vmem>>, vector<166x64xbf16>
    %c3 = arith.constant 3 : index
    %c0_25 = arith.constant 0 : index
    %c0_26 = arith.constant 0 : index
    %28 = vector.load %arg4[%c3, %c0_25, %c0_26] : memref<9x64x128xbf16, #tpu.memory_space<vmem>>, vector<1x64x128xbf16>
    %29 = vector.shape_cast %28 : vector<1x64x128xbf16> to vector<64x128xbf16>
    %cst_27 = arith.constant dense<0.000000e+00> : vector<166x128xf32>
    %30 = tpu.matmul %27, %29, %cst_27 {dimension_numbers = #tpu.dot_dimension_numbers<[1], [0], [0], [1], [0, 0, 1, 1], [], []>} : vector<166x64xbf16>, vector<64x128xbf16>, vector<166x128xf32> -> vector<166x128xf32>
    %31 = arith.addf %26, %30 : vector<166x128xf32>
    %c15 = arith.constant 15 : index
    %c0_28 = arith.constant 0 : index
    %32 = vector.load %arg6[%c15, %c0_28] : memref<196x64xbf16, #tpu.memory_space<vmem>>, vector<166x64xbf16>
    %c4 = arith.constant 4 : index
    %c0_29 = arith.constant 0 : index
    %c0_30 = arith.constant 0 : index
    %33 = vector.load %arg4[%c4, %c0_29, %c0_30] : memref<9x64x128xbf16, #tpu.memory_space<vmem>>, vector<1x64x128xbf16>
    %34 = vector.shape_cast %33 : vector<1x64x128xbf16> to vector<64x128xbf16>
    %cst_31 = arith.constant dense<0.000000e+00> : vector<166x128xf32>
    %35 = tpu.matmul %32, %34, %cst_31 {dimension_numbers = #tpu.dot_dimension_numbers<[1], [0], [0], [1], [0, 0, 1, 1], [], []>} : vector<166x64xbf16>, vector<64x128xbf16>, vector<166x128xf32> -> vector<166x128xf32>
    %36 = arith.addf %31, %35 : vector<166x128xf32>
    %c16 = arith.constant 16 : index
    %c0_32 = arith.constant 0 : index
    %37 = vector.load %arg6[%c16, %c0_32] : memref<196x64xbf16, #tpu.memory_space<vmem>>, vector<166x64xbf16>
    %c5 = arith.constant 5 : index
    %c0_33 = arith.constant 0 : index
    %c0_34 = arith.constant 0 : index
    %38 = vector.load %arg4[%c5, %c0_33, %c0_34] : memref<9x64x128xbf16, #tpu.memory_space<vmem>>, vector<1x64x128xbf16>
    %39 = vector.shape_cast %38 : vector<1x64x128xbf16> to vector<64x128xbf16>
    %cst_35 = arith.constant dense<0.000000e+00> : vector<166x128xf32>
    %40 = tpu.matmul %37, %39, %cst_35 {dimension_numbers = #tpu.dot_dimension_numbers<[1], [0], [0], [1], [0, 0, 1, 1], [], []>} : vector<166x64xbf16>, vector<64x128xbf16>, vector<166x128xf32> -> vector<166x128xf32>
    %41 = arith.addf %36, %40 : vector<166x128xf32>
    %c28 = arith.constant 28 : index
    %c0_36 = arith.constant 0 : index
    %42 = vector.load %arg6[%c28, %c0_36] : memref<196x64xbf16, #tpu.memory_space<vmem>>, vector<166x64xbf16>
    %c6 = arith.constant 6 : index
    %c0_37 = arith.constant 0 : index
    %c0_38 = arith.constant 0 : index
    %43 = vector.load %arg4[%c6, %c0_37, %c0_38] : memref<9x64x128xbf16, #tpu.memory_space<vmem>>, vector<1x64x128xbf16>
    %44 = vector.shape_cast %43 : vector<1x64x128xbf16> to vector<64x128xbf16>
    %cst_39 = arith.constant dense<0.000000e+00> : vector<166x128xf32>
    %45 = tpu.matmul %42, %44, %cst_39 {dimension_numbers = #tpu.dot_dimension_numbers<[1], [0], [0], [1], [0, 0, 1, 1], [], []>} : vector<166x64xbf16>, vector<64x128xbf16>, vector<166x128xf32> -> vector<166x128xf32>
    %46 = arith.addf %41, %45 : vector<166x128xf32>
    %c29 = arith.constant 29 : index
    %c0_40 = arith.constant 0 : index
    %47 = vector.load %arg6[%c29, %c0_40] : memref<196x64xbf16, #tpu.memory_space<vmem>>, vector<166x64xbf16>
    %c7 = arith.constant 7 : index
    %c0_41 = arith.constant 0 : index
    %c0_42 = arith.constant 0 : index
    %48 = vector.load %arg4[%c7, %c0_41, %c0_42] : memref<9x64x128xbf16, #tpu.memory_space<vmem>>, vector<1x64x128xbf16>
    %49 = vector.shape_cast %48 : vector<1x64x128xbf16> to vector<64x128xbf16>
    %cst_43 = arith.constant dense<0.000000e+00> : vector<166x128xf32>
    %50 = tpu.matmul %47, %49, %cst_43 {dimension_numbers = #tpu.dot_dimension_numbers<[1], [0], [0], [1], [0, 0, 1, 1], [], []>} : vector<166x64xbf16>, vector<64x128xbf16>, vector<166x128xf32> -> vector<166x128xf32>
    %51 = arith.addf %46, %50 : vector<166x128xf32>
    %c30 = arith.constant 30 : index
    %c0_44 = arith.constant 0 : index
    %52 = vector.load %arg6[%c30, %c0_44] : memref<196x64xbf16, #tpu.memory_space<vmem>>, vector<166x64xbf16>
    %c8 = arith.constant 8 : index
    %c0_45 = arith.constant 0 : index
    %c0_46 = arith.constant 0 : index
    %53 = vector.load %arg4[%c8, %c0_45, %c0_46] : memref<9x64x128xbf16, #tpu.memory_space<vmem>>, vector<1x64x128xbf16>
    %54 = vector.shape_cast %53 : vector<1x64x128xbf16> to vector<64x128xbf16>
    %cst_47 = arith.constant dense<0.000000e+00> : vector<166x128xf32>
    %55 = tpu.matmul %52, %54, %cst_47 {dimension_numbers = #tpu.dot_dimension_numbers<[1], [0], [0], [1], [0, 0, 1, 1], [], []>} : vector<166x64xbf16>, vector<64x128xbf16>, vector<166x128xf32> -> vector<166x128xf32>
    %56 = arith.addf %51, %55 : vector<166x128xf32>
    %57 = arith.truncf %56 : vector<166x128xf32> to vector<166x128xbf16>
    %c0_48 = arith.constant 0 : index
    %c0_49 = arith.constant 0 : index
    %c0_50 = arith.constant 0 : index
    %58 = vector.load %arg5[%c0_48, %c0_49, %c0_50] : memref<1x196x128xbf16, #tpu.memory_space<vmem>>, vector<1x166x128xbf16>
    %59 = vector.shape_cast %58 : vector<1x166x128xbf16> to vector<166x128xbf16>
    %60 = vector.shape_cast %57 : vector<166x128xbf16> to vector<1x166x128xbf16>
    tpu.vector_store %arg5[%c0_48, %c0_49, %c0_50], %60 {strides = array<i32>} : memref<1x196x128xbf16, #tpu.memory_space<vmem>>, vector<1x166x128xbf16>,
    %cst_51 = arith.constant 0.000000e+00 : bf16
    %61 = vector.broadcast %cst_51 : bf16 to vector<30x128xbf16>
    %c0_52 = arith.constant 0 : index
    %c166 = arith.constant 166 : index
    %c0_53 = arith.constant 0 : index
    %62 = vector.load %arg5[%c0_52, %c166, %c0_53] : memref<1x196x128xbf16, #tpu.memory_space<vmem>>, vector<1x30x128xbf16>
    %63 = vector.shape_cast %62 : vector<1x30x128xbf16> to vector<30x128xbf16>
    %64 = vector.shape_cast %61 : vector<30x128xbf16> to vector<1x30x128xbf16>
    tpu.vector_store %arg5[%c0_52, %c166, %c0_53], %64 {strides = array<i32>} : memref<1x196x128xbf16, #tpu.memory_space<vmem>>, vector<1x30x128xbf16>,
    return
  }
  func.func @transform_0(%arg0: i32) -> (i32, i32, i32) {
    %c0_i32 = arith.constant 0 : i32
    %c0_i32_0 = arith.constant 0 : i32
    %c0_i32_1 = arith.constant 0 : i32
    return %arg0, %c0_i32, %c0_i32_0 : i32, i32, i32
  }
  func.func @transform_1(%arg0: i32) -> (i32, i32) {
    %c0_i32 = arith.constant 0 : i32
    %c0_i32_0 = arith.constant 0 : i32
    %c0_i32_1 = arith.constant 0 : i32
    return %c0_i32, %c0_i32_0 : i32, i32
  }
  func.func @transform_2(%arg0: i32) -> (i32, i32) {
    %c0_i32 = arith.constant 0 : i32
    %c0_i32_0 = arith.constant 0 : i32
    %c0_i32_1 = arith.constant 0 : i32
    return %c0_i32, %c0_i32_0 : i32, i32
  }
  func.func @transform_3(%arg0: i32) -> (i32, i32, i32) {
    %c0_i32 = arith.constant 0 : i32
    %c0_i32_0 = arith.constant 0 : i32
    %c0_i32_1 = arith.constant 0 : i32
    %c0_i32_2 = arith.constant 0 : i32
    return %c0_i32, %c0_i32_0, %c0_i32_1 : i32, i32, i32
  }
  func.func @transform_4(%arg0: i32) -> (i32, i32, i32) {
    %c0_i32 = arith.constant 0 : i32
    %c0_i32_0 = arith.constant 0 : i32
    %c0_i32_1 = arith.constant 0 : i32
    return %arg0, %c0_i32, %c0_i32_0 : i32, i32, i32
  }
}

module attributes {stable_mosaic.version = 11 : i64} {
  func.func @_bn_stats_kernel(%arg0: i32, %arg1: memref<288x128xbf16, #tpu.memory_space<vmem>>, %arg2: memref<1x2x128xf32, #tpu.memory_space<vmem>>) attributes {dimension_semantics = [#tpu.dimension_semantics<parallel>], iteration_bounds = array<i64: 1>, scalar_prefetch = 0 : i64, scratch_operands = 0 : i64, tpu.core_type = #tpu.core_type<tc>, window_params = [{transform_indices = @transform_0, window_bounds = array<i64: 288, 128>}, {transform_indices = @transform_1, window_bounds = array<i64: 1, 2, 128>}]} {
    %c0 = arith.constant 0 : index
    %c0_0 = arith.constant 0 : index
    %0 = vector.load %arg1[%c0, %c0_0] : memref<288x128xbf16, #tpu.memory_space<vmem>>, vector<288x128xbf16>
    %1 = arith.extf %0 : vector<288x128xbf16> to vector<288x128xf32>
    %cst = arith.constant dense<0.000000e+00> : vector<128xf32>
    %2 = vector.multi_reduction <add>, %1, %cst [0] : vector<288x128xf32> to vector<128xf32>
    %3 = vector.shape_cast %2 : vector<128xf32> to vector<1x128xf32>
    %4 = arith.mulf %1, %1 : vector<288x128xf32>
    %cst_1 = arith.constant dense<0.000000e+00> : vector<128xf32>
    %5 = vector.multi_reduction <add>, %4, %cst_1 [0] : vector<288x128xf32> to vector<128xf32>
    %6 = vector.shape_cast %5 : vector<128xf32> to vector<1x128xf32>
    %7 = tpu.concatenate %3, %6 in 0 : vector<1x128xf32>, vector<1x128xf32> -> vector<2x128xf32>
    %c0_2 = arith.constant 0 : index
    %c0_3 = arith.constant 0 : index
    %c0_4 = arith.constant 0 : index
    %8 = vector.load %arg2[%c0_2, %c0_3, %c0_4] : memref<1x2x128xf32, #tpu.memory_space<vmem>>, vector<1x2x128xf32>
    %9 = vector.shape_cast %8 : vector<1x2x128xf32> to vector<2x128xf32>
    %10 = vector.shape_cast %7 : vector<2x128xf32> to vector<1x2x128xf32>
    tpu.vector_store %arg2[%c0_2, %c0_3, %c0_4], %10 {strides = array<i32>} : memref<1x2x128xf32, #tpu.memory_space<vmem>>, vector<1x2x128xf32>,
    return
  }
  func.func @transform_0(%arg0: i32) -> (i32, i32) {
    %c0_i32 = arith.constant 0 : i32
    %c0_i32_0 = arith.constant 0 : i32
    return %arg0, %c0_i32 : i32, i32
  }
  func.func @transform_1(%arg0: i32) -> (i32, i32, i32) {
    %c0_i32 = arith.constant 0 : i32
    %c0_i32_0 = arith.constant 0 : i32
    %c0_i32_1 = arith.constant 0 : i32
    return %arg0, %c0_i32, %c0_i32_0 : i32, i32, i32
  }
}

module attributes {stable_mosaic.version = 11 : i64} {
  func.func @_bn_relu_pool2_kernel(%arg0: i32, %arg1: memref<1x12x6x256xbf16, #tpu.memory_space<vmem>>, %arg2: memref<1x256xf32, #tpu.memory_space<vmem>>, %arg3: memref<1x256xf32, #tpu.memory_space<vmem>>, %arg4: memref<1x6x6x128xbf16, #tpu.memory_space<vmem>>) attributes {dimension_semantics = [#tpu.dimension_semantics<parallel>], iteration_bounds = array<i64: 2>, scalar_prefetch = 0 : i64, scratch_operands = 0 : i64, tpu.core_type = #tpu.core_type<tc>, window_params = [{transform_indices = @transform_0, window_bounds = array<i64: 1, 12, 6, 256>}, {pipeline_mode = #tpu.pipeline_mode<synchronous>, transform_indices = @transform_1, window_bounds = array<i64: 1, 256>}, {pipeline_mode = #tpu.pipeline_mode<synchronous>, transform_indices = @transform_2, window_bounds = array<i64: 1, 256>}, {transform_indices = @transform_3, window_bounds = array<i64: 1, 6, 6, 128>}]} {
    %c0 = arith.constant 0 : index
    %c0_0 = arith.constant 0 : index
    %c0_1 = arith.constant 0 : index
    %c0_2 = arith.constant 0 : index
    %0 = vector.load %arg1[%c0, %c0_0, %c0_1, %c0_2] : memref<1x12x6x256xbf16, #tpu.memory_space<vmem>>, vector<1x12x6x256xbf16>
    %1 = vector.shape_cast %0 : vector<1x12x6x256xbf16> to vector<12x6x256xbf16>
    %2 = arith.extf %1 : vector<12x6x256xbf16> to vector<12x6x256xf32>
    %c0_3 = arith.constant 0 : index
    %c0_4 = arith.constant 0 : index
    %3 = vector.load %arg2[%c0_3, %c0_4] : memref<1x256xf32, #tpu.memory_space<vmem>>, vector<1x256xf32>
    %4 = vector.shape_cast %3 : vector<1x256xf32> to vector<1x1x256xf32>
    %5 = vector.broadcast %4 : vector<1x1x256xf32> to vector<12x6x256xf32>
    %6 = arith.mulf %2, %5 : vector<12x6x256xf32>
    %c0_5 = arith.constant 0 : index
    %c0_6 = arith.constant 0 : index
    %7 = vector.load %arg3[%c0_5, %c0_6] : memref<1x256xf32, #tpu.memory_space<vmem>>, vector<1x256xf32>
    %8 = vector.shape_cast %7 : vector<1x256xf32> to vector<1x1x256xf32>
    %9 = vector.broadcast %8 : vector<1x1x256xf32> to vector<12x6x256xf32>
    %10 = arith.addf %6, %9 : vector<12x6x256xf32>
    %cst = arith.constant 0.000000e+00 : f32
    %11 = vector.broadcast %cst : f32 to vector<12x6x256xf32>
    %12 = arith.maximumf %10, %11 : vector<12x6x256xf32>
    %13 = vector.extract_strided_slice %12 {offsets = [0, 0, 0], sizes = [12, 6, 128], strides = [1, 1, 1]} : vector<12x6x256xf32> to vector<12x6x128xf32>
    %14 = vector.extract_strided_slice %12 {offsets = [0, 0, 128], sizes = [12, 6, 128], strides = [1, 1, 1]} : vector<12x6x256xf32> to vector<12x6x128xf32>
    %15 = arith.addf %13, %14 : vector<12x6x128xf32>
    %16 = vector.shape_cast %15 : vector<12x6x128xf32> to vector<6x2x6x128xf32>
    %17 = vector.extract_strided_slice %16 {offsets = [0, 0, 0, 0], sizes = [6, 1, 6, 128], strides = [1, 1, 1, 1]} : vector<6x2x6x128xf32> to vector<6x1x6x128xf32>
    %18 = vector.shape_cast %17 : vector<6x1x6x128xf32> to vector<6x6x128xf32>
    %19 = vector.extract_strided_slice %16 {offsets = [0, 1, 0, 0], sizes = [6, 1, 6, 128], strides = [1, 1, 1, 1]} : vector<6x2x6x128xf32> to vector<6x1x6x128xf32>
    %20 = vector.shape_cast %19 : vector<6x1x6x128xf32> to vector<6x6x128xf32>
    %21 = arith.addf %18, %20 : vector<6x6x128xf32>
    %cst_7 = arith.constant 2.500000e-01 : f32
    %22 = vector.broadcast %cst_7 : f32 to vector<6x6x128xf32>
    %23 = arith.mulf %21, %22 : vector<6x6x128xf32>
    %24 = arith.truncf %23 : vector<6x6x128xf32> to vector<6x6x128xbf16>
    %c0_8 = arith.constant 0 : index
    %c0_9 = arith.constant 0 : index
    %c0_10 = arith.constant 0 : index
    %c0_11 = arith.constant 0 : index
    %25 = vector.load %arg4[%c0_8, %c0_9, %c0_10, %c0_11] : memref<1x6x6x128xbf16, #tpu.memory_space<vmem>>, vector<1x6x6x128xbf16>
    %26 = vector.shape_cast %25 : vector<1x6x6x128xbf16> to vector<6x6x128xbf16>
    %27 = vector.shape_cast %24 : vector<6x6x128xbf16> to vector<1x6x6x128xbf16>
    tpu.vector_store %arg4[%c0_8, %c0_9, %c0_10, %c0_11], %27 {strides = array<i32>} : memref<1x6x6x128xbf16, #tpu.memory_space<vmem>>, vector<1x6x6x128xbf16>,
    return
  }
  func.func @transform_0(%arg0: i32) -> (i32, i32, i32, i32) {
    %c0_i32 = arith.constant 0 : i32
    %c0_i32_0 = arith.constant 0 : i32
    %c0_i32_1 = arith.constant 0 : i32
    %c0_i32_2 = arith.constant 0 : i32
    return %arg0, %c0_i32, %c0_i32_0, %c0_i32_1 : i32, i32, i32, i32
  }
  func.func @transform_1(%arg0: i32) -> (i32, i32) {
    %c0_i32 = arith.constant 0 : i32
    %c0_i32_0 = arith.constant 0 : i32
    %c0_i32_1 = arith.constant 0 : i32
    return %c0_i32, %c0_i32_0 : i32, i32
  }
  func.func @transform_2(%arg0: i32) -> (i32, i32) {
    %c0_i32 = arith.constant 0 : i32
    %c0_i32_0 = arith.constant 0 : i32
    %c0_i32_1 = arith.constant 0 : i32
    return %c0_i32, %c0_i32_0 : i32, i32
  }
  func.func @transform_3(%arg0: i32) -> (i32, i32, i32, i32) {
    %c0_i32 = arith.constant 0 : i32
    %c0_i32_0 = arith.constant 0 : i32
    %c0_i32_1 = arith.constant 0 : i32
    %c0_i32_2 = arith.constant 0 : i32
    return %arg0, %c0_i32, %c0_i32_0, %c0_i32_1 : i32, i32, i32, i32
  }
}

module attributes {stable_mosaic.version = 11 : i64} {
  func.func @_bn_stats_kernel(%arg0: i32, %arg1: memref<72x128xbf16, #tpu.memory_space<vmem>>, %arg2: memref<1x2x128xf32, #tpu.memory_space<vmem>>) attributes {dimension_semantics = [#tpu.dimension_semantics<parallel>], iteration_bounds = array<i64: 1>, scalar_prefetch = 0 : i64, scratch_operands = 0 : i64, tpu.core_type = #tpu.core_type<tc>, window_params = [{transform_indices = @transform_0, window_bounds = array<i64: 72, 128>}, {transform_indices = @transform_1, window_bounds = array<i64: 1, 2, 128>}]} {
    %c0 = arith.constant 0 : index
    %c0_0 = arith.constant 0 : index
    %0 = vector.load %arg1[%c0, %c0_0] : memref<72x128xbf16, #tpu.memory_space<vmem>>, vector<72x128xbf16>
    %1 = arith.extf %0 : vector<72x128xbf16> to vector<72x128xf32>
    %cst = arith.constant dense<0.000000e+00> : vector<128xf32>
    %2 = vector.multi_reduction <add>, %1, %cst [0] : vector<72x128xf32> to vector<128xf32>
    %3 = vector.shape_cast %2 : vector<128xf32> to vector<1x128xf32>
    %4 = arith.mulf %1, %1 : vector<72x128xf32>
    %cst_1 = arith.constant dense<0.000000e+00> : vector<128xf32>
    %5 = vector.multi_reduction <add>, %4, %cst_1 [0] : vector<72x128xf32> to vector<128xf32>
    %6 = vector.shape_cast %5 : vector<128xf32> to vector<1x128xf32>
    %7 = tpu.concatenate %3, %6 in 0 : vector<1x128xf32>, vector<1x128xf32> -> vector<2x128xf32>
    %c0_2 = arith.constant 0 : index
    %c0_3 = arith.constant 0 : index
    %c0_4 = arith.constant 0 : index
    %8 = vector.load %arg2[%c0_2, %c0_3, %c0_4] : memref<1x2x128xf32, #tpu.memory_space<vmem>>, vector<1x2x128xf32>
    %9 = vector.shape_cast %8 : vector<1x2x128xf32> to vector<2x128xf32>
    %10 = vector.shape_cast %7 : vector<2x128xf32> to vector<1x2x128xf32>
    tpu.vector_store %arg2[%c0_2, %c0_3, %c0_4], %10 {strides = array<i32>} : memref<1x2x128xf32, #tpu.memory_space<vmem>>, vector<1x2x128xf32>,
    return
  }
  func.func @transform_0(%arg0: i32) -> (i32, i32) {
    %c0_i32 = arith.constant 0 : i32
    %c0_i32_0 = arith.constant 0 : i32
    return %arg0, %c0_i32 : i32, i32
  }
  func.func @transform_1(%arg0: i32) -> (i32, i32, i32) {
    %c0_i32 = arith.constant 0 : i32
    %c0_i32_0 = arith.constant 0 : i32
    %c0_i32_1 = arith.constant 0 : i32
    return %arg0, %c0_i32, %c0_i32_0 : i32, i32, i32
  }
}

module attributes {stable_mosaic.version = 11 : i64} {
  func.func @_matmul_kernel(%arg0: i32, %arg1: memref<72x128xbf16, #tpu.memory_space<vmem>>, %arg2: memref<128x128xbf16, #tpu.memory_space<vmem>>, %arg3: memref<72x128xbf16, #tpu.memory_space<vmem>>) attributes {dimension_semantics = [#tpu.dimension_semantics<parallel>], iteration_bounds = array<i64: 1>, scalar_prefetch = 0 : i64, scratch_operands = 0 : i64, tpu.core_type = #tpu.core_type<tc>, window_params = [{transform_indices = @transform_0, window_bounds = array<i64: 72, 128>}, {pipeline_mode = #tpu.pipeline_mode<synchronous>, transform_indices = @transform_1, window_bounds = array<i64: 128, 128>}, {transform_indices = @transform_2, window_bounds = array<i64: 72, 128>}]} {
    %c0 = arith.constant 0 : index
    %c0_0 = arith.constant 0 : index
    %0 = vector.load %arg1[%c0, %c0_0] : memref<72x128xbf16, #tpu.memory_space<vmem>>, vector<72x128xbf16>
    %c0_1 = arith.constant 0 : index
    %c0_2 = arith.constant 0 : index
    %1 = vector.load %arg2[%c0_1, %c0_2] : memref<128x128xbf16, #tpu.memory_space<vmem>>, vector<128x128xbf16>
    %cst = arith.constant dense<0.000000e+00> : vector<72x128xf32>
    %2 = tpu.matmul %0, %1, %cst {dimension_numbers = #tpu.dot_dimension_numbers<[1], [0], [0], [1], [0, 0, 1, 1], [], []>} : vector<72x128xbf16>, vector<128x128xbf16>, vector<72x128xf32> -> vector<72x128xf32>
    %3 = arith.truncf %2 : vector<72x128xf32> to vector<72x128xbf16>
    %c0_3 = arith.constant 0 : index
    %c0_4 = arith.constant 0 : index
    %4 = vector.load %arg3[%c0_3, %c0_4] : memref<72x128xbf16, #tpu.memory_space<vmem>>, vector<72x128xbf16>
    tpu.vector_store %arg3[%c0_3, %c0_4], %3 {strides = array<i32>} : memref<72x128xbf16, #tpu.memory_space<vmem>>, vector<72x128xbf16>,
    return
  }
  func.func @transform_0(%arg0: i32) -> (i32, i32) {
    %c0_i32 = arith.constant 0 : i32
    %c0_i32_0 = arith.constant 0 : i32
    return %arg0, %c0_i32 : i32, i32
  }
  func.func @transform_1(%arg0: i32) -> (i32, i32) {
    %c0_i32 = arith.constant 0 : i32
    %c0_i32_0 = arith.constant 0 : i32
    %c0_i32_1 = arith.constant 0 : i32
    return %c0_i32, %c0_i32_0 : i32, i32
  }
  func.func @transform_2(%arg0: i32) -> (i32, i32) {
    %c0_i32 = arith.constant 0 : i32
    %c0_i32_0 = arith.constant 0 : i32
    return %arg0, %c0_i32 : i32, i32
  }
}

module attributes {stable_mosaic.version = 11 : i64} {
  func.func @_gconv3x3_kernel(%arg0: i32, %arg1: memref<1x36x128xbf16, #tpu.memory_space<vmem>>, %arg2: memref<1x128xf32, #tpu.memory_space<vmem>>, %arg3: memref<1x128xf32, #tpu.memory_space<vmem>>, %arg4: memref<9x128x128xbf16, #tpu.memory_space<vmem>>, %arg5: memref<1x36x128xbf16, #tpu.memory_space<vmem>>, %arg6: memref<36x128xbf16, #tpu.memory_space<vmem>>) attributes {dimension_semantics = [#tpu.dimension_semantics<parallel>], iteration_bounds = array<i64: 2>, scalar_prefetch = 0 : i64, scratch_operands = 1 : i64, tpu.core_type = #tpu.core_type<tc>, window_params = [{transform_indices = @transform_0, window_bounds = array<i64: 1, 36, 128>}, {pipeline_mode = #tpu.pipeline_mode<synchronous>, transform_indices = @transform_1, window_bounds = array<i64: 1, 128>}, {pipeline_mode = #tpu.pipeline_mode<synchronous>, transform_indices = @transform_2, window_bounds = array<i64: 1, 128>}, {pipeline_mode = #tpu.pipeline_mode<synchronous>, transform_indices = @transform_3, window_bounds = array<i64: 9, 128, 128>}, {transform_indices = @transform_4, window_bounds = array<i64: 1, 36, 128>}]} {
    %c0 = arith.constant 0 : index
    %c0_0 = arith.constant 0 : index
    %c0_1 = arith.constant 0 : index
    %0 = vector.load %arg1[%c0, %c0_0, %c0_1] : memref<1x36x128xbf16, #tpu.memory_space<vmem>>, vector<1x36x128xbf16>
    %1 = vector.shape_cast %0 : vector<1x36x128xbf16> to vector<36x128xbf16>
    %2 = arith.extf %1 : vector<36x128xbf16> to vector<36x128xf32>
    %c0_2 = arith.constant 0 : index
    %c0_3 = arith.constant 0 : index
    %3 = vector.load %arg2[%c0_2, %c0_3] : memref<1x128xf32, #tpu.memory_space<vmem>>, vector<1x128xf32>
    %4 = vector.broadcast %3 : vector<1x128xf32> to vector<36x128xf32>
    %5 = arith.mulf %2, %4 : vector<36x128xf32>
    %c0_4 = arith.constant 0 : index
    %c0_5 = arith.constant 0 : index
    %6 = vector.load %arg3[%c0_4, %c0_5] : memref<1x128xf32, #tpu.memory_space<vmem>>, vector<1x128xf32>
    %7 = vector.broadcast %6 : vector<1x128xf32> to vector<36x128xf32>
    %8 = arith.addf %5, %7 : vector<36x128xf32>
    %cst = arith.constant 0.000000e+00 : f32
    %9 = vector.broadcast %cst : f32 to vector<36x128xf32>
    %10 = arith.maximumf %8, %9 : vector<36x128xf32>
    %11 = arith.truncf %10 : vector<36x128xf32> to vector<36x128xbf16>
    %c0_6 = arith.constant 0 : index
    %c0_7 = arith.constant 0 : index
    %12 = vector.load %arg6[%c0_6, %c0_7] : memref<36x128xbf16, #tpu.memory_space<vmem>>, vector<36x128xbf16>
    tpu.vector_store %arg6[%c0_6, %c0_7], %11 {strides = array<i32>} : memref<36x128xbf16, #tpu.memory_space<vmem>>, vector<36x128xbf16>,
    %c0_8 = arith.constant 0 : index
    %c0_9 = arith.constant 0 : index
    %13 = vector.load %arg6[%c0_8, %c0_9] : memref<36x128xbf16, #tpu.memory_space<vmem>>, vector<22x128xbf16>
    %c0_10 = arith.constant 0 : index
    %c0_11 = arith.constant 0 : index
    %c0_12 = arith.constant 0 : index
    %14 = vector.load %arg4[%c0_10, %c0_11, %c0_12] : memref<9x128x128xbf16, #tpu.memory_space<vmem>>, vector<1x128x128xbf16>
    %15 = vector.shape_cast %14 : vector<1x128x128xbf16> to vector<128x128xbf16>
    %cst_13 = arith.constant dense<0.000000e+00> : vector<22x128xf32>
    %16 = tpu.matmul %13, %15, %cst_13 {dimension_numbers = #tpu.dot_dimension_numbers<[1], [0], [0], [1], [0, 0, 1, 1], [], []>} : vector<22x128xbf16>, vector<128x128xbf16>, vector<22x128xf32> -> vector<22x128xf32>
    %c1 = arith.constant 1 : index
    %c0_14 = arith.constant 0 : index
    %17 = vector.load %arg6[%c1, %c0_14] : memref<36x128xbf16, #tpu.memory_space<vmem>>, vector<22x128xbf16>
    %c1_15 = arith.constant 1 : index
    %c0_16 = arith.constant 0 : index
    %c0_17 = arith.constant 0 : index
    %18 = vector.load %arg4[%c1_15, %c0_16, %c0_17] : memref<9x128x128xbf16, #tpu.memory_space<vmem>>, vector<1x128x128xbf16>
    %19 = vector.shape_cast %18 : vector<1x128x128xbf16> to vector<128x128xbf16>
    %cst_18 = arith.constant dense<0.000000e+00> : vector<22x128xf32>
    %20 = tpu.matmul %17, %19, %cst_18 {dimension_numbers = #tpu.dot_dimension_numbers<[1], [0], [0], [1], [0, 0, 1, 1], [], []>} : vector<22x128xbf16>, vector<128x128xbf16>, vector<22x128xf32> -> vector<22x128xf32>
    %21 = arith.addf %16, %20 : vector<22x128xf32>
    %c2 = arith.constant 2 : index
    %c0_19 = arith.constant 0 : index
    %22 = vector.load %arg6[%c2, %c0_19] : memref<36x128xbf16, #tpu.memory_space<vmem>>, vector<22x128xbf16>
    %c2_20 = arith.constant 2 : index
    %c0_21 = arith.constant 0 : index
    %c0_22 = arith.constant 0 : index
    %23 = vector.load %arg4[%c2_20, %c0_21, %c0_22] : memref<9x128x128xbf16, #tpu.memory_space<vmem>>, vector<1x128x128xbf16>
    %24 = vector.shape_cast %23 : vector<1x128x128xbf16> to vector<128x128xbf16>
    %cst_23 = arith.constant dense<0.000000e+00> : vector<22x128xf32>
    %25 = tpu.matmul %22, %24, %cst_23 {dimension_numbers = #tpu.dot_dimension_numbers<[1], [0], [0], [1], [0, 0, 1, 1], [], []>} : vector<22x128xbf16>, vector<128x128xbf16>, vector<22x128xf32> -> vector<22x128xf32>
    %26 = arith.addf %21, %25 : vector<22x128xf32>
    %c6 = arith.constant 6 : index
    %c0_24 = arith.constant 0 : index
    %27 = vector.load %arg6[%c6, %c0_24] : memref<36x128xbf16, #tpu.memory_space<vmem>>, vector<22x128xbf16>
    %c3 = arith.constant 3 : index
    %c0_25 = arith.constant 0 : index
    %c0_26 = arith.constant 0 : index
    %28 = vector.load %arg4[%c3, %c0_25, %c0_26] : memref<9x128x128xbf16, #tpu.memory_space<vmem>>, vector<1x128x128xbf16>
    %29 = vector.shape_cast %28 : vector<1x128x128xbf16> to vector<128x128xbf16>
    %cst_27 = arith.constant dense<0.000000e+00> : vector<22x128xf32>
    %30 = tpu.matmul %27, %29, %cst_27 {dimension_numbers = #tpu.dot_dimension_numbers<[1], [0], [0], [1], [0, 0, 1, 1], [], []>} : vector<22x128xbf16>, vector<128x128xbf16>, vector<22x128xf32> -> vector<22x128xf32>
    %31 = arith.addf %26, %30 : vector<22x128xf32>
    %c7 = arith.constant 7 : index
    %c0_28 = arith.constant 0 : index
    %32 = vector.load %arg6[%c7, %c0_28] : memref<36x128xbf16, #tpu.memory_space<vmem>>, vector<22x128xbf16>
    %c4 = arith.constant 4 : index
    %c0_29 = arith.constant 0 : index
    %c0_30 = arith.constant 0 : index
    %33 = vector.load %arg4[%c4, %c0_29, %c0_30] : memref<9x128x128xbf16, #tpu.memory_space<vmem>>, vector<1x128x128xbf16>
    %34 = vector.shape_cast %33 : vector<1x128x128xbf16> to vector<128x128xbf16>
    %cst_31 = arith.constant dense<0.000000e+00> : vector<22x128xf32>
    %35 = tpu.matmul %32, %34, %cst_31 {dimension_numbers = #tpu.dot_dimension_numbers<[1], [0], [0], [1], [0, 0, 1, 1], [], []>} : vector<22x128xbf16>, vector<128x128xbf16>, vector<22x128xf32> -> vector<22x128xf32>
    %36 = arith.addf %31, %35 : vector<22x128xf32>
    %c8 = arith.constant 8 : index
    %c0_32 = arith.constant 0 : index
    %37 = vector.load %arg6[%c8, %c0_32] : memref<36x128xbf16, #tpu.memory_space<vmem>>, vector<22x128xbf16>
    %c5 = arith.constant 5 : index
    %c0_33 = arith.constant 0 : index
    %c0_34 = arith.constant 0 : index
    %38 = vector.load %arg4[%c5, %c0_33, %c0_34] : memref<9x128x128xbf16, #tpu.memory_space<vmem>>, vector<1x128x128xbf16>
    %39 = vector.shape_cast %38 : vector<1x128x128xbf16> to vector<128x128xbf16>
    %cst_35 = arith.constant dense<0.000000e+00> : vector<22x128xf32>
    %40 = tpu.matmul %37, %39, %cst_35 {dimension_numbers = #tpu.dot_dimension_numbers<[1], [0], [0], [1], [0, 0, 1, 1], [], []>} : vector<22x128xbf16>, vector<128x128xbf16>, vector<22x128xf32> -> vector<22x128xf32>
    %41 = arith.addf %36, %40 : vector<22x128xf32>
    %c12 = arith.constant 12 : index
    %c0_36 = arith.constant 0 : index
    %42 = vector.load %arg6[%c12, %c0_36] : memref<36x128xbf16, #tpu.memory_space<vmem>>, vector<22x128xbf16>
    %c6_37 = arith.constant 6 : index
    %c0_38 = arith.constant 0 : index
    %c0_39 = arith.constant 0 : index
    %43 = vector.load %arg4[%c6_37, %c0_38, %c0_39] : memref<9x128x128xbf16, #tpu.memory_space<vmem>>, vector<1x128x128xbf16>
    %44 = vector.shape_cast %43 : vector<1x128x128xbf16> to vector<128x128xbf16>
    %cst_40 = arith.constant dense<0.000000e+00> : vector<22x128xf32>
    %45 = tpu.matmul %42, %44, %cst_40 {dimension_numbers = #tpu.dot_dimension_numbers<[1], [0], [0], [1], [0, 0, 1, 1], [], []>} : vector<22x128xbf16>, vector<128x128xbf16>, vector<22x128xf32> -> vector<22x128xf32>
    %46 = arith.addf %41, %45 : vector<22x128xf32>
    %c13 = arith.constant 13 : index
    %c0_41 = arith.constant 0 : index
    %47 = vector.load %arg6[%c13, %c0_41] : memref<36x128xbf16, #tpu.memory_space<vmem>>, vector<22x128xbf16>
    %c7_42 = arith.constant 7 : index
    %c0_43 = arith.constant 0 : index
    %c0_44 = arith.constant 0 : index
    %48 = vector.load %arg4[%c7_42, %c0_43, %c0_44] : memref<9x128x128xbf16, #tpu.memory_space<vmem>>, vector<1x128x128xbf16>
    %49 = vector.shape_cast %48 : vector<1x128x128xbf16> to vector<128x128xbf16>
    %cst_45 = arith.constant dense<0.000000e+00> : vector<22x128xf32>
    %50 = tpu.matmul %47, %49, %cst_45 {dimension_numbers = #tpu.dot_dimension_numbers<[1], [0], [0], [1], [0, 0, 1, 1], [], []>} : vector<22x128xbf16>, vector<128x128xbf16>, vector<22x128xf32> -> vector<22x128xf32>
    %51 = arith.addf %46, %50 : vector<22x128xf32>
    %c14 = arith.constant 14 : index
    %c0_46 = arith.constant 0 : index
    %52 = vector.load %arg6[%c14, %c0_46] : memref<36x128xbf16, #tpu.memory_space<vmem>>, vector<22x128xbf16>
    %c8_47 = arith.constant 8 : index
    %c0_48 = arith.constant 0 : index
    %c0_49 = arith.constant 0 : index
    %53 = vector.load %arg4[%c8_47, %c0_48, %c0_49] : memref<9x128x128xbf16, #tpu.memory_space<vmem>>, vector<1x128x128xbf16>
    %54 = vector.shape_cast %53 : vector<1x128x128xbf16> to vector<128x128xbf16>
    %cst_50 = arith.constant dense<0.000000e+00> : vector<22x128xf32>
    %55 = tpu.matmul %52, %54, %cst_50 {dimension_numbers = #tpu.dot_dimension_numbers<[1], [0], [0], [1], [0, 0, 1, 1], [], []>} : vector<22x128xbf16>, vector<128x128xbf16>, vector<22x128xf32> -> vector<22x128xf32>
    %56 = arith.addf %51, %55 : vector<22x128xf32>
    %57 = arith.truncf %56 : vector<22x128xf32> to vector<22x128xbf16>
    %c0_51 = arith.constant 0 : index
    %c0_52 = arith.constant 0 : index
    %c0_53 = arith.constant 0 : index
    %58 = vector.load %arg5[%c0_51, %c0_52, %c0_53] : memref<1x36x128xbf16, #tpu.memory_space<vmem>>, vector<1x22x128xbf16>
    %59 = vector.shape_cast %58 : vector<1x22x128xbf16> to vector<22x128xbf16>
    %60 = vector.shape_cast %57 : vector<22x128xbf16> to vector<1x22x128xbf16>
    tpu.vector_store %arg5[%c0_51, %c0_52, %c0_53], %60 {strides = array<i32>} : memref<1x36x128xbf16, #tpu.memory_space<vmem>>, vector<1x22x128xbf16>,
    %cst_54 = arith.constant 0.000000e+00 : bf16
    %61 = vector.broadcast %cst_54 : bf16 to vector<14x128xbf16>
    %c0_55 = arith.constant 0 : index
    %c22 = arith.constant 22 : index
    %c0_56 = arith.constant 0 : index
    %62 = vector.load %arg5[%c0_55, %c22, %c0_56] : memref<1x36x128xbf16, #tpu.memory_space<vmem>>, vector<1x14x128xbf16>
    %63 = vector.shape_cast %62 : vector<1x14x128xbf16> to vector<14x128xbf16>
    %64 = vector.shape_cast %61 : vector<14x128xbf16> to vector<1x14x128xbf16>
    tpu.vector_store %arg5[%c0_55, %c22, %c0_56], %64 {strides = array<i32>} : memref<1x36x128xbf16, #tpu.memory_space<vmem>>, vector<1x14x128xbf16>,
    return
  }
  func.func @transform_0(%arg0: i32) -> (i32, i32, i32) {
    %c0_i32 = arith.constant 0 : i32
    %c0_i32_0 = arith.constant 0 : i32
    %c0_i32_1 = arith.constant 0 : i32
    return %arg0, %c0_i32, %c0_i32_0 : i32, i32, i32
  }
  func.func @transform_1(%arg0: i32) -> (i32, i32) {
    %c0_i32 = arith.constant 0 : i32
    %c0_i32_0 = arith.constant 0 : i32
    %c0_i32_1 = arith.constant 0 : i32
    return %c0_i32, %c0_i32_0 : i32, i32
  }
  func.func @transform_2(%arg0: i32) -> (i32, i32) {
    %c0_i32 = arith.constant 0 : i32
    %c0_i32_0 = arith.constant 0 : i32
    %c0_i32_1 = arith.constant 0 : i32
    return %c0_i32, %c0_i32_0 : i32, i32
  }
  func.func @transform_3(%arg0: i32) -> (i32, i32, i32) {
    %c0_i32 = arith.constant 0 : i32
    %c0_i32_0 = arith.constant 0 : i32
    %c0_i32_1 = arith.constant 0 : i32
    %c0_i32_2 = arith.constant 0 : i32
    return %c0_i32, %c0_i32_0, %c0_i32_1 : i32, i32, i32
  }
  func.func @transform_4(%arg0: i32) -> (i32, i32, i32) {
    %c0_i32 = arith.constant 0 : i32
    %c0_i32_0 = arith.constant 0 : i32
    %c0_i32_1 = arith.constant 0 : i32
    return %arg0, %c0_i32, %c0_i32_0 : i32, i32, i32
  }
}

module attributes {stable_mosaic.version = 11 : i64} {
  func.func @_matmul_bn_relu_kernel(%arg0: i32, %arg1: memref<32x192xbf16, #tpu.memory_space<vmem>>, %arg2: memref<1x192xf32, #tpu.memory_space<vmem>>, %arg3: memref<1x192xf32, #tpu.memory_space<vmem>>, %arg4: memref<192x128xbf16, #tpu.memory_space<vmem>>, %arg5: memref<32x128xbf16, #tpu.memory_space<vmem>>) attributes {dimension_semantics = [#tpu.dimension_semantics<parallel>], iteration_bounds = array<i64: 1>, scalar_prefetch = 0 : i64, scratch_operands = 0 : i64, tpu.core_type = #tpu.core_type<tc>, window_params = [{transform_indices = @transform_0, window_bounds = array<i64: 32, 192>}, {pipeline_mode = #tpu.pipeline_mode<synchronous>, transform_indices = @transform_1, window_bounds = array<i64: 1, 192>}, {pipeline_mode = #tpu.pipeline_mode<synchronous>, transform_indices = @transform_2, window_bounds = array<i64: 1, 192>}, {pipeline_mode = #tpu.pipeline_mode<synchronous>, transform_indices = @transform_3, window_bounds = array<i64: 192, 128>}, {transform_indices = @transform_4, window_bounds = array<i64: 32, 128>}]} {
    %c0 = arith.constant 0 : index
    %c0_0 = arith.constant 0 : index
    %0 = vector.load %arg1[%c0, %c0_0] : memref<32x192xbf16, #tpu.memory_space<vmem>>, vector<32x192xbf16>
    %1 = arith.extf %0 : vector<32x192xbf16> to vector<32x192xf32>
    %c0_1 = arith.constant 0 : index
    %c0_2 = arith.constant 0 : index
    %2 = vector.load %arg2[%c0_1, %c0_2] : memref<1x192xf32, #tpu.memory_space<vmem>>, vector<1x192xf32>
    %3 = vector.broadcast %2 : vector<1x192xf32> to vector<32x192xf32>
    %4 = arith.mulf %1, %3 : vector<32x192xf32>
    %c0_3 = arith.constant 0 : index
    %c0_4 = arith.constant 0 : index
    %5 = vector.load %arg3[%c0_3, %c0_4] : memref<1x192xf32, #tpu.memory_space<vmem>>, vector<1x192xf32>
    %6 = vector.broadcast %5 : vector<1x192xf32> to vector<32x192xf32>
    %7 = arith.addf %4, %6 : vector<32x192xf32>
    %cst = arith.constant 0.000000e+00 : f32
    %8 = vector.broadcast %cst : f32 to vector<32x192xf32>
    %9 = arith.maximumf %7, %8 : vector<32x192xf32>
    %10 = arith.truncf %9 : vector<32x192xf32> to vector<32x192xbf16>
    %c0_5 = arith.constant 0 : index
    %c0_6 = arith.constant 0 : index
    %11 = vector.load %arg4[%c0_5, %c0_6] : memref<192x128xbf16, #tpu.memory_space<vmem>>, vector<192x128xbf16>
    %cst_7 = arith.constant dense<0.000000e+00> : vector<32x128xf32>
    %12 = tpu.matmul %10, %11, %cst_7 {dimension_numbers = #tpu.dot_dimension_numbers<[1], [0], [0], [1], [0, 0, 1, 1], [], []>} : vector<32x192xbf16>, vector<192x128xbf16>, vector<32x128xf32> -> vector<32x128xf32>
    %13 = arith.truncf %12 : vector<32x128xf32> to vector<32x128xbf16>
    %c0_8 = arith.constant 0 : index
    %c0_9 = arith.constant 0 : index
    %14 = vector.load %arg5[%c0_8, %c0_9] : memref<32x128xbf16, #tpu.memory_space<vmem>>, vector<32x128xbf16>
    tpu.vector_store %arg5[%c0_8, %c0_9], %13 {strides = array<i32>} : memref<32x128xbf16, #tpu.memory_space<vmem>>, vector<32x128xbf16>,
    return
  }
  func.func @transform_0(%arg0: i32) -> (i32, i32) {
    %c0_i32 = arith.constant 0 : i32
    %c0_i32_0 = arith.constant 0 : i32
    return %arg0, %c0_i32 : i32, i32
  }
  func.func @transform_1(%arg0: i32) -> (i32, i32) {
    %c0_i32 = arith.constant 0 : i32
    %c0_i32_0 = arith.constant 0 : i32
    %c0_i32_1 = arith.constant 0 : i32
    return %c0_i32, %c0_i32_0 : i32, i32
  }
  func.func @transform_2(%arg0: i32) -> (i32, i32) {
    %c0_i32 = arith.constant 0 : i32
    %c0_i32_0 = arith.constant 0 : i32
    %c0_i32_1 = arith.constant 0 : i32
    return %c0_i32, %c0_i32_0 : i32, i32
  }
  func.func @transform_3(%arg0: i32) -> (i32, i32) {
    %c0_i32 = arith.constant 0 : i32
    %c0_i32_0 = arith.constant 0 : i32
    %c0_i32_1 = arith.constant 0 : i32
    return %c0_i32, %c0_i32_0 : i32, i32
  }
  func.func @transform_4(%arg0: i32) -> (i32, i32) {
    %c0_i32 = arith.constant 0 : i32
    %c0_i32_0 = arith.constant 0 : i32
    return %arg0, %c0_i32 : i32, i32
  }
}

module attributes {stable_mosaic.version = 11 : i64} {
  func.func @_bn_stats_kernel(%arg0: i32, %arg1: memref<32x192xbf16, #tpu.memory_space<vmem>>, %arg2: memref<1x2x192xf32, #tpu.memory_space<vmem>>) attributes {dimension_semantics = [#tpu.dimension_semantics<parallel>], iteration_bounds = array<i64: 1>, scalar_prefetch = 0 : i64, scratch_operands = 0 : i64, tpu.core_type = #tpu.core_type<tc>, window_params = [{transform_indices = @transform_0, window_bounds = array<i64: 32, 192>}, {transform_indices = @transform_1, window_bounds = array<i64: 1, 2, 192>}]} {
    %c0 = arith.constant 0 : index
    %c0_0 = arith.constant 0 : index
    %0 = vector.load %arg1[%c0, %c0_0] : memref<32x192xbf16, #tpu.memory_space<vmem>>, vector<32x192xbf16>
    %1 = arith.extf %0 : vector<32x192xbf16> to vector<32x192xf32>
    %cst = arith.constant dense<0.000000e+00> : vector<192xf32>
    %2 = vector.multi_reduction <add>, %1, %cst [0] : vector<32x192xf32> to vector<192xf32>
    %3 = vector.shape_cast %2 : vector<192xf32> to vector<1x192xf32>
    %4 = arith.mulf %1, %1 : vector<32x192xf32>
    %cst_1 = arith.constant dense<0.000000e+00> : vector<192xf32>
    %5 = vector.multi_reduction <add>, %4, %cst_1 [0] : vector<32x192xf32> to vector<192xf32>
    %6 = vector.shape_cast %5 : vector<192xf32> to vector<1x192xf32>
    %7 = tpu.concatenate %3, %6 in 0 : vector<1x192xf32>, vector<1x192xf32> -> vector<2x192xf32>
    %c0_2 = arith.constant 0 : index
    %c0_3 = arith.constant 0 : index
    %c0_4 = arith.constant 0 : index
    %8 = vector.load %arg2[%c0_2, %c0_3, %c0_4] : memref<1x2x192xf32, #tpu.memory_space<vmem>>, vector<1x2x192xf32>
    %9 = vector.shape_cast %8 : vector<1x2x192xf32> to vector<2x192xf32>
    %10 = vector.shape_cast %7 : vector<2x192xf32> to vector<1x2x192xf32>
    tpu.vector_store %arg2[%c0_2, %c0_3, %c0_4], %10 {strides = array<i32>} : memref<1x2x192xf32, #tpu.memory_space<vmem>>, vector<1x2x192xf32>,
    return
  }
  func.func @transform_0(%arg0: i32) -> (i32, i32) {
    %c0_i32 = arith.constant 0 : i32
    %c0_i32_0 = arith.constant 0 : i32
    return %arg0, %c0_i32 : i32, i32
  }
  func.func @transform_1(%arg0: i32) -> (i32, i32, i32) {
    %c0_i32 = arith.constant 0 : i32
    %c0_i32_0 = arith.constant 0 : i32
    %c0_i32_1 = arith.constant 0 : i32
    return %arg0, %c0_i32, %c0_i32_0 : i32, i32, i32
  }
}

module attributes {stable_mosaic.version = 11 : i64} {
  func.func @_global_pool_kernel(%arg0: memref<2x16x128xbf16, #tpu.memory_space<vmem>>, %arg1: memref<2x128xf32, #tpu.memory_space<vmem>>) attributes {dimension_semantics = [], scalar_prefetch = 0 : i64, scratch_operands = 0 : i64, tpu.core_type = #tpu.core_type<tc>} {
    %c0 = arith.constant 0 : index
    %c0_0 = arith.constant 0 : index
    %c0_1 = arith.constant 0 : index
    %0 = vector.load %arg0[%c0, %c0_0, %c0_1] : memref<2x16x128xbf16, #tpu.memory_space<vmem>>, vector<2x16x128xbf16>
    %1 = arith.extf %0 : vector<2x16x128xbf16> to vector<2x16x128xf32>
    %cst = arith.constant dense<0.000000e+00> : vector<2x128xf32>
    %2 = vector.multi_reduction <add>, %1, %cst [1] : vector<2x16x128xf32> to vector<2x128xf32>
    %cst_2 = arith.constant 1.600000e+01 : f32
    %3 = vector.broadcast %cst_2 : f32 to vector<2x128xf32>
    %4 = arith.divf %2, %3 : vector<2x128xf32>
    %c0_3 = arith.constant 0 : index
    %c0_4 = arith.constant 0 : index
    %5 = vector.load %arg1[%c0_3, %c0_4] : memref<2x128xf32, #tpu.memory_space<vmem>>, vector<2x128xf32>
    tpu.vector_store %arg1[%c0_3, %c0_4], %4 {strides = array<i32>} : memref<2x128xf32, #tpu.memory_space<vmem>>, vector<2x128xf32>,
    return
  }
}

</mosaic_0001>

<llo_original>
// kernel: p4m_densenet_forward.12
$region0: #{p4m_densenet_forward.12}
  #allocation0 [shape = 'u32[]', space=smem, size = 0x4, offset = 0x4, fixed_abs, tag = 'smem constant byte address 0x4 - core index']
  #allocation1 [shape = 'u32[72,128]{1,0:T(1,128)}', space=vmem, size = 0x9000, scoped, tag = 'internal scratch']
  %s0 = inlined_call_operand.vmem [shape: bf16[392,64], index: 0, kind: input, shape index: {}]
  %s1 = inlined_call_operand.vmem [shape: f32[1,2,64], index: 1, kind: output, shape index: {}]
  %s2 = sld [smem:[#allocation0]]
  $region14: #{p4m_densenet_forward.12} parent=0
    _
  %s4 = ssub.s32 1, %s2
  %s5 = scalar_select 0, %s4, %s2
  // Predicated region
  $region2: #{p4m_densenet_forward.12} parent=0 // pred_check
    _
  $region3: #{p4m_densenet_forward.12} parent=0 // pred_check_branch
    %7 = sbr.rel (0) target = $region5
  $region4: #{p4m_densenet_forward.12} parent=0 // pred_region
    _
  $region5: #{p4m_densenet_forward.12} parent=0 // pred_fallthru
    _
  %v8 = vld [vmem:[%s0] sm:$0xf]
  %v9 = vld [vmem:[%s0 + $0x4] sm:$0xf]
  %v10 = vld [vmem:[%s0 + $0x8] sm:$0xf]
  %v11 = vld [vmem:[%s0 + $0xc] sm:$0xf]
  %v12 = vld [vmem:[%s0 + $0x10] sm:$0xf]
  %v13 = vld [vmem:[%s0 + $0x14] sm:$0xf]
  %v14 = vld [vmem:[%s0 + $0x18] sm:$0xf]
  %v15 = vld [vmem:[%s0 + $0x1c] sm:$0xf]
  %v16 = vld [vmem:[%s0 + $0x20] sm:$0xf]
  %v17 = vld [vmem:[%s0 + $0x24] sm:$0xf]
  %v18 = vld [vmem:[%s0 + $0x28] sm:$0xf]
  %v19 = vld [vmem:[%s0 + $0x2c] sm:$0xf]
  %v20 = vld [vmem:[%s0 + $0x30] sm:$0xf]
  %v21 = vld [vmem:[%s0 + $0x34] sm:$0xf]
  %v22 = vld [vmem:[%s0 + $0x38] sm:$0xf]
  %v23 = vld [vmem:[%s0 + $0x3c] sm:$0xf]
  %v24 = vld [vmem:[%s0 + $0x40] sm:$0xf]
  %v25 = vld [vmem:[%s0 + $0x44] sm:$0xf]
  %v26 = vld [vmem:[%s0 + $0x48] sm:$0xf]
  %v27 = vld [vmem:[%s0 + $0x4c] sm:$0xf]
  %v28 = vld [vmem:[%s0 + $0x50] sm:$0xf]
  %v29 = vld [vmem:[%s0 + $0x54] sm:$0xf]
  %v30 = vld [vmem:[%s0 + $0x58] sm:$0xf]
  %v31 = vld [vmem:[%s0 + $0x5c] sm:$0xf]
  %v32 = vld [vmem:[%s0 + $0x60] sm:$0xf]
  %v33 = vld [vmem:[%s0 + $0x64] sm:$0xf]
  %v34 = vld [vmem:[%s0 + $0x68] sm:$0xf]
  %v35 = vld [vmem:[%s0 + $0x6c] sm:$0xf]
  %v36 = vld [vmem:[%s0 + $0x70] sm:$0xf]
  %v37 = vld [vmem:[%s0 + $0x74] sm:$0xf]
  %v38 = vld [vmem:[%s0 + $0x78] sm:$0xf]
  %v39 = vld [vmem:[%s0 + $0x7c] sm:$0xf]
  %v40 = vld [vmem:[%s0 + $0x80] sm:$0xf]
  %v41 = vld [vmem:[%s0 + $0x84] sm:$0xf]
  %v42 = vld [vmem:[%s0 + $0x88] sm:$0xf]
  %v43 = vld [vmem:[%s0 + $0x8c] sm:$0xf]
  %v44 = vld [vmem:[%s0 + $0x90] sm:$0xf]
  %v45 = vld [vmem:[%s0 + $0x94] sm:$0xf]
  %v46 = vld [vmem:[%s0 + $0x98] sm:$0xf]
  %v47 = vld [vmem:[%s0 + $0x9c] sm:$0xf]
  %v48 = vld [vmem:[%s0 + $0xa0] sm:$0xf]
  %v49 = vld [vmem:[%s0 + $0xa4] sm:$0xf]
  %v50 = vld [vmem:[%s0 + $0xa8] sm:$0xf]
  %v51 = vld [vmem:[%s0 + $0xac] sm:$0xf]
  %v52 = vld [vmem:[%s0 + $0xb0] sm:$0xf]
  %v53 = vld [vmem:[%s0 + $0xb4] sm:$0xf]
  %v54 = vld [vmem:[%s0 + $0xb8] sm:$0xf]
  %v55 = vld [vmem:[%s0 + $0xbc] sm:$0xf]
  %v56 = vld [vmem:[%s0 + $0xc0] sm:$0xf]
  %v57 = vunpack.c.l.bf16 %v8
  %v58 = vunpack.c.l.bf16 %v9
  %v59 = vunpack.c.l.bf16 %v10
  %v60 = vunpack.c.l.bf16 %v11
  %v61 = vunpack.c.l.bf16 %v12
  %v62 = vunpack.c.l.bf16 %v13
  %v63 = vunpack.c.l.bf16 %v14
  %v64 = vunpack.c.l.bf16 %v15
  %v65 = vunpack.c.l.bf16 %v16
  %v66 = vunpack.c.l.bf16 %v17
  %v67 = vunpack.c.l.bf16 %v18
  %v68 = vunpack.c.l.bf16 %v19
  %v69 = vunpack.c.l.bf16 %v20
  %v70 = vunpack.c.l.bf16 %v21
  %v71 = vunpack.c.l.bf16 %v22
  %v72 = vunpack.c.l.bf16 %v23
  %v73 = vunpack.c.l.bf16 %v24
  %v74 = vunpack.c.l.bf16 %v25
  %v75 = vunpack.c.l.bf16 %v26
  %v76 = vunpack.c.l.bf16 %v27
  %v77 = vunpack.c.l.bf16 %v28
  %v78 = vunpack.c.l.bf16 %v29
  %v79 = vunpack.c.l.bf16 %v30
  %v80 = vunpack.c.l.bf16 %v31
  %v81 = vunpack.c.l.bf16 %v32
  %v82 = vunpack.c.l.bf16 %v33
  %v83 = vunpack.c.l.bf16 %v34
  %v84 = vunpack.c.l.bf16 %v35
  %v85 = vunpack.c.l.bf16 %v36
  %v86 = vunpack.c.l.bf16 %v37
  %v87 = vunpack.c.l.bf16 %v38
  %v88 = vunpack.c.l.bf16 %v39
  %v89 = vunpack.c.l.bf16 %v40
  %v90 = vunpack.c.l.bf16 %v41
  %v91 = vunpack.c.l.bf16 %v42
  %v92 = vunpack.c.l.bf16 %v43
  %v93 = vunpack.c.l.bf16 %v44
  %v94 = vunpack.c.l.bf16 %v45
  %v95 = vunpack.c.l.bf16 %v46
  %v96 = vunpack.c.l.bf16 %v47
  %v97 = vunpack.c.l.bf16 %v48
  %v98 = vunpack.c.l.bf16 %v49
  %v99 = vunpack.c.l.bf16 %v50
  %v100 = vunpack.c.l.bf16 %v51
  %v101 = vunpack.c.l.bf16 %v52
  %v102 = vunpack.c.l.bf16 %v53
  %v103 = vunpack.c.l.bf16 %v54
  %v104 = vunpack.c.l.bf16 %v55
  %v105 = vunpack.c.l.bf16 %v56
  %vm106 = vcmask 523264
  %v107 = vsel %vm106, %v57, 0.0
  %v108 = vsel %vm106, %v58, 0.0
  %v109 = vadd.f32 %v107, %v108
  %v110 = vsel %vm106, %v59, 0.0
  %v111 = vadd.f32 %v109, %v110
  %v112 = vsel %vm106, %v60, 0.0
  %v113 = vadd.f32 %v111, %v112
  %v114 = vsel %vm106, %v61, 0.0
  %v115 = vadd.f32 %v113, %v114
  %v116 = vsel %vm106, %v62, 0.0
  %v117 = vadd.f32 %v115, %v116
  %v118 = vsel %vm106, %v63, 0.0
  %v119 = vadd.f32 %v117, %v118
  %v120 = vsel %vm106, %v64, 0.0
  %v121 = vadd.f32 %v119, %v120
  %v122 = vsel %vm106, %v65, 0.0
  %v123 = vadd.f32 %v121, %v122
  %v124 = vsel %vm106, %v66, 0.0
  %v125 = vadd.f32 %v123, %v124
  %v126 = vsel %vm106, %v67, 0.0
  %v127 = vadd.f32 %v125, %v126
  %v128 = vsel %vm106, %v68, 0.0
  %v129 = vadd.f32 %v127, %v128
  %v130 = vsel %vm106, %v69, 0.0
  %v131 = vadd.f32 %v129, %v130
  %v132 = vsel %vm106, %v70, 0.0
  %v133 = vadd.f32 %v131, %v132
  %v134 = vsel %vm106, %v71, 0.0
  %v135 = vadd.f32 %v133, %v134
  %v136 = vsel %vm106, %v72, 0.0
  %v137 = vadd.f32 %v135, %v136
  %v138 = vsel %vm106, %v73, 0.0
  %v139 = vadd.f32 %v137, %v138
  %v140 = vsel %vm106, %v74, 0.0
  %v141 = vadd.f32 %v139, %v140
  %v142 = vsel %vm106, %v75, 0.0
  %v143 = vadd.f32 %v141, %v142
  %v144 = vsel %vm106, %v76, 0.0
  %v145 = vadd.f32 %v143, %v144
  %v146 = vsel %vm106, %v77, 0.0
  %v147 = vadd.f32 %v145, %v146
  %v148 = vsel %vm106, %v78, 0.0
  %v149 = vadd.f32 %v147, %v148
  %v150 = vsel %vm106, %v79, 0.0
  %v151 = vadd.f32 %v149, %v150
  %v152 = vsel %vm106, %v80, 0.0
  %v153 = vadd.f32 %v151, %v152
  %v154 = vsel %vm106, %v81, 0.0
  %v155 = vadd.f32 %v153, %v154
  %v156 = vsel %vm106, %v82, 0.0
  %v157 = vadd.f32 %v155, %v156
  %v158 = vsel %vm106, %v83, 0.0
  %v159 = vadd.f32 %v157, %v158
  %v160 = vsel %vm106, %v84, 0.0
  %v161 = vadd.f32 %v159, %v160
  %v162 = vsel %vm106, %v85, 0.0
  %v163 = vadd.f32 %v161, %v162
  %v164 = vsel %vm106, %v86, 0.0
  %v165 = vadd.f32 %v163, %v164
  %v166 = vsel %vm106, %v87, 0.0
  %v167 = vadd.f32 %v165, %v166
  %v168 = vsel %vm106, %v88, 0.0
  %v169 = vadd.f32 %v167, %v168
  %v170 = vsel %vm106, %v89, 0.0
  %v171 = vadd.f32 %v169, %v170
  %v172 = vsel %vm106, %v90, 0.0
  %v173 = vadd.f32 %v171, %v172
  %v174 = vsel %vm106, %v91, 0.0
  %v175 = vadd.f32 %v173, %v174
  %v176 = vsel %vm106, %v92, 0.0
  %v177 = vadd.f32 %v175, %v176
  %v178 = vsel %vm106, %v93, 0.0
  %v179 = vadd.f32 %v177, %v178
  %v180 = vsel %vm106, %v94, 0.0
  %v181 = vadd.f32 %v179, %v180
  %v182 = vsel %vm106, %v95, 0.0
  %v183 = vadd.f32 %v181, %v182
  %v184 = vsel %vm106, %v96, 0.0
  %v185 = vadd.f32 %v183, %v184
  %v186 = vsel %vm106, %v97, 0.0
  %v187 = vadd.f32 %v185, %v186
  %v188 = vsel %vm106, %v98, 0.0
  %v189 = vadd.f32 %v187, %v188
  %v190 = vsel %vm106, %v99, 0.0
  %v191 = vadd.f32 %v189, %v190
  %v192 = vsel %vm106, %v100, 0.0
  %v193 = vadd.f32 %v191, %v192
  %v194 = vsel %vm106, %v101, 0.0
  %v195 = vadd.f32 %v193, %v194
  %v196 = vsel %vm106, %v102, 0.0
  %v197 = vadd.f32 %v195, %v196
  %v198 = vsel %vm106, %v103, 0.0
  %v199 = vadd.f32 %v197, %v198
  %v200 = vsel %vm106, %v104, 0.0
  %v201 = vadd.f32 %v199, %v200
  %v202 = vsel %vm106, %v105, 0.0
  %v203 = vadd.f32 %v201, %v202
  %v204 = vrot.slane %v203, 4
  %v205 = vadd.f32 %v203, %v204
  %v206 = vrot.slane %v205, 2
  %v207 = vadd.f32 %v205, %v206
  %v208 = vrot.slane %v207, 1
  %v209 = vadd.f32 %v207, %v208
  %v210 = vmul.f32 %v57, %v57
  %v211 = vmul.f32 %v58, %v58
  %v212 = vmul.f32 %v59, %v59
  %v213 = vmul.f32 %v60, %v60
  %v214 = vmul.f32 %v61, %v61
  %v215 = vmul.f32 %v62, %v62
  %v216 = vmul.f32 %v63, %v63
  %v217 = vmul.f32 %v64, %v64
  %v218 = vmul.f32 %v65, %v65
  %v219 = vmul.f32 %v66, %v66
  %v220 = vmul.f32 %v67, %v67
  %v221 = vmul.f32 %v68, %v68
  %v222 = vmul.f32 %v69, %v69
  %v223 = vmul.f32 %v70, %v70
  %v224 = vmul.f32 %v71, %v71
  %v225 = vmul.f32 %v72, %v72
  %v226 = vmul.f32 %v73, %v73
  %v227 = vmul.f32 %v74, %v74
  %v228 = vmul.f32 %v75, %v75
  %v229 = vmul.f32 %v76, %v76
  %v230 = vmul.f32 %v77, %v77
  %v231 = vmul.f32 %v78, %v78
  %v232 = vmul.f32 %v79, %v79
  %v233 = vmul.f32 %v80, %v80
  %v234 = vmul.f32 %v81, %v81
  %v235 = vmul.f32 %v82, %v82
  %v236 = vmul.f32 %v83, %v83
  %v237 = vmul.f32 %v84, %v84
  %v238 = vmul.f32 %v85, %v85
  %v239 = vmul.f32 %v86, %v86
  %v240 = vmul.f32 %v87, %v87
  %v241 = vmul.f32 %v88, %v88
  %v242 = vmul.f32 %v89, %v89
  %v243 = vmul.f32 %v90, %v90
  %v244 = vmul.f32 %v91, %v91
  %v245 = vmul.f32 %v92, %v92
  %v246 = vmul.f32 %v93, %v93
  %v247 = vmul.f32 %v94, %v94
  %v248 = vmul.f32 %v95, %v95
  %v249 = vmul.f32 %v96, %v96
  %v250 = vmul.f32 %v97, %v97
  %v251 = vmul.f32 %v98, %v98
  %v252 = vmul.f32 %v99, %v99
  %v253 = vmul.f32 %v100, %v100
  %v254 = vmul.f32 %v101, %v101
  %v255 = vmul.f32 %v102, %v102
  %v256 = vmul.f32 %v103, %v103
  %v257 = vmul.f32 %v104, %v104
  %v258 = vmul.f32 %v105, %v105
  %v259 = vsel %vm106, %v210, 0.0
  %v260 = vsel %vm106, %v211, 0.0
  %v261 = vadd.f32 %v259, %v260
  %v262 = vsel %vm106, %v212, 0.0
  %v263 = vadd.f32 %v261, %v262
  %v264 = vsel %vm106, %v213, 0.0
  %v265 = vadd.f32 %v263, %v264
  %v266 = vsel %vm106, %v214, 0.0
  %v267 = vadd.f32 %v265, %v266
  %v268 = vsel %vm106, %v215, 0.0
  %v269 = vadd.f32 %v267, %v268
  %v270 = vsel %vm106, %v216, 0.0
  %v271 = vadd.f32 %v269, %v270
  %v272 = vsel %vm106, %v217, 0.0
  %v273 = vadd.f32 %v271, %v272
  %v274 = vsel %vm106, %v218, 0.0
  %v275 = vadd.f32 %v273, %v274
  %v276 = vsel %vm106, %v219, 0.0
  %v277 = vadd.f32 %v275, %v276
  %v278 = vsel %vm106, %v220, 0.0
  %v279 = vadd.f32 %v277, %v278
  %v280 = vsel %vm106, %v221, 0.0
  %v281 = vadd.f32 %v279, %v280
  %v282 = vsel %vm106, %v222, 0.0
  %v283 = vadd.f32 %v281, %v282
  %v284 = vsel %vm106, %v223, 0.0
  %v285 = vadd.f32 %v283, %v284
  %v286 = vsel %vm106, %v224, 0.0
  %v287 = vadd.f32 %v285, %v286
  %v288 = vsel %vm106, %v225, 0.0
  %v289 = vadd.f32 %v287, %v288
  %v290 = vsel %vm106, %v226, 0.0
  %v291 = vadd.f32 %v289, %v290
  %v292 = vsel %vm106, %v227, 0.0
  %v293 = vadd.f32 %v291, %v292
  %v294 = vsel %vm106, %v228, 0.0
  %v295 = vadd.f32 %v293, %v294
  %v296 = vsel %vm106, %v229, 0.0
  %v297 = vadd.f32 %v295, %v296
  %v298 = vsel %vm106, %v230, 0.0
  %v299 = vadd.f32 %v297, %v298
  %v300 = vsel %vm106, %v231, 0.0
  %v301 = vadd.f32 %v299, %v300
  %v302 = vsel %vm106, %v232, 0.0
  %v303 = vadd.f32 %v301, %v302
  %v304 = vsel %vm106, %v233, 0.0
  %v305 = vadd.f32 %v303, %v304
  %v306 = vsel %vm106, %v234, 0.0
  %v307 = vadd.f32 %v305, %v306
  %v308 = vsel %vm106, %v235, 0.0
  %v309 = vadd.f32 %v307, %v308
  %v310 = vsel %vm106, %v236, 0.0
  %v311 = vadd.f32 %v309, %v310
  %v312 = vsel %vm106, %v237, 0.0
  %v313 = vadd.f32 %v311, %v312
  %v314 = vsel %vm106, %v238, 0.0
  %v315 = vadd.f32 %v313, %v314
  %v316 = vsel %vm106, %v239, 0.0
  %v317 = vadd.f32 %v315, %v316
  %v318 = vsel %vm106, %v240, 0.0
  %v319 = vadd.f32 %v317, %v318
  %v320 = vsel %vm106, %v241, 0.0
  %v321 = vadd.f32 %v319, %v320
  %v322 = vsel %vm106, %v242, 0.0
  %v323 = vadd.f32 %v321, %v322
  %v324 = vsel %vm106, %v243, 0.0
  %v325 = vadd.f32 %v323, %v324
  %v326 = vsel %vm106, %v244, 0.0
  %v327 = vadd.f32 %v325, %v326
  %v328 = vsel %vm106, %v245, 0.0
  %v329 = vadd.f32 %v327, %v328
  %v330 = vsel %vm106, %v246, 0.0
  %v331 = vadd.f32 %v329, %v330
  %v332 = vsel %vm106, %v247, 0.0
  %v333 = vadd.f32 %v331, %v332
  %v334 = vsel %vm106, %v248, 0.0
  %v335 = vadd.f32 %v333, %v334
  %v336 = vsel %vm106, %v249, 0.0
  %v337 = vadd.f32 %v335, %v336
  %v338 = vsel %vm106, %v250, 0.0
  %v339 = vadd.f32 %v337, %v338
  %v340 = vsel %vm106, %v251, 0.0
  %v341 = vadd.f32 %v339, %v340
  %v342 = vsel %vm106, %v252, 0.0
  %v343 = vadd.f32 %v341, %v342
  %v344 = vsel %vm106, %v253, 0.0
  %v345 = vadd.f32 %v343, %v344
  %v346 = vsel %vm106, %v254, 0.0
  %v347 = vadd.f32 %v345, %v346
  %v348 = vsel %vm106, %v255, 0.0
  %v349 = vadd.f32 %v347, %v348
  %v350 = vsel %vm106, %v256, 0.0
  %v351 = vadd.f32 %v349, %v350
  %v352 = vsel %vm106, %v257, 0.0
  %v353 = vadd.f32 %v351, %v352
  %v354 = vsel %vm106, %v258, 0.0
  %v355 = vadd.f32 %v353, %v354
  %v356 = vrot.slane %v355, 4
  %v357 = vadd.f32 %v355, %v356
  %v358 = vrot.slane %v357, 2
  %v359 = vadd.f32 %v357, %v358
  %v360 = vrot.slane %v359, 1
  %v361 = vadd.f32 %v359, %v360
  %vm362 = vcmask 1040384
  %v363 = vsel %vm362, %v209, %v361
  %vm364 = vcmask 517120
  %365 = vst.msk [vmem:[%s1] sm:$0x3] %vm364, %v363
  // Predicated region
  $region6: #{p4m_densenet_forward.12} parent=0 // pred_check
    _
  $region7: #{p4m_densenet_forward.12} parent=0 // pred_check_branch
    %367 = sbr.rel (0) target = $region9
  $region8: #{p4m_densenet_forward.12} parent=0 // pred_region
    _
  $region9: #{p4m_densenet_forward.12} parent=0 // pred_fallthru
    _
  // Predicated region
  $region10: #{p4m_densenet_forward.12} parent=0 // pred_check
    _
  $region11: #{p4m_densenet_forward.12} parent=0 // pred_check_branch
    %369 = sbr.rel (0) target = $region13
  $region12: #{p4m_densenet_forward.12} parent=0 // pred_region
    _
  $region13: #{p4m_densenet_forward.12} parent=0 // pred_fallthru
    _

// kernel: p4m_densenet_forward.11
$region0: #{p4m_densenet_forward.11}
  #allocation0 [shape = 'u32[]', space=smem, size = 0x4, offset = 0x4, fixed_abs, tag = 'smem constant byte address 0x4 - core index']
  #allocation1 [shape = 'u32[72,128]{1,0:T(1,128)}', space=vmem, size = 0x9000, scoped, tag = 'internal scratch']
  #allocation2 [shape = 'bf16[256,3]{1,0:T(8,128)(2,1)}', space=vmem, size = 0x10000, scoped, tag = 'scratch operand']
  %s0 = inlined_call_operand.vmem [shape: bf16[2,256,3], index: 0, kind: input, shape index: {}]
  %s1 = inlined_call_operand.vmem [shape: f32[1,3], index: 1, kind: input, shape index: {}]
  %s2 = inlined_call_operand.vmem [shape: f32[1,3], index: 2, kind: input, shape index: {}]
  %s3 = inlined_call_operand.vmem [shape: bf16[9,3,128], index: 3, kind: input, shape index: {}]
  %s4 = inlined_call_operand.vmem [shape: bf16[2,256,128], index: 4, kind: output, shape index: {}]
  %s5 = sld [smem:[#allocation0]]
  $region49: #{p4m_densenet_forward.11} parent=0
    _
  %s7 = ssub.s32 1, %s5
  %s8 = scalar_select 0, %s7, %s5
  loop: start=0, step=1, limit=4
  $region2: #{p4m_densenet_forward.11} parent=0 // loop_pre_header
    _
  $region3: #{p4m_densenet_forward.11} parent=0 // loop_header
    %s10 = sphi 0, %s14
    %p11 = scmp.ge.s32.totalorder %s10, 4
    %s20 = sphi 0, %s22
    %s23 = sphi 0, %s20
    %s24 = sphi 0, %s23
    %s40 = sphi 0, %s24
    %s44 = sphi 0, %s44
    %s46 = sphi 0, %s44
    %s47 = sphi 0, %s46
    %s61 = sphi 0, %s47
    %s65 = sphi 0, %s65
    %s67 = sphi 0, %s65
    %s68 = sphi 0, %s67
    %s82 = sphi 0, %s68
    %s86 = sphi 0, %s86
    %s88 = sphi 0, %s86
    %s89 = sphi 0, %s88
    %s103 = sphi 0, %s89
    %s109 = sphi 0, %s111
    %s112 = sphi 0, %s109
    %s113 = sphi 0, %s112
    %s129 = sphi 0, %s113
  $region4: #{p4m_densenet_forward.11} parent=0 // loop_header_branch
    %13 = sbr.rel (%p11) target = $region8
  $region5: #{p4m_densenet_forward.11} parent=0 // loop_body
    %s15 = ssub.s32 %s10, 1
    %s16 = ssub.s32 %s10, 2
    %s17 = sadd.s32 %s10, 1
    %s18 = ssub.s32 %s10, %s17
    %p19 = scmp.eq.s32.totalorder %s18, 0
    %s21 = sadd.s32 %s20, 1
    %s22 = scalar_select %p19, %s20, %s21
    %p25 = pneg %p19
    %p26 = scmp.eq.s32.totalorder %s10, 1
    %p27 = por %p25, %p26
    %p28 = scmp.ne.s32.totalorder %s20, %s23
    %p29 = scmp.eq.s32.totalorder %s10, 0
    %p30 = por %p28, %p29
    %p31 = scmp.ne.s32.totalorder %s20, %s23
    %p32 = scmp.eq.s32.totalorder %s15, 1
    %p33 = por %p31, %p32
    %p34 = scmp.ne.s32.totalorder %s23, %s24
    %p35 = scmp.eq.s32.totalorder %s15, 0
    %p36 = por %p34, %p35
    %p37 = scmp.ne.s32.totalorder %s23, %s24
    %p38 = scmp.eq.s32.totalorder %s16, 1
    %p39 = por %p37, %p38
    %p41 = scmp.ne.s32.totalorder %s24, %s40
    %p42 = scmp.eq.s32.totalorder %s16, 0
    %p43 = por %p41, %p42
    %s45 = sadd.s32 %s44, 1
    %p48 = scmp.eq.s32.totalorder %s10, 1
    %p49 = scmp.ne.s32.totalorder %s44, %s46
    %p50 = scmp.eq.s32.totalorder %s10, 0
    %p51 = por %p49, %p50
    %p52 = scmp.ne.s32.totalorder %s44, %s46
    %p53 = scmp.eq.s32.totalorder %s15, 1
    %p54 = por %p52, %p53
    %p55 = scmp.ne.s32.totalorder %s46, %s47
    %p56 = scmp.eq.s32.totalorder %s15, 0
    %p57 = por %p55, %p56
    %p58 = scmp.ne.s32.totalorder %s46, %s47
    %p59 = scmp.eq.s32.totalorder %s16, 1
    %p60 = por %p58, %p59
    %p62 = scmp.ne.s32.totalorder %s47, %s61
    %p63 = scmp.eq.s32.totalorder %s16, 0
    %p64 = por %p62, %p63
    %s66 = sadd.s32 %s65, 1
    %p69 = scmp.eq.s32.totalorder %s10, 1
    %p70 = scmp.ne.s32.totalorder %s65, %s67
    %p71 = scmp.eq.s32.totalorder %s10, 0
    %p72 = por %p70, %p71
    %p73 = scmp.ne.s32.totalorder %s65, %s67
    %p74 = scmp.eq.s32.totalorder %s15, 1
    %p75 = por %p73, %p74
    %p76 = scmp.ne.s32.totalorder %s67, %s68
    %p77 = scmp.eq.s32.totalorder %s15, 0
    %p78 = por %p76, %p77
    %p79 = scmp.ne.s32.totalorder %s67, %s68
    %p80 = scmp.eq.s32.totalorder %s16, 1
    %p81 = por %p79, %p80
    %p83 = scmp.ne.s32.totalorder %s68, %s82
    %p84 = scmp.eq.s32.totalorder %s16, 0
    %p85 = por %p83, %p84
    %s87 = sadd.s32 %s86, 1
    %p90 = scmp.eq.s32.totalorder %s10, 1
    %p91 = scmp.ne.s32.totalorder %s86, %s88
    %p92 = scmp.eq.s32.totalorder %s10, 0
    %p93 = por %p91, %p92
    %p94 = scmp.ne.s32.totalorder %s86, %s88
    %p95 = scmp.eq.s32.totalorder %s15, 1
    %p96 = por %p94, %p95
    %p97 = scmp.ne.s32.totalorder %s88, %s89
    %p98 = scmp.eq.s32.totalorder %s15, 0
    %p99 = por %p97, %p98
    %p100 = scmp.ne.s32.totalorder %s88, %s89
    %p101 = scmp.eq.s32.totalorder %s16, 1
    %p102 = por %p100, %p101
    %p104 = scmp.ne.s32.totalorder %s89, %s103
    %p105 = scmp.eq.s32.totalorder %s16, 0
    %p106 = por %p104, %p105
    %s107 = ssub.s32 %s10, %s17
    %p108 = scmp.eq.s32.totalorder %s107, 0
    %s110 = sadd.s32 %s109, 1
    %s111 = scalar_select %p108, %s109, %s110
    %p114 = pneg %p108
    %p115 = scmp.eq.s32.totalorder %s10, 1
    %p116 = por %p114, %p115
    %p117 = scmp.ne.s32.totalorder %s109, %s112
    %p118 = scmp.eq.s32.totalorder %s10, 0
    %p119 = por %p117, %p118
    %p120 = scmp.ne.s32.totalorder %s109, %s112
    %p121 = scmp.eq.s32.totalorder %s15, 1
    %p122 = por %p120, %p121
    %p123 = scmp.ne.s32.totalorder %s112, %s113
    %p124 = scmp.eq.s32.totalorder %s15, 0
    %p125 = por %p123, %p124
    %p126 = scmp.ne.s32.totalorder %s112, %s113
    %p127 = scmp.eq.s32.totalorder %s16, 1
    %p128 = por %p126, %p127
    %p130 = scmp.ne.s32.totalorder %s113, %s129
    %p131 = scmp.eq.s32.totalorder %s16, 0
    %p132 = por %p130, %p131
    %p133 = scmp.le.s32.totalorder 1, %s10
    %p134 = scmp.lt.s32.totalorder %s10, 3
    %p135 = pnand %p133, %p134
    %p136 = pneg %p135
    // Predicated region
    $region9: #{p4m_densenet_forward.11} parent=5 // pred_check
      _
    $region10: #{p4m_densenet_forward.11} parent=5 // pred_check_branch
      %138 = sbr.rel (%p135) target = $region12
    $region11: #{p4m_densenet_forward.11} parent=5 // pred_region
      %s139 = ssub.s32 %s10, 1
      // Predicated region
      $region13: #{p4m_densenet_forward.11} parent=11 // pred_check
        %p140 = pneg %p57
      $region14: #{p4m_densenet_forward.11} parent=11 // pred_check_branch
        %142 = sbr.rel (%p140) target = $region16
      $region15: #{p4m_densenet_forward.11} parent=11 // pred_region
        _
      $region16: #{p4m_densenet_forward.11} parent=11 // pred_fallthru
        _
      // Predicated region
      $region17: #{p4m_densenet_forward.11} parent=11 // pred_check
        %p143 = pneg %p78
      $region18: #{p4m_densenet_forward.11} parent=11 // pred_check_branch
        %145 = sbr.rel (%p143) target = $region20
      $region19: #{p4m_densenet_forward.11} parent=11 // pred_region
        _
      $region20: #{p4m_densenet_forward.11} parent=11 // pred_fallthru
        _
      // Predicated region
      $region21: #{p4m_densenet_forward.11} parent=11 // pred_check
        %p146 = pneg %p99
      $region22: #{p4m_densenet_forward.11} parent=11 // pred_check_branch
        %148 = sbr.rel (%p146) target = $region24
      $region23: #{p4m_densenet_forward.11} parent=11 // pred_region
        _
      $region24: #{p4m_densenet_forward.11} parent=11 // pred_fallthru
        _
    $region12: #{p4m_densenet_forward.11} parent=5 // pred_fallthru
      _
    %p149 = scmp.lt.s32.totalorder %s10, 2
    // Predicated region
    $region25: #{p4m_densenet_forward.11} parent=5 // pred_check
      %p150 = pneg %p149
    $region26: #{p4m_densenet_forward.11} parent=5 // pred_check_branch
      %152 = sbr.rel (%p150) target = $region28
    $region27: #{p4m_densenet_forward.11} parent=5 // pred_region
      // Predicated region
      $region29: #{p4m_densenet_forward.11} parent=27 // pred_check
        %p153 = pneg %p30
      $region30: #{p4m_densenet_forward.11} parent=27 // pred_check_branch
        %155 = sbr.rel (%p153) target = $region32
      $region31: #{p4m_densenet_forward.11} parent=27 // pred_region
        %p156 = scmp.lt.s32.totalorder %s10, 1
        %s157 = scalar_select %p156, %s10, 1
        %s158 = smul.addr %s157, 32
        %s159 = smul.addr %s158, 4
        %s160 = scalar_lea.vmem %s0, %s159
      $region32: #{p4m_densenet_forward.11} parent=27 // pred_fallthru
        _
    $region28: #{p4m_densenet_forward.11} parent=5 // pred_fallthru
      _
    %p161 = scmp.le.s32.totalorder 1, %s10
    %p162 = scmp.lt.s32.totalorder %s10, 3
    %p163 = pnand %p161, %p162
    %p164 = pneg %p163
    // Predicated region
    $region33: #{p4m_densenet_forward.11} parent=5 // pred_check
      _
    $region34: #{p4m_densenet_forward.11} parent=5 // pred_check_branch
      %166 = sbr.rel (%p163) target = $region36
    $region35: #{p4m_densenet_forward.11} parent=5 // pred_region
      %s167 = ssub.s32 %s10, 1
      %p168 = scmp.lt.s32.totalorder %s15, 1
      %s169 = scalar_select %p168, %s15, 1
      %s170 = smul.addr %s169, 32
      %s171 = smul.addr %s170, 4
      %s172 = scalar_lea.vmem %s0, %s171
      %p173 = pneg %p36
      %p174 = pneg %p33
      %p175 = pneg %p57
      %p176 = pneg %p54
      %p177 = pneg %p78
      %p178 = pneg %p75
      %p179 = pneg %p99
      %p180 = pneg %p96
      %p181 = pneg %p125
      %p182 = pneg %p122
      %p183 = scmp.lt.s32.totalorder %s15, 1
      %s184 = scalar_select %p183, %s15, 1
      %s185 = smul.addr %s184, 32
      %s186 = smul.addr %s185, 4
      %s187 = scalar_lea.vmem %s4, %s186
      %p188 = scmp.lt.s32.totalorder %s15, 1
      %s189 = scalar_select %p188, %s15, 1
      %s190 = smul.addr %s189, 32
      %s191 = smul.addr %s190, 4
      %s192 = scalar_lea.vmem %s0, %s191
      %p193 = scmp.lt.s32.totalorder %s15, 1
      %s194 = scalar_select %p193, %s15, 1
      %s195 = smul.addr %s194, 32
      %s196 = smul.addr %s195, 4
      %s197 = scalar_lea.vmem %s4, %s196
      %v199 = vld [vmem:[%s192] sm:$0xf]
      %v200 = vld [vmem:[%s192 + $0x4] sm:$0xf]
      %v201 = vld [vmem:[%s192 + $0x8] sm:$0xf]
      %v202 = vld [vmem:[%s192 + $0xc] sm:$0xf]
      %v203 = vld [vmem:[%s192 + $0x10] sm:$0xf]
      %v204 = vld [vmem:[%s192 + $0x14] sm:$0xf]
      %v205 = vld [vmem:[%s192 + $0x18] sm:$0xf]
      %v206 = vld [vmem:[%s192 + $0x1c] sm:$0xf]
      %v207 = vld [vmem:[%s192 + $0x20] sm:$0xf]
      %v208 = vld [vmem:[%s192 + $0x24] sm:$0xf]
      %v209 = vld [vmem:[%s192 + $0x28] sm:$0xf]
      %v210 = vld [vmem:[%s192 + $0x2c] sm:$0xf]
      %v211 = vld [vmem:[%s192 + $0x30] sm:$0xf]
      %v212 = vld [vmem:[%s192 + $0x34] sm:$0xf]
      %v213 = vld [vmem:[%s192 + $0x38] sm:$0xf]
      %v214 = vld [vmem:[%s192 + $0x3c] sm:$0xf]
      %v215 = vld [vmem:[%s192 + $0x40] sm:$0xf]
      %v216 = vld [vmem:[%s192 + $0x44] sm:$0xf]
      %v217 = vld [vmem:[%s192 + $0x48] sm:$0xf]
      %v218 = vld [vmem:[%s192 + $0x4c] sm:$0xf]
      %v219 = vld [vmem:[%s192 + $0x50] sm:$0xf]
      %v220 = vld [vmem:[%s192 + $0x54] sm:$0xf]
      %v221 = vld [vmem:[%s192 + $0x58] sm:$0xf]
      %v222 = vld [vmem:[%s192 + $0x5c] sm:$0xf]
      %v223 = vld [vmem:[%s192 + $0x60] sm:$0xf]
      %v224 = vld [vmem:[%s192 + $0x64] sm:$0xf]
      %v225 = vld [vmem:[%s192 + $0x68] sm:$0xf]
      %v226 = vld [vmem:[%s192 + $0x6c] sm:$0xf]
      %v227 = vld [vmem:[%s192 + $0x70] sm:$0xf]
      %v228 = vld [vmem:[%s192 + $0x74] sm:$0xf]
      %v229 = vld [vmem:[%s192 + $0x78] sm:$0xf]
      %v230 = vld [vmem:[%s192 + $0x7c] sm:$0xf]
      %vm231 = vcmask 19456
      %232 = vst.msk [vmem:[#allocation2] sm:$0xf] %vm231, %v199
      %233 = vst.msk [vmem:[#allocation2 + $0x4] sm:$0xf] %vm231, %v200
      %234 = vst.msk [vmem:[#allocation2 + $0x8] sm:$0xf] %vm231, %v201
      %235 = vst.msk [vmem:[#allocation2 + $0xc] sm:$0xf] %vm231, %v202
      %236 = vst.msk [vmem:[#allocation2 + $0x10] sm:$0xf] %vm231, %v203
      %237 = vst.msk [vmem:[#allocation2 + $0x14] sm:$0xf] %vm231, %v204
      %238 = vst.msk [vmem:[#allocation2 + $0x18] sm:$0xf] %vm231, %v205
      %239 = vst.msk [vmem:[#allocation2 + $0x1c] sm:$0xf] %vm231, %v206
      %240 = vst.msk [vmem:[#allocation2 + $0x20] sm:$0xf] %vm231, %v207
      %241 = vst.msk [vmem:[#allocation2 + $0x24] sm:$0xf] %vm231, %v208
      %242 = vst.msk [vmem:[#allocation2 + $0x28] sm:$0xf] %vm231, %v209
      %243 = vst.msk [vmem:[#allocation2 + $0x2c] sm:$0xf] %vm231, %v210
      %244 = vst.msk [vmem:[#allocation2 + $0x30] sm:$0xf] %vm231, %v211
      %245 = vst.msk [vmem:[#allocation2 + $0x34] sm:$0xf] %vm231, %v212
      %246 = vst.msk [vmem:[#allocation2 + $0x38] sm:$0xf] %vm231, %v213
      %247 = vst.msk [vmem:[#allocation2 + $0x3c] sm:$0xf] %vm231, %v214
      %248 = vst.msk [vmem:[#allocation2 + $0x40] sm:$0xf] %vm231, %v215
      %249 = vst.msk [vmem:[#allocation2 + $0x44] sm:$0xf] %vm231, %v216
      %250 = vst.msk [vmem:[#allocation2 + $0x48] sm:$0xf] %vm231, %v217
      %251 = vst.msk [vmem:[#allocation2 + $0x4c] sm:$0xf] %vm231, %v218
      %252 = vst.msk [vmem:[#allocation2 + $0x50] sm:$0xf] %vm231, %v219
      %253 = vst.msk [vmem:[#allocation2 + $0x54] sm:$0xf] %vm231, %v220
      %254 = vst.msk [vmem:[#allocation2 + $0x58] sm:$0xf] %vm231, %v221
      %255 = vst.msk [vmem:[#allocation2 + $0x5c] sm:$0xf] %vm231, %v222
      %256 = vst.msk [vmem:[#allocation2 + $0x60] sm:$0xf] %vm231, %v223
      %257 = vst.msk [vmem:[#allocation2 + $0x64] sm:$0xf] %vm231, %v224
      %258 = vst.msk [vmem:[#allocation2 + $0x68] sm:$0xf] %vm231, %v225
      %259 = vst.msk [vmem:[#allocation2 + $0x6c] sm:$0xf] %vm231, %v226
      %260 = vst.msk [vmem:[#allocation2 + $0x70] sm:$0xf] %vm231, %v227
      %261 = vst.msk [vmem:[#allocation2 + $0x74] sm:$0xf] %vm231, %v228
      %262 = vst.msk [vmem:[#allocation2 + $0x78] sm:$0xf] %vm231, %v229
      %263 = vst.msk [vmem:[#allocation2 + $0x7c] sm:$0xf] %vm231, %v230
      %v264 = vld [vmem:[#allocation2] sm:$0xf]
      %v265 = vld [vmem:[#allocation2 + $0x4] sm:$0xf]
      %v266 = vld [vmem:[#allocation2 + $0x8] sm:$0xf]
      %v267 = vld [vmem:[#allocation2 + $0xc] sm:$0xf]
      %v268 = vld [vmem:[#allocation2 + $0x10] sm:$0xf]
      %v269 = vld [vmem:[#allocation2 + $0x14] sm:$0xf]
      %v270 = vld [vmem:[#allocation2 + $0x18] sm:$0xf]
      %v271 = vld [vmem:[#allocation2 + $0x1c] sm:$0xf]
      %v272 = vld [vmem:[#allocation2 + $0x20] sm:$0xf]
      %v273 = vld [vmem:[#allocation2 + $0x24] sm:$0xf]
      %v274 = vld [vmem:[#allocation2 + $0x28] sm:$0xf]
      %v275 = vld [vmem:[#allocation2 + $0x2c] sm:$0xf]
      %v276 = vld [vmem:[#allocation2 + $0x30] sm:$0xf]
      %v277 = vld [vmem:[#allocation2 + $0x34] sm:$0xf]
      %v278 = vld [vmem:[#allocation2 + $0x38] sm:$0xf]
      %v279 = vld [vmem:[#allocation2 + $0x3c] sm:$0xf]
      %v280 = vld [vmem:[#allocation2 + $0x40] sm:$0xf]
      %v281 = vld [vmem:[#allocation2 + $0x44] sm:$0xf]
      %v282 = vld [vmem:[#allocation2 + $0x48] sm:$0xf]
      %v283 = vld [vmem:[#allocation2 + $0x4c] sm:$0xf]
      %v284 = vld [vmem:[#allocation2 + $0x50] sm:$0xf]
      %v285 = vld [vmem:[#allocation2 + $0x54] sm:$0xf]
      %v286 = vld [vmem:[#allocation2 + $0x58] sm:$0xf]
      %v287 = vld [vmem:[#allocation2 + $0x5c] sm:$0xf]
      %v288 = vld [vmem:[#allocation2 + $0x60] sm:$0xf]
      %v289 = vld [vmem:[#allocation2 + $0x64] sm:$0xf]
      %v290 = vld [vmem:[#allocation2 + $0x68] sm:$0xf]
      %v291 = vld [vmem:[#allocation2 + $0x6c] sm:$0x7]
      %v292 = vld [vmem:[%s3] sm:$0x3]
      %v293 = vld [vmem:[#allocation2 + $0x6c] sm:$0xf]
      %s294 = scalar_lea.vmem %s3, 2
      %v295 = vld [vmem:[%s294] sm:$0x3]
      %v324 = vunpack.c.l.b16 %v264
      %v325 = vunpack.c.l.b16 %v265
      %v326 = vunpack.c.l.b16 %v266
      %v327 = vunpack.c.l.b16 %v267
      %v328 = vunpack.c.l.b16 %v268
      %v329 = vunpack.c.l.b16 %v269
      %v330 = vunpack.c.l.b16 %v270
      %v331 = vunpack.c.l.b16 %v271
      %v332 = vunpack.c.l.b16 %v272
      %v333 = vunpack.c.l.b16 %v273
      %v334 = vunpack.c.l.b16 %v274
      %v335 = vunpack.c.l.b16 %v275
      %v336 = vunpack.c.l.b16 %v276
      %v337 = vunpack.c.l.b16 %v277
      %v338 = vunpack.c.l.b16 %v278
      %v339 = vunpack.c.l.b16 %v279
      %v340 = vunpack.c.l.b16 %v280
      %v341 = vunpack.c.l.b16 %v281
      %v342 = vunpack.c.l.b16 %v282
      %v343 = vunpack.c.l.b16 %v283
      %v344 = vunpack.c.l.b16 %v284
      %v345 = vunpack.c.l.b16 %v285
      %v346 = vunpack.c.l.b16 %v286
      %v347 = vunpack.c.l.b16 %v287
      %v348 = vunpack.c.l.b16 %v288
      %v349 = vunpack.c.l.b16 %v289
      %v350 = vunpack.c.l.b16 %v290
      %v351 = vunpack.c.l.b16 %v293
      %v352 = vpack.c.b16 %v325, %v324
      %v353 = vpack.c.b16 %v327, %v326
      %v354 = vpack.c.b16 %v329, %v328
      %v355 = vpack.c.b16 %v331, %v330
      %v356 = vpack.c.b16 %v333, %v332
      %v357 = vpack.c.b16 %v335, %v334
      %v358 = vpack.c.b16 %v337, %v336
      %v359 = vpack.c.b16 %v339, %v338
      %v360 = vpack.c.b16 %v341, %v340
      %v361 = vpack.c.b16 %v343, %v342
      %v362 = vpack.c.b16 %v345, %v344
      %v363 = vpack.c.b16 %v347, %v346
      %v364 = vpack.c.b16 %v349, %v348
      %v365 = vpack.c.b16 %v351, %v350
      %vm366 = vsmask.f32 7424
      %v368 = vshrl.u32 %v352, 16
      %v370 = vshll.u32 %v352, 16
      %v372 = vrot.slane %v370, 1
      %v373 = vor.u32 %v368, %v372
      %v375 = vshll.u32 %v353, 16
      %v377 = vrot.slane %v375, 1
      %v378 = vsel %vm366, %v373, %v377
      %v379 = vshrl.u32 %v353, 16
      %v381 = vor.u32 %v379, %v377
      %v383 = vshll.u32 %v354, 16
      %v385 = vrot.slane %v383, 1
      %v386 = vsel %vm366, %v381, %v385
      %v387 = vshrl.u32 %v354, 16
      %v389 = vor.u32 %v387, %v385
      %v391 = vshll.u32 %v355, 16
      %v393 = vrot.slane %v391, 1
      %v394 = vsel %vm366, %v389, %v393
      %v395 = vshrl.u32 %v355, 16
      %v397 = vor.u32 %v395, %v393
      %v399 = vshll.u32 %v356, 16
      %v401 = vrot.slane %v399, 1
      %v402 = vsel %vm366, %v397, %v401
      %v403 = vshrl.u32 %v356, 16
      %v405 = vor.u32 %v403, %v401
      %v407 = vshll.u32 %v357, 16
      %v409 = vrot.slane %v407, 1
      %v410 = vsel %vm366, %v405, %v409
      %v411 = vshrl.u32 %v357, 16
      %v413 = vor.u32 %v411, %v409
      %v415 = vshll.u32 %v358, 16
      %v417 = vrot.slane %v415, 1
      %v418 = vsel %vm366, %v413, %v417
      %v419 = vshrl.u32 %v358, 16
      %v421 = vor.u32 %v419, %v417
      %v423 = vshll.u32 %v359, 16
      %v425 = vrot.slane %v423, 1
      %v426 = vsel %vm366, %v421, %v425
      %v427 = vshrl.u32 %v359, 16
      %v429 = vor.u32 %v427, %v425
      %v431 = vshll.u32 %v360, 16
      %v433 = vrot.slane %v431, 1
      %v434 = vsel %vm366, %v429, %v433
      %v435 = vshrl.u32 %v360, 16
      %v437 = vor.u32 %v435, %v433
      %v439 = vshll.u32 %v361, 16
      %v441 = vrot.slane %v439, 1
      %v442 = vsel %vm366, %v437, %v441
      %v443 = vshrl.u32 %v361, 16
      %v445 = vor.u32 %v443, %v441
      %v447 = vshll.u32 %v362, 16
      %v449 = vrot.slane %v447, 1
      %v450 = vsel %vm366, %v445, %v449
      %v451 = vshrl.u32 %v362, 16
      %v453 = vor.u32 %v451, %v449
      %v455 = vshll.u32 %v363, 16
      %v457 = vrot.slane %v455, 1
      %v458 = vsel %vm366, %v453, %v457
      %v459 = vshrl.u32 %v363, 16
      %v461 = vor.u32 %v459, %v457
      %v463 = vshll.u32 %v364, 16
      %v465 = vrot.slane %v463, 1
      %v466 = vsel %vm366, %v461, %v465
      %v467 = vshrl.u32 %v364, 16
      %v469 = vor.u32 %v467, %v465
      %v471 = vshll.u32 %v365, 16
      %v473 = vrot.slane %v471, 1
      %v474 = vsel %vm366, %v469, %v473
      %v475 = vshrl.u32 %v365, 16
      %v477 = vor.u32 %v475, %v473
      %vm478 = vcmask 23552
      %v480 = vsel %vm478, %v378, 0
      %v483 = vsel %vm478, %v386, 0
      %v486 = vsel %vm478, %v394, 0
      %v489 = vsel %vm478, %v402, 0
      %v492 = vsel %vm478, %v410, 0
      %v495 = vsel %vm478, %v418, 0
      %v498 = vsel %vm478, %v426, 0
      %v501 = vsel %vm478, %v434, 0
      %v504 = vsel %vm478, %v442, 0
      %v507 = vsel %vm478, %v450, 0
      %v510 = vsel %vm478, %v458, 0
      %v513 = vsel %vm478, %v466, 0
      %v516 = vsel %vm478, %v474, 0
      %v519 = vsel %vm478, %v477, 0
      %vm521 = vcmask 1040384
      %vm522 = vcmask 1041408
      %v523 = vsel %vm521, 4294967295, 65535
      %v524 = vsel %vm522, %v523, 0
      %v526 = vand.u32 %v295, %v524
      %528 = vmatpush.bf16.msra.mxu0 0
      %529 = vmatpush.bf16.msra.mxu0 0
      %530 = vmatpush.bf16.msra.mxu0 0
      %531 = vmatpush.bf16.msra.mxu0 0
      %532 = vmatpush.bf16.msra.mxu0 0
      %533 = vmatpush.bf16.msra.mxu0 0
      %534 = vmatpush.bf16.msra.mxu0 0
      %535 = vmatpush.bf16.msra.mxu0 %v526
      %536 = vmatmul.bf16.gmra.mxu0 %v480
      %v537 = vpop.f32.mrf.mxu0
      %v538 = vadd.f32 0.0, %v537
      %v539 = vpop.f32.mrf.mxu0
      %v540 = vadd.f32 0.0, %v539
      %541 = vmatmul.bf16.gmra.mxu0 %v483
      %v542 = vpop.f32.mrf.mxu0
      %v543 = vadd.f32 0.0, %v542
      %v544 = vpop.f32.mrf.mxu0
      %v545 = vadd.f32 0.0, %v544
      %546 = vmatmul.bf16.gmra.mxu0 %v486
      %v547 = vpop.f32.mrf.mxu0
      %v548 = vadd.f32 0.0, %v547
      %v549 = vpop.f32.mrf.mxu0
      %v550 = vadd.f32 0.0, %v549
      %551 = vmatmul.bf16.gmra.mxu0 %v489
      %v552 = vpop.f32.mrf.mxu0
      %v553 = vadd.f32 0.0, %v552
      %v554 = vpop.f32.mrf.mxu0
      %v555 = vadd.f32 0.0, %v554
      %556 = vmatmul.bf16.gmra.mxu0 %v492
      %v557 = vpop.f32.mrf.mxu0
      %v558 = vadd.f32 0.0, %v557
      %v559 = vpop.f32.mrf.mxu0
      %v560 = vadd.f32 0.0, %v559
      %561 = vmatmul.bf16.gmra.mxu0 %v495
      %v562 = vpop.f32.mrf.mxu0
      %v563 = vadd.f32 0.0, %v562
      %v564 = vpop.f32.mrf.mxu0
      %v565 = vadd.f32 0.0, %v564
      %566 = vmatmul.bf16.gmra.mxu0 %v498
      %v567 = vpop.f32.mrf.mxu0
      %v568 = vadd.f32 0.0, %v567
      %v569 = vpop.f32.mrf.mxu0
      %v570 = vadd.f32 0.0, %v569
      %571 = vmatmul.bf16.gmra.mxu0 %v501
      %v572 = vpop.f32.mrf.mxu0
      %v573 = vadd.f32 0.0, %v572
      %v574 = vpop.f32.mrf.mxu0
      %v575 = vadd.f32 0.0, %v574
      %576 = vmatmul.bf16.gmra.mxu0 %v504
      %v577 = vpop.f32.mrf.mxu0
      %v578 = vadd.f32 0.0, %v577
      %v579 = vpop.f32.mrf.mxu0
      %v580 = vadd.f32 0.0, %v579
      %581 = vmatmul.bf16.gmra.mxu0 %v507
      %v582 = vpop.f32.mrf.mxu0
      %v583 = vadd.f32 0.0, %v582
      %v584 = vpop.f32.mrf.mxu0
      %v585 = vadd.f32 0.0, %v584
      %586 = vmatmul.bf16.gmra.mxu0 %v510
      %v587 = vpop.f32.mrf.mxu0
      %v588 = vadd.f32 0.0, %v587
      %v589 = vpop.f32.mrf.mxu0
      %v590 = vadd.f32 0.0, %v589
      %591 = vmatmul.bf16.gmra.mxu0 %v513
      %v592 = vpop.f32.mrf.mxu0
      %v593 = vadd.f32 0.0, %v592
      %v594 = vpop.f32.mrf.mxu0
      %v595 = vadd.f32 0.0, %v594
      %596 = vmatmul.bf16.gmra.mxu0 %v516
      %v597 = vpop.f32.mrf.mxu0
      %v598 = vadd.f32 0.0, %v597
      %v599 = vpop.f32.mrf.mxu0
      %v600 = vadd.f32 0.0, %v599
      %601 = vmatmul.bf16.gmra.mxu0 %v519
      %v602 = vpop.f32.mrf.mxu0
      %v603 = vadd.f32 0.0, %v602
      %v604 = vpop.f32.mrf.mxu0
      %v605 = vadd.f32 0.0, %v604
      %606 = vdwg.mxu0
      %v608 = vunpack.c.l.b16 %v291
      %v609 = vpack.c.b16 %v608, %v350
      %v610 = vsel %vm478, %v352, 0
      %v612 = vsel %vm478, %v353, 0
      %v614 = vsel %vm478, %v354, 0
      %v616 = vsel %vm478, %v355, 0
      %v618 = vsel %vm478, %v356, 0
      %v620 = vsel %vm478, %v357, 0
      %v622 = vsel %vm478, %v358, 0
      %v624 = vsel %vm478, %v359, 0
      %v626 = vsel %vm478, %v360, 0
      %v628 = vsel %vm478, %v361, 0
      %v630 = vsel %vm478, %v362, 0
      %v632 = vsel %vm478, %v363, 0
      %v634 = vsel %vm478, %v364, 0
      %v637 = vsel %vm478, %v609, 0
      %v640 = vand.u32 %v292, %v524
      %642 = vmatpush.bf16.msra.mxu0 0
      %643 = vmatpush.bf16.msra.mxu0 0
      %644 = vmatpush.bf16.msra.mxu0 0
      %645 = vmatpush.bf16.msra.mxu0 0
      %646 = vmatpush.bf16.msra.mxu0 0
      %647 = vmatpush.bf16.msra.mxu0 0
      %648 = vmatpush.bf16.msra.mxu0 0
      %649 = vmatpush.bf16.msra.mxu0 %v640
      %650 = vmatmul.bf16.gmra.mxu0 %v610
      %v651 = vpop.f32.mrf.mxu0
      %v652 = vadd.f32 %v538, %v651
      %v653 = vpop.f32.mrf.mxu0
      %v654 = vadd.f32 %v540, %v653
      %655 = vmatmul.bf16.gmra.mxu0 %v612
      %v656 = vpop.f32.mrf.mxu0
      %v657 = vadd.f32 %v543, %v656
      %v658 = vpop.f32.mrf.mxu0
      %v659 = vadd.f32 %v545, %v658
      %660 = vmatmul.bf16.gmra.mxu0 %v614
      %v661 = vpop.f32.mrf.mxu0
      %v662 = vadd.f32 %v548, %v661
      %v663 = vpop.f32.mrf.mxu0
      %v664 = vadd.f32 %v550, %v663
      %665 = vmatmul.bf16.gmra.mxu0 %v616
      %v666 = vpop.f32.mrf.mxu0
      %v667 = vadd.f32 %v553, %v666
      %v668 = vpop.f32.mrf.mxu0
      %v669 = vadd.f32 %v555, %v668
      %670 = vmatmul.bf16.gmra.mxu0 %v618
      %v671 = vpop.f32.mrf.mxu0
      %v672 = vadd.f32 %v558, %v671
      %v673 = vpop.f32.mrf.mxu0
      %v674 = vadd.f32 %v560, %v673
      %675 = vmatmul.bf16.gmra.mxu0 %v620
      %v676 = vpop.f32.mrf.mxu0
      %v677 = vadd.f32 %v563, %v676
      %v678 = vpop.f32.mrf.mxu0
      %v679 = vadd.f32 %v565, %v678
      %680 = vmatmul.bf16.gmra.mxu0 %v622
      %v681 = vpop.f32.mrf.mxu0
      %v682 = vadd.f32 %v568, %v681
      %v683 = vpop.f32.mrf.mxu0
      %v684 = vadd.f32 %v570, %v683
      %685 = vmatmul.bf16.gmra.mxu0 %v624
      %v686 = vpop.f32.mrf.mxu0
      %v687 = vadd.f32 %v573, %v686
      %v688 = vpop.f32.mrf.mxu0
      %v689 = vadd.f32 %v575, %v688
      %690 = vmatmul.bf16.gmra.mxu0 %v626
      %v691 = vpop.f32.mrf.mxu0
      %v692 = vadd.f32 %v578, %v691
      %v693 = vpop.f32.mrf.mxu0
      %v694 = vadd.f32 %v580, %v693
      %695 = vmatmul.bf16.gmra.mxu0 %v628
      %v696 = vpop.f32.mrf.mxu0
      %v697 = vadd.f32 %v583, %v696
      %v698 = vpop.f32.mrf.mxu0
      %v699 = vadd.f32 %v585, %v698
      %700 = vmatmul.bf16.gmra.mxu0 %v630
      %v701 = vpop.f32.mrf.mxu0
      %v702 = vadd.f32 %v588, %v701
      %v703 = vpop.f32.mrf.mxu0
      %v704 = vadd.f32 %v590, %v703
      %705 = vmatmul.bf16.gmra.mxu0 %v632
      %v706 = vpop.f32.mrf.mxu0
      %v707 = vadd.f32 %v593, %v706
      %v708 = vpop.f32.mrf.mxu0
      %v709 = vadd.f32 %v595, %v708
      %710 = vmatmul.bf16.gmra.mxu0 %v634
      %v711 = vpop.f32.mrf.mxu0
      %v712 = vadd.f32 %v598, %v711
      %v713 = vpop.f32.mrf.mxu0
      %v714 = vadd.f32 %v600, %v713
      %715 = vmatmul.bf16.gmra.mxu0 %v637
      %v716 = vpop.f32.mrf.mxu0
      %v717 = vadd.f32 %v603, %v716
      %v718 = vpop.f32.mrf.mxu0
      %v719 = vadd.f32 %v605, %v718
      %720 = vdwg.mxu0
      %v721 = vld [vmem:[#allocation2] sm:$0xe]
      %s722 = scalar_lea.vmem %s3, 4
      %v723 = vld [vmem:[%s722] sm:$0x3]
      %v725 = vunpack.c.l.b16 %v721
      %v726 = vpack.c.b16 %v325, %v725
      %vm727 = vcmask 1046528
      %v728 = vrot.slane %v726, 1
      %v729 = vrot.slane %v353, 1
      %v730 = vsel %vm727, %v728, %v729
      %v731 = vrot.slane %v354, 1
      %v732 = vsel %vm727, %v729, %v731
      %v733 = vrot.slane %v355, 1
      %v734 = vsel %vm727, %v731, %v733
      %v735 = vrot.slane %v356, 1
      %v736 = vsel %vm727, %v733, %v735
      %v737 = vrot.slane %v357, 1
      %v738 = vsel %vm727, %v735, %v737
      %v739 = vrot.slane %v358, 1
      %v740 = vsel %vm727, %v737, %v739
      %v741 = vrot.slane %v359, 1
      %v742 = vsel %vm727, %v739, %v741
      %v743 = vrot.slane %v360, 1
      %v744 = vsel %vm727, %v741, %v743
      %v745 = vrot.slane %v361, 1
      %v746 = vsel %vm727, %v743, %v745
      %v747 = vrot.slane %v362, 1
      %v748 = vsel %vm727, %v745, %v747
      %v749 = vrot.slane %v363, 1
      %v750 = vsel %vm727, %v747, %v749
      %v751 = vrot.slane %v364, 1
      %v752 = vsel %vm727, %v749, %v751
      %v753 = vrot.slane %v365, 1
      %v754 = vsel %vm727, %v751, %v753
      %v756 = vsel %vm478, %v730, 0
      %v759 = vsel %vm478, %v732, 0
      %v762 = vsel %vm478, %v734, 0
      %v765 = vsel %vm478, %v736, 0
      %v768 = vsel %vm478, %v738, 0
      %v771 = vsel %vm478, %v740, 0
      %v774 = vsel %vm478, %v742, 0
      %v777 = vsel %vm478, %v744, 0
      %v780 = vsel %vm478, %v746, 0
      %v783 = vsel %vm478, %v748, 0
      %v786 = vsel %vm478, %v750, 0
      %v789 = vsel %vm478, %v752, 0
      %v792 = vsel %vm478, %v754, 0
      %v795 = vsel %vm478, %v753, 0
      %v798 = vand.u32 %v723, %v524
      %800 = vmatpush.bf16.msra.mxu0 0
      %801 = vmatpush.bf16.msra.mxu0 0
      %802 = vmatpush.bf16.msra.mxu0 0
      %803 = vmatpush.bf16.msra.mxu0 0
      %804 = vmatpush.bf16.msra.mxu0 0
      %805 = vmatpush.bf16.msra.mxu0 0
      %806 = vmatpush.bf16.msra.mxu0 0
      %807 = vmatpush.bf16.msra.mxu0 %v798
      %808 = vmatmul.bf16.gmra.mxu0 %v756
      %v809 = vpop.f32.mrf.mxu0
      %v810 = vadd.f32 0.0, %v809
      %v811 = vpop.f32.mrf.mxu0
      %v812 = vadd.f32 0.0, %v811
      %813 = vmatmul.bf16.gmra.mxu0 %v759
      %v814 = vpop.f32.mrf.mxu0
      %v815 = vadd.f32 0.0, %v814
      %v816 = vpop.f32.mrf.mxu0
      %v817 = vadd.f32 0.0, %v816
      %818 = vmatmul.bf16.gmra.mxu0 %v762
      %v819 = vpop.f32.mrf.mxu0
      %v820 = vadd.f32 0.0, %v819
      %v821 = vpop.f32.mrf.mxu0
      %v822 = vadd.f32 0.0, %v821
      %823 = vmatmul.bf16.gmra.mxu0 %v765
      %v824 = vpop.f32.mrf.mxu0
      %v825 = vadd.f32 0.0, %v824
      %v826 = vpop.f32.mrf.mxu0
      %v827 = vadd.f32 0.0, %v826
      %828 = vmatmul.bf16.gmra.mxu0 %v768
      %v829 = vpop.f32.mrf.mxu0
      %v830 = vadd.f32 0.0, %v829
      %v831 = vpop.f32.mrf.mxu0
      %v832 = vadd.f32 0.0, %v831
      %833 = vmatmul.bf16.gmra.mxu0 %v771
      %v834 = vpop.f32.mrf.mxu0
      %v835 = vadd.f32 0.0, %v834
      %v836 = vpop.f32.mrf.mxu0
      %v837 = vadd.f32 0.0, %v836
      %838 = vmatmul.bf16.gmra.mxu0 %v774
      %v839 = vpop.f32.mrf.mxu0
      %v840 = vadd.f32 0.0, %v839
      %v841 = vpop.f32.mrf.mxu0
      %v842 = vadd.f32 0.0, %v841
      %843 = vmatmul.bf16.gmra.mxu0 %v777
      %v844 = vpop.f32.mrf.mxu0
      %v845 = vadd.f32 0.0, %v844
      %v846 = vpop.f32.mrf.mxu0
      %v847 = vadd.f32 0.0, %v846
      %848 = vmatmul.bf16.gmra.mxu0 %v780
      %v849 = vpop.f32.mrf.mxu0
      %v850 = vadd.f32 0.0, %v849
      %v851 = vpop.f32.mrf.mxu0
      %v852 = vadd.f32 0.0, %v851
      %853 = vmatmul.bf16.gmra.mxu0 %v783
      %v854 = vpop.f32.mrf.mxu0
      %v855 = vadd.f32 0.0, %v854
      %v856 = vpop.f32.mrf.mxu0
      %v857 = vadd.f32 0.0, %v856
      %858 = vmatmul.bf16.gmra.mxu0 %v786
      %v859 = vpop.f32.mrf.mxu0
      %v860 = vadd.f32 0.0, %v859
      %v861 = vpop.f32.mrf.mxu0
      %v862 = vadd.f32 0.0, %v861
      %863 = vmatmul.bf16.gmra.mxu0 %v789
      %v864 = vpop.f32.mrf.mxu0
      %v865 = vadd.f32 0.0, %v864
      %v866 = vpop.f32.mrf.mxu0
      %v867 = vadd.f32 0.0, %v866
      %868 = vmatmul.bf16.gmra.mxu0 %v792
      %v869 = vpop.f32.mrf.mxu0
      %v870 = vadd.f32 0.0, %v869
      %v871 = vpop.f32.mrf.mxu0
      %v872 = vadd.f32 0.0, %v871
      %873 = vmatmul.bf16.gmra.mxu0 %v795
      %v874 = vpop.f32.mrf.mxu0
      %v875 = vadd.f32 0.0, %v874
      %v876 = vpop.f32.mrf.mxu0
      %v877 = vadd.f32 0.0, %v876
      %878 = vdwg.mxu0
      %v879 = vadd.f32 %v652, %v810
      %v880 = vadd.f32 %v654, %v812
      %v881 = vadd.f32 %v657, %v815
      %v882 = vadd.f32 %v659, %v817
      %v883 = vadd.f32 %v662, %v820
      %v884 = vadd.f32 %v664, %v822
      %v885 = vadd.f32 %v667, %v825
      %v886 = vadd.f32 %v669, %v827
      %v887 = vadd.f32 %v672, %v830
      %v888 = vadd.f32 %v674, %v832
      %v889 = vadd.f32 %v677, %v835
      %v890 = vadd.f32 %v679, %v837
      %v891 = vadd.f32 %v682, %v840
      %v892 = vadd.f32 %v684, %v842
      %v893 = vadd.f32 %v687, %v845
      %v894 = vadd.f32 %v689, %v847
      %v895 = vadd.f32 %v692, %v850
      %v896 = vadd.f32 %v694, %v852
      %v897 = vadd.f32 %v697, %v855
      %v898 = vadd.f32 %v699, %v857
      %v899 = vadd.f32 %v702, %v860
      %v900 = vadd.f32 %v704, %v862
      %v901 = vadd.f32 %v707, %v865
      %v902 = vadd.f32 %v709, %v867
      %v903 = vadd.f32 %v712, %v870
      %v904 = vadd.f32 %v714, %v872
      %v905 = vadd.f32 %v717, %v875
      %v906 = vadd.f32 %v719, %v877
      %v907 = vld [vmem:[#allocation2 + $0x8] sm:$0xf]
      %v908 = vld [vmem:[#allocation2 + $0xc] sm:$0xf]
      %v909 = vld [vmem:[#allocation2 + $0x10] sm:$0xf]
      %v910 = vld [vmem:[#allocation2 + $0x14] sm:$0xf]
      %v911 = vld [vmem:[#allocation2 + $0x18] sm:$0xf]
      %v912 = vld [vmem:[#allocation2 + $0x1c] sm:$0xf]
      %v913 = vld [vmem:[#allocation2 + $0x20] sm:$0xf]
      %v914 = vld [vmem:[#allocation2 + $0x24] sm:$0xf]
      %v915 = vld [vmem:[#allocation2 + $0x28] sm:$0xf]
      %v916 = vld [vmem:[#allocation2 + $0x2c] sm:$0xf]
      %v917 = vld [vmem:[#allocation2 + $0x30] sm:$0xf]
      %v918 = vld [vmem:[#allocation2 + $0x34] sm:$0xf]
      %v919 = vld [vmem:[#allocation2 + $0x38] sm:$0xf]
      %v920 = vld [vmem:[#allocation2 + $0x3c] sm:$0xf]
      %v921 = vld [vmem:[#allocation2 + $0x40] sm:$0xf]
      %v922 = vld [vmem:[#allocation2 + $0x44] sm:$0xf]
      %v923 = vld [vmem:[#allocation2 + $0x48] sm:$0xf]
      %v924 = vld [vmem:[#allocation2 + $0x4c] sm:$0xf]
      %v925 = vld [vmem:[#allocation2 + $0x50] sm:$0xf]
      %v926 = vld [vmem:[#allocation2 + $0x54] sm:$0xf]
      %v927 = vld [vmem:[#allocation2 + $0x58] sm:$0xf]
      %v928 = vld [vmem:[#allocation2 + $0x5c] sm:$0xf]
      %v929 = vld [vmem:[#allocation2 + $0x60] sm:$0xf]
      %v930 = vld [vmem:[#allocation2 + $0x64] sm:$0xf]
      %v931 = vld [vmem:[#allocation2 + $0x68] sm:$0xf]
      %v932 = vld [vmem:[#allocation2 + $0x6c] sm:$0xf]
      %v933 = vld [vmem:[#allocation2 + $0x70] sm:$0xf]
      %v934 = vld [vmem:[#allocation2 + $0x74] sm:$0x7]
      %s935 = scalar_lea.vmem %s3, 6
      %v936 = vld [vmem:[%s935] sm:$0x3]
      %v965 = vunpack.c.l.b16 %v907
      %v966 = vunpack.c.l.b16 %v908
      %v967 = vunpack.c.l.b16 %v909
      %v968 = vunpack.c.l.b16 %v910
      %v969 = vunpack.c.l.b16 %v911
      %v970 = vunpack.c.l.b16 %v912
      %v971 = vunpack.c.l.b16 %v913
      %v972 = vunpack.c.l.b16 %v914
      %v973 = vunpack.c.l.b16 %v915
      %v974 = vunpack.c.l.b16 %v916
      %v975 = vunpack.c.l.b16 %v917
      %v976 = vunpack.c.l.b16 %v918
      %v977 = vunpack.c.l.b16 %v919
      %v978 = vunpack.c.l.b16 %v920
      %v979 = vunpack.c.l.b16 %v921
      %v980 = vunpack.c.l.b16 %v922
      %v981 = vunpack.c.l.b16 %v923
      %v982 = vunpack.c.l.b16 %v924
      %v983 = vunpack.c.l.b16 %v925
      %v984 = vunpack.c.l.b16 %v926
      %v985 = vunpack.c.l.b16 %v927
      %v986 = vunpack.c.l.b16 %v928
      %v987 = vunpack.c.l.b16 %v929
      %v988 = vunpack.c.l.b16 %v930
      %v989 = vunpack.c.l.b16 %v931
      %v990 = vunpack.c.l.b16 %v932
      %v991 = vunpack.c.l.b16 %v933
      %v992 = vunpack.c.l.b16 %v934
      %v993 = vpack.c.b16 %v966, %v965
      %v994 = vpack.c.b16 %v968, %v967
      %v995 = vpack.c.b16 %v970, %v969
      %v996 = vpack.c.b16 %v972, %v971
      %v997 = vpack.c.b16 %v974, %v973
      %v998 = vpack.c.b16 %v976, %v975
      %v999 = vpack.c.b16 %v978, %v977
      %v1000 = vpack.c.b16 %v980, %v979
      %v1001 = vpack.c.b16 %v982, %v981
      %v1002 = vpack.c.b16 %v984, %v983
      %v1003 = vpack.c.b16 %v986, %v985
      %v1004 = vpack.c.b16 %v988, %v987
      %v1005 = vpack.c.b16 %v990, %v989
      %v1006 = vpack.c.b16 %v992, %v991
      %v1008 = vsel %vm478, %v993, 0
      %v1011 = vsel %vm478, %v994, 0
      %v1014 = vsel %vm478, %v995, 0
      %v1017 = vsel %vm478, %v996, 0
      %v1020 = vsel %vm478, %v997, 0
      %v1023 = vsel %vm478, %v998, 0
      %v1026 = vsel %vm478, %v999, 0
      %v1029 = vsel %vm478, %v1000, 0
      %v1032 = vsel %vm478, %v1001, 0
      %v1035 = vsel %vm478, %v1002, 0
      %v1038 = vsel %vm478, %v1003, 0
      %v1041 = vsel %vm478, %v1004, 0
      %v1044 = vsel %vm478, %v1005, 0
      %v1047 = vsel %vm478, %v1006, 0
      %v1050 = vand.u32 %v936, %v524
      %1052 = vmatpush.bf16.msra.mxu0 0
      %1053 = vmatpush.bf16.msra.mxu0 0
      %1054 = vmatpush.bf16.msra.mxu0 0
      %1055 = vmatpush.bf16.msra.mxu0 0
      %1056 = vmatpush.bf16.msra.mxu0 0
      %1057 = vmatpush.bf16.msra.mxu0 0
      %1058 = vmatpush.bf16.msra.mxu0 0
      %1059 = vmatpush.bf16.msra.mxu0 %v1050
      %1060 = vmatmul.bf16.gmra.mxu0 %v1008
      %v1061 = vpop.f32.mrf.mxu0
      %v1062 = vadd.f32 0.0, %v1061
      %v1063 = vpop.f32.mrf.mxu0
      %v1064 = vadd.f32 0.0, %v1063
      %1065 = vmatmul.bf16.gmra.mxu0 %v1011
      %v1066 = vpop.f32.mrf.mxu0
      %v1067 = vadd.f32 0.0, %v1066
      %v1068 = vpop.f32.mrf.mxu0
      %v1069 = vadd.f32 0.0, %v1068
      %1070 = vmatmul.bf16.gmra.mxu0 %v1014
      %v1071 = vpop.f32.mrf.mxu0
      %v1072 = vadd.f32 0.0, %v1071
      %v1073 = vpop.f32.mrf.mxu0
      %v1074 = vadd.f32 0.0, %v1073
      %1075 = vmatmul.bf16.gmra.mxu0 %v1017
      %v1076 = vpop.f32.mrf.mxu0
      %v1077 = vadd.f32 0.0, %v1076
      %v1078 = vpop.f32.mrf.mxu0
      %v1079 = vadd.f32 0.0, %v1078
      %1080 = vmatmul.bf16.gmra.mxu0 %v1020
      %v1081 = vpop.f32.mrf.mxu0
      %v1082 = vadd.f32 0.0, %v1081
      %v1083 = vpop.f32.mrf.mxu0
      %v1084 = vadd.f32 0.0, %v1083
      %1085 = vmatmul.bf16.gmra.mxu0 %v1023
      %v1086 = vpop.f32.mrf.mxu0
      %v1087 = vadd.f32 0.0, %v1086
      %v1088 = vpop.f32.mrf.mxu0
      %v1089 = vadd.f32 0.0, %v1088
      %1090 = vmatmul.bf16.gmra.mxu0 %v1026
      %v1091 = vpop.f32.mrf.mxu0
      %v1092 = vadd.f32 0.0, %v1091
      %v1093 = vpop.f32.mrf.mxu0
      %v1094 = vadd.f32 0.0, %v1093
      %1095 = vmatmul.bf16.gmra.mxu0 %v1029
      %v1096 = vpop.f32.mrf.mxu0
      %v1097 = vadd.f32 0.0, %v1096
      %v1098 = vpop.f32.mrf.mxu0
      %v1099 = vadd.f32 0.0, %v1098
      %1100 = vmatmul.bf16.gmra.mxu0 %v1032
      %v1101 = vpop.f32.mrf.mxu0
      %v1102 = vadd.f32 0.0, %v1101
      %v1103 = vpop.f32.mrf.mxu0
      %v1104 = vadd.f32 0.0, %v1103
      %1105 = vmatmul.bf16.gmra.mxu0 %v1035
      %v1106 = vpop.f32.mrf.mxu0
      %v1107 = vadd.f32 0.0, %v1106
      %v1108 = vpop.f32.mrf.mxu0
      %v1109 = vadd.f32 0.0, %v1108
      %1110 = vmatmul.bf16.gmra.mxu0 %v1038
      %v1111 = vpop.f32.mrf.mxu0
      %v1112 = vadd.f32 0.0, %v1111
      %v1113 = vpop.f32.mrf.mxu0
      %v1114 = vadd.f32 0.0, %v1113
      %1115 = vmatmul.bf16.gmra.mxu0 %v1041
      %v1116 = vpop.f32.mrf.mxu0
      %v1117 = vadd.f32 0.0, %v1116
      %v1118 = vpop.f32.mrf.mxu0
      %v1119 = vadd.f32 0.0, %v1118
      %1120 = vmatmul.bf16.gmra.mxu0 %v1044
      %v1121 = vpop.f32.mrf.mxu0
      %v1122 = vadd.f32 0.0, %v1121
      %v1123 = vpop.f32.mrf.mxu0
      %v1124 = vadd.f32 0.0, %v1123
      %1125 = vmatmul.bf16.gmra.mxu0 %v1047
      %v1126 = vpop.f32.mrf.mxu0
      %v1127 = vadd.f32 0.0, %v1126
      %v1128 = vpop.f32.mrf.mxu0
      %v1129 = vadd.f32 0.0, %v1128
      %1130 = vdwg.mxu0
      %v1131 = vadd.f32 %v879, %v1062
      %v1132 = vadd.f32 %v880, %v1064
      %v1133 = vadd.f32 %v881, %v1067
      %v1134 = vadd.f32 %v882, %v1069
      %v1135 = vadd.f32 %v883, %v1072
      %v1136 = vadd.f32 %v884, %v1074
      %v1137 = vadd.f32 %v885, %v1077
      %v1138 = vadd.f32 %v886, %v1079
      %v1139 = vadd.f32 %v887, %v1082
      %v1140 = vadd.f32 %v888, %v1084
      %v1141 = vadd.f32 %v889, %v1087
      %v1142 = vadd.f32 %v890, %v1089
      %v1143 = vadd.f32 %v891, %v1092
      %v1144 = vadd.f32 %v892, %v1094
      %v1145 = vadd.f32 %v893, %v1097
      %v1146 = vadd.f32 %v894, %v1099
      %v1147 = vadd.f32 %v895, %v1102
      %v1148 = vadd.f32 %v896, %v1104
      %v1149 = vadd.f32 %v897, %v1107
      %v1150 = vadd.f32 %v898, %v1109
      %v1151 = vadd.f32 %v899, %v1112
      %v1152 = vadd.f32 %v900, %v1114
      %v1153 = vadd.f32 %v901, %v1117
      %v1154 = vadd.f32 %v902, %v1119
      %v1155 = vadd.f32 %v903, %v1122
      %v1156 = vadd.f32 %v904, %v1124
      %v1157 = vadd.f32 %v905, %v1127
      %v1158 = vadd.f32 %v906, %v1129
      %v1159 = vld [vmem:[#allocation2 + $0x74] sm:$0xf]
      %s1160 = scalar_lea.vmem %s3, 8
      %v1161 = vld [vmem:[%s1160] sm:$0x3]
      %v1163 = vunpack.c.l.b16 %v1159
      %v1164 = vpack.c.b16 %v1163, %v991
      %v1165 = vshrl.u32 %v993, 16
      %v1167 = vshll.u32 %v993, 16
      %v1169 = vrot.slane %v1167, 1
      %v1170 = vor.u32 %v1165, %v1169
      %v1171 = vshll.u32 %v994, 16
      %v1173 = vrot.slane %v1171, 1
      %v1174 = vsel %vm366, %v1170, %v1173
      %v1175 = vshrl.u32 %v994, 16
      %v1177 = vor.u32 %v1175, %v1173
      %v1178 = vshll.u32 %v995, 16
      %v1180 = vrot.slane %v1178, 1
      %v1181 = vsel %vm366, %v1177, %v1180
      %v1182 = vshrl.u32 %v995, 16
      %v1184 = vor.u32 %v1182, %v1180
      %v1185 = vshll.u32 %v996, 16
      %v1187 = vrot.slane %v1185, 1
      %v1188 = vsel %vm366, %v1184, %v1187
      %v1189 = vshrl.u32 %v996, 16
      %v1191 = vor.u32 %v1189, %v1187
      %v1192 = vshll.u32 %v997, 16
      %v1194 = vrot.slane %v1192, 1
      %v1195 = vsel %vm366, %v1191, %v1194
      %v1196 = vshrl.u32 %v997, 16
      %v1198 = vor.u32 %v1196, %v1194
      %v1199 = vshll.u32 %v998, 16
      %v1201 = vrot.slane %v1199, 1
      %v1202 = vsel %vm366, %v1198, %v1201
      %v1203 = vshrl.u32 %v998, 16
      %v1205 = vor.u32 %v1203, %v1201
      %v1206 = vshll.u32 %v999, 16
      %v1208 = vrot.slane %v1206, 1
      %v1209 = vsel %vm366, %v1205, %v1208
      %v1210 = vshrl.u32 %v999, 16
      %v1212 = vor.u32 %v1210, %v1208
      %v1213 = vshll.u32 %v1000, 16
      %v1215 = vrot.slane %v1213, 1
      %v1216 = vsel %vm366, %v1212, %v1215
      %v1217 = vshrl.u32 %v1000, 16
      %v1219 = vor.u32 %v1217, %v1215
      %v1220 = vshll.u32 %v1001, 16
      %v1222 = vrot.slane %v1220, 1
      %v1223 = vsel %vm366, %v1219, %v1222
      %v1224 = vshrl.u32 %v1001, 16
      %v1226 = vor.u32 %v1224, %v1222
      %v1227 = vshll.u32 %v1002, 16
      %v1229 = vrot.slane %v1227, 1
      %v1230 = vsel %vm366, %v1226, %v1229
      %v1231 = vshrl.u32 %v1002, 16
      %v1233 = vor.u32 %v1231, %v1229
      %v1234 = vshll.u32 %v1003, 16
      %v1236 = vrot.slane %v1234, 1
      %v1237 = vsel %vm366, %v1233, %v1236
      %v1238 = vshrl.u32 %v1003, 16
      %v1240 = vor.u32 %v1238, %v1236
      %v1241 = vshll.u32 %v1004, 16
      %v1243 = vrot.slane %v1241, 1
      %v1244 = vsel %vm366, %v1240, %v1243
      %v1245 = vshrl.u32 %v1004, 16
      %v1247 = vor.u32 %v1245, %v1243
      %v1248 = vshll.u32 %v1005, 16
      %v1250 = vrot.slane %v1248, 1
      %v1251 = vsel %vm366, %v1247, %v1250
      %v1252 = vshrl.u32 %v1005, 16
      %v1254 = vor.u32 %v1252, %v1250
      %v1256 = vshll.u32 %v1164, 16
      %v1258 = vrot.slane %v1256, 1
      %v1259 = vsel %vm366, %v1254, %v1258
      %v1260 = vshrl.u32 %v1164, 16
      %v1262 = vor.u32 %v1260, %v1258
      %v1264 = vsel %vm478, %v1174, 0
      %v1267 = vsel %vm478, %v1181, 0
      %v1270 = vsel %vm478, %v1188, 0
      %v1273 = vsel %vm478, %v1195, 0
      %v1276 = vsel %vm478, %v1202, 0
      %v1279 = vsel %vm478, %v1209, 0
      %v1282 = vsel %vm478, %v1216, 0
      %v1285 = vsel %vm478, %v1223, 0
      %v1288 = vsel %vm478, %v1230, 0
      %v1291 = vsel %vm478, %v1237, 0
      %v1294 = vsel %vm478, %v1244, 0
      %v1297 = vsel %vm478, %v1251, 0
      %v1300 = vsel %vm478, %v1259, 0
      %v1303 = vsel %vm478, %v1262, 0
      %v1306 = vand.u32 %v1161, %v524
      %1308 = vmatpush.bf16.msra.mxu0 0
      %1309 = vmatpush.bf16.msra.mxu0 0
      %1310 = vmatpush.bf16.msra.mxu0 0
      %1311 = vmatpush.bf16.msra.mxu0 0
      %1312 = vmatpush.bf16.msra.mxu0 0
      %1313 = vmatpush.bf16.msra.mxu0 0
      %1314 = vmatpush.bf16.msra.mxu0 0
      %1315 = vmatpush.bf16.msra.mxu0 %v1306
      %1316 = vmatmul.bf16.gmra.mxu0 %v1264
      %v1317 = vpop.f32.mrf.mxu0
      %v1318 = vadd.f32 0.0, %v1317
      %v1319 = vpop.f32.mrf.mxu0
      %v1320 = vadd.f32 0.0, %v1319
      %1321 = vmatmul.bf16.gmra.mxu0 %v1267
      %v1322 = vpop.f32.mrf.mxu0
      %v1323 = vadd.f32 0.0, %v1322
      %v1324 = vpop.f32.mrf.mxu0
      %v1325 = vadd.f32 0.0, %v1324
      %1326 = vmatmul.bf16.gmra.mxu0 %v1270
      %v1327 = vpop.f32.mrf.mxu0
      %v1328 = vadd.f32 0.0, %v1327
      %v1329 = vpop.f32.mrf.mxu0
      %v1330 = vadd.f32 0.0, %v1329
      %1331 = vmatmul.bf16.gmra.mxu0 %v1273
      %v1332 = vpop.f32.mrf.mxu0
      %v1333 = vadd.f32 0.0, %v1332
      %v1334 = vpop.f32.mrf.mxu0
      %v1335 = vadd.f32 0.0, %v1334
      %1336 = vmatmul.bf16.gmra.mxu0 %v1276
      %v1337 = vpop.f32.mrf.mxu0
      %v1338 = vadd.f32 0.0, %v1337
      %v1339 = vpop.f32.mrf.mxu0
      %v1340 = vadd.f32 0.0, %v1339
      %1341 = vmatmul.bf16.gmra.mxu0 %v1279
      %v1342 = vpop.f32.mrf.mxu0
      %v1343 = vadd.f32 0.0, %v1342
      %v1344 = vpop.f32.mrf.mxu0
      %v1345 = vadd.f32 0.0, %v1344
      %1346 = vmatmul.bf16.gmra.mxu0 %v1282
      %v1347 = vpop.f32.mrf.mxu0
      %v1348 = vadd.f32 0.0, %v1347
      %v1349 = vpop.f32.mrf.mxu0
      %v1350 = vadd.f32 0.0, %v1349
      %1351 = vmatmul.bf16.gmra.mxu0 %v1285
      %v1352 = vpop.f32.mrf.mxu0
      %v1353 = vadd.f32 0.0, %v1352
      %v1354 = vpop.f32.mrf.mxu0
      %v1355 = vadd.f32 0.0, %v1354
      %1356 = vmatmul.bf16.gmra.mxu0 %v1288
      %v1357 = vpop.f32.mrf.mxu0
      %v1358 = vadd.f32 0.0, %v1357
      %v1359 = vpop.f32.mrf.mxu0
      %v1360 = vadd.f32 0.0, %v1359
      %1361 = vmatmul.bf16.gmra.mxu0 %v1291
      %v1362 = vpop.f32.mrf.mxu0
      %v1363 = vadd.f32 0.0, %v1362
      %v1364 = vpop.f32.mrf.mxu0
      %v1365 = vadd.f32 0.0, %v1364
      %1366 = vmatmul.bf16.gmra.mxu0 %v1294
      %v1367 = vpop.f32.mrf.mxu0
      %v1368 = vadd.f32 0.0, %v1367
      %v1369 = vpop.f32.mrf.mxu0
      %v1370 = vadd.f32 0.0, %v1369
      %1371 = vmatmul.bf16.gmra.mxu0 %v1297
      %v1372 = vpop.f32.mrf.mxu0
      %v1373 = vadd.f32 0.0, %v1372
      %v1374 = vpop.f32.mrf.mxu0
      %v1375 = vadd.f32 0.0, %v1374
      %1376 = vmatmul.bf16.gmra.mxu0 %v1300
      %v1377 = vpop.f32.mrf.mxu0
      %v1378 = vadd.f32 0.0, %v1377
      %v1379 = vpop.f32.mrf.mxu0
      %v1380 = vadd.f32 0.0, %v1379
      %1381 = vmatmul.bf16.gmra.mxu0 %v1303
      %v1382 = vpop.f32.mrf.mxu0
      %v1383 = vadd.f32 0.0, %v1382
      %v1384 = vpop.f32.mrf.mxu0
      %v1385 = vadd.f32 0.0, %v1384
      %1386 = vdwg.mxu0
      %v1387 = vadd.f32 %v1131, %v1318
      %v1388 = vadd.f32 %v1132, %v1320
      %v1389 = vadd.f32 %v1133, %v1323
      %v1390 = vadd.f32 %v1134, %v1325
      %v1391 = vadd.f32 %v1135, %v1328
      %v1392 = vadd.f32 %v1136, %v1330
      %v1393 = vadd.f32 %v1137, %v1333
      %v1394 = vadd.f32 %v1138, %v1335
      %v1395 = vadd.f32 %v1139, %v1338
      %v1396 = vadd.f32 %v1140, %v1340
      %v1397 = vadd.f32 %v1141, %v1343
      %v1398 = vadd.f32 %v1142, %v1345
      %v1399 = vadd.f32 %v1143, %v1348
      %v1400 = vadd.f32 %v1144, %v1350
      %v1401 = vadd.f32 %v1145, %v1353
      %v1402 = vadd.f32 %v1146, %v1355
      %v1403 = vadd.f32 %v1147, %v1358
      %v1404 = vadd.f32 %v1148, %v1360
      %v1405 = vadd.f32 %v1149, %v1363
      %v1406 = vadd.f32 %v1150, %v1365
      %v1407 = vadd.f32 %v1151, %v1368
      %v1408 = vadd.f32 %v1152, %v1370
      %v1409 = vadd.f32 %v1153, %v1373
      %v1410 = vadd.f32 %v1154, %v1375
      %v1411 = vadd.f32 %v1155, %v1378
      %v1412 = vadd.f32 %v1156, %v1380
      %v1413 = vadd.f32 %v1157, %v1383
      %v1414 = vadd.f32 %v1158, %v1385
      %v1415 = vld [vmem:[#allocation2 + $0x8] sm:$0xe]
      %s1416 = scalar_lea.vmem %s3, 10
      %v1417 = vld [vmem:[%s1416] sm:$0x3]
      %v1419 = vunpack.c.l.b16 %v1415
      %v1420 = vpack.c.b16 %v966, %v1419
      %v1421 = vrot.slane %v1420, 1
      %v1422 = vrot.slane %v994, 1
      %v1423 = vsel %vm727, %v1421, %v1422
      %v1424 = vrot.slane %v995, 1
      %v1425 = vsel %vm727, %v1422, %v1424
      %v1426 = vrot.slane %v996, 1
      %v1427 = vsel %vm727, %v1424, %v1426
      %v1428 = vrot.slane %v997, 1
      %v1429 = vsel %vm727, %v1426, %v1428
      %v1430 = vrot.slane %v998, 1
      %v1431 = vsel %vm727, %v1428, %v1430
      %v1432 = vrot.slane %v999, 1
      %v1433 = vsel %vm727, %v1430, %v1432
      %v1434 = vrot.slane %v1000, 1
      %v1435 = vsel %vm727, %v1432, %v1434
      %v1436 = vrot.slane %v1001, 1
      %v1437 = vsel %vm727, %v1434, %v1436
      %v1438 = vrot.slane %v1002, 1
      %v1439 = vsel %vm727, %v1436, %v1438
      %v1440 = vrot.slane %v1003, 1
      %v1441 = vsel %vm727, %v1438, %v1440
      %v1442 = vrot.slane %v1004, 1
      %v1443 = vsel %vm727, %v1440, %v1442
      %v1444 = vrot.slane %v1005, 1
      %v1445 = vsel %vm727, %v1442, %v1444
      %v1446 = vrot.slane %v1164, 1
      %v1447 = vsel %vm727, %v1444, %v1446
      %v1449 = vsel %vm478, %v1423, 0
      %v1452 = vsel %vm478, %v1425, 0
      %v1455 = vsel %vm478, %v1427, 0
      %v1458 = vsel %vm478, %v1429, 0
      %v1461 = vsel %vm478, %v1431, 0
      %v1464 = vsel %vm478, %v1433, 0
      %v1467 = vsel %vm478, %v1435, 0
      %v1470 = vsel %vm478, %v1437, 0
      %v1473 = vsel %vm478, %v1439, 0
      %v1476 = vsel %vm478, %v1441, 0
      %v1479 = vsel %vm478, %v1443, 0
      %v1482 = vsel %vm478, %v1445, 0
      %v1485 = vsel %vm478, %v1447, 0
      %v1488 = vsel %vm478, %v1446, 0
      %v1491 = vand.u32 %v1417, %v524
      %1493 = vmatpush.bf16.msra.mxu0 0
      %1494 = vmatpush.bf16.msra.mxu0 0
      %1495 = vmatpush.bf16.msra.mxu0 0
      %1496 = vmatpush.bf16.msra.mxu0 0
      %1497 = vmatpush.bf16.msra.mxu0 0
      %1498 = vmatpush.bf16.msra.mxu0 0
      %1499 = vmatpush.bf16.msra.mxu0 0
      %1500 = vmatpush.bf16.msra.mxu0 %v1491
      %1501 = vmatmul.bf16.gmra.mxu0 %v1449
      %v1502 = vpop.f32.mrf.mxu0
      %v1503 = vadd.f32 0.0, %v1502
      %v1504 = vpop.f32.mrf.mxu0
      %v1505 = vadd.f32 0.0, %v1504
      %1506 = vmatmul.bf16.gmra.mxu0 %v1452
      %v1507 = vpop.f32.mrf.mxu0
      %v1508 = vadd.f32 0.0, %v1507
      %v1509 = vpop.f32.mrf.mxu0
      %v1510 = vadd.f32 0.0, %v1509
      %1511 = vmatmul.bf16.gmra.mxu0 %v1455
      %v1512 = vpop.f32.mrf.mxu0
      %v1513 = vadd.f32 0.0, %v1512
      %v1514 = vpop.f32.mrf.mxu0
      %v1515 = vadd.f32 0.0, %v1514
      %1516 = vmatmul.bf16.gmra.mxu0 %v1458
      %v1517 = vpop.f32.mrf.mxu0
      %v1518 = vadd.f32 0.0, %v1517
      %v1519 = vpop.f32.mrf.mxu0
      %v1520 = vadd.f32 0.0, %v1519
      %1521 = vmatmul.bf16.gmra.mxu0 %v1461
      %v1522 = vpop.f32.mrf.mxu0
      %v1523 = vadd.f32 0.0, %v1522
      %v1524 = vpop.f32.mrf.mxu0
      %v1525 = vadd.f32 0.0, %v1524
      %1526 = vmatmul.bf16.gmra.mxu0 %v1464
      %v1527 = vpop.f32.mrf.mxu0
      %v1528 = vadd.f32 0.0, %v1527
      %v1529 = vpop.f32.mrf.mxu0
      %v1530 = vadd.f32 0.0, %v1529
      %1531 = vmatmul.bf16.gmra.mxu0 %v1467
      %v1532 = vpop.f32.mrf.mxu0
      %v1533 = vadd.f32 0.0, %v1532
      %v1534 = vpop.f32.mrf.mxu0
      %v1535 = vadd.f32 0.0, %v1534
      %1536 = vmatmul.bf16.gmra.mxu0 %v1470
      %v1537 = vpop.f32.mrf.mxu0
      %v1538 = vadd.f32 0.0, %v1537
      %v1539 = vpop.f32.mrf.mxu0
      %v1540 = vadd.f32 0.0, %v1539
      %1541 = vmatmul.bf16.gmra.mxu0 %v1473
      %v1542 = vpop.f32.mrf.mxu0
      %v1543 = vadd.f32 0.0, %v1542
      %v1544 = vpop.f32.mrf.mxu0
      %v1545 = vadd.f32 0.0, %v1544
      %1546 = vmatmul.bf16.gmra.mxu0 %v1476
      %v1547 = vpop.f32.mrf.mxu0
      %v1548 = vadd.f32 0.0, %v1547
      %v1549 = vpop.f32.mrf.mxu0
      %v1550 = vadd.f32 0.0, %v1549
      %1551 = vmatmul.bf16.gmra.mxu0 %v1479
      %v1552 = vpop.f32.mrf.mxu0
      %v1553 = vadd.f32 0.0, %v1552
      %v1554 = vpop.f32.mrf.mxu0
      %v1555 = vadd.f32 0.0, %v1554
      %1556 = vmatmul.bf16.gmra.mxu0 %v1482
      %v1557 = vpop.f32.mrf.mxu0
      %v1558 = vadd.f32 0.0, %v1557
      %v1559 = vpop.f32.mrf.mxu0
      %v1560 = vadd.f32 0.0, %v1559
      %1561 = vmatmul.bf16.gmra.mxu0 %v1485
      %v1562 = vpop.f32.mrf.mxu0
      %v1563 = vadd.f32 0.0, %v1562
      %v1564 = vpop.f32.mrf.mxu0
      %v1565 = vadd.f32 0.0, %v1564
      %1566 = vmatmul.bf16.gmra.mxu0 %v1488
      %v1567 = vpop.f32.mrf.mxu0
      %v1568 = vadd.f32 0.0, %v1567
      %v1569 = vpop.f32.mrf.mxu0
      %v1570 = vadd.f32 0.0, %v1569
      %1571 = vdwg.mxu0
      %v1572 = vadd.f32 %v1387, %v1503
      %v1573 = vadd.f32 %v1388, %v1505
      %v1574 = vadd.f32 %v1389, %v1508
      %v1575 = vadd.f32 %v1390, %v1510
      %v1576 = vadd.f32 %v1391, %v1513
      %v1577 = vadd.f32 %v1392, %v1515
      %v1578 = vadd.f32 %v1393, %v1518
      %v1579 = vadd.f32 %v1394, %v1520
      %v1580 = vadd.f32 %v1395, %v1523
      %v1581 = vadd.f32 %v1396, %v1525
      %v1582 = vadd.f32 %v1397, %v1528
      %v1583 = vadd.f32 %v1398, %v1530
      %v1584 = vadd.f32 %v1399, %v1533
      %v1585 = vadd.f32 %v1400, %v1535
      %v1586 = vadd.f32 %v1401, %v1538
      %v1587 = vadd.f32 %v1402, %v1540
      %v1588 = vadd.f32 %v1403, %v1543
      %v1589 = vadd.f32 %v1404, %v1545
      %v1590 = vadd.f32 %v1405, %v1548
      %v1591 = vadd.f32 %v1406, %v1550
      %v1592 = vadd.f32 %v1407, %v1553
      %v1593 = vadd.f32 %v1408, %v1555
      %v1594 = vadd.f32 %v1409, %v1558
      %v1595 = vadd.f32 %v1410, %v1560
      %v1596 = vadd.f32 %v1411, %v1563
      %v1597 = vadd.f32 %v1412, %v1565
      %v1598 = vadd.f32 %v1413, %v1568
      %v1599 = vadd.f32 %v1414, %v1570
      %v1600 = vld [vmem:[#allocation2 + $0x10] sm:$0xf]
      %v1601 = vld [vmem:[#allocation2 + $0x14] sm:$0xf]
      %v1602 = vld [vmem:[#allocation2 + $0x18] sm:$0xf]
      %v1603 = vld [vmem:[#allocation2 + $0x1c] sm:$0xf]
      %v1604 = vld [vmem:[#allocation2 + $0x20] sm:$0xf]
      %v1605 = vld [vmem:[#allocation2 + $0x24] sm:$0xf]
      %v1606 = vld [vmem:[#allocation2 + $0x28] sm:$0xf]
      %v1607 = vld [vmem:[#allocation2 + $0x2c] sm:$0xf]
      %v1608 = vld [vmem:[#allocation2 + $0x30] sm:$0xf]
      %v1609 = vld [vmem:[#allocation2 + $0x34] sm:$0xf]
      %v1610 = vld [vmem:[#allocation2 + $0x38] sm:$0xf]
      %v1611 = vld [vmem:[#allocation2 + $0x3c] sm:$0xf]
      %v1612 = vld [vmem:[#allocation2 + $0x40] sm:$0xf]
      %v1613 = vld [vmem:[#allocation2 + $0x44] sm:$0xf]
      %v1614 = vld [vmem:[#allocation2 + $0x48] sm:$0xf]
      %v1615 = vld [vmem:[#allocation2 + $0x4c] sm:$0xf]
      %v1616 = vld [vmem:[#allocation2 + $0x50] sm:$0xf]
      %v1617 = vld [vmem:[#allocation2 + $0x54] sm:$0xf]
      %v1618 = vld [vmem:[#allocation2 + $0x58] sm:$0xf]
      %v1619 = vld [vmem:[#allocation2 + $0x5c] sm:$0xf]
      %v1620 = vld [vmem:[#allocation2 + $0x60] sm:$0xf]
      %v1621 = vld [vmem:[#allocation2 + $0x64] sm:$0xf]
      %v1622 = vld [vmem:[#allocation2 + $0x68] sm:$0xf]
      %v1623 = vld [vmem:[#allocation2 + $0x6c] sm:$0xf]
      %v1624 = vld [vmem:[#allocation2 + $0x70] sm:$0xf]
      %v1625 = vld [vmem:[#allocation2 + $0x74] sm:$0xf]
      %v1626 = vld [vmem:[#allocation2 + $0x78] sm:$0xf]
      %v1627 = vld [vmem:[#allocation2 + $0x7c] sm:$0x7]
      %s1628 = scalar_lea.vmem %s3, 12
      %v1629 = vld [vmem:[%s1628] sm:$0x3]
      %v1658 = vunpack.c.l.b16 %v1600
      %v1659 = vunpack.c.l.b16 %v1601
      %v1660 = vunpack.c.l.b16 %v1602
      %v1661 = vunpack.c.l.b16 %v1603
      %v1662 = vunpack.c.l.b16 %v1604
      %v1663 = vunpack.c.l.b16 %v1605
      %v1664 = vunpack.c.l.b16 %v1606
      %v1665 = vunpack.c.l.b16 %v1607
      %v1666 = vunpack.c.l.b16 %v1608
      %v1667 = vunpack.c.l.b16 %v1609
      %v1668 = vunpack.c.l.b16 %v1610
      %v1669 = vunpack.c.l.b16 %v1611
      %v1670 = vunpack.c.l.b16 %v1612
      %v1671 = vunpack.c.l.b16 %v1613
      %v1672 = vunpack.c.l.b16 %v1614
      %v1673 = vunpack.c.l.b16 %v1615
      %v1674 = vunpack.c.l.b16 %v1616
      %v1675 = vunpack.c.l.b16 %v1617
      %v1676 = vunpack.c.l.b16 %v1618
      %v1677 = vunpack.c.l.b16 %v1619
      %v1678 = vunpack.c.l.b16 %v1620
      %v1679 = vunpack.c.l.b16 %v1621
      %v1680 = vunpack.c.l.b16 %v1622
      %v1681 = vunpack.c.l.b16 %v1623
      %v1682 = vunpack.c.l.b16 %v1624
      %v1683 = vunpack.c.l.b16 %v1625
      %v1684 = vunpack.c.l.b16 %v1626
      %v1685 = vunpack.c.l.b16 %v1627
      %v1686 = vpack.c.b16 %v1659, %v1658
      %v1687 = vpack.c.b16 %v1661, %v1660
      %v1688 = vpack.c.b16 %v1663, %v1662
      %v1689 = vpack.c.b16 %v1665, %v1664
      %v1690 = vpack.c.b16 %v1667, %v1666
      %v1691 = vpack.c.b16 %v1669, %v1668
      %v1692 = vpack.c.b16 %v1671, %v1670
      %v1693 = vpack.c.b16 %v1673, %v1672
      %v1694 = vpack.c.b16 %v1675, %v1674
      %v1695 = vpack.c.b16 %v1677, %v1676
      %v1696 = vpack.c.b16 %v1679, %v1678
      %v1697 = vpack.c.b16 %v1681, %v1680
      %v1698 = vpack.c.b16 %v1683, %v1682
      %v1699 = vpack.c.b16 %v1685, %v1684
      %v1701 = vsel %vm478, %v1686, 0
      %v1704 = vsel %vm478, %v1687, 0
      %v1707 = vsel %vm478, %v1688, 0
      %v1710 = vsel %vm478, %v1689, 0
      %v1713 = vsel %vm478, %v1690, 0
      %v1716 = vsel %vm478, %v1691, 0
      %v1719 = vsel %vm478, %v1692, 0
      %v1722 = vsel %vm478, %v1693, 0
      %v1725 = vsel %vm478, %v1694, 0
      %v1728 = vsel %vm478, %v1695, 0
      %v1731 = vsel %vm478, %v1696, 0
      %v1734 = vsel %vm478, %v1697, 0
      %v1737 = vsel %vm478, %v1698, 0
      %v1740 = vsel %vm478, %v1699, 0
      %v1743 = vand.u32 %v1629, %v524
      %1745 = vmatpush.bf16.msra.mxu0 0
      %1746 = vmatpush.bf16.msra.mxu0 0
      %1747 = vmatpush.bf16.msra.mxu0 0
      %1748 = vmatpush.bf16.msra.mxu0 0
      %1749 = vmatpush.bf16.msra.mxu0 0
      %1750 = vmatpush.bf16.msra.mxu0 0
      %1751 = vmatpush.bf16.msra.mxu0 0
      %1752 = vmatpush.bf16.msra.mxu0 %v1743
      %1753 = vmatmul.bf16.gmra.mxu0 %v1701
      %v1754 = vpop.f32.mrf.mxu0
      %v1755 = vadd.f32 0.0, %v1754
      %v1756 = vpop.f32.mrf.mxu0
      %v1757 = vadd.f32 0.0, %v1756
      %1758 = vmatmul.bf16.gmra.mxu0 %v1704
      %v1759 = vpop.f32.mrf.mxu0
      %v1760 = vadd.f32 0.0, %v1759
      %v1761 = vpop.f32.mrf.mxu0
      %v1762 = vadd.f32 0.0, %v1761
      %1763 = vmatmul.bf16.gmra.mxu0 %v1707
      %v1764 = vpop.f32.mrf.mxu0
      %v1765 = vadd.f32 0.0, %v1764
      %v1766 = vpop.f32.mrf.mxu0
      %v1767 = vadd.f32 0.0, %v1766
      %1768 = vmatmul.bf16.gmra.mxu0 %v1710
      %v1769 = vpop.f32.mrf.mxu0
      %v1770 = vadd.f32 0.0, %v1769
      %v1771 = vpop.f32.mrf.mxu0
      %v1772 = vadd.f32 0.0, %v1771
      %1773 = vmatmul.bf16.gmra.mxu0 %v1713
      %v1774 = vpop.f32.mrf.mxu0
      %v1775 = vadd.f32 0.0, %v1774
      %v1776 = vpop.f32.mrf.mxu0
      %v1777 = vadd.f32 0.0, %v1776
      %1778 = vmatmul.bf16.gmra.mxu0 %v1716
      %v1779 = vpop.f32.mrf.mxu0
      %v1780 = vadd.f32 0.0, %v1779
      %v1781 = vpop.f32.mrf.mxu0
      %v1782 = vadd.f32 0.0, %v1781
      %1783 = vmatmul.bf16.gmra.mxu0 %v1719
      %v1784 = vpop.f32.mrf.mxu0
      %v1785 = vadd.f32 0.0, %v1784
      %v1786 = vpop.f32.mrf.mxu0
      %v1787 = vadd.f32 0.0, %v1786
      %1788 = vmatmul.bf16.gmra.mxu0 %v1722
      %v1789 = vpop.f32.mrf.mxu0
      %v1790 = vadd.f32 0.0, %v1789
      %v1791 = vpop.f32.mrf.mxu0
      %v1792 = vadd.f32 0.0, %v1791
      %1793 = vmatmul.bf16.gmra.mxu0 %v1725
      %v1794 = vpop.f32.mrf.mxu0
      %v1795 = vadd.f32 0.0, %v1794
      %v1796 = vpop.f32.mrf.mxu0
      %v1797 = vadd.f32 0.0, %v1796
      %1798 = vmatmul.bf16.gmra.mxu0 %v1728
      %v1799 = vpop.f32.mrf.mxu0
      %v1800 = vadd.f32 0.0, %v1799
      %v1801 = vpop.f32.mrf.mxu0
      %v1802 = vadd.f32 0.0, %v1801
      %1803 = vmatmul.bf16.gmra.mxu0 %v1731
      %v1804 = vpop.f32.mrf.mxu0
      %v1805 = vadd.f32 0.0, %v1804
      %v1806 = vpop.f32.mrf.mxu0
      %v1807 = vadd.f32 0.0, %v1806
      %1808 = vmatmul.bf16.gmra.mxu0 %v1734
      %v1809 = vpop.f32.mrf.mxu0
      %v1810 = vadd.f32 0.0, %v1809
      %v1811 = vpop.f32.mrf.mxu0
      %v1812 = vadd.f32 0.0, %v1811
      %1813 = vmatmul.bf16.gmra.mxu0 %v1737
      %v1814 = vpop.f32.mrf.mxu0
      %v1815 = vadd.f32 0.0, %v1814
      %v1816 = vpop.f32.mrf.mxu0
      %v1817 = vadd.f32 0.0, %v1816
      %1818 = vmatmul.bf16.gmra.mxu0 %v1740
      %v1819 = vpop.f32.mrf.mxu0
      %v1820 = vadd.f32 0.0, %v1819
      %v1821 = vpop.f32.mrf.mxu0
      %v1822 = vadd.f32 0.0, %v1821
      %1823 = vdwg.mxu0
      %v1824 = vadd.f32 %v1572, %v1755
      %v1825 = vadd.f32 %v1573, %v1757
      %v1826 = vadd.f32 %v1574, %v1760
      %v1827 = vadd.f32 %v1575, %v1762
      %v1828 = vadd.f32 %v1576, %v1765
      %v1829 = vadd.f32 %v1577, %v1767
      %v1830 = vadd.f32 %v1578, %v1770
      %v1831 = vadd.f32 %v1579, %v1772
      %v1832 = vadd.f32 %v1580, %v1775
      %v1833 = vadd.f32 %v1581, %v1777
      %v1834 = vadd.f32 %v1582, %v1780
      %v1835 = vadd.f32 %v1583, %v1782
      %v1836 = vadd.f32 %v1584, %v1785
      %v1837 = vadd.f32 %v1585, %v1787
      %v1838 = vadd.f32 %v1586, %v1790
      %v1839 = vadd.f32 %v1587, %v1792
      %v1840 = vadd.f32 %v1588, %v1795
      %v1841 = vadd.f32 %v1589, %v1797
      %v1842 = vadd.f32 %v1590, %v1800
      %v1843 = vadd.f32 %v1591, %v1802
      %v1844 = vadd.f32 %v1592, %v1805
      %v1845 = vadd.f32 %v1593, %v1807
      %v1846 = vadd.f32 %v1594, %v1810
      %v1847 = vadd.f32 %v1595, %v1812
      %v1848 = vadd.f32 %v1596, %v1815
      %v1849 = vadd.f32 %v1597, %v1817
      %v1850 = vadd.f32 %v1598, %v1820
      %v1851 = vadd.f32 %v1599, %v1822
      %v1852 = vld [vmem:[#allocation2 + $0x7c] sm:$0xf]
      %s1853 = scalar_lea.vmem %s3, 14
      %v1854 = vld [vmem:[%s1853] sm:$0x3]
      %v1856 = vunpack.c.l.b16 %v1852
      %v1857 = vpack.c.b16 %v1856, %v1684
      %v1858 = vshrl.u32 %v1686, 16
      %v1860 = vshll.u32 %v1686, 16
      %v1862 = vrot.slane %v1860, 1
      %v1863 = vor.u32 %v1858, %v1862
      %v1864 = vshll.u32 %v1687, 16
      %v1866 = vrot.slane %v1864, 1
      %v1867 = vsel %vm366, %v1863, %v1866
      %v1868 = vshrl.u32 %v1687, 16
      %v1870 = vor.u32 %v1868, %v1866
      %v1871 = vshll.u32 %v1688, 16
      %v1873 = vrot.slane %v1871, 1
      %v1874 = vsel %vm366, %v1870, %v1873
      %v1875 = vshrl.u32 %v1688, 16
      %v1877 = vor.u32 %v1875, %v1873
      %v1878 = vshll.u32 %v1689, 16
      %v1880 = vrot.slane %v1878, 1
      %v1881 = vsel %vm366, %v1877, %v1880
      %v1882 = vshrl.u32 %v1689, 16
      %v1884 = vor.u32 %v1882, %v1880
      %v1885 = vshll.u32 %v1690, 16
      %v1887 = vrot.slane %v1885, 1
      %v1888 = vsel %vm366, %v1884, %v1887
      %v1889 = vshrl.u32 %v1690, 16
      %v1891 = vor.u32 %v1889, %v1887
      %v1892 = vshll.u32 %v1691, 16
      %v1894 = vrot.slane %v1892, 1
      %v1895 = vsel %vm366, %v1891, %v1894
      %v1896 = vshrl.u32 %v1691, 16
      %v1898 = vor.u32 %v1896, %v1894
      %v1899 = vshll.u32 %v1692, 16
      %v1901 = vrot.slane %v1899, 1
      %v1902 = vsel %vm366, %v1898, %v1901
      %v1903 = vshrl.u32 %v1692, 16
      %v1905 = vor.u32 %v1903, %v1901
      %v1906 = vshll.u32 %v1693, 16
      %v1908 = vrot.slane %v1906, 1
      %v1909 = vsel %vm366, %v1905, %v1908
      %v1910 = vshrl.u32 %v1693, 16
      %v1912 = vor.u32 %v1910, %v1908
      %v1913 = vshll.u32 %v1694, 16
      %v1915 = vrot.slane %v1913, 1
      %v1916 = vsel %vm366, %v1912, %v1915
      %v1917 = vshrl.u32 %v1694, 16
      %v1919 = vor.u32 %v1917, %v1915
      %v1920 = vshll.u32 %v1695, 16
      %v1922 = vrot.slane %v1920, 1
      %v1923 = vsel %vm366, %v1919, %v1922
      %v1924 = vshrl.u32 %v1695, 16
      %v1926 = vor.u32 %v1924, %v1922
      %v1927 = vshll.u32 %v1696, 16
      %v1929 = vrot.slane %v1927, 1
      %v1930 = vsel %vm366, %v1926, %v1929
      %v1931 = vshrl.u32 %v1696, 16
      %v1933 = vor.u32 %v1931, %v1929
      %v1934 = vshll.u32 %v1697, 16
      %v1936 = vrot.slane %v1934, 1
      %v1937 = vsel %vm366, %v1933, %v1936
      %v1938 = vshrl.u32 %v1697, 16
      %v1940 = vor.u32 %v1938, %v1936
      %v1941 = vshll.u32 %v1698, 16
      %v1943 = vrot.slane %v1941, 1
      %v1944 = vsel %vm366, %v1940, %v1943
      %v1945 = vshrl.u32 %v1698, 16
      %v1947 = vor.u32 %v1945, %v1943
      %v1949 = vshll.u32 %v1857, 16
      %v1951 = vrot.slane %v1949, 1
      %v1952 = vsel %vm366, %v1947, %v1951
      %v1953 = vshrl.u32 %v1857, 16
      %v1955 = vor.u32 %v1953, %v1951
      %v1957 = vsel %vm478, %v1867, 0
      %v1960 = vsel %vm478, %v1874, 0
      %v1963 = vsel %vm478, %v1881, 0
      %v1966 = vsel %vm478, %v1888, 0
      %v1969 = vsel %vm478, %v1895, 0
      %v1972 = vsel %vm478, %v1902, 0
      %v1975 = vsel %vm478, %v1909, 0
      %v1978 = vsel %vm478, %v1916, 0
      %v1981 = vsel %vm478, %v1923, 0
      %v1984 = vsel %vm478, %v1930, 0
      %v1987 = vsel %vm478, %v1937, 0
      %v1990 = vsel %vm478, %v1944, 0
      %v1993 = vsel %vm478, %v1952, 0
      %v1996 = vsel %vm478, %v1955, 0
      %v1999 = vand.u32 %v1854, %v524
      %2001 = vmatpush.bf16.msra.mxu0 0
      %2002 = vmatpush.bf16.msra.mxu0 0
      %2003 = vmatpush.bf16.msra.mxu0 0
      %2004 = vmatpush.bf16.msra.mxu0 0
      %2005 = vmatpush.bf16.msra.mxu0 0
      %2006 = vmatpush.bf16.msra.mxu0 0
      %2007 = vmatpush.bf16.msra.mxu0 0
      %2008 = vmatpush.bf16.msra.mxu0 %v1999
      %2009 = vmatmul.bf16.gmra.mxu0 %v1957
      %v2010 = vpop.f32.mrf.mxu0
      %v2011 = vadd.f32 0.0, %v2010
      %v2012 = vpop.f32.mrf.mxu0
      %v2013 = vadd.f32 0.0, %v2012
      %2014 = vmatmul.bf16.gmra.mxu0 %v1960
      %v2015 = vpop.f32.mrf.mxu0
      %v2016 = vadd.f32 0.0, %v2015
      %v2017 = vpop.f32.mrf.mxu0
      %v2018 = vadd.f32 0.0, %v2017
      %2019 = vmatmul.bf16.gmra.mxu0 %v1963
      %v2020 = vpop.f32.mrf.mxu0
      %v2021 = vadd.f32 0.0, %v2020
      %v2022 = vpop.f32.mrf.mxu0
      %v2023 = vadd.f32 0.0, %v2022
      %2024 = vmatmul.bf16.gmra.mxu0 %v1966
      %v2025 = vpop.f32.mrf.mxu0
      %v2026 = vadd.f32 0.0, %v2025
      %v2027 = vpop.f32.mrf.mxu0
      %v2028 = vadd.f32 0.0, %v2027
      %2029 = vmatmul.bf16.gmra.mxu0 %v1969
      %v2030 = vpop.f32.mrf.mxu0
      %v2031 = vadd.f32 0.0, %v2030
      %v2032 = vpop.f32.mrf.mxu0
      %v2033 = vadd.f32 0.0, %v2032
      %2034 = vmatmul.bf16.gmra.mxu0 %v1972
      %v2035 = vpop.f32.mrf.mxu0
      %v2036 = vadd.f32 0.0, %v2035
      %v2037 = vpop.f32.mrf.mxu0
      %v2038 = vadd.f32 0.0, %v2037
      %2039 = vmatmul.bf16.gmra.mxu0 %v1975
      %v2040 = vpop.f32.mrf.mxu0
      %v2041 = vadd.f32 0.0, %v2040
      %v2042 = vpop.f32.mrf.mxu0
      %v2043 = vadd.f32 0.0, %v2042
      %2044 = vmatmul.bf16.gmra.mxu0 %v1978
      %v2045 = vpop.f32.mrf.mxu0
      %v2046 = vadd.f32 0.0, %v2045
      %v2047 = vpop.f32.mrf.mxu0
      %v2048 = vadd.f32 0.0, %v2047
      %2049 = vmatmul.bf16.gmra.mxu0 %v1981
      %v2050 = vpop.f32.mrf.mxu0
      %v2051 = vadd.f32 0.0, %v2050
      %v2052 = vpop.f32.mrf.mxu0
      %v2053 = vadd.f32 0.0, %v2052
      %2054 = vmatmul.bf16.gmra.mxu0 %v1984
      %v2055 = vpop.f32.mrf.mxu0
      %v2056 = vadd.f32 0.0, %v2055
      %v2057 = vpop.f32.mrf.mxu0
      %v2058 = vadd.f32 0.0, %v2057
      %2059 = vmatmul.bf16.gmra.mxu0 %v1987
      %v2060 = vpop.f32.mrf.mxu0
      %v2061 = vadd.f32 0.0, %v2060
      %v2062 = vpop.f32.mrf.mxu0
      %v2063 = vadd.f32 0.0, %v2062
      %2064 = vmatmul.bf16.gmra.mxu0 %v1990
      %v2065 = vpop.f32.mrf.mxu0
      %v2066 = vadd.f32 0.0, %v2065
      %v2067 = vpop.f32.mrf.mxu0
      %v2068 = vadd.f32 0.0, %v2067
      %2069 = vmatmul.bf16.gmra.mxu0 %v1993
      %v2070 = vpop.f32.mrf.mxu0
      %v2071 = vadd.f32 0.0, %v2070
      %v2072 = vpop.f32.mrf.mxu0
      %v2073 = vadd.f32 0.0, %v2072
      %2074 = vmatmul.bf16.gmra.mxu0 %v1996
      %v2075 = vpop.f32.mrf.mxu0
      %v2076 = vadd.f32 0.0, %v2075
      %v2077 = vpop.f32.mrf.mxu0
      %v2078 = vadd.f32 0.0, %v2077
      %2079 = vdwg.mxu0
      %v2080 = vadd.f32 %v1824, %v2011
      %v2081 = vadd.f32 %v1825, %v2013
      %v2082 = vadd.f32 %v1826, %v2016
      %v2083 = vadd.f32 %v1827, %v2018
      %v2084 = vadd.f32 %v1828, %v2021
      %v2085 = vadd.f32 %v1829, %v2023
      %v2086 = vadd.f32 %v1830, %v2026
      %v2087 = vadd.f32 %v1831, %v2028
      %v2088 = vadd.f32 %v1832, %v2031
      %v2089 = vadd.f32 %v1833, %v2033
      %v2090 = vadd.f32 %v1834, %v2036
      %v2091 = vadd.f32 %v1835, %v2038
      %v2092 = vadd.f32 %v1836, %v2041
      %v2093 = vadd.f32 %v1837, %v2043
      %v2094 = vadd.f32 %v1838, %v2046
      %v2095 = vadd.f32 %v1839, %v2048
      %v2096 = vadd.f32 %v1840, %v2051
      %v2097 = vadd.f32 %v1841, %v2053
      %v2098 = vadd.f32 %v1842, %v2056
      %v2099 = vadd.f32 %v1843, %v2058
      %v2100 = vadd.f32 %v1844, %v2061
      %v2101 = vadd.f32 %v1845, %v2063
      %v2102 = vadd.f32 %v1846, %v2066
      %v2103 = vadd.f32 %v1847, %v2068
      %v2104 = vadd.f32 %v1848, %v2071
      %v2105 = vadd.f32 %v1849, %v2073
      %v2106 = vadd.f32 %v1850, %v2076
      %v2107 = vadd.f32 %v1851, %v2078
      %v2108 = vld [vmem:[#allocation2 + $0x10] sm:$0xe]
      %s2109 = scalar_lea.vmem %s3, 16
      %v2110 = vld [vmem:[%s2109] sm:$0x3]
      %v2112 = vunpack.c.l.b16 %v2108
      %v2113 = vpack.c.b16 %v1659, %v2112
      %v2114 = vrot.slane %v2113, 1
      %v2115 = vrot.slane %v1687, 1
      %v2116 = vsel %vm727, %v2114, %v2115
      %v2117 = vrot.slane %v1688, 1
      %v2118 = vsel %vm727, %v2115, %v2117
      %v2119 = vrot.slane %v1689, 1
      %v2120 = vsel %vm727, %v2117, %v2119
      %v2121 = vrot.slane %v1690, 1
      %v2122 = vsel %vm727, %v2119, %v2121
      %v2123 = vrot.slane %v1691, 1
      %v2124 = vsel %vm727, %v2121, %v2123
      %v2125 = vrot.slane %v1692, 1
      %v2126 = vsel %vm727, %v2123, %v2125
      %v2127 = vrot.slane %v1693, 1
      %v2128 = vsel %vm727, %v2125, %v2127
      %v2129 = vrot.slane %v1694, 1
      %v2130 = vsel %vm727, %v2127, %v2129
      %v2131 = vrot.slane %v1695, 1
      %v2132 = vsel %vm727, %v2129, %v2131
      %v2133 = vrot.slane %v1696, 1
      %v2134 = vsel %vm727, %v2131, %v2133
      %v2135 = vrot.slane %v1697, 1
      %v2136 = vsel %vm727, %v2133, %v2135
      %v2137 = vrot.slane %v1698, 1
      %v2138 = vsel %vm727, %v2135, %v2137
      %v2139 = vrot.slane %v1857, 1
      %v2140 = vsel %vm727, %v2137, %v2139
      %v2142 = vsel %vm478, %v2116, 0
      %v2145 = vsel %vm478, %v2118, 0
      %v2148 = vsel %vm478, %v2120, 0
      %v2151 = vsel %vm478, %v2122, 0
      %v2154 = vsel %vm478, %v2124, 0
      %v2157 = vsel %vm478, %v2126, 0
      %v2160 = vsel %vm478, %v2128, 0
      %v2163 = vsel %vm478, %v2130, 0
      %v2166 = vsel %vm478, %v2132, 0
      %v2169 = vsel %vm478, %v2134, 0
      %v2172 = vsel %vm478, %v2136, 0
      %v2175 = vsel %vm478, %v2138, 0
      %v2178 = vsel %vm478, %v2140, 0
      %v2181 = vsel %vm478, %v2139, 0
      %v2184 = vand.u32 %v2110, %v524
      %2186 = vmatpush.bf16.msra.mxu0 0
      %2187 = vmatpush.bf16.msra.mxu0 0
      %2188 = vmatpush.bf16.msra.mxu0 0
      %2189 = vmatpush.bf16.msra.mxu0 0
      %2190 = vmatpush.bf16.msra.mxu0 0
      %2191 = vmatpush.bf16.msra.mxu0 0
      %2192 = vmatpush.bf16.msra.mxu0 0
      %2193 = vmatpush.bf16.msra.mxu0 %v2184
      %2194 = vmatmul.bf16.gmra.mxu0 %v2142
      %v2195 = vpop.f32.mrf.mxu0
      %v2196 = vadd.f32 0.0, %v2195
      %v2197 = vpop.f32.mrf.mxu0
      %v2198 = vadd.f32 0.0, %v2197
      %2199 = vmatmul.bf16.gmra.mxu0 %v2145
      %v2200 = vpop.f32.mrf.mxu0
      %v2201 = vadd.f32 0.0, %v2200
      %v2202 = vpop.f32.mrf.mxu0
      %v2203 = vadd.f32 0.0, %v2202
      %2204 = vmatmul.bf16.gmra.mxu0 %v2148
      %v2205 = vpop.f32.mrf.mxu0
      %v2206 = vadd.f32 0.0, %v2205
      %v2207 = vpop.f32.mrf.mxu0
      %v2208 = vadd.f32 0.0, %v2207
      %2209 = vmatmul.bf16.gmra.mxu0 %v2151
      %v2210 = vpop.f32.mrf.mxu0
      %v2211 = vadd.f32 0.0, %v2210
      %v2212 = vpop.f32.mrf.mxu0
      %v2213 = vadd.f32 0.0, %v2212
      %2214 = vmatmul.bf16.gmra.mxu0 %v2154
      %v2215 = vpop.f32.mrf.mxu0
      %v2216 = vadd.f32 0.0, %v2215
      %v2217 = vpop.f32.mrf.mxu0
      %v2218 = vadd.f32 0.0, %v2217
      %2219 = vmatmul.bf16.gmra.mxu0 %v2157
      %v2220 = vpop.f32.mrf.mxu0
      %v2221 = vadd.f32 0.0, %v2220
      %v2222 = vpop.f32.mrf.mxu0
      %v2223 = vadd.f32 0.0, %v2222
      %2224 = vmatmul.bf16.gmra.mxu0 %v2160
      %v2225 = vpop.f32.mrf.mxu0
      %v2226 = vadd.f32 0.0, %v2225
      %v2227 = vpop.f32.mrf.mxu0
      %v2228 = vadd.f32 0.0, %v2227
      %2229 = vmatmul.bf16.gmra.mxu0 %v2163
      %v2230 = vpop.f32.mrf.mxu0
      %v2231 = vadd.f32 0.0, %v2230
      %v2232 = vpop.f32.mrf.mxu0
      %v2233 = vadd.f32 0.0, %v2232
      %2234 = vmatmul.bf16.gmra.mxu0 %v2166
      %v2235 = vpop.f32.mrf.mxu0
      %v2236 = vadd.f32 0.0, %v2235
      %v2237 = vpop.f32.mrf.mxu0
      %v2238 = vadd.f32 0.0, %v2237
      %2239 = vmatmul.bf16.gmra.mxu0 %v2169
      %v2240 = vpop.f32.mrf.mxu0
      %v2241 = vadd.f32 0.0, %v2240
      %v2242 = vpop.f32.mrf.mxu0
      %v2243 = vadd.f32 0.0, %v2242
      %2244 = vmatmul.bf16.gmra.mxu0 %v2172
      %v2245 = vpop.f32.mrf.mxu0
      %v2246 = vadd.f32 0.0, %v2245
      %v2247 = vpop.f32.mrf.mxu0
      %v2248 = vadd.f32 0.0, %v2247
      %2249 = vmatmul.bf16.gmra.mxu0 %v2175
      %v2250 = vpop.f32.mrf.mxu0
      %v2251 = vadd.f32 0.0, %v2250
      %v2252 = vpop.f32.mrf.mxu0
      %v2253 = vadd.f32 0.0, %v2252
      %2254 = vmatmul.bf16.gmra.mxu0 %v2178
      %v2255 = vpop.f32.mrf.mxu0
      %v2256 = vadd.f32 0.0, %v2255
      %v2257 = vpop.f32.mrf.mxu0
      %v2258 = vadd.f32 0.0, %v2257
      %2259 = vmatmul.bf16.gmra.mxu0 %v2181
      %v2260 = vpop.f32.mrf.mxu0
      %v2261 = vadd.f32 0.0, %v2260
      %v2262 = vpop.f32.mrf.mxu0
      %v2263 = vadd.f32 0.0, %v2262
      %2264 = vdwg.mxu0
      %v2265 = vadd.f32 %v2080, %v2196
      %v2266 = vadd.f32 %v2081, %v2198
      %v2267 = vadd.f32 %v2082, %v2201
      %v2268 = vadd.f32 %v2083, %v2203
      %v2269 = vadd.f32 %v2084, %v2206
      %v2270 = vadd.f32 %v2085, %v2208
      %v2271 = vadd.f32 %v2086, %v2211
      %v2272 = vadd.f32 %v2087, %v2213
      %v2273 = vadd.f32 %v2088, %v2216
      %v2274 = vadd.f32 %v2089, %v2218
      %v2275 = vadd.f32 %v2090, %v2221
      %v2276 = vadd.f32 %v2091, %v2223
      %v2277 = vadd.f32 %v2092, %v2226
      %v2278 = vadd.f32 %v2093, %v2228
      %v2279 = vadd.f32 %v2094, %v2231
      %v2280 = vadd.f32 %v2095, %v2233
      %v2281 = vadd.f32 %v2096, %v2236
      %v2282 = vadd.f32 %v2097, %v2238
      %v2283 = vadd.f32 %v2098, %v2241
      %v2284 = vadd.f32 %v2099, %v2243
      %v2285 = vadd.f32 %v2100, %v2246
      %v2286 = vadd.f32 %v2101, %v2248
      %v2287 = vadd.f32 %v2102, %v2251
      %v2288 = vadd.f32 %v2103, %v2253
      %v2289 = vadd.f32 %v2104, %v2256
      %v2290 = vadd.f32 %v2105, %v2258
      %v2291 = vadd.f32 %v2106, %v2261
      %v2292 = vadd.f32 %v2107, %v2263
      %v2293 = vpack.c.bf16 %v2265, %v2265
      %v2294 = vpack.c.bf16 %v2266, %v2266
      %v2295 = vpack.c.bf16 %v2267, %v2267
      %v2296 = vpack.c.bf16 %v2268, %v2268
      %v2297 = vpack.c.bf16 %v2269, %v2269
      %v2298 = vpack.c.bf16 %v2270, %v2270
      %v2299 = vpack.c.bf16 %v2271, %v2271
      %v2300 = vpack.c.bf16 %v2272, %v2272
      %v2301 = vpack.c.bf16 %v2273, %v2273
      %v2302 = vpack.c.bf16 %v2274, %v2274
      %v2303 = vpack.c.bf16 %v2275, %v2275
      %v2304 = vpack.c.bf16 %v2276, %v2276
      %v2305 = vpack.c.bf16 %v2277, %v2277
      %v2306 = vpack.c.bf16 %v2278, %v2278
      %v2307 = vpack.c.bf16 %v2279, %v2279
      %v2308 = vpack.c.bf16 %v2280, %v2280
      %v2309 = vpack.c.bf16 %v2281, %v2281
      %v2310 = vpack.c.bf16 %v2282, %v2282
      %v2311 = vpack.c.bf16 %v2283, %v2283
      %v2312 = vpack.c.bf16 %v2284, %v2284
      %v2313 = vpack.c.bf16 %v2285, %v2285
      %v2314 = vpack.c.bf16 %v2286, %v2286
      %v2315 = vpack.c.bf16 %v2287, %v2287
      %v2316 = vpack.c.bf16 %v2288, %v2288
      %v2317 = vpack.c.bf16 %v2289, %v2289
      %v2318 = vpack.c.bf16 %v2290, %v2290
      %v2319 = vpack.c.bf16 %v2291, %v2291
      %v2320 = vpack.c.bf16 %v2292, %v2292
      %2321 = vst [vmem:[%s197] sm:$0xf] %v2293
      %2322 = vst [vmem:[%s197 + $0x4] sm:$0xf] %v2294
      %2323 = vst [vmem:[%s197 + $0x8] sm:$0xf] %v2295
      %2324 = vst [vmem:[%s197 + $0xc] sm:$0xf] %v2296
      %2325 = vst [vmem:[%s197 + $0x10] sm:$0xf] %v2297
      %2326 = vst [vmem:[%s197 + $0x14] sm:$0xf] %v2298
      %2327 = vst [vmem:[%s197 + $0x18] sm:$0xf] %v2299
      %2328 = vst [vmem:[%s197 + $0x1c] sm:$0xf] %v2300
      %2329 = vst [vmem:[%s197 + $0x20] sm:$0xf] %v2301
      %2330 = vst [vmem:[%s197 + $0x24] sm:$0xf] %v2302
      %2331 = vst [vmem:[%s197 + $0x28] sm:$0xf] %v2303
      %2332 = vst [vmem:[%s197 + $0x2c] sm:$0xf] %v2304
      %2333 = vst [vmem:[%s197 + $0x30] sm:$0xf] %v2305
      %2334 = vst [vmem:[%s197 + $0x34] sm:$0xf] %v2306
      %2335 = vst [vmem:[%s197 + $0x38] sm:$0xf] %v2307
      %2336 = vst [vmem:[%s197 + $0x3c] sm:$0xf] %v2308
      %2337 = vst [vmem:[%s197 + $0x40] sm:$0xf] %v2309
      %2338 = vst [vmem:[%s197 + $0x44] sm:$0xf] %v2310
      %2339 = vst [vmem:[%s197 + $0x48] sm:$0xf] %v2311
      %2340 = vst [vmem:[%s197 + $0x4c] sm:$0xf] %v2312
      %2341 = vst [vmem:[%s197 + $0x50] sm:$0xf] %v2313
      %2342 = vst [vmem:[%s197 + $0x54] sm:$0xf] %v2314
      %2343 = vst [vmem:[%s197 + $0x58] sm:$0xf] %v2315
      %2344 = vst [vmem:[%s197 + $0x5c] sm:$0xf] %v2316
      %2345 = vst [vmem:[%s197 + $0x60] sm:$0xf] %v2317
      %2346 = vst [vmem:[%s197 + $0x64] sm:$0xf] %v2318
      %2347 = vst [vmem:[%s197 + $0x68] sm:$0xf] %v2319
      %2348 = vst [vmem:[%s197 + $0x6c] sm:$0x7] %v2320
      %2349 = vst [vmem:[%s197 + $0x6c] sm:$0x8] 0
      %2350 = vst [vmem:[%s197 + $0x70] sm:$0xf] 0
      %2351 = vst [vmem:[%s197 + $0x74] sm:$0xf] 0
      %2352 = vst [vmem:[%s197 + $0x78] sm:$0xf] 0
      %2353 = vst [vmem:[%s197 + $0x7c] sm:$0xf] 0
      %p2354 = scmp.lt.s32.totalorder %s15, 1
      %s2355 = scalar_select %p2354, %s15, 1
      %s2356 = smul.addr %s2355, 32
      %s2357 = smul.addr %s2356, 4
      %s2358 = scalar_lea.vmem %s4, %s2357
      // Predicated region
      $region37: #{p4m_densenet_forward.11} parent=35 // pred_check
        %p2359 = pneg %p122
      $region38: #{p4m_densenet_forward.11} parent=35 // pred_check_branch
        %2361 = sbr.rel (%p2359) target = $region40
      $region39: #{p4m_densenet_forward.11} parent=35 // pred_region
        _
      $region40: #{p4m_densenet_forward.11} parent=35 // pred_fallthru
        _
    $region36: #{p4m_densenet_forward.11} parent=5 // pred_fallthru
      _
    %p2362 = scmp.le.s32.totalorder 2, %s10
    // Predicated region
    $region41: #{p4m_densenet_forward.11} parent=5 // pred_check
      %p2363 = pneg %p2362
    $region42: #{p4m_densenet_forward.11} parent=5 // pred_check_branch
      %2365 = sbr.rel (%p2363) target = $region44
    $region43: #{p4m_densenet_forward.11} parent=5 // pred_region
      %s2366 = ssub.s32 %s10, 2
      // Predicated region
      $region45: #{p4m_densenet_forward.11} parent=43 // pred_check
        %p2367 = pneg %p128
      $region46: #{p4m_densenet_forward.11} parent=43 // pred_check_branch
        %2369 = sbr.rel (%p2367) target = $region48
      $region47: #{p4m_densenet_forward.11} parent=43 // pred_region
        %p2370 = scmp.lt.s32.totalorder %s16, 1
        %s2371 = scalar_select %p2370, %s16, 1
        %s2372 = smul.addr %s2371, 32
        %s2373 = smul.addr %s2372, 4
        %s2374 = scalar_lea.vmem %s4, %s2373
      $region48: #{p4m_densenet_forward.11} parent=43 // pred_fallthru
        _
    $region44: #{p4m_densenet_forward.11} parent=5 // pred_fallthru
      _
  $region6: #{p4m_densenet_forward.11} parent=0 // loop_footer
    %s14 = sadd.s32 1, %s10
  $region7: #{p4m_densenet_forward.11} parent=0 // loop_footer_branch
    %9 = sbr.rel target = $region3
  $region8: #{p4m_densenet_forward.11} parent=0 // loop_exit
    _

// kernel: p4m_densenet_forward.14
$region0: #{p4m_densenet_forward.14}
  #allocation0 [shape = 'u32[]', space=smem, size = 0x4, offset = 0x4, fixed_abs, tag = 'smem constant byte address 0x4 - core index']
  #allocation1 [shape = 'u32[72,128]{1,0:T(1,128)}', space=vmem, size = 0x9000, scoped, tag = 'internal scratch']
  %s0 = inlined_call_operand.vmem [shape: bf16[288,128], index: 0, kind: input, shape index: {}]
  %s1 = inlined_call_operand.vmem [shape: f32[1,2,128], index: 1, kind: output, shape index: {}]
  %s2 = sld [smem:[#allocation0]]
  $region14: #{p4m_densenet_forward.14} parent=0
    _
  %s4 = ssub.s32 1, %s2
  %s5 = scalar_select 0, %s4, %s2
  // Predicated region
  $region2: #{p4m_densenet_forward.14} parent=0 // pred_check
    _
  $region3: #{p4m_densenet_forward.14} parent=0 // pred_check_branch
    %7 = sbr.rel (0) target = $region5
  $region4: #{p4m_densenet_forward.14} parent=0 // pred_region
    _
  $region5: #{p4m_densenet_forward.14} parent=0 // pred_fallthru
    _
  %v8 = vld [vmem:[%s0] sm:$0xf]
  %v9 = vld [vmem:[%s0 + $0x4] sm:$0xf]
  %v10 = vld [vmem:[%s0 + $0x8] sm:$0xf]
  %v11 = vld [vmem:[%s0 + $0xc] sm:$0xf]
  %v12 = vld [vmem:[%s0 + $0x10] sm:$0xf]
  %v13 = vld [vmem:[%s0 + $0x14] sm:$0xf]
  %v14 = vld [vmem:[%s0 + $0x18] sm:$0xf]
  %v15 = vld [vmem:[%s0 + $0x1c] sm:$0xf]
  %v16 = vld [vmem:[%s0 + $0x20] sm:$0xf]
  %v17 = vld [vmem:[%s0 + $0x24] sm:$0xf]
  %v18 = vld [vmem:[%s0 + $0x28] sm:$0xf]
  %v19 = vld [vmem:[%s0 + $0x2c] sm:$0xf]
  %v20 = vld [vmem:[%s0 + $0x30] sm:$0xf]
  %v21 = vld [vmem:[%s0 + $0x34] sm:$0xf]
  %v22 = vld [vmem:[%s0 + $0x38] sm:$0xf]
  %v23 = vld [vmem:[%s0 + $0x3c] sm:$0xf]
  %v24 = vld [vmem:[%s0 + $0x40] sm:$0xf]
  %v25 = vld [vmem:[%s0 + $0x44] sm:$0xf]
  %v26 = vld [vmem:[%s0 + $0x48] sm:$0xf]
  %v27 = vld [vmem:[%s0 + $0x4c] sm:$0xf]
  %v28 = vld [vmem:[%s0 + $0x50] sm:$0xf]
  %v29 = vld [vmem:[%s0 + $0x54] sm:$0xf]
  %v30 = vld [vmem:[%s0 + $0x58] sm:$0xf]
  %v31 = vld [vmem:[%s0 + $0x5c] sm:$0xf]
  %v32 = vld [vmem:[%s0 + $0x60] sm:$0xf]
  %v33 = vld [vmem:[%s0 + $0x64] sm:$0xf]
  %v34 = vld [vmem:[%s0 + $0x68] sm:$0xf]
  %v35 = vld [vmem:[%s0 + $0x6c] sm:$0xf]
  %v36 = vld [vmem:[%s0 + $0x70] sm:$0xf]
  %v37 = vld [vmem:[%s0 + $0x74] sm:$0xf]
  %v38 = vld [vmem:[%s0 + $0x78] sm:$0xf]
  %v39 = vld [vmem:[%s0 + $0x7c] sm:$0xf]
  %v40 = vld [vmem:[%s0 + $0x80] sm:$0xf]
  %v41 = vld [vmem:[%s0 + $0x84] sm:$0xf]
  %v42 = vld [vmem:[%s0 + $0x88] sm:$0xf]
  %v43 = vld [vmem:[%s0 + $0x8c] sm:$0xf]
  %v44 = vunpack.c.l.bf16 %v8
  %v45 = vunpack.c.l.bf16 %v9
  %v46 = vunpack.c.l.bf16 %v10
  %v47 = vunpack.c.l.bf16 %v11
  %v48 = vunpack.c.l.bf16 %v12
  %v49 = vunpack.c.l.bf16 %v13
  %v50 = vunpack.c.l.bf16 %v14
  %v51 = vunpack.c.l.bf16 %v15
  %v52 = vunpack.c.l.bf16 %v16
  %v53 = vunpack.c.l.bf16 %v17
  %v54 = vunpack.c.l.bf16 %v18
  %v55 = vunpack.c.l.bf16 %v19
  %v56 = vunpack.c.l.bf16 %v20
  %v57 = vunpack.c.l.bf16 %v21
  %v58 = vunpack.c.l.bf16 %v22
  %v59 = vunpack.c.l.bf16 %v23
  %v60 = vunpack.c.l.bf16 %v24
  %v61 = vunpack.c.l.bf16 %v25
  %v62 = vunpack.c.l.bf16 %v26
  %v63 = vunpack.c.l.bf16 %v27
  %v64 = vunpack.c.l.bf16 %v28
  %v65 = vunpack.c.l.bf16 %v29
  %v66 = vunpack.c.l.bf16 %v30
  %v67 = vunpack.c.l.bf16 %v31
  %v68 = vunpack.c.l.bf16 %v32
  %v69 = vunpack.c.l.bf16 %v33
  %v70 = vunpack.c.l.bf16 %v34
  %v71 = vunpack.c.l.bf16 %v35
  %v72 = vunpack.c.l.bf16 %v36
  %v73 = vunpack.c.l.bf16 %v37
  %v74 = vunpack.c.l.bf16 %v38
  %v75 = vunpack.c.l.bf16 %v39
  %v76 = vunpack.c.l.bf16 %v40
  %v77 = vunpack.c.l.bf16 %v41
  %v78 = vunpack.c.l.bf16 %v42
  %v79 = vunpack.c.l.bf16 %v43
  %v80 = vadd.f32 %v44, %v45
  %v81 = vadd.f32 %v80, %v46
  %v82 = vadd.f32 %v81, %v47
  %v83 = vadd.f32 %v82, %v48
  %v84 = vadd.f32 %v83, %v49
  %v85 = vadd.f32 %v84, %v50
  %v86 = vadd.f32 %v85, %v51
  %v87 = vadd.f32 %v86, %v52
  %v88 = vadd.f32 %v87, %v53
  %v89 = vadd.f32 %v88, %v54
  %v90 = vadd.f32 %v89, %v55
  %v91 = vadd.f32 %v90, %v56
  %v92 = vadd.f32 %v91, %v57
  %v93 = vadd.f32 %v92, %v58
  %v94 = vadd.f32 %v93, %v59
  %v95 = vadd.f32 %v94, %v60
  %v96 = vadd.f32 %v95, %v61
  %v97 = vadd.f32 %v96, %v62
  %v98 = vadd.f32 %v97, %v63
  %v99 = vadd.f32 %v98, %v64
  %v100 = vadd.f32 %v99, %v65
  %v101 = vadd.f32 %v100, %v66
  %v102 = vadd.f32 %v101, %v67
  %v103 = vadd.f32 %v102, %v68
  %v104 = vadd.f32 %v103, %v69
  %v105 = vadd.f32 %v104, %v70
  %v106 = vadd.f32 %v105, %v71
  %v107 = vadd.f32 %v106, %v72
  %v108 = vadd.f32 %v107, %v73
  %v109 = vadd.f32 %v108, %v74
  %v110 = vadd.f32 %v109, %v75
  %v111 = vadd.f32 %v110, %v76
  %v112 = vadd.f32 %v111, %v77
  %v113 = vadd.f32 %v112, %v78
  %v114 = vadd.f32 %v113, %v79
  %v115 = vrot.slane %v114, 4
  %v116 = vadd.f32 %v114, %v115
  %v117 = vrot.slane %v116, 2
  %v118 = vadd.f32 %v116, %v117
  %v119 = vrot.slane %v118, 1
  %v120 = vadd.f32 %v118, %v119
  %v121 = vmul.f32 %v44, %v44
  %v122 = vmul.f32 %v45, %v45
  %v123 = vmul.f32 %v46, %v46
  %v124 = vmul.f32 %v47, %v47
  %v125 = vmul.f32 %v48, %v48
  %v126 = vmul.f32 %v49, %v49
  %v127 = vmul.f32 %v50, %v50
  %v128 = vmul.f32 %v51, %v51
  %v129 = vmul.f32 %v52, %v52
  %v130 = vmul.f32 %v53, %v53
  %v131 = vmul.f32 %v54, %v54
  %v132 = vmul.f32 %v55, %v55
  %v133 = vmul.f32 %v56, %v56
  %v134 = vmul.f32 %v57, %v57
  %v135 = vmul.f32 %v58, %v58
  %v136 = vmul.f32 %v59, %v59
  %v137 = vmul.f32 %v60, %v60
  %v138 = vmul.f32 %v61, %v61
  %v139 = vmul.f32 %v62, %v62
  %v140 = vmul.f32 %v63, %v63
  %v141 = vmul.f32 %v64, %v64
  %v142 = vmul.f32 %v65, %v65
  %v143 = vmul.f32 %v66, %v66
  %v144 = vmul.f32 %v67, %v67
  %v145 = vmul.f32 %v68, %v68
  %v146 = vmul.f32 %v69, %v69
  %v147 = vmul.f32 %v70, %v70
  %v148 = vmul.f32 %v71, %v71
  %v149 = vmul.f32 %v72, %v72
  %v150 = vmul.f32 %v73, %v73
  %v151 = vmul.f32 %v74, %v74
  %v152 = vmul.f32 %v75, %v75
  %v153 = vmul.f32 %v76, %v76
  %v154 = vmul.f32 %v77, %v77
  %v155 = vmul.f32 %v78, %v78
  %v156 = vmul.f32 %v79, %v79
  %v157 = vadd.f32 %v121, %v122
  %v158 = vadd.f32 %v157, %v123
  %v159 = vadd.f32 %v158, %v124
  %v160 = vadd.f32 %v159, %v125
  %v161 = vadd.f32 %v160, %v126
  %v162 = vadd.f32 %v161, %v127
  %v163 = vadd.f32 %v162, %v128
  %v164 = vadd.f32 %v163, %v129
  %v165 = vadd.f32 %v164, %v130
  %v166 = vadd.f32 %v165, %v131
  %v167 = vadd.f32 %v166, %v132
  %v168 = vadd.f32 %v167, %v133
  %v169 = vadd.f32 %v168, %v134
  %v170 = vadd.f32 %v169, %v135
  %v171 = vadd.f32 %v170, %v136
  %v172 = vadd.f32 %v171, %v137
  %v173 = vadd.f32 %v172, %v138
  %v174 = vadd.f32 %v173, %v139
  %v175 = vadd.f32 %v174, %v140
  %v176 = vadd.f32 %v175, %v141
  %v177 = vadd.f32 %v176, %v142
  %v178 = vadd.f32 %v177, %v143
  %v179 = vadd.f32 %v178, %v144
  %v180 = vadd.f32 %v179, %v145
  %v181 = vadd.f32 %v180, %v146
  %v182 = vadd.f32 %v181, %v147
  %v183 = vadd.f32 %v182, %v148
  %v184 = vadd.f32 %v183, %v149
  %v185 = vadd.f32 %v184, %v150
  %v186 = vadd.f32 %v185, %v151
  %v187 = vadd.f32 %v186, %v152
  %v188 = vadd.f32 %v187, %v153
  %v189 = vadd.f32 %v188, %v154
  %v190 = vadd.f32 %v189, %v155
  %v191 = vadd.f32 %v190, %v156
  %v192 = vrot.slane %v191, 4
  %v193 = vadd.f32 %v191, %v192
  %v194 = vrot.slane %v193, 2
  %v195 = vadd.f32 %v193, %v194
  %v196 = vrot.slane %v195, 1
  %v197 = vadd.f32 %v195, %v196
  %vm198 = vcmask 1040384
  %v199 = vsel %vm198, %v120, %v197
  %200 = vst [vmem:[%s1] sm:$0x3] %v199
  // Predicated region
  $region6: #{p4m_densenet_forward.14} parent=0 // pred_check
    _
  $region7: #{p4m_densenet_forward.14} parent=0 // pred_check_branch
    %202 = sbr.rel (0) target = $region9
  $region8: #{p4m_densenet_forward.14} parent=0 // pred_region
    _
  $region9: #{p4m_densenet_forward.14} parent=0 // pred_fallthru
    _
  // Predicated region
  $region10: #{p4m_densenet_forward.14} parent=0 // pred_check
    _
  $region11: #{p4m_densenet_forward.14} parent=0 // pred_check_branch
    %204 = sbr.rel (0) target = $region13
  $region12: #{p4m_densenet_forward.14} parent=0 // pred_region
    _
  $region13: #{p4m_densenet_forward.14} parent=0 // pred_fallthru
    _

// kernel: p4m_densenet_forward.13
$region0: #{p4m_densenet_forward.13}
  #allocation0 [shape = 'u32[]', space=smem, size = 0x4, offset = 0x4, fixed_abs, tag = 'smem constant byte address 0x4 - core index']
  #allocation1 [shape = 'u32[72,128]{1,0:T(1,128)}', space=vmem, size = 0x9000, scoped, tag = 'internal scratch']
  #allocation2 [shape = 'bf16[196,64]{1,0:T(8,128)(2,1)}', space=vmem, size = 0xc800, scoped, tag = 'scratch operand']
  %s0 = inlined_call_operand.vmem [shape: bf16[2,196,64], index: 0, kind: input, shape index: {}]
  %s1 = inlined_call_operand.vmem [shape: f32[1,64], index: 1, kind: input, shape index: {}]
  %s2 = inlined_call_operand.vmem [shape: f32[1,64], index: 2, kind: input, shape index: {}]
  %s3 = inlined_call_operand.vmem [shape: bf16[9,64,128], index: 3, kind: input, shape index: {}]
  %s4 = inlined_call_operand.vmem [shape: bf16[2,196,128], index: 4, kind: output, shape index: {}]
  %s5 = sld [smem:[#allocation0]]
  $region49: #{p4m_densenet_forward.13} parent=0
    _
  %s7 = ssub.s32 1, %s5
  %s8 = scalar_select 0, %s7, %s5
  loop: start=0, step=1, limit=4
  $region2: #{p4m_densenet_forward.13} parent=0 // loop_pre_header
    _
  $region3: #{p4m_densenet_forward.13} parent=0 // loop_header
    %s10 = sphi 0, %s14
    %p11 = scmp.ge.s32.totalorder %s10, 4
    %s20 = sphi 0, %s22
    %s23 = sphi 0, %s20
    %s24 = sphi 0, %s23
    %s40 = sphi 0, %s24
    %s44 = sphi 0, %s44
    %s46 = sphi 0, %s44
    %s47 = sphi 0, %s46
    %s61 = sphi 0, %s47
    %s65 = sphi 0, %s65
    %s67 = sphi 0, %s65
    %s68 = sphi 0, %s67
    %s82 = sphi 0, %s68
    %s86 = sphi 0, %s86
    %s88 = sphi 0, %s86
    %s89 = sphi 0, %s88
    %s103 = sphi 0, %s89
    %s109 = sphi 0, %s111
    %s112 = sphi 0, %s109
    %s113 = sphi 0, %s112
    %s129 = sphi 0, %s113
  $region4: #{p4m_densenet_forward.13} parent=0 // loop_header_branch
    %13 = sbr.rel (%p11) target = $region8
  $region5: #{p4m_densenet_forward.13} parent=0 // loop_body
    %s15 = ssub.s32 %s10, 1
    %s16 = ssub.s32 %s10, 2
    %s17 = sadd.s32 %s10, 1
    %s18 = ssub.s32 %s10, %s17
    %p19 = scmp.eq.s32.totalorder %s18, 0
    %s21 = sadd.s32 %s20, 1
    %s22 = scalar_select %p19, %s20, %s21
    %p25 = pneg %p19
    %p26 = scmp.eq.s32.totalorder %s10, 1
    %p27 = por %p25, %p26
    %p28 = scmp.ne.s32.totalorder %s20, %s23
    %p29 = scmp.eq.s32.totalorder %s10, 0
    %p30 = por %p28, %p29
    %p31 = scmp.ne.s32.totalorder %s20, %s23
    %p32 = scmp.eq.s32.totalorder %s15, 1
    %p33 = por %p31, %p32
    %p34 = scmp.ne.s32.totalorder %s23, %s24
    %p35 = scmp.eq.s32.totalorder %s15, 0
    %p36 = por %p34, %p35
    %p37 = scmp.ne.s32.totalorder %s23, %s24
    %p38 = scmp.eq.s32.totalorder %s16, 1
    %p39 = por %p37, %p38
    %p41 = scmp.ne.s32.totalorder %s24, %s40
    %p42 = scmp.eq.s32.totalorder %s16, 0
    %p43 = por %p41, %p42
    %s45 = sadd.s32 %s44, 1
    %p48 = scmp.eq.s32.totalorder %s10, 1
    %p49 = scmp.ne.s32.totalorder %s44, %s46
    %p50 = scmp.eq.s32.totalorder %s10, 0
    %p51 = por %p49, %p50
    %p52 = scmp.ne.s32.totalorder %s44, %s46
    %p53 = scmp.eq.s32.totalorder %s15, 1
    %p54 = por %p52, %p53
    %p55 = scmp.ne.s32.totalorder %s46, %s47
    %p56 = scmp.eq.s32.totalorder %s15, 0
    %p57 = por %p55, %p56
    %p58 = scmp.ne.s32.totalorder %s46, %s47
    %p59 = scmp.eq.s32.totalorder %s16, 1
    %p60 = por %p58, %p59
    %p62 = scmp.ne.s32.totalorder %s47, %s61
    %p63 = scmp.eq.s32.totalorder %s16, 0
    %p64 = por %p62, %p63
    %s66 = sadd.s32 %s65, 1
    %p69 = scmp.eq.s32.totalorder %s10, 1
    %p70 = scmp.ne.s32.totalorder %s65, %s67
    %p71 = scmp.eq.s32.totalorder %s10, 0
    %p72 = por %p70, %p71
    %p73 = scmp.ne.s32.totalorder %s65, %s67
    %p74 = scmp.eq.s32.totalorder %s15, 1
    %p75 = por %p73, %p74
    %p76 = scmp.ne.s32.totalorder %s67, %s68
    %p77 = scmp.eq.s32.totalorder %s15, 0
    %p78 = por %p76, %p77
    %p79 = scmp.ne.s32.totalorder %s67, %s68
    %p80 = scmp.eq.s32.totalorder %s16, 1
    %p81 = por %p79, %p80
    %p83 = scmp.ne.s32.totalorder %s68, %s82
    %p84 = scmp.eq.s32.totalorder %s16, 0
    %p85 = por %p83, %p84
    %s87 = sadd.s32 %s86, 1
    %p90 = scmp.eq.s32.totalorder %s10, 1
    %p91 = scmp.ne.s32.totalorder %s86, %s88
    %p92 = scmp.eq.s32.totalorder %s10, 0
    %p93 = por %p91, %p92
    %p94 = scmp.ne.s32.totalorder %s86, %s88
    %p95 = scmp.eq.s32.totalorder %s15, 1
    %p96 = por %p94, %p95
    %p97 = scmp.ne.s32.totalorder %s88, %s89
    %p98 = scmp.eq.s32.totalorder %s15, 0
    %p99 = por %p97, %p98
    %p100 = scmp.ne.s32.totalorder %s88, %s89
    %p101 = scmp.eq.s32.totalorder %s16, 1
    %p102 = por %p100, %p101
    %p104 = scmp.ne.s32.totalorder %s89, %s103
    %p105 = scmp.eq.s32.totalorder %s16, 0
    %p106 = por %p104, %p105
    %s107 = ssub.s32 %s10, %s17
    %p108 = scmp.eq.s32.totalorder %s107, 0
    %s110 = sadd.s32 %s109, 1
    %s111 = scalar_select %p108, %s109, %s110
    %p114 = pneg %p108
    %p115 = scmp.eq.s32.totalorder %s10, 1
    %p116 = por %p114, %p115
    %p117 = scmp.ne.s32.totalorder %s109, %s112
    %p118 = scmp.eq.s32.totalorder %s10, 0
    %p119 = por %p117, %p118
    %p120 = scmp.ne.s32.totalorder %s109, %s112
    %p121 = scmp.eq.s32.totalorder %s15, 1
    %p122 = por %p120, %p121
    %p123 = scmp.ne.s32.totalorder %s112, %s113
    %p124 = scmp.eq.s32.totalorder %s15, 0
    %p125 = por %p123, %p124
    %p126 = scmp.ne.s32.totalorder %s112, %s113
    %p127 = scmp.eq.s32.totalorder %s16, 1
    %p128 = por %p126, %p127
    %p130 = scmp.ne.s32.totalorder %s113, %s129
    %p131 = scmp.eq.s32.totalorder %s16, 0
    %p132 = por %p130, %p131
    %p133 = scmp.le.s32.totalorder 1, %s10
    %p134 = scmp.lt.s32.totalorder %s10, 3
    %p135 = pnand %p133, %p134
    %p136 = pneg %p135
    // Predicated region
    $region9: #{p4m_densenet_forward.13} parent=5 // pred_check
      _
    $region10: #{p4m_densenet_forward.13} parent=5 // pred_check_branch
      %138 = sbr.rel (%p135) target = $region12
    $region11: #{p4m_densenet_forward.13} parent=5 // pred_region
      %s139 = ssub.s32 %s10, 1
      // Predicated region
      $region13: #{p4m_densenet_forward.13} parent=11 // pred_check
        %p140 = pneg %p57
      $region14: #{p4m_densenet_forward.13} parent=11 // pred_check_branch
        %142 = sbr.rel (%p140) target = $region16
      $region15: #{p4m_densenet_forward.13} parent=11 // pred_region
        _
      $region16: #{p4m_densenet_forward.13} parent=11 // pred_fallthru
        _
      // Predicated region
      $region17: #{p4m_densenet_forward.13} parent=11 // pred_check
        %p143 = pneg %p78
      $region18: #{p4m_densenet_forward.13} parent=11 // pred_check_branch
        %145 = sbr.rel (%p143) target = $region20
      $region19: #{p4m_densenet_forward.13} parent=11 // pred_region
        _
      $region20: #{p4m_densenet_forward.13} parent=11 // pred_fallthru
        _
      // Predicated region
      $region21: #{p4m_densenet_forward.13} parent=11 // pred_check
        %p146 = pneg %p99
      $region22: #{p4m_densenet_forward.13} parent=11 // pred_check_branch
        %148 = sbr.rel (%p146) target = $region24
      $region23: #{p4m_densenet_forward.13} parent=11 // pred_region
        _
      $region24: #{p4m_densenet_forward.13} parent=11 // pred_fallthru
        _
    $region12: #{p4m_densenet_forward.13} parent=5 // pred_fallthru
      _
    %p149 = scmp.lt.s32.totalorder %s10, 2
    // Predicated region
    $region25: #{p4m_densenet_forward.13} parent=5 // pred_check
      %p150 = pneg %p149
    $region26: #{p4m_densenet_forward.13} parent=5 // pred_check_branch
      %152 = sbr.rel (%p150) target = $region28
    $region27: #{p4m_densenet_forward.13} parent=5 // pred_region
      // Predicated region
      $region29: #{p4m_densenet_forward.13} parent=27 // pred_check
        %p153 = pneg %p30
      $region30: #{p4m_densenet_forward.13} parent=27 // pred_check_branch
        %155 = sbr.rel (%p153) target = $region32
      $region31: #{p4m_densenet_forward.13} parent=27 // pred_region
        %p156 = scmp.lt.s32.totalorder %s10, 1
        %s157 = scalar_select %p156, %s10, 1
        %s158 = smul.addr %s157, 25
        %s159 = smul.addr %s158, 4
        %s160 = scalar_lea.vmem %s0, %s159
      $region32: #{p4m_densenet_forward.13} parent=27 // pred_fallthru
        _
    $region28: #{p4m_densenet_forward.13} parent=5 // pred_fallthru
      _
    %p161 = scmp.le.s32.totalorder 1, %s10
    %p162 = scmp.lt.s32.totalorder %s10, 3
    %p163 = pnand %p161, %p162
    %p164 = pneg %p163
    // Predicated region
    $region33: #{p4m_densenet_forward.13} parent=5 // pred_check
      _
    $region34: #{p4m_densenet_forward.13} parent=5 // pred_check_branch
      %166 = sbr.rel (%p163) target = $region36
    $region35: #{p4m_densenet_forward.13} parent=5 // pred_region
      %s167 = ssub.s32 %s10, 1
      %p168 = scmp.lt.s32.totalorder %s15, 1
      %s169 = scalar_select %p168, %s15, 1
      %s170 = smul.addr %s169, 25
      %s171 = smul.addr %s170, 4
      %s172 = scalar_lea.vmem %s0, %s171
      %p173 = pneg %p36
      %p174 = pneg %p33
      %p175 = pneg %p57
      %p176 = pneg %p54
      %p177 = pneg %p78
      %p178 = pneg %p75
      %p179 = pneg %p99
      %p180 = pneg %p96
      %p181 = pneg %p125
      %p182 = pneg %p122
      %p183 = scmp.lt.s32.totalorder %s15, 1
      %s184 = scalar_select %p183, %s15, 1
      %s185 = smul.addr %s184, 25
      %s186 = smul.addr %s185, 4
      %s187 = scalar_lea.vmem %s4, %s186
      %p188 = scmp.lt.s32.totalorder %s15, 1
      %s189 = scalar_select %p188, %s15, 1
      %s190 = smul.addr %s189, 25
      %s191 = smul.addr %s190, 4
      %s192 = scalar_lea.vmem %s0, %s191
      %p193 = scmp.lt.s32.totalorder %s15, 1
      %s194 = scalar_select %p193, %s15, 1
      %s195 = smul.addr %s194, 25
      %s196 = smul.addr %s195, 4
      %s197 = scalar_lea.vmem %s4, %s196
      %v199 = vld [vmem:[%s192] sm:$0xf]
      %v200 = vld [vmem:[%s192 + $0x4] sm:$0xf]
      %v201 = vld [vmem:[%s192 + $0x8] sm:$0xf]
      %v202 = vld [vmem:[%s192 + $0xc] sm:$0xf]
      %v203 = vld [vmem:[%s192 + $0x10] sm:$0xf]
      %v204 = vld [vmem:[%s192 + $0x14] sm:$0xf]
      %v205 = vld [vmem:[%s192 + $0x18] sm:$0xf]
      %v206 = vld [vmem:[%s192 + $0x1c] sm:$0xf]
      %v207 = vld [vmem:[%s192 + $0x20] sm:$0xf]
      %v208 = vld [vmem:[%s192 + $0x24] sm:$0xf]
      %v209 = vld [vmem:[%s192 + $0x28] sm:$0xf]
      %v210 = vld [vmem:[%s192 + $0x2c] sm:$0xf]
      %v211 = vld [vmem:[%s192 + $0x30] sm:$0xf]
      %v212 = vld [vmem:[%s192 + $0x34] sm:$0xf]
      %v213 = vld [vmem:[%s192 + $0x38] sm:$0xf]
      %v214 = vld [vmem:[%s192 + $0x3c] sm:$0xf]
      %v215 = vld [vmem:[%s192 + $0x40] sm:$0xf]
      %v216 = vld [vmem:[%s192 + $0x44] sm:$0xf]
      %v217 = vld [vmem:[%s192 + $0x48] sm:$0xf]
      %v218 = vld [vmem:[%s192 + $0x4c] sm:$0xf]
      %v219 = vld [vmem:[%s192 + $0x50] sm:$0xf]
      %v220 = vld [vmem:[%s192 + $0x54] sm:$0xf]
      %v221 = vld [vmem:[%s192 + $0x58] sm:$0xf]
      %v222 = vld [vmem:[%s192 + $0x5c] sm:$0xf]
      %v223 = vld [vmem:[%s192 + $0x60] sm:$0x3]
      %v224 = vunpack.c.l.bf16 %v199
      %v225 = vunpack.c.l.bf16 %v200
      %v226 = vunpack.c.l.bf16 %v201
      %v227 = vunpack.c.l.bf16 %v202
      %v228 = vunpack.c.l.bf16 %v203
      %v229 = vunpack.c.l.bf16 %v204
      %v230 = vunpack.c.l.bf16 %v205
      %v231 = vunpack.c.l.bf16 %v206
      %v232 = vunpack.c.l.bf16 %v207
      %v233 = vunpack.c.l.bf16 %v208
      %v234 = vunpack.c.l.bf16 %v209
      %v235 = vunpack.c.l.bf16 %v210
      %v236 = vunpack.c.l.bf16 %v211
      %v237 = vunpack.c.l.bf16 %v212
      %v238 = vunpack.c.l.bf16 %v213
      %v239 = vunpack.c.l.bf16 %v214
      %v240 = vunpack.c.l.bf16 %v215
      %v241 = vunpack.c.l.bf16 %v216
      %v242 = vunpack.c.l.bf16 %v217
      %v243 = vunpack.c.l.bf16 %v218
      %v244 = vunpack.c.l.bf16 %v219
      %v245 = vunpack.c.l.bf16 %v220
      %v246 = vunpack.c.l.bf16 %v221
      %v247 = vunpack.c.l.bf16 %v222
      %v248 = vunpack.c.l.bf16 %v223
      %v249 = vld [vmem:[%s1] sm:$0x1]
      %v251 = vperm.slane %v249, 0
      %v253 = vmul.f32 %v224, %v251
      %v254 = vmul.f32 %v225, %v251
      %v255 = vmul.f32 %v226, %v251
      %v256 = vmul.f32 %v227, %v251
      %v257 = vmul.f32 %v228, %v251
      %v258 = vmul.f32 %v229, %v251
      %v259 = vmul.f32 %v230, %v251
      %v260 = vmul.f32 %v231, %v251
      %v261 = vmul.f32 %v232, %v251
      %v262 = vmul.f32 %v233, %v251
      %v263 = vmul.f32 %v234, %v251
      %v264 = vmul.f32 %v235, %v251
      %v265 = vmul.f32 %v236, %v251
      %v266 = vmul.f32 %v237, %v251
      %v267 = vmul.f32 %v238, %v251
      %v268 = vmul.f32 %v239, %v251
      %v269 = vmul.f32 %v240, %v251
      %v270 = vmul.f32 %v241, %v251
      %v271 = vmul.f32 %v242, %v251
      %v272 = vmul.f32 %v243, %v251
      %v273 = vmul.f32 %v244, %v251
      %v274 = vmul.f32 %v245, %v251
      %v275 = vmul.f32 %v246, %v251
      %v276 = vmul.f32 %v247, %v251
      %v277 = vmul.f32 %v248, %v251
      %v278 = vld [vmem:[%s2] sm:$0x1]
      %v280 = vperm.slane %v278, 0
      %v282 = vadd.f32 %v253, %v280
      %v283 = vadd.f32 %v254, %v280
      %v284 = vadd.f32 %v255, %v280
      %v285 = vadd.f32 %v256, %v280
      %v286 = vadd.f32 %v257, %v280
      %v287 = vadd.f32 %v258, %v280
      %v288 = vadd.f32 %v259, %v280
      %v289 = vadd.f32 %v260, %v280
      %v290 = vadd.f32 %v261, %v280
      %v291 = vadd.f32 %v262, %v280
      %v292 = vadd.f32 %v263, %v280
      %v293 = vadd.f32 %v264, %v280
      %v294 = vadd.f32 %v265, %v280
      %v295 = vadd.f32 %v266, %v280
      %v296 = vadd.f32 %v267, %v280
      %v297 = vadd.f32 %v268, %v280
      %v298 = vadd.f32 %v269, %v280
      %v299 = vadd.f32 %v270, %v280
      %v300 = vadd.f32 %v271, %v280
      %v301 = vadd.f32 %v272, %v280
      %v302 = vadd.f32 %v273, %v280
      %v303 = vadd.f32 %v274, %v280
      %v304 = vadd.f32 %v275, %v280
      %v305 = vadd.f32 %v276, %v280
      %v306 = vadd.f32 %v277, %v280
      %v307 = vmax.f32 %v282, 0.0
      %v308 = vmax.f32 %v283, 0.0
      %v309 = vmax.f32 %v284, 0.0
      %v310 = vmax.f32 %v285, 0.0
      %v311 = vmax.f32 %v286, 0.0
      %v312 = vmax.f32 %v287, 0.0
      %v313 = vmax.f32 %v288, 0.0
      %v314 = vmax.f32 %v289, 0.0
      %v315 = vmax.f32 %v290, 0.0
      %v316 = vmax.f32 %v291, 0.0
      %v317 = vmax.f32 %v292, 0.0
      %v318 = vmax.f32 %v293, 0.0
      %v319 = vmax.f32 %v294, 0.0
      %v320 = vmax.f32 %v295, 0.0
      %v321 = vmax.f32 %v296, 0.0
      %v322 = vmax.f32 %v297, 0.0
      %v323 = vmax.f32 %v298, 0.0
      %v324 = vmax.f32 %v299, 0.0
      %v325 = vmax.f32 %v300, 0.0
      %v326 = vmax.f32 %v301, 0.0
      %v327 = vmax.f32 %v302, 0.0
      %v328 = vmax.f32 %v303, 0.0
      %v329 = vmax.f32 %v304, 0.0
      %v330 = vmax.f32 %v305, 0.0
      %v331 = vmax.f32 %v306, 0.0
      %v332 = vpack.c.bf16 %v307, %v307
      %v333 = vpack.c.bf16 %v308, %v308
      %v334 = vpack.c.bf16 %v309, %v309
      %v335 = vpack.c.bf16 %v310, %v310
      %v336 = vpack.c.bf16 %v311, %v311
      %v337 = vpack.c.bf16 %v312, %v312
      %v338 = vpack.c.bf16 %v313, %v313
      %v339 = vpack.c.bf16 %v314, %v314
      %v340 = vpack.c.bf16 %v315, %v315
      %v341 = vpack.c.bf16 %v316, %v316
      %v342 = vpack.c.bf16 %v317, %v317
      %v343 = vpack.c.bf16 %v318, %v318
      %v344 = vpack.c.bf16 %v319, %v319
      %v345 = vpack.c.bf16 %v320, %v320
      %v346 = vpack.c.bf16 %v321, %v321
      %v347 = vpack.c.bf16 %v322, %v322
      %v348 = vpack.c.bf16 %v323, %v323
      %v349 = vpack.c.bf16 %v324, %v324
      %v350 = vpack.c.bf16 %v325, %v325
      %v351 = vpack.c.bf16 %v326, %v326
      %v352 = vpack.c.bf16 %v327, %v327
      %v353 = vpack.c.bf16 %v328, %v328
      %v354 = vpack.c.bf16 %v329, %v329
      %v355 = vpack.c.bf16 %v330, %v330
      %v356 = vpack.c.bf16 %v331, %v331
      %vm357 = vcmask 519168
      %358 = vst.msk [vmem:[#allocation2] sm:$0xf] %vm357, %v332
      %359 = vst.msk [vmem:[#allocation2 + $0x4] sm:$0xf] %vm357, %v333
      %360 = vst.msk [vmem:[#allocation2 + $0x8] sm:$0xf] %vm357, %v334
      %361 = vst.msk [vmem:[#allocation2 + $0xc] sm:$0xf] %vm357, %v335
      %362 = vst.msk [vmem:[#allocation2 + $0x10] sm:$0xf] %vm357, %v336
      %363 = vst.msk [vmem:[#allocation2 + $0x14] sm:$0xf] %vm357, %v337
      %364 = vst.msk [vmem:[#allocation2 + $0x18] sm:$0xf] %vm357, %v338
      %365 = vst.msk [vmem:[#allocation2 + $0x1c] sm:$0xf] %vm357, %v339
      %366 = vst.msk [vmem:[#allocation2 + $0x20] sm:$0xf] %vm357, %v340
      %367 = vst.msk [vmem:[#allocation2 + $0x24] sm:$0xf] %vm357, %v341
      %368 = vst.msk [vmem:[#allocation2 + $0x28] sm:$0xf] %vm357, %v342
      %369 = vst.msk [vmem:[#allocation2 + $0x2c] sm:$0xf] %vm357, %v343
      %370 = vst.msk [vmem:[#allocation2 + $0x30] sm:$0xf] %vm357, %v344
      %371 = vst.msk [vmem:[#allocation2 + $0x34] sm:$0xf] %vm357, %v345
      %372 = vst.msk [vmem:[#allocation2 + $0x38] sm:$0xf] %vm357, %v346
      %373 = vst.msk [vmem:[#allocation2 + $0x3c] sm:$0xf] %vm357, %v347
      %374 = vst.msk [vmem:[#allocation2 + $0x40] sm:$0xf] %vm357, %v348
      %375 = vst.msk [vmem:[#allocation2 + $0x44] sm:$0xf] %vm357, %v349
      %376 = vst.msk [vmem:[#allocation2 + $0x48] sm:$0xf] %vm357, %v350
      %377 = vst.msk [vmem:[#allocation2 + $0x4c] sm:$0xf] %vm357, %v351
      %378 = vst.msk [vmem:[#allocation2 + $0x50] sm:$0xf] %vm357, %v352
      %379 = vst.msk [vmem:[#allocation2 + $0x54] sm:$0xf] %vm357, %v353
      %380 = vst.msk [vmem:[#allocation2 + $0x58] sm:$0xf] %vm357, %v354
      %381 = vst.msk [vmem:[#allocation2 + $0x5c] sm:$0xf] %vm357, %v355
      %vm382 = vcmask 517120
      %383 = vst.msk [vmem:[#allocation2 + $0x60] sm:$0x3] %vm382, %v356
      %v384 = vld [vmem:[#allocation2] sm:$0xf]
      %v385 = vld [vmem:[#allocation2 + $0x4] sm:$0xf]
      %v386 = vld [vmem:[#allocation2 + $0x8] sm:$0xf]
      %v387 = vld [vmem:[#allocation2 + $0xc] sm:$0xf]
      %v388 = vld [vmem:[#allocation2 + $0x10] sm:$0xf]
      %v389 = vld [vmem:[#allocation2 + $0x14] sm:$0xf]
      %v390 = vld [vmem:[#allocation2 + $0x18] sm:$0xf]
      %v391 = vld [vmem:[#allocation2 + $0x1c] sm:$0xf]
      %v392 = vld [vmem:[#allocation2 + $0x20] sm:$0xf]
      %v393 = vld [vmem:[#allocation2 + $0x24] sm:$0xf]
      %v394 = vld [vmem:[#allocation2 + $0x28] sm:$0xf]
      %v395 = vld [vmem:[#allocation2 + $0x2c] sm:$0xf]
      %v396 = vld [vmem:[#allocation2 + $0x30] sm:$0xf]
      %v397 = vld [vmem:[#allocation2 + $0x34] sm:$0xf]
      %v398 = vld [vmem:[#allocation2 + $0x38] sm:$0xf]
      %v399 = vld [vmem:[#allocation2 + $0x3c] sm:$0xf]
      %v400 = vld [vmem:[#allocation2 + $0x40] sm:$0xf]
      %v401 = vld [vmem:[#allocation2 + $0x44] sm:$0xf]
      %v402 = vld [vmem:[#allocation2 + $0x48] sm:$0xf]
      %v403 = vld [vmem:[#allocation2 + $0x4c] sm:$0xf]
      %v404 = vld [vmem:[#allocation2 + $0x50] sm:$0x7]
      %v405 = vld [vmem:[%s3] sm:$0xf]
      %v406 = vld [vmem:[%s3 + $0x4] sm:$0xf]
      %v407 = vld [vmem:[%s3 + $0x8] sm:$0xf]
      %v408 = vld [vmem:[%s3 + $0xc] sm:$0xf]
      %v409 = vld [vmem:[%s3 + $0x10] sm:$0xf]
      %v410 = vld [vmem:[%s3 + $0x14] sm:$0xf]
      %v411 = vld [vmem:[%s3 + $0x18] sm:$0xf]
      %v412 = vld [vmem:[%s3 + $0x1c] sm:$0xf]
      %v413 = vld [vmem:[#allocation2 + $0x50] sm:$0xf]
      %s414 = scalar_lea.vmem %s3, 32
      %v415 = vld [vmem:[%s414] sm:$0xf]
      %v416 = vld [vmem:[%s414 + $0x4] sm:$0xf]
      %v417 = vld [vmem:[%s414 + $0x8] sm:$0xf]
      %v418 = vld [vmem:[%s414 + $0xc] sm:$0xf]
      %v419 = vld [vmem:[%s414 + $0x10] sm:$0xf]
      %v420 = vld [vmem:[%s414 + $0x14] sm:$0xf]
      %v421 = vld [vmem:[%s414 + $0x18] sm:$0xf]
      %v422 = vld [vmem:[%s414 + $0x1c] sm:$0xf]
      %v444 = vunpack.c.l.b16 %v384
      %v445 = vunpack.c.l.b16 %v385
      %v446 = vunpack.c.l.b16 %v386
      %v447 = vunpack.c.l.b16 %v387
      %v448 = vunpack.c.l.b16 %v388
      %v449 = vunpack.c.l.b16 %v389
      %v450 = vunpack.c.l.b16 %v390
      %v451 = vunpack.c.l.b16 %v391
      %v452 = vunpack.c.l.b16 %v392
      %v453 = vunpack.c.l.b16 %v393
      %v454 = vunpack.c.l.b16 %v394
      %v455 = vunpack.c.l.b16 %v395
      %v456 = vunpack.c.l.b16 %v396
      %v457 = vunpack.c.l.b16 %v397
      %v458 = vunpack.c.l.b16 %v398
      %v459 = vunpack.c.l.b16 %v399
      %v460 = vunpack.c.l.b16 %v400
      %v461 = vunpack.c.l.b16 %v401
      %v462 = vunpack.c.l.b16 %v402
      %v463 = vunpack.c.l.b16 %v403
      %v464 = vunpack.c.l.b16 %v413
      %v465 = vpack.c.b16 %v445, %v444
      %v466 = vpack.c.b16 %v447, %v446
      %v467 = vpack.c.b16 %v449, %v448
      %v468 = vpack.c.b16 %v451, %v450
      %v469 = vpack.c.b16 %v453, %v452
      %v470 = vpack.c.b16 %v455, %v454
      %v471 = vpack.c.b16 %v457, %v456
      %v472 = vpack.c.b16 %v459, %v458
      %v473 = vpack.c.b16 %v461, %v460
      %v474 = vpack.c.b16 %v463, %v462
      %v475 = vpack.c.b16 %v464, %v464
      %vm476 = vsmask.f32 7424
      %v478 = vshrl.u32 %v465, 16
      %v480 = vshll.u32 %v465, 16
      %v482 = vrot.slane %v480, 1
      %v483 = vor.u32 %v478, %v482
      %v485 = vshll.u32 %v466, 16
      %v487 = vrot.slane %v485, 1
      %v488 = vsel %vm476, %v483, %v487
      %v489 = vshrl.u32 %v466, 16
      %v491 = vor.u32 %v489, %v487
      %v493 = vshll.u32 %v467, 16
      %v495 = vrot.slane %v493, 1
      %v496 = vsel %vm476, %v491, %v495
      %v497 = vshrl.u32 %v467, 16
      %v499 = vor.u32 %v497, %v495
      %v501 = vshll.u32 %v468, 16
      %v503 = vrot.slane %v501, 1
      %v504 = vsel %vm476, %v499, %v503
      %v505 = vshrl.u32 %v468, 16
      %v507 = vor.u32 %v505, %v503
      %v509 = vshll.u32 %v469, 16
      %v511 = vrot.slane %v509, 1
      %v512 = vsel %vm476, %v507, %v511
      %v513 = vshrl.u32 %v469, 16
      %v515 = vor.u32 %v513, %v511
      %v517 = vshll.u32 %v470, 16
      %v519 = vrot.slane %v517, 1
      %v520 = vsel %vm476, %v515, %v519
      %v521 = vshrl.u32 %v470, 16
      %v523 = vor.u32 %v521, %v519
      %v525 = vshll.u32 %v471, 16
      %v527 = vrot.slane %v525, 1
      %v528 = vsel %vm476, %v523, %v527
      %v529 = vshrl.u32 %v471, 16
      %v531 = vor.u32 %v529, %v527
      %v533 = vshll.u32 %v472, 16
      %v535 = vrot.slane %v533, 1
      %v536 = vsel %vm476, %v531, %v535
      %v537 = vshrl.u32 %v472, 16
      %v539 = vor.u32 %v537, %v535
      %v541 = vshll.u32 %v473, 16
      %v543 = vrot.slane %v541, 1
      %v544 = vsel %vm476, %v539, %v543
      %v545 = vshrl.u32 %v473, 16
      %v547 = vor.u32 %v545, %v543
      %v549 = vshll.u32 %v474, 16
      %v551 = vrot.slane %v549, 1
      %v552 = vsel %vm476, %v547, %v551
      %v553 = vshrl.u32 %v474, 16
      %v555 = vor.u32 %v553, %v551
      %v557 = vshll.u32 %v475, 16
      %v559 = vrot.slane %v557, 1
      %v560 = vsel %vm476, %v555, %v559
      %v561 = vshrl.u32 %v475, 16
      %v563 = vor.u32 %v561, %v559
      %v572 = vunpack.c.l.b16 %v415
      %v573 = vunpack.c.l.b16 %v416
      %v574 = vunpack.c.l.b16 %v417
      %v575 = vunpack.c.l.b16 %v418
      %v576 = vunpack.c.l.b16 %v419
      %v577 = vunpack.c.l.b16 %v420
      %v578 = vunpack.c.l.b16 %v421
      %v579 = vunpack.c.l.b16 %v422
      %v580 = vpack.c.b16 %v573, %v572
      %v581 = vpack.c.b16 %v575, %v574
      %v582 = vpack.c.b16 %v577, %v576
      %v583 = vpack.c.b16 %v579, %v578
      %vm588 = vcmask 523264
      %v590 = vsel %vm588, %v488, 0
      %v593 = vsel %vm588, %v496, 0
      %v596 = vsel %vm588, %v504, 0
      %v599 = vsel %vm588, %v512, 0
      %v602 = vsel %vm588, %v520, 0
      %v605 = vsel %vm588, %v528, 0
      %v608 = vsel %vm588, %v536, 0
      %v611 = vsel %vm588, %v544, 0
      %v614 = vsel %vm588, %v552, 0
      %v617 = vsel %vm588, %v560, 0
      %v620 = vsel %vm588, %v563, 0
      %622 = vmatpush.bf16.msra.mxu0 0
      %623 = vmatpush.bf16.msra.mxu0 0
      %624 = vmatpush.bf16.msra.mxu0 0
      %625 = vmatpush.bf16.msra.mxu0 0
      %626 = vmatpush.bf16.msra.mxu0 %v583
      %627 = vmatpush.bf16.msra.mxu0 %v582
      %628 = vmatpush.bf16.msra.mxu0 %v581
      %629 = vmatpush.bf16.msra.mxu0 %v580
      %630 = vmatmul.bf16.gmra.mxu0 %v590
      %v631 = vpop.f32.mrf.mxu0
      %v632 = vadd.f32 0.0, %v631
      %v633 = vpop.f32.mrf.mxu0
      %v634 = vadd.f32 0.0, %v633
      %635 = vmatmul.bf16.gmra.mxu0 %v593
      %v636 = vpop.f32.mrf.mxu0
      %v637 = vadd.f32 0.0, %v636
      %v638 = vpop.f32.mrf.mxu0
      %v639 = vadd.f32 0.0, %v638
      %640 = vmatmul.bf16.gmra.mxu0 %v596
      %v641 = vpop.f32.mrf.mxu0
      %v642 = vadd.f32 0.0, %v641
      %v643 = vpop.f32.mrf.mxu0
      %v644 = vadd.f32 0.0, %v643
      %645 = vmatmul.bf16.gmra.mxu0 %v599
      %v646 = vpop.f32.mrf.mxu0
      %v647 = vadd.f32 0.0, %v646
      %v648 = vpop.f32.mrf.mxu0
      %v649 = vadd.f32 0.0, %v648
      %650 = vmatmul.bf16.gmra.mxu0 %v602
      %v651 = vpop.f32.mrf.mxu0
      %v652 = vadd.f32 0.0, %v651
      %v653 = vpop.f32.mrf.mxu0
      %v654 = vadd.f32 0.0, %v653
      %655 = vmatmul.bf16.gmra.mxu0 %v605
      %v656 = vpop.f32.mrf.mxu0
      %v657 = vadd.f32 0.0, %v656
      %v658 = vpop.f32.mrf.mxu0
      %v659 = vadd.f32 0.0, %v658
      %660 = vmatmul.bf16.gmra.mxu0 %v608
      %v661 = vpop.f32.mrf.mxu0
      %v662 = vadd.f32 0.0, %v661
      %v663 = vpop.f32.mrf.mxu0
      %v664 = vadd.f32 0.0, %v663
      %665 = vmatmul.bf16.gmra.mxu0 %v611
      %v666 = vpop.f32.mrf.mxu0
      %v667 = vadd.f32 0.0, %v666
      %v668 = vpop.f32.mrf.mxu0
      %v669 = vadd.f32 0.0, %v668
      %670 = vmatmul.bf16.gmra.mxu0 %v614
      %v671 = vpop.f32.mrf.mxu0
      %v672 = vadd.f32 0.0, %v671
      %v673 = vpop.f32.mrf.mxu0
      %v674 = vadd.f32 0.0, %v673
      %675 = vmatmul.bf16.gmra.mxu0 %v617
      %v676 = vpop.f32.mrf.mxu0
      %v677 = vadd.f32 0.0, %v676
      %v678 = vpop.f32.mrf.mxu0
      %v679 = vadd.f32 0.0, %v678
      %680 = vmatmul.bf16.gmra.mxu0 %v620
      %v681 = vpop.f32.mrf.mxu0
      %v682 = vadd.f32 0.0, %v681
      %v683 = vpop.f32.mrf.mxu0
      %684 = vdwg.mxu0
      %v686 = vunpack.c.l.b16 %v404
      %v687 = vpack.c.b16 %v686, %v686
      %v696 = vunpack.c.l.b16 %v405
      %v697 = vunpack.c.l.b16 %v406
      %v698 = vunpack.c.l.b16 %v407
      %v699 = vunpack.c.l.b16 %v408
      %v700 = vunpack.c.l.b16 %v409
      %v701 = vunpack.c.l.b16 %v410
      %v702 = vunpack.c.l.b16 %v411
      %v703 = vunpack.c.l.b16 %v412
      %v704 = vpack.c.b16 %v697, %v696
      %v705 = vpack.c.b16 %v699, %v698
      %v706 = vpack.c.b16 %v701, %v700
      %v707 = vpack.c.b16 %v703, %v702
      %v712 = vsel %vm588, %v465, 0
      %v714 = vsel %vm588, %v466, 0
      %v716 = vsel %vm588, %v467, 0
      %v718 = vsel %vm588, %v468, 0
      %v720 = vsel %vm588, %v469, 0
      %v722 = vsel %vm588, %v470, 0
      %v724 = vsel %vm588, %v471, 0
      %v726 = vsel %vm588, %v472, 0
      %v728 = vsel %vm588, %v473, 0
      %v730 = vsel %vm588, %v474, 0
      %v733 = vsel %vm588, %v687, 0
      %735 = vmatpush.bf16.msra.mxu0 0
      %736 = vmatpush.bf16.msra.mxu0 0
      %737 = vmatpush.bf16.msra.mxu0 0
      %738 = vmatpush.bf16.msra.mxu0 0
      %739 = vmatpush.bf16.msra.mxu0 %v707
      %740 = vmatpush.bf16.msra.mxu0 %v706
      %741 = vmatpush.bf16.msra.mxu0 %v705
      %742 = vmatpush.bf16.msra.mxu0 %v704
      %743 = vmatmul.bf16.gmra.mxu0 %v712
      %v744 = vpop.f32.mrf.mxu0
      %v745 = vadd.f32 %v632, %v744
      %v746 = vpop.f32.mrf.mxu0
      %v747 = vadd.f32 %v634, %v746
      %748 = vmatmul.bf16.gmra.mxu0 %v714
      %v749 = vpop.f32.mrf.mxu0
      %v750 = vadd.f32 %v637, %v749
      %v751 = vpop.f32.mrf.mxu0
      %v752 = vadd.f32 %v639, %v751
      %753 = vmatmul.bf16.gmra.mxu0 %v716
      %v754 = vpop.f32.mrf.mxu0
      %v755 = vadd.f32 %v642, %v754
      %v756 = vpop.f32.mrf.mxu0
      %v757 = vadd.f32 %v644, %v756
      %758 = vmatmul.bf16.gmra.mxu0 %v718
      %v759 = vpop.f32.mrf.mxu0
      %v760 = vadd.f32 %v647, %v759
      %v761 = vpop.f32.mrf.mxu0
      %v762 = vadd.f32 %v649, %v761
      %763 = vmatmul.bf16.gmra.mxu0 %v720
      %v764 = vpop.f32.mrf.mxu0
      %v765 = vadd.f32 %v652, %v764
      %v766 = vpop.f32.mrf.mxu0
      %v767 = vadd.f32 %v654, %v766
      %768 = vmatmul.bf16.gmra.mxu0 %v722
      %v769 = vpop.f32.mrf.mxu0
      %v770 = vadd.f32 %v657, %v769
      %v771 = vpop.f32.mrf.mxu0
      %v772 = vadd.f32 %v659, %v771
      %773 = vmatmul.bf16.gmra.mxu0 %v724
      %v774 = vpop.f32.mrf.mxu0
      %v775 = vadd.f32 %v662, %v774
      %v776 = vpop.f32.mrf.mxu0
      %v777 = vadd.f32 %v664, %v776
      %778 = vmatmul.bf16.gmra.mxu0 %v726
      %v779 = vpop.f32.mrf.mxu0
      %v780 = vadd.f32 %v667, %v779
      %v781 = vpop.f32.mrf.mxu0
      %v782 = vadd.f32 %v669, %v781
      %783 = vmatmul.bf16.gmra.mxu0 %v728
      %v784 = vpop.f32.mrf.mxu0
      %v785 = vadd.f32 %v672, %v784
      %v786 = vpop.f32.mrf.mxu0
      %v787 = vadd.f32 %v674, %v786
      %788 = vmatmul.bf16.gmra.mxu0 %v730
      %v789 = vpop.f32.mrf.mxu0
      %v790 = vadd.f32 %v677, %v789
      %v791 = vpop.f32.mrf.mxu0
      %v792 = vadd.f32 %v679, %v791
      %793 = vmatmul.bf16.gmra.mxu0 %v733
      %v794 = vpop.f32.mrf.mxu0
      %v795 = vadd.f32 %v682, %v794
      %v796 = vpop.f32.mrf.mxu0
      %797 = vdwg.mxu0
      %v798 = vld [vmem:[#allocation2] sm:$0xe]
      %s799 = scalar_lea.vmem %s3, 64
      %v800 = vld [vmem:[%s799] sm:$0xf]
      %v801 = vld [vmem:[%s799 + $0x4] sm:$0xf]
      %v802 = vld [vmem:[%s799 + $0x8] sm:$0xf]
      %v803 = vld [vmem:[%s799 + $0xc] sm:$0xf]
      %v804 = vld [vmem:[%s799 + $0x10] sm:$0xf]
      %v805 = vld [vmem:[%s799 + $0x14] sm:$0xf]
      %v806 = vld [vmem:[%s799 + $0x18] sm:$0xf]
      %v807 = vld [vmem:[%s799 + $0x1c] sm:$0xf]
      %v809 = vunpack.c.l.b16 %v798
      %v810 = vpack.c.b16 %v445, %v809
      %vm811 = vcmask 1046528
      %v812 = vrot.slane %v810, 1
      %v813 = vrot.slane %v466, 1
      %v814 = vsel %vm811, %v812, %v813
      %v815 = vrot.slane %v467, 1
      %v816 = vsel %vm811, %v813, %v815
      %v817 = vrot.slane %v468, 1
      %v818 = vsel %vm811, %v815, %v817
      %v819 = vrot.slane %v469, 1
      %v820 = vsel %vm811, %v817, %v819
      %v821 = vrot.slane %v470, 1
      %v822 = vsel %vm811, %v819, %v821
      %v823 = vrot.slane %v471, 1
      %v824 = vsel %vm811, %v821, %v823
      %v825 = vrot.slane %v472, 1
      %v826 = vsel %vm811, %v823, %v825
      %v827 = vrot.slane %v473, 1
      %v828 = vsel %vm811, %v825, %v827
      %v829 = vrot.slane %v474, 1
      %v830 = vsel %vm811, %v827, %v829
      %v831 = vrot.slane %v475, 1
      %v832 = vsel %vm811, %v829, %v831
      %v841 = vunpack.c.l.b16 %v800
      %v842 = vunpack.c.l.b16 %v801
      %v843 = vunpack.c.l.b16 %v802
      %v844 = vunpack.c.l.b16 %v803
      %v845 = vunpack.c.l.b16 %v804
      %v846 = vunpack.c.l.b16 %v805
      %v847 = vunpack.c.l.b16 %v806
      %v848 = vunpack.c.l.b16 %v807
      %v849 = vpack.c.b16 %v842, %v841
      %v850 = vpack.c.b16 %v844, %v843
      %v851 = vpack.c.b16 %v846, %v845
      %v852 = vpack.c.b16 %v848, %v847
      %v858 = vsel %vm588, %v814, 0
      %v861 = vsel %vm588, %v816, 0
      %v864 = vsel %vm588, %v818, 0
      %v867 = vsel %vm588, %v820, 0
      %v870 = vsel %vm588, %v822, 0
      %v873 = vsel %vm588, %v824, 0
      %v876 = vsel %vm588, %v826, 0
      %v879 = vsel %vm588, %v828, 0
      %v882 = vsel %vm588, %v830, 0
      %v885 = vsel %vm588, %v832, 0
      %v888 = vsel %vm588, %v831, 0
      %890 = vmatpush.bf16.msra.mxu0 0
      %891 = vmatpush.bf16.msra.mxu0 0
      %892 = vmatpush.bf16.msra.mxu0 0
      %893 = vmatpush.bf16.msra.mxu0 0
      %894 = vmatpush.bf16.msra.mxu0 %v852
      %895 = vmatpush.bf16.msra.mxu0 %v851
      %896 = vmatpush.bf16.msra.mxu0 %v850
      %897 = vmatpush.bf16.msra.mxu0 %v849
      %898 = vmatmul.bf16.gmra.mxu0 %v858
      %v899 = vpop.f32.mrf.mxu0
      %v900 = vadd.f32 0.0, %v899
      %v901 = vpop.f32.mrf.mxu0
      %v902 = vadd.f32 0.0, %v901
      %903 = vmatmul.bf16.gmra.mxu0 %v861
      %v904 = vpop.f32.mrf.mxu0
      %v905 = vadd.f32 0.0, %v904
      %v906 = vpop.f32.mrf.mxu0
      %v907 = vadd.f32 0.0, %v906
      %908 = vmatmul.bf16.gmra.mxu0 %v864
      %v909 = vpop.f32.mrf.mxu0
      %v910 = vadd.f32 0.0, %v909
      %v911 = vpop.f32.mrf.mxu0
      %v912 = vadd.f32 0.0, %v911
      %913 = vmatmul.bf16.gmra.mxu0 %v867
      %v914 = vpop.f32.mrf.mxu0
      %v915 = vadd.f32 0.0, %v914
      %v916 = vpop.f32.mrf.mxu0
      %v917 = vadd.f32 0.0, %v916
      %918 = vmatmul.bf16.gmra.mxu0 %v870
      %v919 = vpop.f32.mrf.mxu0
      %v920 = vadd.f32 0.0, %v919
      %v921 = vpop.f32.mrf.mxu0
      %v922 = vadd.f32 0.0, %v921
      %923 = vmatmul.bf16.gmra.mxu0 %v873
      %v924 = vpop.f32.mrf.mxu0
      %v925 = vadd.f32 0.0, %v924
      %v926 = vpop.f32.mrf.mxu0
      %v927 = vadd.f32 0.0, %v926
      %928 = vmatmul.bf16.gmra.mxu0 %v876
      %v929 = vpop.f32.mrf.mxu0
      %v930 = vadd.f32 0.0, %v929
      %v931 = vpop.f32.mrf.mxu0
      %v932 = vadd.f32 0.0, %v931
      %933 = vmatmul.bf16.gmra.mxu0 %v879
      %v934 = vpop.f32.mrf.mxu0
      %v935 = vadd.f32 0.0, %v934
      %v936 = vpop.f32.mrf.mxu0
      %v937 = vadd.f32 0.0, %v936
      %938 = vmatmul.bf16.gmra.mxu0 %v882
      %v939 = vpop.f32.mrf.mxu0
      %v940 = vadd.f32 0.0, %v939
      %v941 = vpop.f32.mrf.mxu0
      %v942 = vadd.f32 0.0, %v941
      %943 = vmatmul.bf16.gmra.mxu0 %v885
      %v944 = vpop.f32.mrf.mxu0
      %v945 = vadd.f32 0.0, %v944
      %v946 = vpop.f32.mrf.mxu0
      %v947 = vadd.f32 0.0, %v946
      %948 = vmatmul.bf16.gmra.mxu0 %v888
      %v949 = vpop.f32.mrf.mxu0
      %v950 = vadd.f32 0.0, %v949
      %v951 = vpop.f32.mrf.mxu0
      %952 = vdwg.mxu0
      %v953 = vadd.f32 %v745, %v900
      %v954 = vadd.f32 %v747, %v902
      %v955 = vadd.f32 %v750, %v905
      %v956 = vadd.f32 %v752, %v907
      %v957 = vadd.f32 %v755, %v910
      %v958 = vadd.f32 %v757, %v912
      %v959 = vadd.f32 %v760, %v915
      %v960 = vadd.f32 %v762, %v917
      %v961 = vadd.f32 %v765, %v920
      %v962 = vadd.f32 %v767, %v922
      %v963 = vadd.f32 %v770, %v925
      %v964 = vadd.f32 %v772, %v927
      %v965 = vadd.f32 %v775, %v930
      %v966 = vadd.f32 %v777, %v932
      %v967 = vadd.f32 %v780, %v935
      %v968 = vadd.f32 %v782, %v937
      %v969 = vadd.f32 %v785, %v940
      %v970 = vadd.f32 %v787, %v942
      %v971 = vadd.f32 %v790, %v945
      %v972 = vadd.f32 %v792, %v947
      %v973 = vadd.f32 %v795, %v950
      %v974 = vld [vmem:[#allocation2 + $0x4] sm:$0x8]
      %v975 = vld [vmem:[#allocation2 + $0x8] sm:$0xf]
      %v976 = vld [vmem:[#allocation2 + $0xc] sm:$0xf]
      %v977 = vld [vmem:[#allocation2 + $0x10] sm:$0xf]
      %v978 = vld [vmem:[#allocation2 + $0x14] sm:$0xf]
      %v979 = vld [vmem:[#allocation2 + $0x18] sm:$0xf]
      %v980 = vld [vmem:[#allocation2 + $0x1c] sm:$0xf]
      %v981 = vld [vmem:[#allocation2 + $0x20] sm:$0xf]
      %v982 = vld [vmem:[#allocation2 + $0x24] sm:$0xf]
      %v983 = vld [vmem:[#allocation2 + $0x28] sm:$0xf]
      %v984 = vld [vmem:[#allocation2 + $0x2c] sm:$0xf]
      %v985 = vld [vmem:[#allocation2 + $0x30] sm:$0xf]
      %v986 = vld [vmem:[#allocation2 + $0x34] sm:$0xf]
      %v987 = vld [vmem:[#allocation2 + $0x38] sm:$0xf]
      %v988 = vld [vmem:[#allocation2 + $0x3c] sm:$0xf]
      %v989 = vld [vmem:[#allocation2 + $0x40] sm:$0xf]
      %v990 = vld [vmem:[#allocation2 + $0x44] sm:$0xf]
      %v991 = vld [vmem:[#allocation2 + $0x48] sm:$0xf]
      %v992 = vld [vmem:[#allocation2 + $0x4c] sm:$0xf]
      %v993 = vld [vmem:[#allocation2 + $0x50] sm:$0xf]
      %v994 = vld [vmem:[#allocation2 + $0x54] sm:$0xf]
      %v995 = vld [vmem:[#allocation2 + $0x58] sm:$0x3]
      %s996 = scalar_lea.vmem %s3, 96
      %v997 = vld [vmem:[%s996] sm:$0xf]
      %v998 = vld [vmem:[%s996 + $0x4] sm:$0xf]
      %v999 = vld [vmem:[%s996 + $0x8] sm:$0xf]
      %v1000 = vld [vmem:[%s996 + $0xc] sm:$0xf]
      %v1001 = vld [vmem:[%s996 + $0x10] sm:$0xf]
      %v1002 = vld [vmem:[%s996 + $0x14] sm:$0xf]
      %v1003 = vld [vmem:[%s996 + $0x18] sm:$0xf]
      %v1004 = vld [vmem:[%s996 + $0x1c] sm:$0xf]
      %v1027 = vunpack.c.l.b16 %v974
      %v1028 = vunpack.c.l.b16 %v975
      %v1029 = vunpack.c.l.b16 %v976
      %v1030 = vunpack.c.l.b16 %v977
      %v1031 = vunpack.c.l.b16 %v978
      %v1032 = vunpack.c.l.b16 %v979
      %v1033 = vunpack.c.l.b16 %v980
      %v1034 = vunpack.c.l.b16 %v981
      %v1035 = vunpack.c.l.b16 %v982
      %v1036 = vunpack.c.l.b16 %v983
      %v1037 = vunpack.c.l.b16 %v984
      %v1038 = vunpack.c.l.b16 %v985
      %v1039 = vunpack.c.l.b16 %v986
      %v1040 = vunpack.c.l.b16 %v987
      %v1041 = vunpack.c.l.b16 %v988
      %v1042 = vunpack.c.l.b16 %v989
      %v1043 = vunpack.c.l.b16 %v990
      %v1044 = vunpack.c.l.b16 %v991
      %v1045 = vunpack.c.l.b16 %v992
      %v1046 = vunpack.c.l.b16 %v993
      %v1047 = vunpack.c.l.b16 %v994
      %v1048 = vunpack.c.l.b16 %v995
      %v1049 = vpack.c.b16 %v1028, %v1027
      %v1050 = vpack.c.b16 %v1030, %v1029
      %v1051 = vpack.c.b16 %v1032, %v1031
      %v1052 = vpack.c.b16 %v1034, %v1033
      %v1053 = vpack.c.b16 %v1036, %v1035
      %v1054 = vpack.c.b16 %v1038, %v1037
      %v1055 = vpack.c.b16 %v1040, %v1039
      %v1056 = vpack.c.b16 %v1042, %v1041
      %v1057 = vpack.c.b16 %v1044, %v1043
      %v1058 = vpack.c.b16 %v1046, %v1045
      %v1059 = vpack.c.b16 %v1048, %v1047
      %vm1060 = vcmask 1044480
      %v1061 = vrot.slane %v1049, 3
      %v1062 = vrot.slane %v1050, 3
      %v1063 = vsel %vm1060, %v1061, %v1062
      %v1064 = vrot.slane %v1051, 3
      %v1065 = vsel %vm1060, %v1062, %v1064
      %v1066 = vrot.slane %v1052, 3
      %v1067 = vsel %vm1060, %v1064, %v1066
      %v1068 = vrot.slane %v1053, 3
      %v1069 = vsel %vm1060, %v1066, %v1068
      %v1070 = vrot.slane %v1054, 3
      %v1071 = vsel %vm1060, %v1068, %v1070
      %v1072 = vrot.slane %v1055, 3
      %v1073 = vsel %vm1060, %v1070, %v1072
      %v1074 = vrot.slane %v1056, 3
      %v1075 = vsel %vm1060, %v1072, %v1074
      %v1076 = vrot.slane %v1057, 3
      %v1077 = vsel %vm1060, %v1074, %v1076
      %v1078 = vrot.slane %v1058, 3
      %v1079 = vsel %vm1060, %v1076, %v1078
      %v1080 = vrot.slane %v1059, 3
      %v1081 = vsel %vm1060, %v1078, %v1080
      %v1090 = vunpack.c.l.b16 %v997
      %v1091 = vunpack.c.l.b16 %v998
      %v1092 = vunpack.c.l.b16 %v999
      %v1093 = vunpack.c.l.b16 %v1000
      %v1094 = vunpack.c.l.b16 %v1001
      %v1095 = vunpack.c.l.b16 %v1002
      %v1096 = vunpack.c.l.b16 %v1003
      %v1097 = vunpack.c.l.b16 %v1004
      %v1098 = vpack.c.b16 %v1091, %v1090
      %v1099 = vpack.c.b16 %v1093, %v1092
      %v1100 = vpack.c.b16 %v1095, %v1094
      %v1101 = vpack.c.b16 %v1097, %v1096
      %v1107 = vsel %vm588, %v1063, 0
      %v1110 = vsel %vm588, %v1065, 0
      %v1113 = vsel %vm588, %v1067, 0
      %v1116 = vsel %vm588, %v1069, 0
      %v1119 = vsel %vm588, %v1071, 0
      %v1122 = vsel %vm588, %v1073, 0
      %v1125 = vsel %vm588, %v1075, 0
      %v1128 = vsel %vm588, %v1077, 0
      %v1131 = vsel %vm588, %v1079, 0
      %v1134 = vsel %vm588, %v1081, 0
      %v1137 = vsel %vm588, %v1080, 0
      %1139 = vmatpush.bf16.msra.mxu0 0
      %1140 = vmatpush.bf16.msra.mxu0 0
      %1141 = vmatpush.bf16.msra.mxu0 0
      %1142 = vmatpush.bf16.msra.mxu0 0
      %1143 = vmatpush.bf16.msra.mxu0 %v1101
      %1144 = vmatpush.bf16.msra.mxu0 %v1100
      %1145 = vmatpush.bf16.msra.mxu0 %v1099
      %1146 = vmatpush.bf16.msra.mxu0 %v1098
      %1147 = vmatmul.bf16.gmra.mxu0 %v1107
      %v1148 = vpop.f32.mrf.mxu0
      %v1149 = vadd.f32 0.0, %v1148
      %v1150 = vpop.f32.mrf.mxu0
      %v1151 = vadd.f32 0.0, %v1150
      %1152 = vmatmul.bf16.gmra.mxu0 %v1110
      %v1153 = vpop.f32.mrf.mxu0
      %v1154 = vadd.f32 0.0, %v1153
      %v1155 = vpop.f32.mrf.mxu0
      %v1156 = vadd.f32 0.0, %v1155
      %1157 = vmatmul.bf16.gmra.mxu0 %v1113
      %v1158 = vpop.f32.mrf.mxu0
      %v1159 = vadd.f32 0.0, %v1158
      %v1160 = vpop.f32.mrf.mxu0
      %v1161 = vadd.f32 0.0, %v1160
      %1162 = vmatmul.bf16.gmra.mxu0 %v1116
      %v1163 = vpop.f32.mrf.mxu0
      %v1164 = vadd.f32 0.0, %v1163
      %v1165 = vpop.f32.mrf.mxu0
      %v1166 = vadd.f32 0.0, %v1165
      %1167 = vmatmul.bf16.gmra.mxu0 %v1119
      %v1168 = vpop.f32.mrf.mxu0
      %v1169 = vadd.f32 0.0, %v1168
      %v1170 = vpop.f32.mrf.mxu0
      %v1171 = vadd.f32 0.0, %v1170
      %1172 = vmatmul.bf16.gmra.mxu0 %v1122
      %v1173 = vpop.f32.mrf.mxu0
      %v1174 = vadd.f32 0.0, %v1173
      %v1175 = vpop.f32.mrf.mxu0
      %v1176 = vadd.f32 0.0, %v1175
      %1177 = vmatmul.bf16.gmra.mxu0 %v1125
      %v1178 = vpop.f32.mrf.mxu0
      %v1179 = vadd.f32 0.0, %v1178
      %v1180 = vpop.f32.mrf.mxu0
      %v1181 = vadd.f32 0.0, %v1180
      %1182 = vmatmul.bf16.gmra.mxu0 %v1128
      %v1183 = vpop.f32.mrf.mxu0
      %v1184 = vadd.f32 0.0, %v1183
      %v1185 = vpop.f32.mrf.mxu0
      %v1186 = vadd.f32 0.0, %v1185
      %1187 = vmatmul.bf16.gmra.mxu0 %v1131
      %v1188 = vpop.f32.mrf.mxu0
      %v1189 = vadd.f32 0.0, %v1188
      %v1190 = vpop.f32.mrf.mxu0
      %v1191 = vadd.f32 0.0, %v1190
      %1192 = vmatmul.bf16.gmra.mxu0 %v1134
      %v1193 = vpop.f32.mrf.mxu0
      %v1194 = vadd.f32 0.0, %v1193
      %v1195 = vpop.f32.mrf.mxu0
      %v1196 = vadd.f32 0.0, %v1195
      %1197 = vmatmul.bf16.gmra.mxu0 %v1137
      %v1198 = vpop.f32.mrf.mxu0
      %v1199 = vadd.f32 0.0, %v1198
      %v1200 = vpop.f32.mrf.mxu0
      %1201 = vdwg.mxu0
      %v1202 = vadd.f32 %v953, %v1149
      %v1203 = vadd.f32 %v954, %v1151
      %v1204 = vadd.f32 %v955, %v1154
      %v1205 = vadd.f32 %v956, %v1156
      %v1206 = vadd.f32 %v957, %v1159
      %v1207 = vadd.f32 %v958, %v1161
      %v1208 = vadd.f32 %v959, %v1164
      %v1209 = vadd.f32 %v960, %v1166
      %v1210 = vadd.f32 %v961, %v1169
      %v1211 = vadd.f32 %v962, %v1171
      %v1212 = vadd.f32 %v963, %v1174
      %v1213 = vadd.f32 %v964, %v1176
      %v1214 = vadd.f32 %v965, %v1179
      %v1215 = vadd.f32 %v966, %v1181
      %v1216 = vadd.f32 %v967, %v1184
      %v1217 = vadd.f32 %v968, %v1186
      %v1218 = vadd.f32 %v969, %v1189
      %v1219 = vadd.f32 %v970, %v1191
      %v1220 = vadd.f32 %v971, %v1194
      %v1221 = vadd.f32 %v972, %v1196
      %v1222 = vadd.f32 %v973, %v1199
      %v1223 = vld [vmem:[#allocation2 + $0x58] sm:$0x7]
      %s1224 = scalar_lea.vmem %s3, 128
      %v1225 = vld [vmem:[%s1224] sm:$0xf]
      %v1226 = vld [vmem:[%s1224 + $0x4] sm:$0xf]
      %v1227 = vld [vmem:[%s1224 + $0x8] sm:$0xf]
      %v1228 = vld [vmem:[%s1224 + $0xc] sm:$0xf]
      %v1229 = vld [vmem:[%s1224 + $0x10] sm:$0xf]
      %v1230 = vld [vmem:[%s1224 + $0x14] sm:$0xf]
      %v1231 = vld [vmem:[%s1224 + $0x18] sm:$0xf]
      %v1232 = vld [vmem:[%s1224 + $0x1c] sm:$0xf]
      %v1234 = vunpack.c.l.b16 %v1223
      %v1235 = vpack.c.b16 %v1234, %v1047
      %vm1236 = vsmask.f32 4352
      %v1238 = vshrl.u32 %v1049, 16
      %v1240 = vrot.slane %v1238, 3
      %v1241 = vshll.u32 %v1049, 16
      %v1243 = vrot.slane %v1241, 4
      %v1244 = vor.u32 %v1240, %v1243
      %v1246 = vshrl.u32 %v1050, 16
      %v1248 = vrot.slane %v1246, 3
      %v1249 = vshll.u32 %v1050, 16
      %v1251 = vrot.slane %v1249, 4
      %v1252 = vor.u32 %v1248, %v1251
      %v1253 = vsel %vm1236, %v1244, %v1252
      %v1255 = vshrl.u32 %v1051, 16
      %v1257 = vrot.slane %v1255, 3
      %v1258 = vshll.u32 %v1051, 16
      %v1260 = vrot.slane %v1258, 4
      %v1261 = vor.u32 %v1257, %v1260
      %v1262 = vsel %vm1236, %v1252, %v1261
      %v1264 = vshrl.u32 %v1052, 16
      %v1266 = vrot.slane %v1264, 3
      %v1267 = vshll.u32 %v1052, 16
      %v1269 = vrot.slane %v1267, 4
      %v1270 = vor.u32 %v1266, %v1269
      %v1271 = vsel %vm1236, %v1261, %v1270
      %v1273 = vshrl.u32 %v1053, 16
      %v1275 = vrot.slane %v1273, 3
      %v1276 = vshll.u32 %v1053, 16
      %v1278 = vrot.slane %v1276, 4
      %v1279 = vor.u32 %v1275, %v1278
      %v1280 = vsel %vm1236, %v1270, %v1279
      %v1282 = vshrl.u32 %v1054, 16
      %v1284 = vrot.slane %v1282, 3
      %v1285 = vshll.u32 %v1054, 16
      %v1287 = vrot.slane %v1285, 4
      %v1288 = vor.u32 %v1284, %v1287
      %v1289 = vsel %vm1236, %v1279, %v1288
      %v1291 = vshrl.u32 %v1055, 16
      %v1293 = vrot.slane %v1291, 3
      %v1294 = vshll.u32 %v1055, 16
      %v1296 = vrot.slane %v1294, 4
      %v1297 = vor.u32 %v1293, %v1296
      %v1298 = vsel %vm1236, %v1288, %v1297
      %v1300 = vshrl.u32 %v1056, 16
      %v1302 = vrot.slane %v1300, 3
      %v1303 = vshll.u32 %v1056, 16
      %v1305 = vrot.slane %v1303, 4
      %v1306 = vor.u32 %v1302, %v1305
      %v1307 = vsel %vm1236, %v1297, %v1306
      %v1309 = vshrl.u32 %v1057, 16
      %v1311 = vrot.slane %v1309, 3
      %v1312 = vshll.u32 %v1057, 16
      %v1314 = vrot.slane %v1312, 4
      %v1315 = vor.u32 %v1311, %v1314
      %v1316 = vsel %vm1236, %v1306, %v1315
      %v1318 = vshrl.u32 %v1058, 16
      %v1320 = vrot.slane %v1318, 3
      %v1321 = vshll.u32 %v1058, 16
      %v1323 = vrot.slane %v1321, 4
      %v1324 = vor.u32 %v1320, %v1323
      %v1325 = vsel %vm1236, %v1315, %v1324
      %v1327 = vshrl.u32 %v1235, 16
      %v1329 = vrot.slane %v1327, 3
      %v1330 = vshll.u32 %v1235, 16
      %v1332 = vrot.slane %v1330, 4
      %v1333 = vor.u32 %v1329, %v1332
      %v1334 = vsel %vm1236, %v1324, %v1333
      %v1343 = vunpack.c.l.b16 %v1225
      %v1344 = vunpack.c.l.b16 %v1226
      %v1345 = vunpack.c.l.b16 %v1227
      %v1346 = vunpack.c.l.b16 %v1228
      %v1347 = vunpack.c.l.b16 %v1229
      %v1348 = vunpack.c.l.b16 %v1230
      %v1349 = vunpack.c.l.b16 %v1231
      %v1350 = vunpack.c.l.b16 %v1232
      %v1351 = vpack.c.b16 %v1344, %v1343
      %v1352 = vpack.c.b16 %v1346, %v1345
      %v1353 = vpack.c.b16 %v1348, %v1347
      %v1354 = vpack.c.b16 %v1350, %v1349
      %v1360 = vsel %vm588, %v1253, 0
      %v1363 = vsel %vm588, %v1262, 0
      %v1366 = vsel %vm588, %v1271, 0
      %v1369 = vsel %vm588, %v1280, 0
      %v1372 = vsel %vm588, %v1289, 0
      %v1375 = vsel %vm588, %v1298, 0
      %v1378 = vsel %vm588, %v1307, 0
      %v1381 = vsel %vm588, %v1316, 0
      %v1384 = vsel %vm588, %v1325, 0
      %v1387 = vsel %vm588, %v1334, 0
      %v1390 = vsel %vm588, %v1333, 0
      %1392 = vmatpush.bf16.msra.mxu0 0
      %1393 = vmatpush.bf16.msra.mxu0 0
      %1394 = vmatpush.bf16.msra.mxu0 0
      %1395 = vmatpush.bf16.msra.mxu0 0
      %1396 = vmatpush.bf16.msra.mxu0 %v1354
      %1397 = vmatpush.bf16.msra.mxu0 %v1353
      %1398 = vmatpush.bf16.msra.mxu0 %v1352
      %1399 = vmatpush.bf16.msra.mxu0 %v1351
      %1400 = vmatmul.bf16.gmra.mxu0 %v1360
      %v1401 = vpop.f32.mrf.mxu0
      %v1402 = vadd.f32 0.0, %v1401
      %v1403 = vpop.f32.mrf.mxu0
      %v1404 = vadd.f32 0.0, %v1403
      %1405 = vmatmul.bf16.gmra.mxu0 %v1363
      %v1406 = vpop.f32.mrf.mxu0
      %v1407 = vadd.f32 0.0, %v1406
      %v1408 = vpop.f32.mrf.mxu0
      %v1409 = vadd.f32 0.0, %v1408
      %1410 = vmatmul.bf16.gmra.mxu0 %v1366
      %v1411 = vpop.f32.mrf.mxu0
      %v1412 = vadd.f32 0.0, %v1411
      %v1413 = vpop.f32.mrf.mxu0
      %v1414 = vadd.f32 0.0, %v1413
      %1415 = vmatmul.bf16.gmra.mxu0 %v1369
      %v1416 = vpop.f32.mrf.mxu0
      %v1417 = vadd.f32 0.0, %v1416
      %v1418 = vpop.f32.mrf.mxu0
      %v1419 = vadd.f32 0.0, %v1418
      %1420 = vmatmul.bf16.gmra.mxu0 %v1372
      %v1421 = vpop.f32.mrf.mxu0
      %v1422 = vadd.f32 0.0, %v1421
      %v1423 = vpop.f32.mrf.mxu0
      %v1424 = vadd.f32 0.0, %v1423
      %1425 = vmatmul.bf16.gmra.mxu0 %v1375
      %v1426 = vpop.f32.mrf.mxu0
      %v1427 = vadd.f32 0.0, %v1426
      %v1428 = vpop.f32.mrf.mxu0
      %v1429 = vadd.f32 0.0, %v1428
      %1430 = vmatmul.bf16.gmra.mxu0 %v1378
      %v1431 = vpop.f32.mrf.mxu0
      %v1432 = vadd.f32 0.0, %v1431
      %v1433 = vpop.f32.mrf.mxu0
      %v1434 = vadd.f32 0.0, %v1433
      %1435 = vmatmul.bf16.gmra.mxu0 %v1381
      %v1436 = vpop.f32.mrf.mxu0
      %v1437 = vadd.f32 0.0, %v1436
      %v1438 = vpop.f32.mrf.mxu0
      %v1439 = vadd.f32 0.0, %v1438
      %1440 = vmatmul.bf16.gmra.mxu0 %v1384
      %v1441 = vpop.f32.mrf.mxu0
      %v1442 = vadd.f32 0.0, %v1441
      %v1443 = vpop.f32.mrf.mxu0
      %v1444 = vadd.f32 0.0, %v1443
      %1445 = vmatmul.bf16.gmra.mxu0 %v1387
      %v1446 = vpop.f32.mrf.mxu0
      %v1447 = vadd.f32 0.0, %v1446
      %v1448 = vpop.f32.mrf.mxu0
      %v1449 = vadd.f32 0.0, %v1448
      %1450 = vmatmul.bf16.gmra.mxu0 %v1390
      %v1451 = vpop.f32.mrf.mxu0
      %v1452 = vadd.f32 0.0, %v1451
      %v1453 = vpop.f32.mrf.mxu0
      %1454 = vdwg.mxu0
      %v1455 = vadd.f32 %v1202, %v1402
      %v1456 = vadd.f32 %v1203, %v1404
      %v1457 = vadd.f32 %v1204, %v1407
      %v1458 = vadd.f32 %v1205, %v1409
      %v1459 = vadd.f32 %v1206, %v1412
      %v1460 = vadd.f32 %v1207, %v1414
      %v1461 = vadd.f32 %v1208, %v1417
      %v1462 = vadd.f32 %v1209, %v1419
      %v1463 = vadd.f32 %v1210, %v1422
      %v1464 = vadd.f32 %v1211, %v1424
      %v1465 = vadd.f32 %v1212, %v1427
      %v1466 = vadd.f32 %v1213, %v1429
      %v1467 = vadd.f32 %v1214, %v1432
      %v1468 = vadd.f32 %v1215, %v1434
      %v1469 = vadd.f32 %v1216, %v1437
      %v1470 = vadd.f32 %v1217, %v1439
      %v1471 = vadd.f32 %v1218, %v1442
      %v1472 = vadd.f32 %v1219, %v1444
      %v1473 = vadd.f32 %v1220, %v1447
      %v1474 = vadd.f32 %v1221, %v1449
      %v1475 = vadd.f32 %v1222, %v1452
      %s1476 = scalar_lea.vmem %s3, 160
      %v1477 = vld [vmem:[%s1476] sm:$0xf]
      %v1478 = vld [vmem:[%s1476 + $0x4] sm:$0xf]
      %v1479 = vld [vmem:[%s1476 + $0x8] sm:$0xf]
      %v1480 = vld [vmem:[%s1476 + $0xc] sm:$0xf]
      %v1481 = vld [vmem:[%s1476 + $0x10] sm:$0xf]
      %v1482 = vld [vmem:[%s1476 + $0x14] sm:$0xf]
      %v1483 = vld [vmem:[%s1476 + $0x18] sm:$0xf]
      %v1484 = vld [vmem:[%s1476 + $0x1c] sm:$0xf]
      %v1485 = vpack.c.b16 %v1029, %v1028
      %v1486 = vpack.c.b16 %v1031, %v1030
      %v1487 = vpack.c.b16 %v1033, %v1032
      %v1488 = vpack.c.b16 %v1035, %v1034
      %v1489 = vpack.c.b16 %v1037, %v1036
      %v1490 = vpack.c.b16 %v1039, %v1038
      %v1491 = vpack.c.b16 %v1041, %v1040
      %v1492 = vpack.c.b16 %v1043, %v1042
      %v1493 = vpack.c.b16 %v1045, %v1044
      %v1494 = vpack.c.b16 %v1047, %v1046
      %v1495 = vpack.c.b16 %v1234, %v1234
      %v1504 = vunpack.c.l.b16 %v1477
      %v1505 = vunpack.c.l.b16 %v1478
      %v1506 = vunpack.c.l.b16 %v1479
      %v1507 = vunpack.c.l.b16 %v1480
      %v1508 = vunpack.c.l.b16 %v1481
      %v1509 = vunpack.c.l.b16 %v1482
      %v1510 = vunpack.c.l.b16 %v1483
      %v1511 = vunpack.c.l.b16 %v1484
      %v1512 = vpack.c.b16 %v1505, %v1504
      %v1513 = vpack.c.b16 %v1507, %v1506
      %v1514 = vpack.c.b16 %v1509, %v1508
      %v1515 = vpack.c.b16 %v1511, %v1510
      %v1521 = vsel %vm588, %v1485, 0
      %v1524 = vsel %vm588, %v1486, 0
      %v1527 = vsel %vm588, %v1487, 0
      %v1530 = vsel %vm588, %v1488, 0
      %v1533 = vsel %vm588, %v1489, 0
      %v1536 = vsel %vm588, %v1490, 0
      %v1539 = vsel %vm588, %v1491, 0
      %v1542 = vsel %vm588, %v1492, 0
      %v1545 = vsel %vm588, %v1493, 0
      %v1548 = vsel %vm588, %v1494, 0
      %v1551 = vsel %vm588, %v1495, 0
      %1553 = vmatpush.bf16.msra.mxu0 0
      %1554 = vmatpush.bf16.msra.mxu0 0
      %1555 = vmatpush.bf16.msra.mxu0 0
      %1556 = vmatpush.bf16.msra.mxu0 0
      %1557 = vmatpush.bf16.msra.mxu0 %v1515
      %1558 = vmatpush.bf16.msra.mxu0 %v1514
      %1559 = vmatpush.bf16.msra.mxu0 %v1513
      %1560 = vmatpush.bf16.msra.mxu0 %v1512
      %1561 = vmatmul.bf16.gmra.mxu0 %v1521
      %v1562 = vpop.f32.mrf.mxu0
      %v1563 = vadd.f32 0.0, %v1562
      %v1564 = vpop.f32.mrf.mxu0
      %v1565 = vadd.f32 0.0, %v1564
      %1566 = vmatmul.bf16.gmra.mxu0 %v1524
      %v1567 = vpop.f32.mrf.mxu0
      %v1568 = vadd.f32 0.0, %v1567
      %v1569 = vpop.f32.mrf.mxu0
      %v1570 = vadd.f32 0.0, %v1569
      %1571 = vmatmul.bf16.gmra.mxu0 %v1527
      %v1572 = vpop.f32.mrf.mxu0
      %v1573 = vadd.f32 0.0, %v1572
      %v1574 = vpop.f32.mrf.mxu0
      %v1575 = vadd.f32 0.0, %v1574
      %1576 = vmatmul.bf16.gmra.mxu0 %v1530
      %v1577 = vpop.f32.mrf.mxu0
      %v1578 = vadd.f32 0.0, %v1577
      %v1579 = vpop.f32.mrf.mxu0
      %v1580 = vadd.f32 0.0, %v1579
      %1581 = vmatmul.bf16.gmra.mxu0 %v1533
      %v1582 = vpop.f32.mrf.mxu0
      %v1583 = vadd.f32 0.0, %v1582
      %v1584 = vpop.f32.mrf.mxu0
      %v1585 = vadd.f32 0.0, %v1584
      %1586 = vmatmul.bf16.gmra.mxu0 %v1536
      %v1587 = vpop.f32.mrf.mxu0
      %v1588 = vadd.f32 0.0, %v1587
      %v1589 = vpop.f32.mrf.mxu0
      %v1590 = vadd.f32 0.0, %v1589
      %1591 = vmatmul.bf16.gmra.mxu0 %v1539
      %v1592 = vpop.f32.mrf.mxu0
      %v1593 = vadd.f32 0.0, %v1592
      %v1594 = vpop.f32.mrf.mxu0
      %v1595 = vadd.f32 0.0, %v1594
      %1596 = vmatmul.bf16.gmra.mxu0 %v1542
      %v1597 = vpop.f32.mrf.mxu0
      %v1598 = vadd.f32 0.0, %v1597
      %v1599 = vpop.f32.mrf.mxu0
      %v1600 = vadd.f32 0.0, %v1599
      %1601 = vmatmul.bf16.gmra.mxu0 %v1545
      %v1602 = vpop.f32.mrf.mxu0
      %v1603 = vadd.f32 0.0, %v1602
      %v1604 = vpop.f32.mrf.mxu0
      %v1605 = vadd.f32 0.0, %v1604
      %1606 = vmatmul.bf16.gmra.mxu0 %v1548
      %v1607 = vpop.f32.mrf.mxu0
      %v1608 = vadd.f32 0.0, %v1607
      %v1609 = vpop.f32.mrf.mxu0
      %v1610 = vadd.f32 0.0, %v1609
      %1611 = vmatmul.bf16.gmra.mxu0 %v1551
      %v1612 = vpop.f32.mrf.mxu0
      %v1613 = vadd.f32 0.0, %v1612
      %v1614 = vpop.f32.mrf.mxu0
      %1615 = vdwg.mxu0
      %v1616 = vadd.f32 %v1455, %v1563
      %v1617 = vadd.f32 %v1456, %v1565
      %v1618 = vadd.f32 %v1457, %v1568
      %v1619 = vadd.f32 %v1458, %v1570
      %v1620 = vadd.f32 %v1459, %v1573
      %v1621 = vadd.f32 %v1460, %v1575
      %v1622 = vadd.f32 %v1461, %v1578
      %v1623 = vadd.f32 %v1462, %v1580
      %v1624 = vadd.f32 %v1463, %v1583
      %v1625 = vadd.f32 %v1464, %v1585
      %v1626 = vadd.f32 %v1465, %v1588
      %v1627 = vadd.f32 %v1466, %v1590
      %v1628 = vadd.f32 %v1467, %v1593
      %v1629 = vadd.f32 %v1468, %v1595
      %v1630 = vadd.f32 %v1469, %v1598
      %v1631 = vadd.f32 %v1470, %v1600
      %v1632 = vadd.f32 %v1471, %v1603
      %v1633 = vadd.f32 %v1472, %v1605
      %v1634 = vadd.f32 %v1473, %v1608
      %v1635 = vadd.f32 %v1474, %v1610
      %v1636 = vadd.f32 %v1475, %v1613
      %v1637 = vld [vmem:[#allocation2 + $0xc] sm:$0xc]
      %v1638 = vld [vmem:[#allocation2 + $0x10] sm:$0xf]
      %v1639 = vld [vmem:[#allocation2 + $0x14] sm:$0xf]
      %v1640 = vld [vmem:[#allocation2 + $0x18] sm:$0xf]
      %v1641 = vld [vmem:[#allocation2 + $0x1c] sm:$0xf]
      %v1642 = vld [vmem:[#allocation2 + $0x20] sm:$0xf]
      %v1643 = vld [vmem:[#allocation2 + $0x24] sm:$0xf]
      %v1644 = vld [vmem:[#allocation2 + $0x28] sm:$0xf]
      %v1645 = vld [vmem:[#allocation2 + $0x2c] sm:$0xf]
      %v1646 = vld [vmem:[#allocation2 + $0x30] sm:$0xf]
      %v1647 = vld [vmem:[#allocation2 + $0x34] sm:$0xf]
      %v1648 = vld [vmem:[#allocation2 + $0x38] sm:$0xf]
      %v1649 = vld [vmem:[#allocation2 + $0x3c] sm:$0xf]
      %v1650 = vld [vmem:[#allocation2 + $0x40] sm:$0xf]
      %v1651 = vld [vmem:[#allocation2 + $0x44] sm:$0xf]
      %v1652 = vld [vmem:[#allocation2 + $0x48] sm:$0xf]
      %v1653 = vld [vmem:[#allocation2 + $0x4c] sm:$0xf]
      %v1654 = vld [vmem:[#allocation2 + $0x50] sm:$0xf]
      %v1655 = vld [vmem:[#allocation2 + $0x54] sm:$0xf]
      %v1656 = vld [vmem:[#allocation2 + $0x58] sm:$0xf]
      %v1657 = vld [vmem:[#allocation2 + $0x5c] sm:$0xf]
      %v1658 = vld [vmem:[#allocation2 + $0x60] sm:$0x1]
      %s1659 = scalar_lea.vmem %s3, 192
      %v1660 = vld [vmem:[%s1659] sm:$0xf]
      %v1661 = vld [vmem:[%s1659 + $0x4] sm:$0xf]
      %v1662 = vld [vmem:[%s1659 + $0x8] sm:$0xf]
      %v1663 = vld [vmem:[%s1659 + $0xc] sm:$0xf]
      %v1664 = vld [vmem:[%s1659 + $0x10] sm:$0xf]
      %v1665 = vld [vmem:[%s1659 + $0x14] sm:$0xf]
      %v1666 = vld [vmem:[%s1659 + $0x18] sm:$0xf]
      %v1667 = vld [vmem:[%s1659 + $0x1c] sm:$0xf]
      %v1690 = vunpack.c.l.b16 %v1637
      %v1691 = vunpack.c.l.b16 %v1638
      %v1692 = vunpack.c.l.b16 %v1639
      %v1693 = vunpack.c.l.b16 %v1640
      %v1694 = vunpack.c.l.b16 %v1641
      %v1695 = vunpack.c.l.b16 %v1642
      %v1696 = vunpack.c.l.b16 %v1643
      %v1697 = vunpack.c.l.b16 %v1644
      %v1698 = vunpack.c.l.b16 %v1645
      %v1699 = vunpack.c.l.b16 %v1646
      %v1700 = vunpack.c.l.b16 %v1647
      %v1701 = vunpack.c.l.b16 %v1648
      %v1702 = vunpack.c.l.b16 %v1649
      %v1703 = vunpack.c.l.b16 %v1650
      %v1704 = vunpack.c.l.b16 %v1651
      %v1705 = vunpack.c.l.b16 %v1652
      %v1706 = vunpack.c.l.b16 %v1653
      %v1707 = vunpack.c.l.b16 %v1654
      %v1708 = vunpack.c.l.b16 %v1655
      %v1709 = vunpack.c.l.b16 %v1656
      %v1710 = vunpack.c.l.b16 %v1657
      %v1711 = vunpack.c.l.b16 %v1658
      %v1712 = vpack.c.b16 %v1691, %v1690
      %v1713 = vpack.c.b16 %v1693, %v1692
      %v1714 = vpack.c.b16 %v1695, %v1694
      %v1715 = vpack.c.b16 %v1697, %v1696
      %v1716 = vpack.c.b16 %v1699, %v1698
      %v1717 = vpack.c.b16 %v1701, %v1700
      %v1718 = vpack.c.b16 %v1703, %v1702
      %v1719 = vpack.c.b16 %v1705, %v1704
      %v1720 = vpack.c.b16 %v1707, %v1706
      %v1721 = vpack.c.b16 %v1709, %v1708
      %v1722 = vpack.c.b16 %v1711, %v1710
      %vm1723 = vcmask 1045504
      %v1724 = vrot.slane %v1712, 2
      %v1725 = vrot.slane %v1713, 2
      %v1726 = vsel %vm1723, %v1724, %v1725
      %v1727 = vrot.slane %v1714, 2
      %v1728 = vsel %vm1723, %v1725, %v1727
      %v1729 = vrot.slane %v1715, 2
      %v1730 = vsel %vm1723, %v1727, %v1729
      %v1731 = vrot.slane %v1716, 2
      %v1732 = vsel %vm1723, %v1729, %v1731
      %v1733 = vrot.slane %v1717, 2
      %v1734 = vsel %vm1723, %v1731, %v1733
      %v1735 = vrot.slane %v1718, 2
      %v1736 = vsel %vm1723, %v1733, %v1735
      %v1737 = vrot.slane %v1719, 2
      %v1738 = vsel %vm1723, %v1735, %v1737
      %v1739 = vrot.slane %v1720, 2
      %v1740 = vsel %vm1723, %v1737, %v1739
      %v1741 = vrot.slane %v1721, 2
      %v1742 = vsel %vm1723, %v1739, %v1741
      %v1743 = vrot.slane %v1722, 2
      %v1744 = vsel %vm1723, %v1741, %v1743
      %v1753 = vunpack.c.l.b16 %v1660
      %v1754 = vunpack.c.l.b16 %v1661
      %v1755 = vunpack.c.l.b16 %v1662
      %v1756 = vunpack.c.l.b16 %v1663
      %v1757 = vunpack.c.l.b16 %v1664
      %v1758 = vunpack.c.l.b16 %v1665
      %v1759 = vunpack.c.l.b16 %v1666
      %v1760 = vunpack.c.l.b16 %v1667
      %v1761 = vpack.c.b16 %v1754, %v1753
      %v1762 = vpack.c.b16 %v1756, %v1755
      %v1763 = vpack.c.b16 %v1758, %v1757
      %v1764 = vpack.c.b16 %v1760, %v1759
      %v1770 = vsel %vm588, %v1726, 0
      %v1773 = vsel %vm588, %v1728, 0
      %v1776 = vsel %vm588, %v1730, 0
      %v1779 = vsel %vm588, %v1732, 0
      %v1782 = vsel %vm588, %v1734, 0
      %v1785 = vsel %vm588, %v1736, 0
      %v1788 = vsel %vm588, %v1738, 0
      %v1791 = vsel %vm588, %v1740, 0
      %v1794 = vsel %vm588, %v1742, 0
      %v1797 = vsel %vm588, %v1744, 0
      %v1800 = vsel %vm588, %v1743, 0
      %1802 = vmatpush.bf16.msra.mxu0 0
      %1803 = vmatpush.bf16.msra.mxu0 0
      %1804 = vmatpush.bf16.msra.mxu0 0
      %1805 = vmatpush.bf16.msra.mxu0 0
      %1806 = vmatpush.bf16.msra.mxu0 %v1764
      %1807 = vmatpush.bf16.msra.mxu0 %v1763
      %1808 = vmatpush.bf16.msra.mxu0 %v1762
      %1809 = vmatpush.bf16.msra.mxu0 %v1761
      %1810 = vmatmul.bf16.gmra.mxu0 %v1770
      %v1811 = vpop.f32.mrf.mxu0
      %v1812 = vadd.f32 0.0, %v1811
      %v1813 = vpop.f32.mrf.mxu0
      %v1814 = vadd.f32 0.0, %v1813
      %1815 = vmatmul.bf16.gmra.mxu0 %v1773
      %v1816 = vpop.f32.mrf.mxu0
      %v1817 = vadd.f32 0.0, %v1816
      %v1818 = vpop.f32.mrf.mxu0
      %v1819 = vadd.f32 0.0, %v1818
      %1820 = vmatmul.bf16.gmra.mxu0 %v1776
      %v1821 = vpop.f32.mrf.mxu0
      %v1822 = vadd.f32 0.0, %v1821
      %v1823 = vpop.f32.mrf.mxu0
      %v1824 = vadd.f32 0.0, %v1823
      %1825 = vmatmul.bf16.gmra.mxu0 %v1779
      %v1826 = vpop.f32.mrf.mxu0
      %v1827 = vadd.f32 0.0, %v1826
      %v1828 = vpop.f32.mrf.mxu0
      %v1829 = vadd.f32 0.0, %v1828
      %1830 = vmatmul.bf16.gmra.mxu0 %v1782
      %v1831 = vpop.f32.mrf.mxu0
      %v1832 = vadd.f32 0.0, %v1831
      %v1833 = vpop.f32.mrf.mxu0
      %v1834 = vadd.f32 0.0, %v1833
      %1835 = vmatmul.bf16.gmra.mxu0 %v1785
      %v1836 = vpop.f32.mrf.mxu0
      %v1837 = vadd.f32 0.0, %v1836
      %v1838 = vpop.f32.mrf.mxu0
      %v1839 = vadd.f32 0.0, %v1838
      %1840 = vmatmul.bf16.gmra.mxu0 %v1788
      %v1841 = vpop.f32.mrf.mxu0
      %v1842 = vadd.f32 0.0, %v1841
      %v1843 = vpop.f32.mrf.mxu0
      %v1844 = vadd.f32 0.0, %v1843
      %1845 = vmatmul.bf16.gmra.mxu0 %v1791
      %v1846 = vpop.f32.mrf.mxu0
      %v1847 = vadd.f32 0.0, %v1846
      %v1848 = vpop.f32.mrf.mxu0
      %v1849 = vadd.f32 0.0, %v1848
      %1850 = vmatmul.bf16.gmra.mxu0 %v1794
      %v1851 = vpop.f32.mrf.mxu0
      %v1852 = vadd.f32 0.0, %v1851
      %v1853 = vpop.f32.mrf.mxu0
      %v1854 = vadd.f32 0.0, %v1853
      %1855 = vmatmul.bf16.gmra.mxu0 %v1797
      %v1856 = vpop.f32.mrf.mxu0
      %v1857 = vadd.f32 0.0, %v1856
      %v1858 = vpop.f32.mrf.mxu0
      %v1859 = vadd.f32 0.0, %v1858
      %1860 = vmatmul.bf16.gmra.mxu0 %v1800
      %v1861 = vpop.f32.mrf.mxu0
      %v1862 = vadd.f32 0.0, %v1861
      %v1863 = vpop.f32.mrf.mxu0
      %1864 = vdwg.mxu0
      %v1865 = vadd.f32 %v1616, %v1812
      %v1866 = vadd.f32 %v1617, %v1814
      %v1867 = vadd.f32 %v1618, %v1817
      %v1868 = vadd.f32 %v1619, %v1819
      %v1869 = vadd.f32 %v1620, %v1822
      %v1870 = vadd.f32 %v1621, %v1824
      %v1871 = vadd.f32 %v1622, %v1827
      %v1872 = vadd.f32 %v1623, %v1829
      %v1873 = vadd.f32 %v1624, %v1832
      %v1874 = vadd.f32 %v1625, %v1834
      %v1875 = vadd.f32 %v1626, %v1837
      %v1876 = vadd.f32 %v1627, %v1839
      %v1877 = vadd.f32 %v1628, %v1842
      %v1878 = vadd.f32 %v1629, %v1844
      %v1879 = vadd.f32 %v1630, %v1847
      %v1880 = vadd.f32 %v1631, %v1849
      %v1881 = vadd.f32 %v1632, %v1852
      %v1882 = vadd.f32 %v1633, %v1854
      %v1883 = vadd.f32 %v1634, %v1857
      %v1884 = vadd.f32 %v1635, %v1859
      %v1885 = vadd.f32 %v1636, %v1862
      %v1886 = vld [vmem:[#allocation2 + $0x60] sm:$0x3]
      %s1887 = scalar_lea.vmem %s3, 224
      %v1888 = vld [vmem:[%s1887] sm:$0xf]
      %v1889 = vld [vmem:[%s1887 + $0x4] sm:$0xf]
      %v1890 = vld [vmem:[%s1887 + $0x8] sm:$0xf]
      %v1891 = vld [vmem:[%s1887 + $0xc] sm:$0xf]
      %v1892 = vld [vmem:[%s1887 + $0x10] sm:$0xf]
      %v1893 = vld [vmem:[%s1887 + $0x14] sm:$0xf]
      %v1894 = vld [vmem:[%s1887 + $0x18] sm:$0xf]
      %v1895 = vld [vmem:[%s1887 + $0x1c] sm:$0xf]
      %v1897 = vunpack.c.l.b16 %v1886
      %v1898 = vpack.c.b16 %v1897, %v1710
      %vm1899 = vsmask.f32 5376
      %v1901 = vshrl.u32 %v1712, 16
      %v1903 = vrot.slane %v1901, 2
      %v1904 = vshll.u32 %v1712, 16
      %v1906 = vrot.slane %v1904, 3
      %v1907 = vor.u32 %v1903, %v1906
      %v1909 = vshrl.u32 %v1713, 16
      %v1911 = vrot.slane %v1909, 2
      %v1912 = vshll.u32 %v1713, 16
      %v1914 = vrot.slane %v1912, 3
      %v1915 = vor.u32 %v1911, %v1914
      %v1916 = vsel %vm1899, %v1907, %v1915
      %v1918 = vshrl.u32 %v1714, 16
      %v1920 = vrot.slane %v1918, 2
      %v1921 = vshll.u32 %v1714, 16
      %v1923 = vrot.slane %v1921, 3
      %v1924 = vor.u32 %v1920, %v1923
      %v1925 = vsel %vm1899, %v1915, %v1924
      %v1927 = vshrl.u32 %v1715, 16
      %v1929 = vrot.slane %v1927, 2
      %v1930 = vshll.u32 %v1715, 16
      %v1932 = vrot.slane %v1930, 3
      %v1933 = vor.u32 %v1929, %v1932
      %v1934 = vsel %vm1899, %v1924, %v1933
      %v1936 = vshrl.u32 %v1716, 16
      %v1938 = vrot.slane %v1936, 2
      %v1939 = vshll.u32 %v1716, 16
      %v1941 = vrot.slane %v1939, 3
      %v1942 = vor.u32 %v1938, %v1941
      %v1943 = vsel %vm1899, %v1933, %v1942
      %v1945 = vshrl.u32 %v1717, 16
      %v1947 = vrot.slane %v1945, 2
      %v1948 = vshll.u32 %v1717, 16
      %v1950 = vrot.slane %v1948, 3
      %v1951 = vor.u32 %v1947, %v1950
      %v1952 = vsel %vm1899, %v1942, %v1951
      %v1954 = vshrl.u32 %v1718, 16
      %v1956 = vrot.slane %v1954, 2
      %v1957 = vshll.u32 %v1718, 16
      %v1959 = vrot.slane %v1957, 3
      %v1960 = vor.u32 %v1956, %v1959
      %v1961 = vsel %vm1899, %v1951, %v1960
      %v1963 = vshrl.u32 %v1719, 16
      %v1965 = vrot.slane %v1963, 2
      %v1966 = vshll.u32 %v1719, 16
      %v1968 = vrot.slane %v1966, 3
      %v1969 = vor.u32 %v1965, %v1968
      %v1970 = vsel %vm1899, %v1960, %v1969
      %v1972 = vshrl.u32 %v1720, 16
      %v1974 = vrot.slane %v1972, 2
      %v1975 = vshll.u32 %v1720, 16
      %v1977 = vrot.slane %v1975, 3
      %v1978 = vor.u32 %v1974, %v1977
      %v1979 = vsel %vm1899, %v1969, %v1978
      %v1981 = vshrl.u32 %v1721, 16
      %v1983 = vrot.slane %v1981, 2
      %v1984 = vshll.u32 %v1721, 16
      %v1986 = vrot.slane %v1984, 3
      %v1987 = vor.u32 %v1983, %v1986
      %v1988 = vsel %vm1899, %v1978, %v1987
      %v1990 = vshrl.u32 %v1898, 16
      %v1992 = vrot.slane %v1990, 2
      %v1993 = vshll.u32 %v1898, 16
      %v1995 = vrot.slane %v1993, 3
      %v1996 = vor.u32 %v1992, %v1995
      %v1997 = vsel %vm1899, %v1987, %v1996
      %v2006 = vunpack.c.l.b16 %v1888
      %v2007 = vunpack.c.l.b16 %v1889
      %v2008 = vunpack.c.l.b16 %v1890
      %v2009 = vunpack.c.l.b16 %v1891
      %v2010 = vunpack.c.l.b16 %v1892
      %v2011 = vunpack.c.l.b16 %v1893
      %v2012 = vunpack.c.l.b16 %v1894
      %v2013 = vunpack.c.l.b16 %v1895
      %v2014 = vpack.c.b16 %v2007, %v2006
      %v2015 = vpack.c.b16 %v2009, %v2008
      %v2016 = vpack.c.b16 %v2011, %v2010
      %v2017 = vpack.c.b16 %v2013, %v2012
      %v2023 = vsel %vm588, %v1916, 0
      %v2026 = vsel %vm588, %v1925, 0
      %v2029 = vsel %vm588, %v1934, 0
      %v2032 = vsel %vm588, %v1943, 0
      %v2035 = vsel %vm588, %v1952, 0
      %v2038 = vsel %vm588, %v1961, 0
      %v2041 = vsel %vm588, %v1970, 0
      %v2044 = vsel %vm588, %v1979, 0
      %v2047 = vsel %vm588, %v1988, 0
      %v2050 = vsel %vm588, %v1997, 0
      %v2053 = vsel %vm588, %v1996, 0
      %2055 = vmatpush.bf16.msra.mxu0 0
      %2056 = vmatpush.bf16.msra.mxu0 0
      %2057 = vmatpush.bf16.msra.mxu0 0
      %2058 = vmatpush.bf16.msra.mxu0 0
      %2059 = vmatpush.bf16.msra.mxu0 %v2017
      %2060 = vmatpush.bf16.msra.mxu0 %v2016
      %2061 = vmatpush.bf16.msra.mxu0 %v2015
      %2062 = vmatpush.bf16.msra.mxu0 %v2014
      %2063 = vmatmul.bf16.gmra.mxu0 %v2023
      %v2064 = vpop.f32.mrf.mxu0
      %v2065 = vadd.f32 0.0, %v2064
      %v2066 = vpop.f32.mrf.mxu0
      %v2067 = vadd.f32 0.0, %v2066
      %2068 = vmatmul.bf16.gmra.mxu0 %v2026
      %v2069 = vpop.f32.mrf.mxu0
      %v2070 = vadd.f32 0.0, %v2069
      %v2071 = vpop.f32.mrf.mxu0
      %v2072 = vadd.f32 0.0, %v2071
      %2073 = vmatmul.bf16.gmra.mxu0 %v2029
      %v2074 = vpop.f32.mrf.mxu0
      %v2075 = vadd.f32 0.0, %v2074
      %v2076 = vpop.f32.mrf.mxu0
      %v2077 = vadd.f32 0.0, %v2076
      %2078 = vmatmul.bf16.gmra.mxu0 %v2032
      %v2079 = vpop.f32.mrf.mxu0
      %v2080 = vadd.f32 0.0, %v2079
      %v2081 = vpop.f32.mrf.mxu0
      %v2082 = vadd.f32 0.0, %v2081
      %2083 = vmatmul.bf16.gmra.mxu0 %v2035
      %v2084 = vpop.f32.mrf.mxu0
      %v2085 = vadd.f32 0.0, %v2084
      %v2086 = vpop.f32.mrf.mxu0
      %v2087 = vadd.f32 0.0, %v2086
      %2088 = vmatmul.bf16.gmra.mxu0 %v2038
      %v2089 = vpop.f32.mrf.mxu0
      %v2090 = vadd.f32 0.0, %v2089
      %v2091 = vpop.f32.mrf.mxu0
      %v2092 = vadd.f32 0.0, %v2091
      %2093 = vmatmul.bf16.gmra.mxu0 %v2041
      %v2094 = vpop.f32.mrf.mxu0
      %v2095 = vadd.f32 0.0, %v2094
      %v2096 = vpop.f32.mrf.mxu0
      %v2097 = vadd.f32 0.0, %v2096
      %2098 = vmatmul.bf16.gmra.mxu0 %v2044
      %v2099 = vpop.f32.mrf.mxu0
      %v2100 = vadd.f32 0.0, %v2099
      %v2101 = vpop.f32.mrf.mxu0
      %v2102 = vadd.f32 0.0, %v2101
      %2103 = vmatmul.bf16.gmra.mxu0 %v2047
      %v2104 = vpop.f32.mrf.mxu0
      %v2105 = vadd.f32 0.0, %v2104
      %v2106 = vpop.f32.mrf.mxu0
      %v2107 = vadd.f32 0.0, %v2106
      %2108 = vmatmul.bf16.gmra.mxu0 %v2050
      %v2109 = vpop.f32.mrf.mxu0
      %v2110 = vadd.f32 0.0, %v2109
      %v2111 = vpop.f32.mrf.mxu0
      %v2112 = vadd.f32 0.0, %v2111
      %2113 = vmatmul.bf16.gmra.mxu0 %v2053
      %v2114 = vpop.f32.mrf.mxu0
      %v2115 = vadd.f32 0.0, %v2114
      %v2116 = vpop.f32.mrf.mxu0
      %2117 = vdwg.mxu0
      %v2118 = vadd.f32 %v1865, %v2065
      %v2119 = vadd.f32 %v1866, %v2067
      %v2120 = vadd.f32 %v1867, %v2070
      %v2121 = vadd.f32 %v1868, %v2072
      %v2122 = vadd.f32 %v1869, %v2075
      %v2123 = vadd.f32 %v1870, %v2077
      %v2124 = vadd.f32 %v1871, %v2080
      %v2125 = vadd.f32 %v1872, %v2082
      %v2126 = vadd.f32 %v1873, %v2085
      %v2127 = vadd.f32 %v1874, %v2087
      %v2128 = vadd.f32 %v1875, %v2090
      %v2129 = vadd.f32 %v1876, %v2092
      %v2130 = vadd.f32 %v1877, %v2095
      %v2131 = vadd.f32 %v1878, %v2097
      %v2132 = vadd.f32 %v1879, %v2100
      %v2133 = vadd.f32 %v1880, %v2102
      %v2134 = vadd.f32 %v1881, %v2105
      %v2135 = vadd.f32 %v1882, %v2107
      %v2136 = vadd.f32 %v1883, %v2110
      %v2137 = vadd.f32 %v1884, %v2112
      %v2138 = vadd.f32 %v1885, %v2115
      %v2139 = vld [vmem:[#allocation2 + $0xc] sm:$0x8]
      %s2140 = scalar_lea.vmem %s3, 256
      %v2141 = vld [vmem:[%s2140] sm:$0xf]
      %v2142 = vld [vmem:[%s2140 + $0x4] sm:$0xf]
      %v2143 = vld [vmem:[%s2140 + $0x8] sm:$0xf]
      %v2144 = vld [vmem:[%s2140 + $0xc] sm:$0xf]
      %v2145 = vld [vmem:[%s2140 + $0x10] sm:$0xf]
      %v2146 = vld [vmem:[%s2140 + $0x14] sm:$0xf]
      %v2147 = vld [vmem:[%s2140 + $0x18] sm:$0xf]
      %v2148 = vld [vmem:[%s2140 + $0x1c] sm:$0xf]
      %v2150 = vunpack.c.l.b16 %v2139
      %v2151 = vpack.c.b16 %v1691, %v2150
      %v2152 = vrot.slane %v2151, 3
      %v2153 = vrot.slane %v1713, 3
      %v2154 = vsel %vm1060, %v2152, %v2153
      %v2155 = vrot.slane %v1714, 3
      %v2156 = vsel %vm1060, %v2153, %v2155
      %v2157 = vrot.slane %v1715, 3
      %v2158 = vsel %vm1060, %v2155, %v2157
      %v2159 = vrot.slane %v1716, 3
      %v2160 = vsel %vm1060, %v2157, %v2159
      %v2161 = vrot.slane %v1717, 3
      %v2162 = vsel %vm1060, %v2159, %v2161
      %v2163 = vrot.slane %v1718, 3
      %v2164 = vsel %vm1060, %v2161, %v2163
      %v2165 = vrot.slane %v1719, 3
      %v2166 = vsel %vm1060, %v2163, %v2165
      %v2167 = vrot.slane %v1720, 3
      %v2168 = vsel %vm1060, %v2165, %v2167
      %v2169 = vrot.slane %v1721, 3
      %v2170 = vsel %vm1060, %v2167, %v2169
      %v2171 = vrot.slane %v1898, 3
      %v2172 = vsel %vm1060, %v2169, %v2171
      %v2181 = vunpack.c.l.b16 %v2141
      %v2182 = vunpack.c.l.b16 %v2142
      %v2183 = vunpack.c.l.b16 %v2143
      %v2184 = vunpack.c.l.b16 %v2144
      %v2185 = vunpack.c.l.b16 %v2145
      %v2186 = vunpack.c.l.b16 %v2146
      %v2187 = vunpack.c.l.b16 %v2147
      %v2188 = vunpack.c.l.b16 %v2148
      %v2189 = vpack.c.b16 %v2182, %v2181
      %v2190 = vpack.c.b16 %v2184, %v2183
      %v2191 = vpack.c.b16 %v2186, %v2185
      %v2192 = vpack.c.b16 %v2188, %v2187
      %v2198 = vsel %vm588, %v2154, 0
      %v2201 = vsel %vm588, %v2156, 0
      %v2204 = vsel %vm588, %v2158, 0
      %v2207 = vsel %vm588, %v2160, 0
      %v2210 = vsel %vm588, %v2162, 0
      %v2213 = vsel %vm588, %v2164, 0
      %v2216 = vsel %vm588, %v2166, 0
      %v2219 = vsel %vm588, %v2168, 0
      %v2222 = vsel %vm588, %v2170, 0
      %v2225 = vsel %vm588, %v2172, 0
      %v2228 = vsel %vm588, %v2171, 0
      %2230 = vmatpush.bf16.msra.mxu0 0
      %2231 = vmatpush.bf16.msra.mxu0 0
      %2232 = vmatpush.bf16.msra.mxu0 0
      %2233 = vmatpush.bf16.msra.mxu0 0
      %2234 = vmatpush.bf16.msra.mxu0 %v2192
      %2235 = vmatpush.bf16.msra.mxu0 %v2191
      %2236 = vmatpush.bf16.msra.mxu0 %v2190
      %2237 = vmatpush.bf16.msra.mxu0 %v2189
      %2238 = vmatmul.bf16.gmra.mxu0 %v2198
      %v2239 = vpop.f32.mrf.mxu0
      %v2240 = vadd.f32 0.0, %v2239
      %v2241 = vpop.f32.mrf.mxu0
      %v2242 = vadd.f32 0.0, %v2241
      %2243 = vmatmul.bf16.gmra.mxu0 %v2201
      %v2244 = vpop.f32.mrf.mxu0
      %v2245 = vadd.f32 0.0, %v2244
      %v2246 = vpop.f32.mrf.mxu0
      %v2247 = vadd.f32 0.0, %v2246
      %2248 = vmatmul.bf16.gmra.mxu0 %v2204
      %v2249 = vpop.f32.mrf.mxu0
      %v2250 = vadd.f32 0.0, %v2249
      %v2251 = vpop.f32.mrf.mxu0
      %v2252 = vadd.f32 0.0, %v2251
      %2253 = vmatmul.bf16.gmra.mxu0 %v2207
      %v2254 = vpop.f32.mrf.mxu0
      %v2255 = vadd.f32 0.0, %v2254
      %v2256 = vpop.f32.mrf.mxu0
      %v2257 = vadd.f32 0.0, %v2256
      %2258 = vmatmul.bf16.gmra.mxu0 %v2210
      %v2259 = vpop.f32.mrf.mxu0
      %v2260 = vadd.f32 0.0, %v2259
      %v2261 = vpop.f32.mrf.mxu0
      %v2262 = vadd.f32 0.0, %v2261
      %2263 = vmatmul.bf16.gmra.mxu0 %v2213
      %v2264 = vpop.f32.mrf.mxu0
      %v2265 = vadd.f32 0.0, %v2264
      %v2266 = vpop.f32.mrf.mxu0
      %v2267 = vadd.f32 0.0, %v2266
      %2268 = vmatmul.bf16.gmra.mxu0 %v2216
      %v2269 = vpop.f32.mrf.mxu0
      %v2270 = vadd.f32 0.0, %v2269
      %v2271 = vpop.f32.mrf.mxu0
      %v2272 = vadd.f32 0.0, %v2271
      %2273 = vmatmul.bf16.gmra.mxu0 %v2219
      %v2274 = vpop.f32.mrf.mxu0
      %v2275 = vadd.f32 0.0, %v2274
      %v2276 = vpop.f32.mrf.mxu0
      %v2277 = vadd.f32 0.0, %v2276
      %2278 = vmatmul.bf16.gmra.mxu0 %v2222
      %v2279 = vpop.f32.mrf.mxu0
      %v2280 = vadd.f32 0.0, %v2279
      %v2281 = vpop.f32.mrf.mxu0
      %v2282 = vadd.f32 0.0, %v2281
      %2283 = vmatmul.bf16.gmra.mxu0 %v2225
      %v2284 = vpop.f32.mrf.mxu0
      %v2285 = vadd.f32 0.0, %v2284
      %v2286 = vpop.f32.mrf.mxu0
      %v2287 = vadd.f32 0.0, %v2286
      %2288 = vmatmul.bf16.gmra.mxu0 %v2228
      %v2289 = vpop.f32.mrf.mxu0
      %v2290 = vadd.f32 0.0, %v2289
      %v2291 = vpop.f32.mrf.mxu0
      %2292 = vdwg.mxu0
      %v2293 = vadd.f32 %v2118, %v2240
      %v2294 = vadd.f32 %v2119, %v2242
      %v2295 = vadd.f32 %v2120, %v2245
      %v2296 = vadd.f32 %v2121, %v2247
      %v2297 = vadd.f32 %v2122, %v2250
      %v2298 = vadd.f32 %v2123, %v2252
      %v2299 = vadd.f32 %v2124, %v2255
      %v2300 = vadd.f32 %v2125, %v2257
      %v2301 = vadd.f32 %v2126, %v2260
      %v2302 = vadd.f32 %v2127, %v2262
      %v2303 = vadd.f32 %v2128, %v2265
      %v2304 = vadd.f32 %v2129, %v2267
      %v2305 = vadd.f32 %v2130, %v2270
      %v2306 = vadd.f32 %v2131, %v2272
      %v2307 = vadd.f32 %v2132, %v2275
      %v2308 = vadd.f32 %v2133, %v2277
      %v2309 = vadd.f32 %v2134, %v2280
      %v2310 = vadd.f32 %v2135, %v2282
      %v2311 = vadd.f32 %v2136, %v2285
      %v2312 = vadd.f32 %v2137, %v2287
      %v2313 = vadd.f32 %v2138, %v2290
      %v2314 = vpack.c.bf16 %v2293, %v2293
      %v2315 = vpack.c.bf16 %v2294, %v2294
      %v2316 = vpack.c.bf16 %v2295, %v2295
      %v2317 = vpack.c.bf16 %v2296, %v2296
      %v2318 = vpack.c.bf16 %v2297, %v2297
      %v2319 = vpack.c.bf16 %v2298, %v2298
      %v2320 = vpack.c.bf16 %v2299, %v2299
      %v2321 = vpack.c.bf16 %v2300, %v2300
      %v2322 = vpack.c.bf16 %v2301, %v2301
      %v2323 = vpack.c.bf16 %v2302, %v2302
      %v2324 = vpack.c.bf16 %v2303, %v2303
      %v2325 = vpack.c.bf16 %v2304, %v2304
      %v2326 = vpack.c.bf16 %v2305, %v2305
      %v2327 = vpack.c.bf16 %v2306, %v2306
      %v2328 = vpack.c.bf16 %v2307, %v2307
      %v2329 = vpack.c.bf16 %v2308, %v2308
      %v2330 = vpack.c.bf16 %v2309, %v2309
      %v2331 = vpack.c.bf16 %v2310, %v2310
      %v2332 = vpack.c.bf16 %v2311, %v2311
      %v2333 = vpack.c.bf16 %v2312, %v2312
      %v2334 = vpack.c.bf16 %v2313, %v2313
      %2335 = vst [vmem:[%s197] sm:$0xf] %v2314
      %2336 = vst [vmem:[%s197 + $0x4] sm:$0xf] %v2315
      %2337 = vst [vmem:[%s197 + $0x8] sm:$0xf] %v2316
      %2338 = vst [vmem:[%s197 + $0xc] sm:$0xf] %v2317
      %2339 = vst [vmem:[%s197 + $0x10] sm:$0xf] %v2318
      %2340 = vst [vmem:[%s197 + $0x14] sm:$0xf] %v2319
      %2341 = vst [vmem:[%s197 + $0x18] sm:$0xf] %v2320
      %2342 = vst [vmem:[%s197 + $0x1c] sm:$0xf] %v2321
      %2343 = vst [vmem:[%s197 + $0x20] sm:$0xf] %v2322
      %2344 = vst [vmem:[%s197 + $0x24] sm:$0xf] %v2323
      %2345 = vst [vmem:[%s197 + $0x28] sm:$0xf] %v2324
      %2346 = vst [vmem:[%s197 + $0x2c] sm:$0xf] %v2325
      %2347 = vst [vmem:[%s197 + $0x30] sm:$0xf] %v2326
      %2348 = vst [vmem:[%s197 + $0x34] sm:$0xf] %v2327
      %2349 = vst [vmem:[%s197 + $0x38] sm:$0xf] %v2328
      %2350 = vst [vmem:[%s197 + $0x3c] sm:$0xf] %v2329
      %2351 = vst [vmem:[%s197 + $0x40] sm:$0xf] %v2330
      %2352 = vst [vmem:[%s197 + $0x44] sm:$0xf] %v2331
      %2353 = vst [vmem:[%s197 + $0x48] sm:$0xf] %v2332
      %2354 = vst [vmem:[%s197 + $0x4c] sm:$0xf] %v2333
      %2355 = vst [vmem:[%s197 + $0x50] sm:$0x7] %v2334
      %2356 = vst [vmem:[%s197 + $0x50] sm:$0x8] 0
      %2357 = vst [vmem:[%s197 + $0x54] sm:$0xf] 0
      %2358 = vst [vmem:[%s197 + $0x58] sm:$0xf] 0
      %2359 = vst [vmem:[%s197 + $0x5c] sm:$0xf] 0
      %2360 = vst [vmem:[%s197 + $0x60] sm:$0x3] 0
      %p2361 = scmp.lt.s32.totalorder %s15, 1
      %s2362 = scalar_select %p2361, %s15, 1
      %s2363 = smul.addr %s2362, 25
      %s2364 = smul.addr %s2363, 4
      %s2365 = scalar_lea.vmem %s4, %s2364
      // Predicated region
      $region37: #{p4m_densenet_forward.13} parent=35 // pred_check
        %p2366 = pneg %p122
      $region38: #{p4m_densenet_forward.13} parent=35 // pred_check_branch
        %2368 = sbr.rel (%p2366) target = $region40
      $region39: #{p4m_densenet_forward.13} parent=35 // pred_region
        _
      $region40: #{p4m_densenet_forward.13} parent=35 // pred_fallthru
        _
    $region36: #{p4m_densenet_forward.13} parent=5 // pred_fallthru
      _
    %p2369 = scmp.le.s32.totalorder 2, %s10
    // Predicated region
    $region41: #{p4m_densenet_forward.13} parent=5 // pred_check
      %p2370 = pneg %p2369
    $region42: #{p4m_densenet_forward.13} parent=5 // pred_check_branch
      %2372 = sbr.rel (%p2370) target = $region44
    $region43: #{p4m_densenet_forward.13} parent=5 // pred_region
      %s2373 = ssub.s32 %s10, 2
      // Predicated region
      $region45: #{p4m_densenet_forward.13} parent=43 // pred_check
        %p2374 = pneg %p128
      $region46: #{p4m_densenet_forward.13} parent=43 // pred_check_branch
        %2376 = sbr.rel (%p2374) target = $region48
      $region47: #{p4m_densenet_forward.13} parent=43 // pred_region
        %p2377 = scmp.lt.s32.totalorder %s16, 1
        %s2378 = scalar_select %p2377, %s16, 1
        %s2379 = smul.addr %s2378, 25
        %s2380 = smul.addr %s2379, 4
        %s2381 = scalar_lea.vmem %s4, %s2380
      $region48: #{p4m_densenet_forward.13} parent=43 // pred_fallthru
        _
    $region44: #{p4m_densenet_forward.13} parent=5 // pred_fallthru
      _
  $region6: #{p4m_densenet_forward.13} parent=0 // loop_footer
    %s14 = sadd.s32 1, %s10
  $region7: #{p4m_densenet_forward.13} parent=0 // loop_footer_branch
    %9 = sbr.rel target = $region3
  $region8: #{p4m_densenet_forward.13} parent=0 // loop_exit
    _

// kernel: p4m_densenet_forward.15
$region0: #{p4m_densenet_forward.15}
  #allocation0 [shape = 'u32[]', space=smem, size = 0x4, offset = 0x4, fixed_abs, tag = 'smem constant byte address 0x4 - core index']
  #allocation1 [shape = 'u32[72,128]{1,0:T(1,128)}', space=vmem, size = 0x9000, scoped, tag = 'internal scratch']
  %s0 = inlined_call_operand.vmem [shape: bf16[2,12,6,256], index: 0, kind: input, shape index: {}]
  %s1 = inlined_call_operand.vmem [shape: f32[1,256], index: 1, kind: input, shape index: {}]
  %s2 = inlined_call_operand.vmem [shape: f32[1,256], index: 2, kind: input, shape index: {}]
  %s3 = inlined_call_operand.vmem [shape: bf16[2,6,6,128], index: 3, kind: output, shape index: {}]
  %s4 = sld [smem:[#allocation0]]
  $region45: #{p4m_densenet_forward.15} parent=0
    _
  %s6 = ssub.s32 1, %s4
  %s7 = scalar_select 0, %s6, %s4
  loop: start=0, step=1, limit=4
  $region2: #{p4m_densenet_forward.15} parent=0 // loop_pre_header
    _
  $region3: #{p4m_densenet_forward.15} parent=0 // loop_header
    %s9 = sphi 0, %s13
    %p10 = scmp.ge.s32.totalorder %s9, 4
    %s19 = sphi 0, %s21
    %s22 = sphi 0, %s19
    %s23 = sphi 0, %s22
    %s39 = sphi 0, %s23
    %s43 = sphi 0, %s43
    %s45 = sphi 0, %s43
    %s46 = sphi 0, %s45
    %s60 = sphi 0, %s46
    %s64 = sphi 0, %s64
    %s66 = sphi 0, %s64
    %s67 = sphi 0, %s66
    %s81 = sphi 0, %s67
    %s87 = sphi 0, %s89
    %s90 = sphi 0, %s87
    %s91 = sphi 0, %s90
    %s107 = sphi 0, %s91
  $region4: #{p4m_densenet_forward.15} parent=0 // loop_header_branch
    %12 = sbr.rel (%p10) target = $region8
  $region5: #{p4m_densenet_forward.15} parent=0 // loop_body
    %s14 = ssub.s32 %s9, 1
    %s15 = ssub.s32 %s9, 2
    %s16 = sadd.s32 %s9, 1
    %s17 = ssub.s32 %s9, %s16
    %p18 = scmp.eq.s32.totalorder %s17, 0
    %s20 = sadd.s32 %s19, 1
    %s21 = scalar_select %p18, %s19, %s20
    %p24 = pneg %p18
    %p25 = scmp.eq.s32.totalorder %s9, 1
    %p26 = por %p24, %p25
    %p27 = scmp.ne.s32.totalorder %s19, %s22
    %p28 = scmp.eq.s32.totalorder %s9, 0
    %p29 = por %p27, %p28
    %p30 = scmp.ne.s32.totalorder %s19, %s22
    %p31 = scmp.eq.s32.totalorder %s14, 1
    %p32 = por %p30, %p31
    %p33 = scmp.ne.s32.totalorder %s22, %s23
    %p34 = scmp.eq.s32.totalorder %s14, 0
    %p35 = por %p33, %p34
    %p36 = scmp.ne.s32.totalorder %s22, %s23
    %p37 = scmp.eq.s32.totalorder %s15, 1
    %p38 = por %p36, %p37
    %p40 = scmp.ne.s32.totalorder %s23, %s39
    %p41 = scmp.eq.s32.totalorder %s15, 0
    %p42 = por %p40, %p41
    %s44 = sadd.s32 %s43, 1
    %p47 = scmp.eq.s32.totalorder %s9, 1
    %p48 = scmp.ne.s32.totalorder %s43, %s45
    %p49 = scmp.eq.s32.totalorder %s9, 0
    %p50 = por %p48, %p49
    %p51 = scmp.ne.s32.totalorder %s43, %s45
    %p52 = scmp.eq.s32.totalorder %s14, 1
    %p53 = por %p51, %p52
    %p54 = scmp.ne.s32.totalorder %s45, %s46
    %p55 = scmp.eq.s32.totalorder %s14, 0
    %p56 = por %p54, %p55
    %p57 = scmp.ne.s32.totalorder %s45, %s46
    %p58 = scmp.eq.s32.totalorder %s15, 1
    %p59 = por %p57, %p58
    %p61 = scmp.ne.s32.totalorder %s46, %s60
    %p62 = scmp.eq.s32.totalorder %s15, 0
    %p63 = por %p61, %p62
    %s65 = sadd.s32 %s64, 1
    %p68 = scmp.eq.s32.totalorder %s9, 1
    %p69 = scmp.ne.s32.totalorder %s64, %s66
    %p70 = scmp.eq.s32.totalorder %s9, 0
    %p71 = por %p69, %p70
    %p72 = scmp.ne.s32.totalorder %s64, %s66
    %p73 = scmp.eq.s32.totalorder %s14, 1
    %p74 = por %p72, %p73
    %p75 = scmp.ne.s32.totalorder %s66, %s67
    %p76 = scmp.eq.s32.totalorder %s14, 0
    %p77 = por %p75, %p76
    %p78 = scmp.ne.s32.totalorder %s66, %s67
    %p79 = scmp.eq.s32.totalorder %s15, 1
    %p80 = por %p78, %p79
    %p82 = scmp.ne.s32.totalorder %s67, %s81
    %p83 = scmp.eq.s32.totalorder %s15, 0
    %p84 = por %p82, %p83
    %s85 = ssub.s32 %s9, %s16
    %p86 = scmp.eq.s32.totalorder %s85, 0
    %s88 = sadd.s32 %s87, 1
    %s89 = scalar_select %p86, %s87, %s88
    %p92 = pneg %p86
    %p93 = scmp.eq.s32.totalorder %s9, 1
    %p94 = por %p92, %p93
    %p95 = scmp.ne.s32.totalorder %s87, %s90
    %p96 = scmp.eq.s32.totalorder %s9, 0
    %p97 = por %p95, %p96
    %p98 = scmp.ne.s32.totalorder %s87, %s90
    %p99 = scmp.eq.s32.totalorder %s14, 1
    %p100 = por %p98, %p99
    %p101 = scmp.ne.s32.totalorder %s90, %s91
    %p102 = scmp.eq.s32.totalorder %s14, 0
    %p103 = por %p101, %p102
    %p104 = scmp.ne.s32.totalorder %s90, %s91
    %p105 = scmp.eq.s32.totalorder %s15, 1
    %p106 = por %p104, %p105
    %p108 = scmp.ne.s32.totalorder %s91, %s107
    %p109 = scmp.eq.s32.totalorder %s15, 0
    %p110 = por %p108, %p109
    %p111 = scmp.le.s32.totalorder 1, %s9
    %p112 = scmp.lt.s32.totalorder %s9, 3
    %p113 = pnand %p111, %p112
    %p114 = pneg %p113
    // Predicated region
    $region9: #{p4m_densenet_forward.15} parent=5 // pred_check
      _
    $region10: #{p4m_densenet_forward.15} parent=5 // pred_check_branch
      %116 = sbr.rel (%p113) target = $region12
    $region11: #{p4m_densenet_forward.15} parent=5 // pred_region
      %s117 = ssub.s32 %s9, 1
      // Predicated region
      $region13: #{p4m_densenet_forward.15} parent=11 // pred_check
        %p118 = pneg %p56
      $region14: #{p4m_densenet_forward.15} parent=11 // pred_check_branch
        %120 = sbr.rel (%p118) target = $region16
      $region15: #{p4m_densenet_forward.15} parent=11 // pred_region
        _
      $region16: #{p4m_densenet_forward.15} parent=11 // pred_fallthru
        _
      // Predicated region
      $region17: #{p4m_densenet_forward.15} parent=11 // pred_check
        %p121 = pneg %p77
      $region18: #{p4m_densenet_forward.15} parent=11 // pred_check_branch
        %123 = sbr.rel (%p121) target = $region20
      $region19: #{p4m_densenet_forward.15} parent=11 // pred_region
        _
      $region20: #{p4m_densenet_forward.15} parent=11 // pred_fallthru
        _
    $region12: #{p4m_densenet_forward.15} parent=5 // pred_fallthru
      _
    %p124 = scmp.lt.s32.totalorder %s9, 2
    // Predicated region
    $region21: #{p4m_densenet_forward.15} parent=5 // pred_check
      %p125 = pneg %p124
    $region22: #{p4m_densenet_forward.15} parent=5 // pred_check_branch
      %127 = sbr.rel (%p125) target = $region24
    $region23: #{p4m_densenet_forward.15} parent=5 // pred_region
      // Predicated region
      $region25: #{p4m_densenet_forward.15} parent=23 // pred_check
        %p128 = pneg %p29
      $region26: #{p4m_densenet_forward.15} parent=23 // pred_check_branch
        %130 = sbr.rel (%p128) target = $region28
      $region27: #{p4m_densenet_forward.15} parent=23 // pred_region
        %p131 = scmp.lt.s32.totalorder %s9, 1
        %s132 = scalar_select %p131, %s9, 1
        %s133 = smul.addr %s132, 24
        %s134 = smul.addr %s133, 4
        %s135 = scalar_lea.vmem %s0, %s134
      $region28: #{p4m_densenet_forward.15} parent=23 // pred_fallthru
        _
    $region24: #{p4m_densenet_forward.15} parent=5 // pred_fallthru
      _
    %p136 = scmp.le.s32.totalorder 1, %s9
    %p137 = scmp.lt.s32.totalorder %s9, 3
    %p138 = pnand %p136, %p137
    %p139 = pneg %p138
    // Predicated region
    $region29: #{p4m_densenet_forward.15} parent=5 // pred_check
      _
    $region30: #{p4m_densenet_forward.15} parent=5 // pred_check_branch
      %141 = sbr.rel (%p138) target = $region32
    $region31: #{p4m_densenet_forward.15} parent=5 // pred_region
      %s142 = ssub.s32 %s9, 1
      %p143 = scmp.lt.s32.totalorder %s14, 1
      %s144 = scalar_select %p143, %s14, 1
      %s145 = smul.addr %s144, 24
      %s146 = smul.addr %s145, 4
      %s147 = scalar_lea.vmem %s0, %s146
      %p148 = pneg %p35
      %p149 = pneg %p32
      %p150 = pneg %p56
      %p151 = pneg %p53
      %p152 = pneg %p77
      %p153 = pneg %p74
      %p154 = pneg %p103
      %p155 = pneg %p100
      %p156 = scmp.lt.s32.totalorder %s14, 1
      %s157 = scalar_select %p156, %s14, 1
      %s158 = smul.addr %s157, 6
      %s159 = smul.addr %s158, 4
      %s160 = scalar_lea.vmem %s3, %s159
      %p161 = scmp.lt.s32.totalorder %s14, 1
      %s162 = scalar_select %p161, %s14, 1
      %s163 = smul.addr %s162, 24
      %s164 = smul.addr %s163, 4
      %s165 = scalar_lea.vmem %s0, %s164
      %p166 = scmp.lt.s32.totalorder %s14, 1
      %s167 = scalar_select %p166, %s14, 1
      %s168 = smul.addr %s167, 6
      %s169 = smul.addr %s168, 4
      %s170 = scalar_lea.vmem %s3, %s169
      %v171 = vld [vmem:[%s165] sm:$0x77]
      %v172 = vld [vmem:[%s165 + $0x8] sm:$0x77]
      %v173 = vld [vmem:[%s165 + $0x10] sm:$0x77]
      %v174 = vld [vmem:[%s165 + $0x18] sm:$0x77]
      %v175 = vld [vmem:[%s165 + $0x20] sm:$0x77]
      %v176 = vld [vmem:[%s165 + $0x28] sm:$0x77]
      %v177 = vld [vmem:[%s165 + $0x30] sm:$0x77]
      %v178 = vld [vmem:[%s165 + $0x38] sm:$0x77]
      %v179 = vld [vmem:[%s165 + $0x40] sm:$0x77]
      %v180 = vld [vmem:[%s165 + $0x48] sm:$0x77]
      %v181 = vld [vmem:[%s165 + $0x50] sm:$0x77]
      %v182 = vld [vmem:[%s165 + $0x58] sm:$0x77]
      %v183 = vunpack.c.l.bf16 %v171
      %v184 = vunpack.c.h.bf16 %v171
      %v185 = vunpack.c.l.bf16 %v172
      %v186 = vunpack.c.h.bf16 %v172
      %v187 = vunpack.c.l.bf16 %v173
      %v188 = vunpack.c.h.bf16 %v173
      %v189 = vunpack.c.l.bf16 %v174
      %v190 = vunpack.c.h.bf16 %v174
      %v191 = vunpack.c.l.bf16 %v175
      %v192 = vunpack.c.h.bf16 %v175
      %v193 = vunpack.c.l.bf16 %v176
      %v194 = vunpack.c.h.bf16 %v176
      %v195 = vunpack.c.l.bf16 %v177
      %v196 = vunpack.c.h.bf16 %v177
      %v197 = vunpack.c.l.bf16 %v178
      %v198 = vunpack.c.h.bf16 %v178
      %v199 = vunpack.c.l.bf16 %v179
      %v200 = vunpack.c.h.bf16 %v179
      %v201 = vunpack.c.l.bf16 %v180
      %v202 = vunpack.c.h.bf16 %v180
      %v203 = vunpack.c.l.bf16 %v181
      %v204 = vunpack.c.h.bf16 %v181
      %v205 = vunpack.c.l.bf16 %v182
      %v206 = vunpack.c.h.bf16 %v182
      %v207 = vld [vmem:[%s1] sm:$0x3]
      %v209 = vperm.slane %v207, 0
      %v210 = vperm.slane %v207, 1
      %v213 = vmul.f32 %v183, %v209
      %v214 = vmul.f32 %v184, %v210
      %v215 = vmul.f32 %v185, %v209
      %v216 = vmul.f32 %v186, %v210
      %v217 = vmul.f32 %v187, %v209
      %v218 = vmul.f32 %v188, %v210
      %v219 = vmul.f32 %v189, %v209
      %v220 = vmul.f32 %v190, %v210
      %v221 = vmul.f32 %v191, %v209
      %v222 = vmul.f32 %v192, %v210
      %v223 = vmul.f32 %v193, %v209
      %v224 = vmul.f32 %v194, %v210
      %v225 = vmul.f32 %v195, %v209
      %v226 = vmul.f32 %v196, %v210
      %v227 = vmul.f32 %v197, %v209
      %v228 = vmul.f32 %v198, %v210
      %v229 = vmul.f32 %v199, %v209
      %v230 = vmul.f32 %v200, %v210
      %v231 = vmul.f32 %v201, %v209
      %v232 = vmul.f32 %v202, %v210
      %v233 = vmul.f32 %v203, %v209
      %v234 = vmul.f32 %v204, %v210
      %v235 = vmul.f32 %v205, %v209
      %v236 = vmul.f32 %v206, %v210
      %v237 = vld [vmem:[%s2] sm:$0x3]
      %v239 = vperm.slane %v237, 0
      %v240 = vperm.slane %v237, 1
      %v243 = vadd.f32 %v213, %v239
      %v244 = vadd.f32 %v214, %v240
      %v245 = vadd.f32 %v215, %v239
      %v246 = vadd.f32 %v216, %v240
      %v247 = vadd.f32 %v217, %v239
      %v248 = vadd.f32 %v218, %v240
      %v249 = vadd.f32 %v219, %v239
      %v250 = vadd.f32 %v220, %v240
      %v251 = vadd.f32 %v221, %v239
      %v252 = vadd.f32 %v222, %v240
      %v253 = vadd.f32 %v223, %v239
      %v254 = vadd.f32 %v224, %v240
      %v255 = vadd.f32 %v225, %v239
      %v256 = vadd.f32 %v226, %v240
      %v257 = vadd.f32 %v227, %v239
      %v258 = vadd.f32 %v228, %v240
      %v259 = vadd.f32 %v229, %v239
      %v260 = vadd.f32 %v230, %v240
      %v261 = vadd.f32 %v231, %v239
      %v262 = vadd.f32 %v232, %v240
      %v263 = vadd.f32 %v233, %v239
      %v264 = vadd.f32 %v234, %v240
      %v265 = vadd.f32 %v235, %v239
      %v266 = vadd.f32 %v236, %v240
      %v267 = vmax.f32 %v243, 0.0
      %v268 = vmax.f32 %v244, 0.0
      %v269 = vmax.f32 %v245, 0.0
      %v270 = vmax.f32 %v246, 0.0
      %v271 = vmax.f32 %v247, 0.0
      %v272 = vmax.f32 %v248, 0.0
      %v273 = vmax.f32 %v249, 0.0
      %v274 = vmax.f32 %v250, 0.0
      %v275 = vmax.f32 %v251, 0.0
      %v276 = vmax.f32 %v252, 0.0
      %v277 = vmax.f32 %v253, 0.0
      %v278 = vmax.f32 %v254, 0.0
      %v279 = vmax.f32 %v255, 0.0
      %v280 = vmax.f32 %v256, 0.0
      %v281 = vmax.f32 %v257, 0.0
      %v282 = vmax.f32 %v258, 0.0
      %v283 = vmax.f32 %v259, 0.0
      %v284 = vmax.f32 %v260, 0.0
      %v285 = vmax.f32 %v261, 0.0
      %v286 = vmax.f32 %v262, 0.0
      %v287 = vmax.f32 %v263, 0.0
      %v288 = vmax.f32 %v264, 0.0
      %v289 = vmax.f32 %v265, 0.0
      %v290 = vmax.f32 %v266, 0.0
      %v291 = vadd.f32 %v267, %v268
      %v292 = vadd.f32 %v269, %v270
      %v293 = vadd.f32 %v271, %v272
      %v294 = vadd.f32 %v273, %v274
      %v295 = vadd.f32 %v275, %v276
      %v296 = vadd.f32 %v277, %v278
      %v297 = vadd.f32 %v279, %v280
      %v298 = vadd.f32 %v281, %v282
      %v299 = vadd.f32 %v283, %v284
      %v300 = vadd.f32 %v285, %v286
      %v301 = vadd.f32 %v287, %v288
      %v302 = vadd.f32 %v289, %v290
      %v303 = vadd.f32 %v291, %v292
      %v304 = vadd.f32 %v293, %v294
      %v305 = vadd.f32 %v295, %v296
      %v306 = vadd.f32 %v297, %v298
      %v307 = vadd.f32 %v299, %v300
      %v308 = vadd.f32 %v301, %v302
      %v309 = vmul.f32 %v303, 0.25
      %v310 = vmul.f32 %v304, 0.25
      %v311 = vmul.f32 %v305, 0.25
      %v312 = vmul.f32 %v306, 0.25
      %v313 = vmul.f32 %v307, 0.25
      %v314 = vmul.f32 %v308, 0.25
      %v315 = vpack.c.bf16 %v309, %v309
      %v316 = vpack.c.bf16 %v310, %v310
      %v317 = vpack.c.bf16 %v311, %v311
      %v318 = vpack.c.bf16 %v312, %v312
      %v319 = vpack.c.bf16 %v313, %v313
      %v320 = vpack.c.bf16 %v314, %v314
      %321 = vst [vmem:[%s170] sm:$0x7] %v315
      %322 = vst [vmem:[%s170 + $0x4] sm:$0x7] %v316
      %323 = vst [vmem:[%s170 + $0x8] sm:$0x7] %v317
      %324 = vst [vmem:[%s170 + $0xc] sm:$0x7] %v318
      %325 = vst [vmem:[%s170 + $0x10] sm:$0x7] %v319
      %326 = vst [vmem:[%s170 + $0x14] sm:$0x7] %v320
      %p327 = scmp.lt.s32.totalorder %s14, 1
      %s328 = scalar_select %p327, %s14, 1
      %s329 = smul.addr %s328, 6
      %s330 = smul.addr %s329, 4
      %s331 = scalar_lea.vmem %s3, %s330
      // Predicated region
      $region33: #{p4m_densenet_forward.15} parent=31 // pred_check
        %p332 = pneg %p100
      $region34: #{p4m_densenet_forward.15} parent=31 // pred_check_branch
        %334 = sbr.rel (%p332) target = $region36
      $region35: #{p4m_densenet_forward.15} parent=31 // pred_region
        _
      $region36: #{p4m_densenet_forward.15} parent=31 // pred_fallthru
        _
    $region32: #{p4m_densenet_forward.15} parent=5 // pred_fallthru
      _
    %p335 = scmp.le.s32.totalorder 2, %s9
    // Predicated region
    $region37: #{p4m_densenet_forward.15} parent=5 // pred_check
      %p336 = pneg %p335
    $region38: #{p4m_densenet_forward.15} parent=5 // pred_check_branch
      %338 = sbr.rel (%p336) target = $region40
    $region39: #{p4m_densenet_forward.15} parent=5 // pred_region
      %s339 = ssub.s32 %s9, 2
      // Predicated region
      $region41: #{p4m_densenet_forward.15} parent=39 // pred_check
        %p340 = pneg %p106
      $region42: #{p4m_densenet_forward.15} parent=39 // pred_check_branch
        %342 = sbr.rel (%p340) target = $region44
      $region43: #{p4m_densenet_forward.15} parent=39 // pred_region
        %p343 = scmp.lt.s32.totalorder %s15, 1
        %s344 = scalar_select %p343, %s15, 1
        %s345 = smul.addr %s344, 6
        %s346 = smul.addr %s345, 4
        %s347 = scalar_lea.vmem %s3, %s346
      $region44: #{p4m_densenet_forward.15} parent=39 // pred_fallthru
        _
    $region40: #{p4m_densenet_forward.15} parent=5 // pred_fallthru
      _
  $region6: #{p4m_densenet_forward.15} parent=0 // loop_footer
    %s13 = sadd.s32 1, %s9
  $region7: #{p4m_densenet_forward.15} parent=0 // loop_footer_branch
    %8 = sbr.rel target = $region3
  $region8: #{p4m_densenet_forward.15} parent=0 // loop_exit
    _

// kernel: p4m_densenet_forward.17
$region0: #{p4m_densenet_forward.17}
  #allocation0 [shape = 'u32[]', space=smem, size = 0x4, offset = 0x4, fixed_abs, tag = 'smem constant byte address 0x4 - core index']
  #allocation1 [shape = 'u32[72,128]{1,0:T(1,128)}', space=vmem, size = 0x9000, scoped, tag = 'internal scratch']
  %s0 = inlined_call_operand.vmem [shape: bf16[72,128], index: 0, kind: input, shape index: {}]
  %s1 = inlined_call_operand.vmem [shape: f32[1,2,128], index: 1, kind: output, shape index: {}]
  %s2 = sld [smem:[#allocation0]]
  $region14: #{p4m_densenet_forward.17} parent=0
    _
  %s4 = ssub.s32 1, %s2
  %s5 = scalar_select 0, %s4, %s2
  // Predicated region
  $region2: #{p4m_densenet_forward.17} parent=0 // pred_check
    _
  $region3: #{p4m_densenet_forward.17} parent=0 // pred_check_branch
    %7 = sbr.rel (0) target = $region5
  $region4: #{p4m_densenet_forward.17} parent=0 // pred_region
    _
  $region5: #{p4m_densenet_forward.17} parent=0 // pred_fallthru
    _
  %v8 = vld [vmem:[%s0] sm:$0xf]
  %v9 = vld [vmem:[%s0 + $0x4] sm:$0xf]
  %v10 = vld [vmem:[%s0 + $0x8] sm:$0xf]
  %v11 = vld [vmem:[%s0 + $0xc] sm:$0xf]
  %v12 = vld [vmem:[%s0 + $0x10] sm:$0xf]
  %v13 = vld [vmem:[%s0 + $0x14] sm:$0xf]
  %v14 = vld [vmem:[%s0 + $0x18] sm:$0xf]
  %v15 = vld [vmem:[%s0 + $0x1c] sm:$0xf]
  %v16 = vld [vmem:[%s0 + $0x20] sm:$0xf]
  %v17 = vunpack.c.l.bf16 %v8
  %v18 = vunpack.c.l.bf16 %v9
  %v19 = vunpack.c.l.bf16 %v10
  %v20 = vunpack.c.l.bf16 %v11
  %v21 = vunpack.c.l.bf16 %v12
  %v22 = vunpack.c.l.bf16 %v13
  %v23 = vunpack.c.l.bf16 %v14
  %v24 = vunpack.c.l.bf16 %v15
  %v25 = vunpack.c.l.bf16 %v16
  %v26 = vadd.f32 %v17, %v18
  %v27 = vadd.f32 %v26, %v19
  %v28 = vadd.f32 %v27, %v20
  %v29 = vadd.f32 %v28, %v21
  %v30 = vadd.f32 %v29, %v22
  %v31 = vadd.f32 %v30, %v23
  %v32 = vadd.f32 %v31, %v24
  %v33 = vadd.f32 %v32, %v25
  %v34 = vrot.slane %v33, 4
  %v35 = vadd.f32 %v33, %v34
  %v36 = vrot.slane %v35, 2
  %v37 = vadd.f32 %v35, %v36
  %v38 = vrot.slane %v37, 1
  %v39 = vadd.f32 %v37, %v38
  %v40 = vmul.f32 %v17, %v17
  %v41 = vmul.f32 %v18, %v18
  %v42 = vmul.f32 %v19, %v19
  %v43 = vmul.f32 %v20, %v20
  %v44 = vmul.f32 %v21, %v21
  %v45 = vmul.f32 %v22, %v22
  %v46 = vmul.f32 %v23, %v23
  %v47 = vmul.f32 %v24, %v24
  %v48 = vmul.f32 %v25, %v25
  %v49 = vadd.f32 %v40, %v41
  %v50 = vadd.f32 %v49, %v42
  %v51 = vadd.f32 %v50, %v43
  %v52 = vadd.f32 %v51, %v44
  %v53 = vadd.f32 %v52, %v45
  %v54 = vadd.f32 %v53, %v46
  %v55 = vadd.f32 %v54, %v47
  %v56 = vadd.f32 %v55, %v48
  %v57 = vrot.slane %v56, 4
  %v58 = vadd.f32 %v56, %v57
  %v59 = vrot.slane %v58, 2
  %v60 = vadd.f32 %v58, %v59
  %v61 = vrot.slane %v60, 1
  %v62 = vadd.f32 %v60, %v61
  %vm63 = vcmask 1040384
  %v64 = vsel %vm63, %v39, %v62
  %65 = vst [vmem:[%s1] sm:$0x3] %v64
  // Predicated region
  $region6: #{p4m_densenet_forward.17} parent=0 // pred_check
    _
  $region7: #{p4m_densenet_forward.17} parent=0 // pred_check_branch
    %67 = sbr.rel (0) target = $region9
  $region8: #{p4m_densenet_forward.17} parent=0 // pred_region
    _
  $region9: #{p4m_densenet_forward.17} parent=0 // pred_fallthru
    _
  // Predicated region
  $region10: #{p4m_densenet_forward.17} parent=0 // pred_check
    _
  $region11: #{p4m_densenet_forward.17} parent=0 // pred_check_branch
    %69 = sbr.rel (0) target = $region13
  $region12: #{p4m_densenet_forward.17} parent=0 // pred_region
    _
  $region13: #{p4m_densenet_forward.17} parent=0 // pred_fallthru
    _

// kernel: p4m_densenet_forward.16
$region0: #{p4m_densenet_forward.16}
  #allocation0 [shape = 'u32[]', space=smem, size = 0x4, offset = 0x4, fixed_abs, tag = 'smem constant byte address 0x4 - core index']
  #allocation1 [shape = 'u32[72,128]{1,0:T(1,128)}', space=vmem, size = 0x9000, scoped, tag = 'internal scratch']
  %s0 = inlined_call_operand.vmem [shape: bf16[72,128], index: 0, kind: input, shape index: {}]
  %s1 = inlined_call_operand.vmem [shape: bf16[128,128], index: 1, kind: input, shape index: {}]
  %s2 = inlined_call_operand.vmem [shape: bf16[72,128], index: 2, kind: output, shape index: {}]
  %s3 = sld [smem:[#allocation0]]
  $region18: #{p4m_densenet_forward.16} parent=0
    _
  %s5 = ssub.s32 1, %s3
  %s6 = scalar_select 0, %s5, %s3
  // Predicated region
  $region2: #{p4m_densenet_forward.16} parent=0 // pred_check
    _
  $region3: #{p4m_densenet_forward.16} parent=0 // pred_check_branch
    %8 = sbr.rel (0) target = $region5
  $region4: #{p4m_densenet_forward.16} parent=0 // pred_region
    _
  $region5: #{p4m_densenet_forward.16} parent=0 // pred_fallthru
    _
  // Predicated region
  $region6: #{p4m_densenet_forward.16} parent=0 // pred_check
    _
  $region7: #{p4m_densenet_forward.16} parent=0 // pred_check_branch
    %10 = sbr.rel (0) target = $region9
  $region8: #{p4m_densenet_forward.16} parent=0 // pred_region
    _
  $region9: #{p4m_densenet_forward.16} parent=0 // pred_fallthru
    _
  %v11 = vld [vmem:[%s0] sm:$0xf]
  %v12 = vld [vmem:[%s0 + $0x4] sm:$0xf]
  %v13 = vld [vmem:[%s0 + $0x8] sm:$0xf]
  %v14 = vld [vmem:[%s0 + $0xc] sm:$0xf]
  %v15 = vld [vmem:[%s0 + $0x10] sm:$0xf]
  %v16 = vld [vmem:[%s0 + $0x14] sm:$0xf]
  %v17 = vld [vmem:[%s0 + $0x18] sm:$0xf]
  %v18 = vld [vmem:[%s0 + $0x1c] sm:$0xf]
  %v19 = vld [vmem:[%s0 + $0x20] sm:$0xf]
  %v20 = vld [vmem:[%s1] sm:$0xf]
  %v21 = vld [vmem:[%s1 + $0x4] sm:$0xf]
  %v22 = vld [vmem:[%s1 + $0x8] sm:$0xf]
  %v23 = vld [vmem:[%s1 + $0xc] sm:$0xf]
  %v24 = vld [vmem:[%s1 + $0x10] sm:$0xf]
  %v25 = vld [vmem:[%s1 + $0x14] sm:$0xf]
  %v26 = vld [vmem:[%s1 + $0x18] sm:$0xf]
  %v27 = vld [vmem:[%s1 + $0x1c] sm:$0xf]
  %v28 = vld [vmem:[%s1 + $0x20] sm:$0xf]
  %v29 = vld [vmem:[%s1 + $0x24] sm:$0xf]
  %v30 = vld [vmem:[%s1 + $0x28] sm:$0xf]
  %v31 = vld [vmem:[%s1 + $0x2c] sm:$0xf]
  %v32 = vld [vmem:[%s1 + $0x30] sm:$0xf]
  %v33 = vld [vmem:[%s1 + $0x34] sm:$0xf]
  %v34 = vld [vmem:[%s1 + $0x38] sm:$0xf]
  %v35 = vld [vmem:[%s1 + $0x3c] sm:$0xf]
  %v45 = vunpack.c.l.b16 %v11
  %v46 = vunpack.c.l.b16 %v12
  %v47 = vunpack.c.l.b16 %v13
  %v48 = vunpack.c.l.b16 %v14
  %v49 = vunpack.c.l.b16 %v15
  %v50 = vunpack.c.l.b16 %v16
  %v51 = vunpack.c.l.b16 %v17
  %v52 = vunpack.c.l.b16 %v18
  %v53 = vunpack.c.l.b16 %v19
  %v54 = vpack.c.b16 %v46, %v45
  %v55 = vpack.c.b16 %v48, %v47
  %v56 = vpack.c.b16 %v50, %v49
  %v57 = vpack.c.b16 %v52, %v51
  %v58 = vpack.c.b16 %v53, %v53
  %v80 = vunpack.c.l.b16 %v20
  %v81 = vunpack.c.l.b16 %v21
  %v82 = vunpack.c.l.b16 %v22
  %v83 = vunpack.c.l.b16 %v23
  %v84 = vunpack.c.l.b16 %v24
  %v85 = vunpack.c.l.b16 %v25
  %v86 = vunpack.c.l.b16 %v26
  %v87 = vunpack.c.l.b16 %v27
  %v88 = vunpack.c.l.b16 %v28
  %v89 = vunpack.c.l.b16 %v29
  %v90 = vunpack.c.l.b16 %v30
  %v91 = vunpack.c.l.b16 %v31
  %v92 = vunpack.c.l.b16 %v32
  %v93 = vunpack.c.l.b16 %v33
  %v94 = vunpack.c.l.b16 %v34
  %v95 = vunpack.c.l.b16 %v35
  %v96 = vpack.c.b16 %v81, %v80
  %v97 = vpack.c.b16 %v83, %v82
  %v98 = vpack.c.b16 %v85, %v84
  %v99 = vpack.c.b16 %v87, %v86
  %v100 = vpack.c.b16 %v89, %v88
  %v101 = vpack.c.b16 %v91, %v90
  %v102 = vpack.c.b16 %v93, %v92
  %v103 = vpack.c.b16 %v95, %v94
  %112 = vmatpush.bf16.msra.mxu0 %v103
  %113 = vmatpush.bf16.msra.mxu0 %v102
  %114 = vmatpush.bf16.msra.mxu0 %v101
  %115 = vmatpush.bf16.msra.mxu0 %v100
  %116 = vmatpush.bf16.msra.mxu0 %v99
  %117 = vmatpush.bf16.msra.mxu0 %v98
  %118 = vmatpush.bf16.msra.mxu0 %v97
  %119 = vmatpush.bf16.msra.mxu0 %v96
  %120 = vmatmul.bf16.gmra.mxu0 %v54
  %v121 = vpop.f32.mrf.mxu0
  %v122 = vadd.f32 0.0, %v121
  %v123 = vpop.f32.mrf.mxu0
  %v124 = vadd.f32 0.0, %v123
  %125 = vmatmul.bf16.gmra.mxu0 %v55
  %v126 = vpop.f32.mrf.mxu0
  %v127 = vadd.f32 0.0, %v126
  %v128 = vpop.f32.mrf.mxu0
  %v129 = vadd.f32 0.0, %v128
  %130 = vmatmul.bf16.gmra.mxu0 %v56
  %v131 = vpop.f32.mrf.mxu0
  %v132 = vadd.f32 0.0, %v131
  %v133 = vpop.f32.mrf.mxu0
  %v134 = vadd.f32 0.0, %v133
  %135 = vmatmul.bf16.gmra.mxu0 %v57
  %v136 = vpop.f32.mrf.mxu0
  %v137 = vadd.f32 0.0, %v136
  %v138 = vpop.f32.mrf.mxu0
  %v139 = vadd.f32 0.0, %v138
  %140 = vmatmul.bf16.gmra.mxu0 %v58
  %v141 = vpop.f32.mrf.mxu0
  %v142 = vadd.f32 0.0, %v141
  %v143 = vpop.f32.mrf.mxu0
  %144 = vdwg.mxu0
  %v145 = vpack.c.bf16 %v122, %v122
  %v146 = vpack.c.bf16 %v124, %v124
  %v147 = vpack.c.bf16 %v127, %v127
  %v148 = vpack.c.bf16 %v129, %v129
  %v149 = vpack.c.bf16 %v132, %v132
  %v150 = vpack.c.bf16 %v134, %v134
  %v151 = vpack.c.bf16 %v137, %v137
  %v152 = vpack.c.bf16 %v139, %v139
  %v153 = vpack.c.bf16 %v142, %v142
  %154 = vst [vmem:[%s2] sm:$0xf] %v145
  %155 = vst [vmem:[%s2 + $0x4] sm:$0xf] %v146
  %156 = vst [vmem:[%s2 + $0x8] sm:$0xf] %v147
  %157 = vst [vmem:[%s2 + $0xc] sm:$0xf] %v148
  %158 = vst [vmem:[%s2 + $0x10] sm:$0xf] %v149
  %159 = vst [vmem:[%s2 + $0x14] sm:$0xf] %v150
  %160 = vst [vmem:[%s2 + $0x18] sm:$0xf] %v151
  %161 = vst [vmem:[%s2 + $0x1c] sm:$0xf] %v152
  %162 = vst [vmem:[%s2 + $0x20] sm:$0xf] %v153
  // Predicated region
  $region10: #{p4m_densenet_forward.16} parent=0 // pred_check
    _
  $region11: #{p4m_densenet_forward.16} parent=0 // pred_check_branch
    %164 = sbr.rel (0) target = $region13
  $region12: #{p4m_densenet_forward.16} parent=0 // pred_region
    _
  $region13: #{p4m_densenet_forward.16} parent=0 // pred_fallthru
    _
  // Predicated region
  $region14: #{p4m_densenet_forward.16} parent=0 // pred_check
    _
  $region15: #{p4m_densenet_forward.16} parent=0 // pred_check_branch
    %166 = sbr.rel (0) target = $region17
  $region16: #{p4m_densenet_forward.16} parent=0 // pred_region
    _
  $region17: #{p4m_densenet_forward.16} parent=0 // pred_fallthru
    _

// kernel: p4m_densenet_forward.19
$region0: #{p4m_densenet_forward.19}
  #allocation0 [shape = 'u32[]', space=smem, size = 0x4, offset = 0x4, fixed_abs, tag = 'smem constant byte address 0x4 - core index']
  #allocation1 [shape = 'u32[72,128]{1,0:T(1,128)}', space=vmem, size = 0x9000, scoped, tag = 'internal scratch']
  %s0 = inlined_call_operand.vmem [shape: bf16[32,192], index: 0, kind: input, shape index: {}]
  %s1 = inlined_call_operand.vmem [shape: f32[1,2,192], index: 1, kind: output, shape index: {}]
  %s2 = sld [smem:[#allocation0]]
  $region14: #{p4m_densenet_forward.19} parent=0
    _
  %s4 = ssub.s32 1, %s2
  %s5 = scalar_select 0, %s4, %s2
  // Predicated region
  $region2: #{p4m_densenet_forward.19} parent=0 // pred_check
    _
  $region3: #{p4m_densenet_forward.19} parent=0 // pred_check_branch
    %7 = sbr.rel (0) target = $region5
  $region4: #{p4m_densenet_forward.19} parent=0 // pred_region
    _
  $region5: #{p4m_densenet_forward.19} parent=0 // pred_fallthru
    _
  %v8 = vld [vmem:[%s0] sm:$0xff]
  %v9 = vld [vmem:[%s0 + $0x8] sm:$0xff]
  %v10 = vld [vmem:[%s0 + $0x10] sm:$0xff]
  %v11 = vld [vmem:[%s0 + $0x18] sm:$0xff]
  %v12 = vunpack.c.l.bf16 %v8
  %v13 = vunpack.c.h.bf16 %v8
  %v14 = vunpack.c.l.bf16 %v9
  %v15 = vunpack.c.h.bf16 %v9
  %v16 = vunpack.c.l.bf16 %v10
  %v17 = vunpack.c.h.bf16 %v10
  %v18 = vunpack.c.l.bf16 %v11
  %v19 = vunpack.c.h.bf16 %v11
  %v20 = vadd.f32 %v12, %v14
  %v21 = vadd.f32 %v20, %v16
  %v22 = vadd.f32 %v21, %v18
  %v23 = vrot.slane %v22, 4
  %v24 = vadd.f32 %v22, %v23
  %v25 = vrot.slane %v24, 2
  %v26 = vadd.f32 %v24, %v25
  %v27 = vrot.slane %v26, 1
  %v28 = vadd.f32 %v26, %v27
  %vm29 = vcmask 523264
  %v30 = vsel %vm29, %v13, 0.0
  %v31 = vsel %vm29, %v15, 0.0
  %v32 = vadd.f32 %v30, %v31
  %v33 = vsel %vm29, %v17, 0.0
  %v34 = vadd.f32 %v32, %v33
  %v35 = vsel %vm29, %v19, 0.0
  %v36 = vadd.f32 %v34, %v35
  %v37 = vrot.slane %v36, 4
  %v38 = vadd.f32 %v36, %v37
  %v39 = vrot.slane %v38, 2
  %v40 = vadd.f32 %v38, %v39
  %v41 = vrot.slane %v40, 1
  %v42 = vadd.f32 %v40, %v41
  %v43 = vmul.f32 %v12, %v12
  %v44 = vmul.f32 %v13, %v13
  %v45 = vmul.f32 %v14, %v14
  %v46 = vmul.f32 %v15, %v15
  %v47 = vmul.f32 %v16, %v16
  %v48 = vmul.f32 %v17, %v17
  %v49 = vmul.f32 %v18, %v18
  %v50 = vmul.f32 %v19, %v19
  %v51 = vadd.f32 %v43, %v45
  %v52 = vadd.f32 %v51, %v47
  %v53 = vadd.f32 %v52, %v49
  %v54 = vrot.slane %v53, 4
  %v55 = vadd.f32 %v53, %v54
  %v56 = vrot.slane %v55, 2
  %v57 = vadd.f32 %v55, %v56
  %v58 = vrot.slane %v57, 1
  %v59 = vadd.f32 %v57, %v58
  %v60 = vsel %vm29, %v44, 0.0
  %v61 = vsel %vm29, %v46, 0.0
  %v62 = vadd.f32 %v60, %v61
  %v63 = vsel %vm29, %v48, 0.0
  %v64 = vadd.f32 %v62, %v63
  %v65 = vsel %vm29, %v50, 0.0
  %v66 = vadd.f32 %v64, %v65
  %v67 = vrot.slane %v66, 4
  %v68 = vadd.f32 %v66, %v67
  %v69 = vrot.slane %v68, 2
  %v70 = vadd.f32 %v68, %v69
  %v71 = vrot.slane %v70, 1
  %v72 = vadd.f32 %v70, %v71
  %vm73 = vcmask 1040384
  %v74 = vsel %vm73, %v28, %v59
  %v75 = vsel %vm73, %v42, %v72
  %v78 = vrot.slane %v75, 6
  %vm79 = vcmask 1041408
  %v80 = vsel %vm79, %v74, %v78
  %vm82 = vcmask 519170
  %vm83 = vmor %vm82, %vm79
  %84 = vst.msk [vmem:[%s1] sm:$0xf] %vm83, %v80
  // Predicated region
  $region6: #{p4m_densenet_forward.19} parent=0 // pred_check
    _
  $region7: #{p4m_densenet_forward.19} parent=0 // pred_check_branch
    %86 = sbr.rel (0) target = $region9
  $region8: #{p4m_densenet_forward.19} parent=0 // pred_region
    _
  $region9: #{p4m_densenet_forward.19} parent=0 // pred_fallthru
    _
  // Predicated region
  $region10: #{p4m_densenet_forward.19} parent=0 // pred_check
    _
  $region11: #{p4m_densenet_forward.19} parent=0 // pred_check_branch
    %88 = sbr.rel (0) target = $region13
  $region12: #{p4m_densenet_forward.19} parent=0 // pred_region
    _
  $region13: #{p4m_densenet_forward.19} parent=0 // pred_fallthru
    _

// kernel: p4m_densenet_forward.20
$region0: #{p4m_densenet_forward.20}
  #allocation0 [shape = 'u32[]', space=smem, size = 0x4, offset = 0x4, fixed_abs, tag = 'smem constant byte address 0x4 - core index']
  #allocation1 [shape = 'u32[72,128]{1,0:T(1,128)}', space=vmem, size = 0x9000, scoped, tag = 'internal scratch']
  %s0 = inlined_call_operand.vmem [shape: bf16[32,192], index: 0, kind: input, shape index: {}]
  %s1 = inlined_call_operand.vmem [shape: f32[1,192], index: 1, kind: input, shape index: {}]
  %s2 = inlined_call_operand.vmem [shape: f32[1,192], index: 2, kind: input, shape index: {}]
  %s3 = inlined_call_operand.vmem [shape: bf16[192,128], index: 3, kind: input, shape index: {}]
  %s4 = inlined_call_operand.vmem [shape: bf16[32,128], index: 4, kind: output, shape index: {}]
  %s5 = sld [smem:[#allocation0]]
  $region26: #{p4m_densenet_forward.20} parent=0
    _
  %s7 = ssub.s32 1, %s5
  %s8 = scalar_select 0, %s7, %s5
  // Predicated region
  $region2: #{p4m_densenet_forward.20} parent=0 // pred_check
    _
  $region3: #{p4m_densenet_forward.20} parent=0 // pred_check_branch
    %10 = sbr.rel (0) target = $region5
  $region4: #{p4m_densenet_forward.20} parent=0 // pred_region
    _
  $region5: #{p4m_densenet_forward.20} parent=0 // pred_fallthru
    _
  // Predicated region
  $region6: #{p4m_densenet_forward.20} parent=0 // pred_check
    _
  $region7: #{p4m_densenet_forward.20} parent=0 // pred_check_branch
    %12 = sbr.rel (0) target = $region9
  $region8: #{p4m_densenet_forward.20} parent=0 // pred_region
    _
  $region9: #{p4m_densenet_forward.20} parent=0 // pred_fallthru
    _
  // Predicated region
  $region10: #{p4m_densenet_forward.20} parent=0 // pred_check
    _
  $region11: #{p4m_densenet_forward.20} parent=0 // pred_check_branch
    %14 = sbr.rel (0) target = $region13
  $region12: #{p4m_densenet_forward.20} parent=0 // pred_region
    _
  $region13: #{p4m_densenet_forward.20} parent=0 // pred_fallthru
    _
  // Predicated region
  $region14: #{p4m_densenet_forward.20} parent=0 // pred_check
    _
  $region15: #{p4m_densenet_forward.20} parent=0 // pred_check_branch
    %16 = sbr.rel (0) target = $region17
  $region16: #{p4m_densenet_forward.20} parent=0 // pred_region
    _
  $region17: #{p4m_densenet_forward.20} parent=0 // pred_fallthru
    _
  %v18 = vld [vmem:[%s0] sm:$0xff]
  %v19 = vld [vmem:[%s0 + $0x8] sm:$0xff]
  %v20 = vld [vmem:[%s0 + $0x10] sm:$0xff]
  %v21 = vld [vmem:[%s0 + $0x18] sm:$0xff]
  %v22 = vunpack.c.l.bf16 %v18
  %v23 = vunpack.c.h.bf16 %v18
  %v24 = vunpack.c.l.bf16 %v19
  %v25 = vunpack.c.h.bf16 %v19
  %v26 = vunpack.c.l.bf16 %v20
  %v27 = vunpack.c.h.bf16 %v20
  %v28 = vunpack.c.l.bf16 %v21
  %v29 = vunpack.c.h.bf16 %v21
  %v30 = vld [vmem:[%s1] sm:$0x3]
  %v32 = vperm.slane %v30, 0
  %v33 = vperm.slane %v30, 1
  %v36 = vmul.f32 %v22, %v32
  %v37 = vmul.f32 %v23, %v33
  %v38 = vmul.f32 %v24, %v32
  %v39 = vmul.f32 %v25, %v33
  %v40 = vmul.f32 %v26, %v32
  %v41 = vmul.f32 %v27, %v33
  %v42 = vmul.f32 %v28, %v32
  %v43 = vmul.f32 %v29, %v33
  %v44 = vld [vmem:[%s2] sm:$0x3]
  %v46 = vperm.slane %v44, 0
  %v47 = vperm.slane %v44, 1
  %v50 = vadd.f32 %v36, %v46
  %v51 = vadd.f32 %v37, %v47
  %v52 = vadd.f32 %v38, %v46
  %v53 = vadd.f32 %v39, %v47
  %v54 = vadd.f32 %v40, %v46
  %v55 = vadd.f32 %v41, %v47
  %v56 = vadd.f32 %v42, %v46
  %v57 = vadd.f32 %v43, %v47
  %v58 = vmax.f32 %v50, 0.0
  %v59 = vmax.f32 %v51, 0.0
  %v60 = vmax.f32 %v52, 0.0
  %v61 = vmax.f32 %v53, 0.0
  %v62 = vmax.f32 %v54, 0.0
  %v63 = vmax.f32 %v55, 0.0
  %v64 = vmax.f32 %v56, 0.0
  %v65 = vmax.f32 %v57, 0.0
  %v66 = vpack.c.bf16 %v60, %v58
  %v67 = vpack.c.bf16 %v61, %v59
  %v68 = vpack.c.bf16 %v64, %v62
  %v69 = vpack.c.bf16 %v65, %v63
  %v70 = vld [vmem:[%s3] sm:$0xf]
  %v71 = vld [vmem:[%s3 + $0x4] sm:$0xf]
  %v72 = vld [vmem:[%s3 + $0x8] sm:$0xf]
  %v73 = vld [vmem:[%s3 + $0xc] sm:$0xf]
  %v74 = vld [vmem:[%s3 + $0x10] sm:$0xf]
  %v75 = vld [vmem:[%s3 + $0x14] sm:$0xf]
  %v76 = vld [vmem:[%s3 + $0x18] sm:$0xf]
  %v77 = vld [vmem:[%s3 + $0x1c] sm:$0xf]
  %v78 = vld [vmem:[%s3 + $0x20] sm:$0xf]
  %v79 = vld [vmem:[%s3 + $0x24] sm:$0xf]
  %v80 = vld [vmem:[%s3 + $0x28] sm:$0xf]
  %v81 = vld [vmem:[%s3 + $0x2c] sm:$0xf]
  %v82 = vld [vmem:[%s3 + $0x30] sm:$0xf]
  %v83 = vld [vmem:[%s3 + $0x34] sm:$0xf]
  %v84 = vld [vmem:[%s3 + $0x38] sm:$0xf]
  %v85 = vld [vmem:[%s3 + $0x3c] sm:$0xf]
  %v86 = vld [vmem:[%s3 + $0x40] sm:$0xf]
  %v87 = vld [vmem:[%s3 + $0x44] sm:$0xf]
  %v88 = vld [vmem:[%s3 + $0x48] sm:$0xf]
  %v89 = vld [vmem:[%s3 + $0x4c] sm:$0xf]
  %v90 = vld [vmem:[%s3 + $0x50] sm:$0xf]
  %v91 = vld [vmem:[%s3 + $0x54] sm:$0xf]
  %v92 = vld [vmem:[%s3 + $0x58] sm:$0xf]
  %v93 = vld [vmem:[%s3 + $0x5c] sm:$0xf]
  %v118 = vunpack.c.l.b16 %v70
  %v119 = vunpack.c.l.b16 %v71
  %v120 = vunpack.c.l.b16 %v72
  %v121 = vunpack.c.l.b16 %v73
  %v122 = vunpack.c.l.b16 %v74
  %v123 = vunpack.c.l.b16 %v75
  %v124 = vunpack.c.l.b16 %v76
  %v125 = vunpack.c.l.b16 %v77
  %v126 = vunpack.c.l.b16 %v78
  %v127 = vunpack.c.l.b16 %v79
  %v128 = vunpack.c.l.b16 %v80
  %v129 = vunpack.c.l.b16 %v81
  %v130 = vunpack.c.l.b16 %v82
  %v131 = vunpack.c.l.b16 %v83
  %v132 = vunpack.c.l.b16 %v84
  %v133 = vunpack.c.l.b16 %v85
  %v134 = vunpack.c.l.b16 %v86
  %v135 = vunpack.c.l.b16 %v87
  %v136 = vunpack.c.l.b16 %v88
  %v137 = vunpack.c.l.b16 %v89
  %v138 = vunpack.c.l.b16 %v90
  %v139 = vunpack.c.l.b16 %v91
  %v140 = vunpack.c.l.b16 %v92
  %v141 = vunpack.c.l.b16 %v93
  %v142 = vpack.c.b16 %v119, %v118
  %v143 = vpack.c.b16 %v121, %v120
  %v144 = vpack.c.b16 %v123, %v122
  %v145 = vpack.c.b16 %v125, %v124
  %v146 = vpack.c.b16 %v127, %v126
  %v147 = vpack.c.b16 %v129, %v128
  %v148 = vpack.c.b16 %v131, %v130
  %v149 = vpack.c.b16 %v133, %v132
  %v150 = vpack.c.b16 %v135, %v134
  %v151 = vpack.c.b16 %v137, %v136
  %v152 = vpack.c.b16 %v139, %v138
  %v153 = vpack.c.b16 %v141, %v140
  %vm166 = vcmask 523264
  %v168 = vsel %vm166, %v67, 0
  %v171 = vsel %vm166, %v69, 0
  %173 = vmatpush.bf16.msra.mxu0 %v149
  %174 = vmatpush.bf16.msra.mxu0 %v148
  %175 = vmatpush.bf16.msra.mxu0 %v147
  %176 = vmatpush.bf16.msra.mxu0 %v146
  %177 = vmatpush.bf16.msra.mxu0 %v145
  %178 = vmatpush.bf16.msra.mxu0 %v144
  %179 = vmatpush.bf16.msra.mxu0 %v143
  %180 = vmatpush.bf16.msra.mxu0 %v142
  %181 = vmatmul.bf16.gmra.mxu0 %v66
  %v182 = vpop.f32.mrf.mxu0
  %v183 = vadd.f32 0.0, %v182
  %v184 = vpop.f32.mrf.mxu0
  %v185 = vadd.f32 0.0, %v184
  %186 = vmatmul.bf16.gmra.mxu0 %v68
  %v187 = vpop.f32.mrf.mxu0
  %v188 = vadd.f32 0.0, %v187
  %v189 = vpop.f32.mrf.mxu0
  %v190 = vadd.f32 0.0, %v189
  %191 = vdwg.mxu0
  %192 = vmatpush.bf16.msra.mxu0 0
  %193 = vmatpush.bf16.msra.mxu0 0
  %194 = vmatpush.bf16.msra.mxu0 0
  %195 = vmatpush.bf16.msra.mxu0 0
  %196 = vmatpush.bf16.msra.mxu0 %v153
  %197 = vmatpush.bf16.msra.mxu0 %v152
  %198 = vmatpush.bf16.msra.mxu0 %v151
  %199 = vmatpush.bf16.msra.mxu0 %v150
  %200 = vmatmul.bf16.gmra.mxu0 %v168
  %v201 = vpop.f32.mrf.mxu0
  %v202 = vadd.f32 %v183, %v201
  %v203 = vpop.f32.mrf.mxu0
  %v204 = vadd.f32 %v185, %v203
  %205 = vmatmul.bf16.gmra.mxu0 %v171
  %v206 = vpop.f32.mrf.mxu0
  %v207 = vadd.f32 %v188, %v206
  %v208 = vpop.f32.mrf.mxu0
  %v209 = vadd.f32 %v190, %v208
  %210 = vdwg.mxu0
  %v211 = vpack.c.bf16 %v202, %v202
  %v212 = vpack.c.bf16 %v204, %v204
  %v213 = vpack.c.bf16 %v207, %v207
  %v214 = vpack.c.bf16 %v209, %v209
  %215 = vst [vmem:[%s4] sm:$0xf] %v211
  %216 = vst [vmem:[%s4 + $0x4] sm:$0xf] %v212
  %217 = vst [vmem:[%s4 + $0x8] sm:$0xf] %v213
  %218 = vst [vmem:[%s4 + $0xc] sm:$0xf] %v214
  // Predicated region
  $region18: #{p4m_densenet_forward.20} parent=0 // pred_check
    _
  $region19: #{p4m_densenet_forward.20} parent=0 // pred_check_branch
    %220 = sbr.rel (0) target = $region21
  $region20: #{p4m_densenet_forward.20} parent=0 // pred_region
    _
  $region21: #{p4m_densenet_forward.20} parent=0 // pred_fallthru
    _
  // Predicated region
  $region22: #{p4m_densenet_forward.20} parent=0 // pred_check
    _
  $region23: #{p4m_densenet_forward.20} parent=0 // pred_check_branch
    %222 = sbr.rel (0) target = $region25
  $region24: #{p4m_densenet_forward.20} parent=0 // pred_region
    _
  $region25: #{p4m_densenet_forward.20} parent=0 // pred_fallthru
    _

// kernel: p4m_densenet_forward.21
$region0: #{p4m_densenet_forward.21}
  #allocation0 [shape = 'u32[]', space=smem, size = 0x4, offset = 0x4, fixed_abs, tag = 'smem constant byte address 0x4 - core index']
  #allocation1 [shape = 'u32[72,128]{1,0:T(1,128)}', space=vmem, size = 0x9000, scoped, tag = 'internal scratch']
  %s0 = inlined_call_operand.vmem [shape: bf16[2,16,128], index: 0, kind: input, shape index: {}]
  %s1 = inlined_call_operand.vmem [shape: f32[2,128], index: 1, kind: output, shape index: {}]
  %s2 = sld [smem:[#allocation0]]
  $region14: #{p4m_densenet_forward.21} parent=0
    _
  %s4 = ssub.s32 1, %s2
  %s5 = scalar_select 0, %s4, %s2
  // Predicated region
  $region2: #{p4m_densenet_forward.21} parent=0 // pred_check
    _
  $region3: #{p4m_densenet_forward.21} parent=0 // pred_check_branch
    %7 = sbr.rel (0) target = $region5
  $region4: #{p4m_densenet_forward.21} parent=0 // pred_region
    _
  $region5: #{p4m_densenet_forward.21} parent=0 // pred_fallthru
    _
  %v8 = vld [vmem:[%s0] sm:$0xf]
  %v9 = vld [vmem:[%s0 + $0x4] sm:$0xf]
  %v10 = vld [vmem:[%s0 + $0x8] sm:$0xf]
  %v11 = vld [vmem:[%s0 + $0xc] sm:$0xf]
  %v12 = vunpack.c.l.bf16 %v8
  %v13 = vunpack.c.l.bf16 %v9
  %v14 = vunpack.c.l.bf16 %v10
  %v15 = vunpack.c.l.bf16 %v11
  %v16 = vadd.f32 %v12, %v13
  %v17 = vrot.slane %v16, 4
  %v18 = vadd.f32 %v16, %v17
  %v19 = vrot.slane %v18, 2
  %v20 = vadd.f32 %v18, %v19
  %v21 = vrot.slane %v20, 1
  %v22 = vadd.f32 %v20, %v21
  %v23 = vadd.f32 %v14, %v15
  %v24 = vrot.slane %v23, 4
  %v25 = vadd.f32 %v23, %v24
  %v26 = vrot.slane %v25, 2
  %v27 = vadd.f32 %v25, %v26
  %v28 = vrot.slane %v27, 1
  %v29 = vadd.f32 %v27, %v28
  %v30 = vrcp.pop 16.0
  %v31 = vmul.f32 16.0, %v30
  %v32 = vsub.f32 1.0, %v31
  %v33 = vmul.f32 %v30, %v32
  %v34 = vadd.f32 %v30, %v33
  %vm35 = vweird.f32 %v30
  %v36 = vsel %vm35, %v30, %v34
  %v37 = vmul.f32 %v22, %v36
  %v38 = vmul.f32 %v29, %v36
  %vm41 = vcmask 1041409
  %v42 = vsel %vm41, %v38, %v37
  %44 = vst [vmem:[%s1] sm:$0x3] %v42
  // Predicated region
  $region6: #{p4m_densenet_forward.21} parent=0 // pred_check
    _
  $region7: #{p4m_densenet_forward.21} parent=0 // pred_check_branch
    %46 = sbr.rel (0) target = $region9
  $region8: #{p4m_densenet_forward.21} parent=0 // pred_region
    _
  $region9: #{p4m_densenet_forward.21} parent=0 // pred_fallthru
    _
  // Predicated region
  $region10: #{p4m_densenet_forward.21} parent=0 // pred_check
    _
  $region11: #{p4m_densenet_forward.21} parent=0 // pred_check_branch
    %48 = sbr.rel (0) target = $region13
  $region12: #{p4m_densenet_forward.21} parent=0 // pred_region
    _
  $region13: #{p4m_densenet_forward.21} parent=0 // pred_fallthru
    _

// kernel: p4m_densenet_forward.18
$region0: #{p4m_densenet_forward.18}
  #allocation0 [shape = 'u32[]', space=smem, size = 0x4, offset = 0x4, fixed_abs, tag = 'smem constant byte address 0x4 - core index']
  #allocation1 [shape = 'u32[72,128]{1,0:T(1,128)}', space=vmem, size = 0x9000, scoped, tag = 'internal scratch']
  #allocation2 [shape = 'bf16[36,128]{1,0:T(8,128)(2,1)}', space=vmem, size = 0x2800, scoped, tag = 'scratch operand']
  %s0 = inlined_call_operand.vmem [shape: bf16[2,36,128], index: 0, kind: input, shape index: {}]
  %s1 = inlined_call_operand.vmem [shape: f32[1,128], index: 1, kind: input, shape index: {}]
  %s2 = inlined_call_operand.vmem [shape: f32[1,128], index: 2, kind: input, shape index: {}]
  %s3 = inlined_call_operand.vmem [shape: bf16[9,128,128], index: 3, kind: input, shape index: {}]
  %s4 = inlined_call_operand.vmem [shape: bf16[2,36,128], index: 4, kind: output, shape index: {}]
  %s5 = sld [smem:[#allocation0]]
  $region49: #{p4m_densenet_forward.18} parent=0
    _
  %s7 = ssub.s32 1, %s5
  %s8 = scalar_select 0, %s7, %s5
  loop: start=0, step=1, limit=4
  $region2: #{p4m_densenet_forward.18} parent=0 // loop_pre_header
    _
  $region3: #{p4m_densenet_forward.18} parent=0 // loop_header
    %s10 = sphi 0, %s14
    %p11 = scmp.ge.s32.totalorder %s10, 4
    %s20 = sphi 0, %s22
    %s23 = sphi 0, %s20
    %s24 = sphi 0, %s23
    %s40 = sphi 0, %s24
    %s44 = sphi 0, %s44
    %s46 = sphi 0, %s44
    %s47 = sphi 0, %s46
    %s61 = sphi 0, %s47
    %s65 = sphi 0, %s65
    %s67 = sphi 0, %s65
    %s68 = sphi 0, %s67
    %s82 = sphi 0, %s68
    %s86 = sphi 0, %s86
    %s88 = sphi 0, %s86
    %s89 = sphi 0, %s88
    %s103 = sphi 0, %s89
    %s109 = sphi 0, %s111
    %s112 = sphi 0, %s109
    %s113 = sphi 0, %s112
    %s129 = sphi 0, %s113
  $region4: #{p4m_densenet_forward.18} parent=0 // loop_header_branch
    %13 = sbr.rel (%p11) target = $region8
  $region5: #{p4m_densenet_forward.18} parent=0 // loop_body
    %s15 = ssub.s32 %s10, 1
    %s16 = ssub.s32 %s10, 2
    %s17 = sadd.s32 %s10, 1
    %s18 = ssub.s32 %s10, %s17
    %p19 = scmp.eq.s32.totalorder %s18, 0
    %s21 = sadd.s32 %s20, 1
    %s22 = scalar_select %p19, %s20, %s21
    %p25 = pneg %p19
    %p26 = scmp.eq.s32.totalorder %s10, 1
    %p27 = por %p25, %p26
    %p28 = scmp.ne.s32.totalorder %s20, %s23
    %p29 = scmp.eq.s32.totalorder %s10, 0
    %p30 = por %p28, %p29
    %p31 = scmp.ne.s32.totalorder %s20, %s23
    %p32 = scmp.eq.s32.totalorder %s15, 1
    %p33 = por %p31, %p32
    %p34 = scmp.ne.s32.totalorder %s23, %s24
    %p35 = scmp.eq.s32.totalorder %s15, 0
    %p36 = por %p34, %p35
    %p37 = scmp.ne.s32.totalorder %s23, %s24
    %p38 = scmp.eq.s32.totalorder %s16, 1
    %p39 = por %p37, %p38
    %p41 = scmp.ne.s32.totalorder %s24, %s40
    %p42 = scmp.eq.s32.totalorder %s16, 0
    %p43 = por %p41, %p42
    %s45 = sadd.s32 %s44, 1
    %p48 = scmp.eq.s32.totalorder %s10, 1
    %p49 = scmp.ne.s32.totalorder %s44, %s46
    %p50 = scmp.eq.s32.totalorder %s10, 0
    %p51 = por %p49, %p50
    %p52 = scmp.ne.s32.totalorder %s44, %s46
    %p53 = scmp.eq.s32.totalorder %s15, 1
    %p54 = por %p52, %p53
    %p55 = scmp.ne.s32.totalorder %s46, %s47
    %p56 = scmp.eq.s32.totalorder %s15, 0
    %p57 = por %p55, %p56
    %p58 = scmp.ne.s32.totalorder %s46, %s47
    %p59 = scmp.eq.s32.totalorder %s16, 1
    %p60 = por %p58, %p59
    %p62 = scmp.ne.s32.totalorder %s47, %s61
    %p63 = scmp.eq.s32.totalorder %s16, 0
    %p64 = por %p62, %p63
    %s66 = sadd.s32 %s65, 1
    %p69 = scmp.eq.s32.totalorder %s10, 1
    %p70 = scmp.ne.s32.totalorder %s65, %s67
    %p71 = scmp.eq.s32.totalorder %s10, 0
    %p72 = por %p70, %p71
    %p73 = scmp.ne.s32.totalorder %s65, %s67
    %p74 = scmp.eq.s32.totalorder %s15, 1
    %p75 = por %p73, %p74
    %p76 = scmp.ne.s32.totalorder %s67, %s68
    %p77 = scmp.eq.s32.totalorder %s15, 0
    %p78 = por %p76, %p77
    %p79 = scmp.ne.s32.totalorder %s67, %s68
    %p80 = scmp.eq.s32.totalorder %s16, 1
    %p81 = por %p79, %p80
    %p83 = scmp.ne.s32.totalorder %s68, %s82
    %p84 = scmp.eq.s32.totalorder %s16, 0
    %p85 = por %p83, %p84
    %s87 = sadd.s32 %s86, 1
    %p90 = scmp.eq.s32.totalorder %s10, 1
    %p91 = scmp.ne.s32.totalorder %s86, %s88
    %p92 = scmp.eq.s32.totalorder %s10, 0
    %p93 = por %p91, %p92
    %p94 = scmp.ne.s32.totalorder %s86, %s88
    %p95 = scmp.eq.s32.totalorder %s15, 1
    %p96 = por %p94, %p95
    %p97 = scmp.ne.s32.totalorder %s88, %s89
    %p98 = scmp.eq.s32.totalorder %s15, 0
    %p99 = por %p97, %p98
    %p100 = scmp.ne.s32.totalorder %s88, %s89
    %p101 = scmp.eq.s32.totalorder %s16, 1
    %p102 = por %p100, %p101
    %p104 = scmp.ne.s32.totalorder %s89, %s103
    %p105 = scmp.eq.s32.totalorder %s16, 0
    %p106 = por %p104, %p105
    %s107 = ssub.s32 %s10, %s17
    %p108 = scmp.eq.s32.totalorder %s107, 0
    %s110 = sadd.s32 %s109, 1
    %s111 = scalar_select %p108, %s109, %s110
    %p114 = pneg %p108
    %p115 = scmp.eq.s32.totalorder %s10, 1
    %p116 = por %p114, %p115
    %p117 = scmp.ne.s32.totalorder %s109, %s112
    %p118 = scmp.eq.s32.totalorder %s10, 0
    %p119 = por %p117, %p118
    %p120 = scmp.ne.s32.totalorder %s109, %s112
    %p121 = scmp.eq.s32.totalorder %s15, 1
    %p122 = por %p120, %p121
    %p123 = scmp.ne.s32.totalorder %s112, %s113
    %p124 = scmp.eq.s32.totalorder %s15, 0
    %p125 = por %p123, %p124
    %p126 = scmp.ne.s32.totalorder %s112, %s113
    %p127 = scmp.eq.s32.totalorder %s16, 1
    %p128 = por %p126, %p127
    %p130 = scmp.ne.s32.totalorder %s113, %s129
    %p131 = scmp.eq.s32.totalorder %s16, 0
    %p132 = por %p130, %p131
    %p133 = scmp.le.s32.totalorder 1, %s10
    %p134 = scmp.lt.s32.totalorder %s10, 3
    %p135 = pnand %p133, %p134
    %p136 = pneg %p135
    // Predicated region
    $region9: #{p4m_densenet_forward.18} parent=5 // pred_check
      _
    $region10: #{p4m_densenet_forward.18} parent=5 // pred_check_branch
      %138 = sbr.rel (%p135) target = $region12
    $region11: #{p4m_densenet_forward.18} parent=5 // pred_region
      %s139 = ssub.s32 %s10, 1
      // Predicated region
      $region13: #{p4m_densenet_forward.18} parent=11 // pred_check
        %p140 = pneg %p57
      $region14: #{p4m_densenet_forward.18} parent=11 // pred_check_branch
        %142 = sbr.rel (%p140) target = $region16
      $region15: #{p4m_densenet_forward.18} parent=11 // pred_region
        _
      $region16: #{p4m_densenet_forward.18} parent=11 // pred_fallthru
        _
      // Predicated region
      $region17: #{p4m_densenet_forward.18} parent=11 // pred_check
        %p143 = pneg %p78
      $region18: #{p4m_densenet_forward.18} parent=11 // pred_check_branch
        %145 = sbr.rel (%p143) target = $region20
      $region19: #{p4m_densenet_forward.18} parent=11 // pred_region
        _
      $region20: #{p4m_densenet_forward.18} parent=11 // pred_fallthru
        _
      // Predicated region
      $region21: #{p4m_densenet_forward.18} parent=11 // pred_check
        %p146 = pneg %p99
      $region22: #{p4m_densenet_forward.18} parent=11 // pred_check_branch
        %148 = sbr.rel (%p146) target = $region24
      $region23: #{p4m_densenet_forward.18} parent=11 // pred_region
        _
      $region24: #{p4m_densenet_forward.18} parent=11 // pred_fallthru
        _
    $region12: #{p4m_densenet_forward.18} parent=5 // pred_fallthru
      _
    %p149 = scmp.lt.s32.totalorder %s10, 2
    // Predicated region
    $region25: #{p4m_densenet_forward.18} parent=5 // pred_check
      %p150 = pneg %p149
    $region26: #{p4m_densenet_forward.18} parent=5 // pred_check_branch
      %152 = sbr.rel (%p150) target = $region28
    $region27: #{p4m_densenet_forward.18} parent=5 // pred_region
      // Predicated region
      $region29: #{p4m_densenet_forward.18} parent=27 // pred_check
        %p153 = pneg %p30
      $region30: #{p4m_densenet_forward.18} parent=27 // pred_check_branch
        %155 = sbr.rel (%p153) target = $region32
      $region31: #{p4m_densenet_forward.18} parent=27 // pred_region
        %p156 = scmp.lt.s32.totalorder %s10, 1
        %s157 = scalar_select %p156, %s10, 1
        %s158 = smul.addr %s157, 5
        %s159 = smul.addr %s158, 4
        %s160 = scalar_lea.vmem %s0, %s159
      $region32: #{p4m_densenet_forward.18} parent=27 // pred_fallthru
        _
    $region28: #{p4m_densenet_forward.18} parent=5 // pred_fallthru
      _
    %p161 = scmp.le.s32.totalorder 1, %s10
    %p162 = scmp.lt.s32.totalorder %s10, 3
    %p163 = pnand %p161, %p162
    %p164 = pneg %p163
    // Predicated region
    $region33: #{p4m_densenet_forward.18} parent=5 // pred_check
      _
    $region34: #{p4m_densenet_forward.18} parent=5 // pred_check_branch
      %166 = sbr.rel (%p163) target = $region36
    $region35: #{p4m_densenet_forward.18} parent=5 // pred_region
      %s167 = ssub.s32 %s10, 1
      %p168 = scmp.lt.s32.totalorder %s15, 1
      %s169 = scalar_select %p168, %s15, 1
      %s170 = smul.addr %s169, 5
      %s171 = smul.addr %s170, 4
      %s172 = scalar_lea.vmem %s0, %s171
      %p173 = pneg %p36
      %p174 = pneg %p33
      %p175 = pneg %p57
      %p176 = pneg %p54
      %p177 = pneg %p78
      %p178 = pneg %p75
      %p179 = pneg %p99
      %p180 = pneg %p96
      %p181 = pneg %p125
      %p182 = pneg %p122
      %p183 = scmp.lt.s32.totalorder %s15, 1
      %s184 = scalar_select %p183, %s15, 1
      %s185 = smul.addr %s184, 5
      %s186 = smul.addr %s185, 4
      %s187 = scalar_lea.vmem %s4, %s186
      %p188 = scmp.lt.s32.totalorder %s15, 1
      %s189 = scalar_select %p188, %s15, 1
      %s190 = smul.addr %s189, 5
      %s191 = smul.addr %s190, 4
      %s192 = scalar_lea.vmem %s0, %s191
      %p193 = scmp.lt.s32.totalorder %s15, 1
      %s194 = scalar_select %p193, %s15, 1
      %s195 = smul.addr %s194, 5
      %s196 = smul.addr %s195, 4
      %s197 = scalar_lea.vmem %s4, %s196
      %v199 = vld [vmem:[%s192] sm:$0xf]
      %v200 = vld [vmem:[%s192 + $0x4] sm:$0xf]
      %v201 = vld [vmem:[%s192 + $0x8] sm:$0xf]
      %v202 = vld [vmem:[%s192 + $0xc] sm:$0xf]
      %v203 = vld [vmem:[%s192 + $0x10] sm:$0x3]
      %v204 = vunpack.c.l.bf16 %v199
      %v205 = vunpack.c.l.bf16 %v200
      %v206 = vunpack.c.l.bf16 %v201
      %v207 = vunpack.c.l.bf16 %v202
      %v208 = vunpack.c.l.bf16 %v203
      %v209 = vld [vmem:[%s1] sm:$0x1]
      %v211 = vperm.slane %v209, 0
      %v213 = vmul.f32 %v204, %v211
      %v214 = vmul.f32 %v205, %v211
      %v215 = vmul.f32 %v206, %v211
      %v216 = vmul.f32 %v207, %v211
      %v217 = vmul.f32 %v208, %v211
      %v218 = vld [vmem:[%s2] sm:$0x1]
      %v220 = vperm.slane %v218, 0
      %v222 = vadd.f32 %v213, %v220
      %v223 = vadd.f32 %v214, %v220
      %v224 = vadd.f32 %v215, %v220
      %v225 = vadd.f32 %v216, %v220
      %v226 = vadd.f32 %v217, %v220
      %v227 = vmax.f32 %v222, 0.0
      %v228 = vmax.f32 %v223, 0.0
      %v229 = vmax.f32 %v224, 0.0
      %v230 = vmax.f32 %v225, 0.0
      %v231 = vmax.f32 %v226, 0.0
      %v232 = vpack.c.bf16 %v227, %v227
      %v233 = vpack.c.bf16 %v228, %v228
      %v234 = vpack.c.bf16 %v229, %v229
      %v235 = vpack.c.bf16 %v230, %v230
      %v236 = vpack.c.bf16 %v231, %v231
      %237 = vst [vmem:[#allocation2] sm:$0xf] %v232
      %238 = vst [vmem:[#allocation2 + $0x4] sm:$0xf] %v233
      %239 = vst [vmem:[#allocation2 + $0x8] sm:$0xf] %v234
      %240 = vst [vmem:[#allocation2 + $0xc] sm:$0xf] %v235
      %241 = vst [vmem:[#allocation2 + $0x10] sm:$0x3] %v236
      %v242 = vld [vmem:[#allocation2] sm:$0xf]
      %v243 = vld [vmem:[#allocation2 + $0x4] sm:$0xf]
      %v244 = vld [vmem:[#allocation2 + $0x8] sm:$0x7]
      %v245 = vld [vmem:[%s3] sm:$0xf]
      %v246 = vld [vmem:[%s3 + $0x4] sm:$0xf]
      %v247 = vld [vmem:[%s3 + $0x8] sm:$0xf]
      %v248 = vld [vmem:[%s3 + $0xc] sm:$0xf]
      %v249 = vld [vmem:[%s3 + $0x10] sm:$0xf]
      %v250 = vld [vmem:[%s3 + $0x14] sm:$0xf]
      %v251 = vld [vmem:[%s3 + $0x18] sm:$0xf]
      %v252 = vld [vmem:[%s3 + $0x1c] sm:$0xf]
      %v253 = vld [vmem:[%s3 + $0x20] sm:$0xf]
      %v254 = vld [vmem:[%s3 + $0x24] sm:$0xf]
      %v255 = vld [vmem:[%s3 + $0x28] sm:$0xf]
      %v256 = vld [vmem:[%s3 + $0x2c] sm:$0xf]
      %v257 = vld [vmem:[%s3 + $0x30] sm:$0xf]
      %v258 = vld [vmem:[%s3 + $0x34] sm:$0xf]
      %v259 = vld [vmem:[%s3 + $0x38] sm:$0xf]
      %v260 = vld [vmem:[%s3 + $0x3c] sm:$0xf]
      %v261 = vld [vmem:[#allocation2 + $0x8] sm:$0xf]
      %s262 = scalar_lea.vmem %s3, 64
      %v263 = vld [vmem:[%s262] sm:$0xf]
      %v264 = vld [vmem:[%s262 + $0x4] sm:$0xf]
      %v265 = vld [vmem:[%s262 + $0x8] sm:$0xf]
      %v266 = vld [vmem:[%s262 + $0xc] sm:$0xf]
      %v267 = vld [vmem:[%s262 + $0x10] sm:$0xf]
      %v268 = vld [vmem:[%s262 + $0x14] sm:$0xf]
      %v269 = vld [vmem:[%s262 + $0x18] sm:$0xf]
      %v270 = vld [vmem:[%s262 + $0x1c] sm:$0xf]
      %v271 = vld [vmem:[%s262 + $0x20] sm:$0xf]
      %v272 = vld [vmem:[%s262 + $0x24] sm:$0xf]
      %v273 = vld [vmem:[%s262 + $0x28] sm:$0xf]
      %v274 = vld [vmem:[%s262 + $0x2c] sm:$0xf]
      %v275 = vld [vmem:[%s262 + $0x30] sm:$0xf]
      %v276 = vld [vmem:[%s262 + $0x34] sm:$0xf]
      %v277 = vld [vmem:[%s262 + $0x38] sm:$0xf]
      %v278 = vld [vmem:[%s262 + $0x3c] sm:$0xf]
      %v282 = vunpack.c.l.b16 %v242
      %v283 = vunpack.c.l.b16 %v243
      %v284 = vunpack.c.l.b16 %v261
      %v285 = vpack.c.b16 %v283, %v282
      %v286 = vpack.c.b16 %v284, %v284
      %vm287 = vsmask.f32 7424
      %v289 = vshrl.u32 %v285, 16
      %v291 = vshll.u32 %v285, 16
      %v293 = vrot.slane %v291, 1
      %v294 = vor.u32 %v289, %v293
      %v296 = vshll.u32 %v286, 16
      %v298 = vrot.slane %v296, 1
      %v299 = vsel %vm287, %v294, %v298
      %v300 = vshrl.u32 %v286, 16
      %v302 = vor.u32 %v300, %v298
      %v321 = vunpack.c.l.b16 %v263
      %v322 = vunpack.c.l.b16 %v264
      %v323 = vunpack.c.l.b16 %v265
      %v324 = vunpack.c.l.b16 %v266
      %v325 = vunpack.c.l.b16 %v267
      %v326 = vunpack.c.l.b16 %v268
      %v327 = vunpack.c.l.b16 %v269
      %v328 = vunpack.c.l.b16 %v270
      %v329 = vunpack.c.l.b16 %v271
      %v330 = vunpack.c.l.b16 %v272
      %v331 = vunpack.c.l.b16 %v273
      %v332 = vunpack.c.l.b16 %v274
      %v333 = vunpack.c.l.b16 %v275
      %v334 = vunpack.c.l.b16 %v276
      %v335 = vunpack.c.l.b16 %v277
      %v336 = vunpack.c.l.b16 %v278
      %v337 = vpack.c.b16 %v322, %v321
      %v338 = vpack.c.b16 %v324, %v323
      %v339 = vpack.c.b16 %v326, %v325
      %v340 = vpack.c.b16 %v328, %v327
      %v341 = vpack.c.b16 %v330, %v329
      %v342 = vpack.c.b16 %v332, %v331
      %v343 = vpack.c.b16 %v334, %v333
      %v344 = vpack.c.b16 %v336, %v335
      %353 = vmatpush.bf16.msra.mxu0 %v344
      %354 = vmatpush.bf16.msra.mxu0 %v343
      %355 = vmatpush.bf16.msra.mxu0 %v342
      %356 = vmatpush.bf16.msra.mxu0 %v341
      %357 = vmatpush.bf16.msra.mxu0 %v340
      %358 = vmatpush.bf16.msra.mxu0 %v339
      %359 = vmatpush.bf16.msra.mxu0 %v338
      %360 = vmatpush.bf16.msra.mxu0 %v337
      %361 = vmatmul.bf16.gmra.mxu0 %v299
      %v362 = vpop.f32.mrf.mxu0
      %v363 = vadd.f32 0.0, %v362
      %v364 = vpop.f32.mrf.mxu0
      %v365 = vadd.f32 0.0, %v364
      %366 = vmatmul.bf16.gmra.mxu0 %v302
      %v367 = vpop.f32.mrf.mxu0
      %v368 = vadd.f32 0.0, %v367
      %v369 = vpop.f32.mrf.mxu0
      %370 = vdwg.mxu0
      %v372 = vunpack.c.l.b16 %v244
      %v373 = vpack.c.b16 %v372, %v372
      %v392 = vunpack.c.l.b16 %v245
      %v393 = vunpack.c.l.b16 %v246
      %v394 = vunpack.c.l.b16 %v247
      %v395 = vunpack.c.l.b16 %v248
      %v396 = vunpack.c.l.b16 %v249
      %v397 = vunpack.c.l.b16 %v250
      %v398 = vunpack.c.l.b16 %v251
      %v399 = vunpack.c.l.b16 %v252
      %v400 = vunpack.c.l.b16 %v253
      %v401 = vunpack.c.l.b16 %v254
      %v402 = vunpack.c.l.b16 %v255
      %v403 = vunpack.c.l.b16 %v256
      %v404 = vunpack.c.l.b16 %v257
      %v405 = vunpack.c.l.b16 %v258
      %v406 = vunpack.c.l.b16 %v259
      %v407 = vunpack.c.l.b16 %v260
      %v408 = vpack.c.b16 %v393, %v392
      %v409 = vpack.c.b16 %v395, %v394
      %v410 = vpack.c.b16 %v397, %v396
      %v411 = vpack.c.b16 %v399, %v398
      %v412 = vpack.c.b16 %v401, %v400
      %v413 = vpack.c.b16 %v403, %v402
      %v414 = vpack.c.b16 %v405, %v404
      %v415 = vpack.c.b16 %v407, %v406
      %424 = vmatpush.bf16.msra.mxu0 %v415
      %425 = vmatpush.bf16.msra.mxu0 %v414
      %426 = vmatpush.bf16.msra.mxu0 %v413
      %427 = vmatpush.bf16.msra.mxu0 %v412
      %428 = vmatpush.bf16.msra.mxu0 %v411
      %429 = vmatpush.bf16.msra.mxu0 %v410
      %430 = vmatpush.bf16.msra.mxu0 %v409
      %431 = vmatpush.bf16.msra.mxu0 %v408
      %432 = vmatmul.bf16.gmra.mxu0 %v285
      %v433 = vpop.f32.mrf.mxu0
      %v434 = vadd.f32 %v363, %v433
      %v435 = vpop.f32.mrf.mxu0
      %v436 = vadd.f32 %v365, %v435
      %437 = vmatmul.bf16.gmra.mxu0 %v373
      %v438 = vpop.f32.mrf.mxu0
      %v439 = vadd.f32 %v368, %v438
      %v440 = vpop.f32.mrf.mxu0
      %441 = vdwg.mxu0
      %v442 = vld [vmem:[#allocation2] sm:$0xe]
      %s443 = scalar_lea.vmem %s3, 128
      %v444 = vld [vmem:[%s443] sm:$0xf]
      %v445 = vld [vmem:[%s443 + $0x4] sm:$0xf]
      %v446 = vld [vmem:[%s443 + $0x8] sm:$0xf]
      %v447 = vld [vmem:[%s443 + $0xc] sm:$0xf]
      %v448 = vld [vmem:[%s443 + $0x10] sm:$0xf]
      %v449 = vld [vmem:[%s443 + $0x14] sm:$0xf]
      %v450 = vld [vmem:[%s443 + $0x18] sm:$0xf]
      %v451 = vld [vmem:[%s443 + $0x1c] sm:$0xf]
      %v452 = vld [vmem:[%s443 + $0x20] sm:$0xf]
      %v453 = vld [vmem:[%s443 + $0x24] sm:$0xf]
      %v454 = vld [vmem:[%s443 + $0x28] sm:$0xf]
      %v455 = vld [vmem:[%s443 + $0x2c] sm:$0xf]
      %v456 = vld [vmem:[%s443 + $0x30] sm:$0xf]
      %v457 = vld [vmem:[%s443 + $0x34] sm:$0xf]
      %v458 = vld [vmem:[%s443 + $0x38] sm:$0xf]
      %v459 = vld [vmem:[%s443 + $0x3c] sm:$0xf]
      %v461 = vunpack.c.l.b16 %v442
      %v462 = vpack.c.b16 %v283, %v461
      %vm463 = vcmask 1046528
      %v464 = vrot.slane %v462, 1
      %v465 = vrot.slane %v286, 1
      %v466 = vsel %vm463, %v464, %v465
      %v485 = vunpack.c.l.b16 %v444
      %v486 = vunpack.c.l.b16 %v445
      %v487 = vunpack.c.l.b16 %v446
      %v488 = vunpack.c.l.b16 %v447
      %v489 = vunpack.c.l.b16 %v448
      %v490 = vunpack.c.l.b16 %v449
      %v491 = vunpack.c.l.b16 %v450
      %v492 = vunpack.c.l.b16 %v451
      %v493 = vunpack.c.l.b16 %v452
      %v494 = vunpack.c.l.b16 %v453
      %v495 = vunpack.c.l.b16 %v454
      %v496 = vunpack.c.l.b16 %v455
      %v497 = vunpack.c.l.b16 %v456
      %v498 = vunpack.c.l.b16 %v457
      %v499 = vunpack.c.l.b16 %v458
      %v500 = vunpack.c.l.b16 %v459
      %v501 = vpack.c.b16 %v486, %v485
      %v502 = vpack.c.b16 %v488, %v487
      %v503 = vpack.c.b16 %v490, %v489
      %v504 = vpack.c.b16 %v492, %v491
      %v505 = vpack.c.b16 %v494, %v493
      %v506 = vpack.c.b16 %v496, %v495
      %v507 = vpack.c.b16 %v498, %v497
      %v508 = vpack.c.b16 %v500, %v499
      %517 = vmatpush.bf16.msra.mxu0 %v508
      %518 = vmatpush.bf16.msra.mxu0 %v507
      %519 = vmatpush.bf16.msra.mxu0 %v506
      %520 = vmatpush.bf16.msra.mxu0 %v505
      %521 = vmatpush.bf16.msra.mxu0 %v504
      %522 = vmatpush.bf16.msra.mxu0 %v503
      %523 = vmatpush.bf16.msra.mxu0 %v502
      %524 = vmatpush.bf16.msra.mxu0 %v501
      %525 = vmatmul.bf16.gmra.mxu0 %v466
      %v526 = vpop.f32.mrf.mxu0
      %v527 = vadd.f32 0.0, %v526
      %v528 = vpop.f32.mrf.mxu0
      %v529 = vadd.f32 0.0, %v528
      %530 = vmatmul.bf16.gmra.mxu0 %v465
      %v531 = vpop.f32.mrf.mxu0
      %v532 = vadd.f32 0.0, %v531
      %v533 = vpop.f32.mrf.mxu0
      %534 = vdwg.mxu0
      %v535 = vadd.f32 %v434, %v527
      %v536 = vadd.f32 %v436, %v529
      %v537 = vadd.f32 %v439, %v532
      %v538 = vld [vmem:[#allocation2] sm:$0x8]
      %v539 = vld [vmem:[#allocation2 + $0x4] sm:$0xf]
      %v540 = vld [vmem:[#allocation2 + $0x8] sm:$0xf]
      %v541 = vld [vmem:[#allocation2 + $0xc] sm:$0x3]
      %s542 = scalar_lea.vmem %s3, 192
      %v543 = vld [vmem:[%s542] sm:$0xf]
      %v544 = vld [vmem:[%s542 + $0x4] sm:$0xf]
      %v545 = vld [vmem:[%s542 + $0x8] sm:$0xf]
      %v546 = vld [vmem:[%s542 + $0xc] sm:$0xf]
      %v547 = vld [vmem:[%s542 + $0x10] sm:$0xf]
      %v548 = vld [vmem:[%s542 + $0x14] sm:$0xf]
      %v549 = vld [vmem:[%s542 + $0x18] sm:$0xf]
      %v550 = vld [vmem:[%s542 + $0x1c] sm:$0xf]
      %v551 = vld [vmem:[%s542 + $0x20] sm:$0xf]
      %v552 = vld [vmem:[%s542 + $0x24] sm:$0xf]
      %v553 = vld [vmem:[%s542 + $0x28] sm:$0xf]
      %v554 = vld [vmem:[%s542 + $0x2c] sm:$0xf]
      %v555 = vld [vmem:[%s542 + $0x30] sm:$0xf]
      %v556 = vld [vmem:[%s542 + $0x34] sm:$0xf]
      %v557 = vld [vmem:[%s542 + $0x38] sm:$0xf]
      %v558 = vld [vmem:[%s542 + $0x3c] sm:$0xf]
      %v563 = vunpack.c.l.b16 %v538
      %v564 = vunpack.c.l.b16 %v539
      %v565 = vunpack.c.l.b16 %v540
      %v566 = vunpack.c.l.b16 %v541
      %v567 = vpack.c.b16 %v564, %v563
      %v568 = vpack.c.b16 %v566, %v565
      %vm569 = vcmask 1044480
      %v570 = vrot.slane %v567, 3
      %v571 = vrot.slane %v568, 3
      %v572 = vsel %vm569, %v570, %v571
      %v591 = vunpack.c.l.b16 %v543
      %v592 = vunpack.c.l.b16 %v544
      %v593 = vunpack.c.l.b16 %v545
      %v594 = vunpack.c.l.b16 %v546
      %v595 = vunpack.c.l.b16 %v547
      %v596 = vunpack.c.l.b16 %v548
      %v597 = vunpack.c.l.b16 %v549
      %v598 = vunpack.c.l.b16 %v550
      %v599 = vunpack.c.l.b16 %v551
      %v600 = vunpack.c.l.b16 %v552
      %v601 = vunpack.c.l.b16 %v553
      %v602 = vunpack.c.l.b16 %v554
      %v603 = vunpack.c.l.b16 %v555
      %v604 = vunpack.c.l.b16 %v556
      %v605 = vunpack.c.l.b16 %v557
      %v606 = vunpack.c.l.b16 %v558
      %v607 = vpack.c.b16 %v592, %v591
      %v608 = vpack.c.b16 %v594, %v593
      %v609 = vpack.c.b16 %v596, %v595
      %v610 = vpack.c.b16 %v598, %v597
      %v611 = vpack.c.b16 %v600, %v599
      %v612 = vpack.c.b16 %v602, %v601
      %v613 = vpack.c.b16 %v604, %v603
      %v614 = vpack.c.b16 %v606, %v605
      %623 = vmatpush.bf16.msra.mxu0 %v614
      %624 = vmatpush.bf16.msra.mxu0 %v613
      %625 = vmatpush.bf16.msra.mxu0 %v612
      %626 = vmatpush.bf16.msra.mxu0 %v611
      %627 = vmatpush.bf16.msra.mxu0 %v610
      %628 = vmatpush.bf16.msra.mxu0 %v609
      %629 = vmatpush.bf16.msra.mxu0 %v608
      %630 = vmatpush.bf16.msra.mxu0 %v607
      %631 = vmatmul.bf16.gmra.mxu0 %v572
      %v632 = vpop.f32.mrf.mxu0
      %v633 = vadd.f32 0.0, %v632
      %v634 = vpop.f32.mrf.mxu0
      %v635 = vadd.f32 0.0, %v634
      %636 = vmatmul.bf16.gmra.mxu0 %v571
      %v637 = vpop.f32.mrf.mxu0
      %v638 = vadd.f32 0.0, %v637
      %v639 = vpop.f32.mrf.mxu0
      %640 = vdwg.mxu0
      %v641 = vadd.f32 %v535, %v633
      %v642 = vadd.f32 %v536, %v635
      %v643 = vadd.f32 %v537, %v638
      %v644 = vld [vmem:[#allocation2 + $0xc] sm:$0x7]
      %s645 = scalar_lea.vmem %s3, 256
      %v646 = vld [vmem:[%s645] sm:$0xf]
      %v647 = vld [vmem:[%s645 + $0x4] sm:$0xf]
      %v648 = vld [vmem:[%s645 + $0x8] sm:$0xf]
      %v649 = vld [vmem:[%s645 + $0xc] sm:$0xf]
      %v650 = vld [vmem:[%s645 + $0x10] sm:$0xf]
      %v651 = vld [vmem:[%s645 + $0x14] sm:$0xf]
      %v652 = vld [vmem:[%s645 + $0x18] sm:$0xf]
      %v653 = vld [vmem:[%s645 + $0x1c] sm:$0xf]
      %v654 = vld [vmem:[%s645 + $0x20] sm:$0xf]
      %v655 = vld [vmem:[%s645 + $0x24] sm:$0xf]
      %v656 = vld [vmem:[%s645 + $0x28] sm:$0xf]
      %v657 = vld [vmem:[%s645 + $0x2c] sm:$0xf]
      %v658 = vld [vmem:[%s645 + $0x30] sm:$0xf]
      %v659 = vld [vmem:[%s645 + $0x34] sm:$0xf]
      %v660 = vld [vmem:[%s645 + $0x38] sm:$0xf]
      %v661 = vld [vmem:[%s645 + $0x3c] sm:$0xf]
      %v663 = vunpack.c.l.b16 %v644
      %v664 = vpack.c.b16 %v663, %v565
      %vm665 = vsmask.f32 4352
      %v667 = vshrl.u32 %v567, 16
      %v669 = vrot.slane %v667, 3
      %v670 = vshll.u32 %v567, 16
      %v672 = vrot.slane %v670, 4
      %v673 = vor.u32 %v669, %v672
      %v675 = vshrl.u32 %v664, 16
      %v677 = vrot.slane %v675, 3
      %v678 = vshll.u32 %v664, 16
      %v680 = vrot.slane %v678, 4
      %v681 = vor.u32 %v677, %v680
      %v682 = vsel %vm665, %v673, %v681
      %v701 = vunpack.c.l.b16 %v646
      %v702 = vunpack.c.l.b16 %v647
      %v703 = vunpack.c.l.b16 %v648
      %v704 = vunpack.c.l.b16 %v649
      %v705 = vunpack.c.l.b16 %v650
      %v706 = vunpack.c.l.b16 %v651
      %v707 = vunpack.c.l.b16 %v652
      %v708 = vunpack.c.l.b16 %v653
      %v709 = vunpack.c.l.b16 %v654
      %v710 = vunpack.c.l.b16 %v655
      %v711 = vunpack.c.l.b16 %v656
      %v712 = vunpack.c.l.b16 %v657
      %v713 = vunpack.c.l.b16 %v658
      %v714 = vunpack.c.l.b16 %v659
      %v715 = vunpack.c.l.b16 %v660
      %v716 = vunpack.c.l.b16 %v661
      %v717 = vpack.c.b16 %v702, %v701
      %v718 = vpack.c.b16 %v704, %v703
      %v719 = vpack.c.b16 %v706, %v705
      %v720 = vpack.c.b16 %v708, %v707
      %v721 = vpack.c.b16 %v710, %v709
      %v722 = vpack.c.b16 %v712, %v711
      %v723 = vpack.c.b16 %v714, %v713
      %v724 = vpack.c.b16 %v716, %v715
      %733 = vmatpush.bf16.msra.mxu0 %v724
      %734 = vmatpush.bf16.msra.mxu0 %v723
      %735 = vmatpush.bf16.msra.mxu0 %v722
      %736 = vmatpush.bf16.msra.mxu0 %v721
      %737 = vmatpush.bf16.msra.mxu0 %v720
      %738 = vmatpush.bf16.msra.mxu0 %v719
      %739 = vmatpush.bf16.msra.mxu0 %v718
      %740 = vmatpush.bf16.msra.mxu0 %v717
      %741 = vmatmul.bf16.gmra.mxu0 %v682
      %v742 = vpop.f32.mrf.mxu0
      %v743 = vadd.f32 0.0, %v742
      %v744 = vpop.f32.mrf.mxu0
      %v745 = vadd.f32 0.0, %v744
      %746 = vmatmul.bf16.gmra.mxu0 %v681
      %v747 = vpop.f32.mrf.mxu0
      %v748 = vadd.f32 0.0, %v747
      %v749 = vpop.f32.mrf.mxu0
      %750 = vdwg.mxu0
      %v751 = vadd.f32 %v641, %v743
      %v752 = vadd.f32 %v642, %v745
      %v753 = vadd.f32 %v643, %v748
      %s754 = scalar_lea.vmem %s3, 320
      %v755 = vld [vmem:[%s754] sm:$0xf]
      %v756 = vld [vmem:[%s754 + $0x4] sm:$0xf]
      %v757 = vld [vmem:[%s754 + $0x8] sm:$0xf]
      %v758 = vld [vmem:[%s754 + $0xc] sm:$0xf]
      %v759 = vld [vmem:[%s754 + $0x10] sm:$0xf]
      %v760 = vld [vmem:[%s754 + $0x14] sm:$0xf]
      %v761 = vld [vmem:[%s754 + $0x18] sm:$0xf]
      %v762 = vld [vmem:[%s754 + $0x1c] sm:$0xf]
      %v763 = vld [vmem:[%s754 + $0x20] sm:$0xf]
      %v764 = vld [vmem:[%s754 + $0x24] sm:$0xf]
      %v765 = vld [vmem:[%s754 + $0x28] sm:$0xf]
      %v766 = vld [vmem:[%s754 + $0x2c] sm:$0xf]
      %v767 = vld [vmem:[%s754 + $0x30] sm:$0xf]
      %v768 = vld [vmem:[%s754 + $0x34] sm:$0xf]
      %v769 = vld [vmem:[%s754 + $0x38] sm:$0xf]
      %v770 = vld [vmem:[%s754 + $0x3c] sm:$0xf]
      %v771 = vpack.c.b16 %v565, %v564
      %v772 = vpack.c.b16 %v663, %v663
      %v791 = vunpack.c.l.b16 %v755
      %v792 = vunpack.c.l.b16 %v756
      %v793 = vunpack.c.l.b16 %v757
      %v794 = vunpack.c.l.b16 %v758
      %v795 = vunpack.c.l.b16 %v759
      %v796 = vunpack.c.l.b16 %v760
      %v797 = vunpack.c.l.b16 %v761
      %v798 = vunpack.c.l.b16 %v762
      %v799 = vunpack.c.l.b16 %v763
      %v800 = vunpack.c.l.b16 %v764
      %v801 = vunpack.c.l.b16 %v765
      %v802 = vunpack.c.l.b16 %v766
      %v803 = vunpack.c.l.b16 %v767
      %v804 = vunpack.c.l.b16 %v768
      %v805 = vunpack.c.l.b16 %v769
      %v806 = vunpack.c.l.b16 %v770
      %v807 = vpack.c.b16 %v792, %v791
      %v808 = vpack.c.b16 %v794, %v793
      %v809 = vpack.c.b16 %v796, %v795
      %v810 = vpack.c.b16 %v798, %v797
      %v811 = vpack.c.b16 %v800, %v799
      %v812 = vpack.c.b16 %v802, %v801
      %v813 = vpack.c.b16 %v804, %v803
      %v814 = vpack.c.b16 %v806, %v805
      %823 = vmatpush.bf16.msra.mxu0 %v814
      %824 = vmatpush.bf16.msra.mxu0 %v813
      %825 = vmatpush.bf16.msra.mxu0 %v812
      %826 = vmatpush.bf16.msra.mxu0 %v811
      %827 = vmatpush.bf16.msra.mxu0 %v810
      %828 = vmatpush.bf16.msra.mxu0 %v809
      %829 = vmatpush.bf16.msra.mxu0 %v808
      %830 = vmatpush.bf16.msra.mxu0 %v807
      %831 = vmatmul.bf16.gmra.mxu0 %v771
      %v832 = vpop.f32.mrf.mxu0
      %v833 = vadd.f32 0.0, %v832
      %v834 = vpop.f32.mrf.mxu0
      %v835 = vadd.f32 0.0, %v834
      %836 = vmatmul.bf16.gmra.mxu0 %v772
      %v837 = vpop.f32.mrf.mxu0
      %v838 = vadd.f32 0.0, %v837
      %v839 = vpop.f32.mrf.mxu0
      %840 = vdwg.mxu0
      %v841 = vadd.f32 %v751, %v833
      %v842 = vadd.f32 %v752, %v835
      %v843 = vadd.f32 %v753, %v838
      %v844 = vld [vmem:[#allocation2 + $0x4] sm:$0xc]
      %v845 = vld [vmem:[#allocation2 + $0x8] sm:$0xf]
      %v846 = vld [vmem:[#allocation2 + $0xc] sm:$0xf]
      %v847 = vld [vmem:[#allocation2 + $0x10] sm:$0x1]
      %s848 = scalar_lea.vmem %s3, 384
      %v849 = vld [vmem:[%s848] sm:$0xf]
      %v850 = vld [vmem:[%s848 + $0x4] sm:$0xf]
      %v851 = vld [vmem:[%s848 + $0x8] sm:$0xf]
      %v852 = vld [vmem:[%s848 + $0xc] sm:$0xf]
      %v853 = vld [vmem:[%s848 + $0x10] sm:$0xf]
      %v854 = vld [vmem:[%s848 + $0x14] sm:$0xf]
      %v855 = vld [vmem:[%s848 + $0x18] sm:$0xf]
      %v856 = vld [vmem:[%s848 + $0x1c] sm:$0xf]
      %v857 = vld [vmem:[%s848 + $0x20] sm:$0xf]
      %v858 = vld [vmem:[%s848 + $0x24] sm:$0xf]
      %v859 = vld [vmem:[%s848 + $0x28] sm:$0xf]
      %v860 = vld [vmem:[%s848 + $0x2c] sm:$0xf]
      %v861 = vld [vmem:[%s848 + $0x30] sm:$0xf]
      %v862 = vld [vmem:[%s848 + $0x34] sm:$0xf]
      %v863 = vld [vmem:[%s848 + $0x38] sm:$0xf]
      %v864 = vld [vmem:[%s848 + $0x3c] sm:$0xf]
      %v869 = vunpack.c.l.b16 %v844
      %v870 = vunpack.c.l.b16 %v845
      %v871 = vunpack.c.l.b16 %v846
      %v872 = vunpack.c.l.b16 %v847
      %v873 = vpack.c.b16 %v870, %v869
      %v874 = vpack.c.b16 %v872, %v871
      %vm875 = vcmask 1045504
      %v876 = vrot.slane %v873, 2
      %v877 = vrot.slane %v874, 2
      %v878 = vsel %vm875, %v876, %v877
      %v897 = vunpack.c.l.b16 %v849
      %v898 = vunpack.c.l.b16 %v850
      %v899 = vunpack.c.l.b16 %v851
      %v900 = vunpack.c.l.b16 %v852
      %v901 = vunpack.c.l.b16 %v853
      %v902 = vunpack.c.l.b16 %v854
      %v903 = vunpack.c.l.b16 %v855
      %v904 = vunpack.c.l.b16 %v856
      %v905 = vunpack.c.l.b16 %v857
      %v906 = vunpack.c.l.b16 %v858
      %v907 = vunpack.c.l.b16 %v859
      %v908 = vunpack.c.l.b16 %v860
      %v909 = vunpack.c.l.b16 %v861
      %v910 = vunpack.c.l.b16 %v862
      %v911 = vunpack.c.l.b16 %v863
      %v912 = vunpack.c.l.b16 %v864
      %v913 = vpack.c.b16 %v898, %v897
      %v914 = vpack.c.b16 %v900, %v899
      %v915 = vpack.c.b16 %v902, %v901
      %v916 = vpack.c.b16 %v904, %v903
      %v917 = vpack.c.b16 %v906, %v905
      %v918 = vpack.c.b16 %v908, %v907
      %v919 = vpack.c.b16 %v910, %v909
      %v920 = vpack.c.b16 %v912, %v911
      %929 = vmatpush.bf16.msra.mxu0 %v920
      %930 = vmatpush.bf16.msra.mxu0 %v919
      %931 = vmatpush.bf16.msra.mxu0 %v918
      %932 = vmatpush.bf16.msra.mxu0 %v917
      %933 = vmatpush.bf16.msra.mxu0 %v916
      %934 = vmatpush.bf16.msra.mxu0 %v915
      %935 = vmatpush.bf16.msra.mxu0 %v914
      %936 = vmatpush.bf16.msra.mxu0 %v913
      %937 = vmatmul.bf16.gmra.mxu0 %v878
      %v938 = vpop.f32.mrf.mxu0
      %v939 = vadd.f32 0.0, %v938
      %v940 = vpop.f32.mrf.mxu0
      %v941 = vadd.f32 0.0, %v940
      %942 = vmatmul.bf16.gmra.mxu0 %v877
      %v943 = vpop.f32.mrf.mxu0
      %v944 = vadd.f32 0.0, %v943
      %v945 = vpop.f32.mrf.mxu0
      %946 = vdwg.mxu0
      %v947 = vadd.f32 %v841, %v939
      %v948 = vadd.f32 %v842, %v941
      %v949 = vadd.f32 %v843, %v944
      %v950 = vld [vmem:[#allocation2 + $0x10] sm:$0x3]
      %s951 = scalar_lea.vmem %s3, 448
      %v952 = vld [vmem:[%s951] sm:$0xf]
      %v953 = vld [vmem:[%s951 + $0x4] sm:$0xf]
      %v954 = vld [vmem:[%s951 + $0x8] sm:$0xf]
      %v955 = vld [vmem:[%s951 + $0xc] sm:$0xf]
      %v956 = vld [vmem:[%s951 + $0x10] sm:$0xf]
      %v957 = vld [vmem:[%s951 + $0x14] sm:$0xf]
      %v958 = vld [vmem:[%s951 + $0x18] sm:$0xf]
      %v959 = vld [vmem:[%s951 + $0x1c] sm:$0xf]
      %v960 = vld [vmem:[%s951 + $0x20] sm:$0xf]
      %v961 = vld [vmem:[%s951 + $0x24] sm:$0xf]
      %v962 = vld [vmem:[%s951 + $0x28] sm:$0xf]
      %v963 = vld [vmem:[%s951 + $0x2c] sm:$0xf]
      %v964 = vld [vmem:[%s951 + $0x30] sm:$0xf]
      %v965 = vld [vmem:[%s951 + $0x34] sm:$0xf]
      %v966 = vld [vmem:[%s951 + $0x38] sm:$0xf]
      %v967 = vld [vmem:[%s951 + $0x3c] sm:$0xf]
      %v969 = vunpack.c.l.b16 %v950
      %v970 = vpack.c.b16 %v969, %v871
      %vm971 = vsmask.f32 5376
      %v973 = vshrl.u32 %v873, 16
      %v975 = vrot.slane %v973, 2
      %v976 = vshll.u32 %v873, 16
      %v978 = vrot.slane %v976, 3
      %v979 = vor.u32 %v975, %v978
      %v981 = vshrl.u32 %v970, 16
      %v983 = vrot.slane %v981, 2
      %v984 = vshll.u32 %v970, 16
      %v986 = vrot.slane %v984, 3
      %v987 = vor.u32 %v983, %v986
      %v988 = vsel %vm971, %v979, %v987
      %v1007 = vunpack.c.l.b16 %v952
      %v1008 = vunpack.c.l.b16 %v953
      %v1009 = vunpack.c.l.b16 %v954
      %v1010 = vunpack.c.l.b16 %v955
      %v1011 = vunpack.c.l.b16 %v956
      %v1012 = vunpack.c.l.b16 %v957
      %v1013 = vunpack.c.l.b16 %v958
      %v1014 = vunpack.c.l.b16 %v959
      %v1015 = vunpack.c.l.b16 %v960
      %v1016 = vunpack.c.l.b16 %v961
      %v1017 = vunpack.c.l.b16 %v962
      %v1018 = vunpack.c.l.b16 %v963
      %v1019 = vunpack.c.l.b16 %v964
      %v1020 = vunpack.c.l.b16 %v965
      %v1021 = vunpack.c.l.b16 %v966
      %v1022 = vunpack.c.l.b16 %v967
      %v1023 = vpack.c.b16 %v1008, %v1007
      %v1024 = vpack.c.b16 %v1010, %v1009
      %v1025 = vpack.c.b16 %v1012, %v1011
      %v1026 = vpack.c.b16 %v1014, %v1013
      %v1027 = vpack.c.b16 %v1016, %v1015
      %v1028 = vpack.c.b16 %v1018, %v1017
      %v1029 = vpack.c.b16 %v1020, %v1019
      %v1030 = vpack.c.b16 %v1022, %v1021
      %1039 = vmatpush.bf16.msra.mxu0 %v1030
      %1040 = vmatpush.bf16.msra.mxu0 %v1029
      %1041 = vmatpush.bf16.msra.mxu0 %v1028
      %1042 = vmatpush.bf16.msra.mxu0 %v1027
      %1043 = vmatpush.bf16.msra.mxu0 %v1026
      %1044 = vmatpush.bf16.msra.mxu0 %v1025
      %1045 = vmatpush.bf16.msra.mxu0 %v1024
      %1046 = vmatpush.bf16.msra.mxu0 %v1023
      %1047 = vmatmul.bf16.gmra.mxu0 %v988
      %v1048 = vpop.f32.mrf.mxu0
      %v1049 = vadd.f32 0.0, %v1048
      %v1050 = vpop.f32.mrf.mxu0
      %v1051 = vadd.f32 0.0, %v1050
      %1052 = vmatmul.bf16.gmra.mxu0 %v987
      %v1053 = vpop.f32.mrf.mxu0
      %v1054 = vadd.f32 0.0, %v1053
      %v1055 = vpop.f32.mrf.mxu0
      %1056 = vdwg.mxu0
      %v1057 = vadd.f32 %v947, %v1049
      %v1058 = vadd.f32 %v948, %v1051
      %v1059 = vadd.f32 %v949, %v1054
      %v1060 = vld [vmem:[#allocation2 + $0x4] sm:$0x8]
      %s1061 = scalar_lea.vmem %s3, 512
      %v1062 = vld [vmem:[%s1061] sm:$0xf]
      %v1063 = vld [vmem:[%s1061 + $0x4] sm:$0xf]
      %v1064 = vld [vmem:[%s1061 + $0x8] sm:$0xf]
      %v1065 = vld [vmem:[%s1061 + $0xc] sm:$0xf]
      %v1066 = vld [vmem:[%s1061 + $0x10] sm:$0xf]
      %v1067 = vld [vmem:[%s1061 + $0x14] sm:$0xf]
      %v1068 = vld [vmem:[%s1061 + $0x18] sm:$0xf]
      %v1069 = vld [vmem:[%s1061 + $0x1c] sm:$0xf]
      %v1070 = vld [vmem:[%s1061 + $0x20] sm:$0xf]
      %v1071 = vld [vmem:[%s1061 + $0x24] sm:$0xf]
      %v1072 = vld [vmem:[%s1061 + $0x28] sm:$0xf]
      %v1073 = vld [vmem:[%s1061 + $0x2c] sm:$0xf]
      %v1074 = vld [vmem:[%s1061 + $0x30] sm:$0xf]
      %v1075 = vld [vmem:[%s1061 + $0x34] sm:$0xf]
      %v1076 = vld [vmem:[%s1061 + $0x38] sm:$0xf]
      %v1077 = vld [vmem:[%s1061 + $0x3c] sm:$0xf]
      %v1079 = vunpack.c.l.b16 %v1060
      %v1080 = vpack.c.b16 %v870, %v1079
      %v1081 = vrot.slane %v1080, 3
      %v1082 = vrot.slane %v970, 3
      %v1083 = vsel %vm569, %v1081, %v1082
      %v1102 = vunpack.c.l.b16 %v1062
      %v1103 = vunpack.c.l.b16 %v1063
      %v1104 = vunpack.c.l.b16 %v1064
      %v1105 = vunpack.c.l.b16 %v1065
      %v1106 = vunpack.c.l.b16 %v1066
      %v1107 = vunpack.c.l.b16 %v1067
      %v1108 = vunpack.c.l.b16 %v1068
      %v1109 = vunpack.c.l.b16 %v1069
      %v1110 = vunpack.c.l.b16 %v1070
      %v1111 = vunpack.c.l.b16 %v1071
      %v1112 = vunpack.c.l.b16 %v1072
      %v1113 = vunpack.c.l.b16 %v1073
      %v1114 = vunpack.c.l.b16 %v1074
      %v1115 = vunpack.c.l.b16 %v1075
      %v1116 = vunpack.c.l.b16 %v1076
      %v1117 = vunpack.c.l.b16 %v1077
      %v1118 = vpack.c.b16 %v1103, %v1102
      %v1119 = vpack.c.b16 %v1105, %v1104
      %v1120 = vpack.c.b16 %v1107, %v1106
      %v1121 = vpack.c.b16 %v1109, %v1108
      %v1122 = vpack.c.b16 %v1111, %v1110
      %v1123 = vpack.c.b16 %v1113, %v1112
      %v1124 = vpack.c.b16 %v1115, %v1114
      %v1125 = vpack.c.b16 %v1117, %v1116
      %1134 = vmatpush.bf16.msra.mxu0 %v1125
      %1135 = vmatpush.bf16.msra.mxu0 %v1124
      %1136 = vmatpush.bf16.msra.mxu0 %v1123
      %1137 = vmatpush.bf16.msra.mxu0 %v1122
      %1138 = vmatpush.bf16.msra.mxu0 %v1121
      %1139 = vmatpush.bf16.msra.mxu0 %v1120
      %1140 = vmatpush.bf16.msra.mxu0 %v1119
      %1141 = vmatpush.bf16.msra.mxu0 %v1118
      %1142 = vmatmul.bf16.gmra.mxu0 %v1083
      %v1143 = vpop.f32.mrf.mxu0
      %v1144 = vadd.f32 0.0, %v1143
      %v1145 = vpop.f32.mrf.mxu0
      %v1146 = vadd.f32 0.0, %v1145
      %1147 = vmatmul.bf16.gmra.mxu0 %v1082
      %v1148 = vpop.f32.mrf.mxu0
      %v1149 = vadd.f32 0.0, %v1148
      %v1150 = vpop.f32.mrf.mxu0
      %1151 = vdwg.mxu0
      %v1152 = vadd.f32 %v1057, %v1144
      %v1153 = vadd.f32 %v1058, %v1146
      %v1154 = vadd.f32 %v1059, %v1149
      %v1155 = vpack.c.bf16 %v1152, %v1152
      %v1156 = vpack.c.bf16 %v1153, %v1153
      %v1157 = vpack.c.bf16 %v1154, %v1154
      %1158 = vst [vmem:[%s197] sm:$0xf] %v1155
      %1159 = vst [vmem:[%s197 + $0x4] sm:$0xf] %v1156
      %1160 = vst [vmem:[%s197 + $0x8] sm:$0x7] %v1157
      %1161 = vst [vmem:[%s197 + $0x8] sm:$0x8] 0
      %1162 = vst [vmem:[%s197 + $0xc] sm:$0xf] 0
      %1163 = vst [vmem:[%s197 + $0x10] sm:$0x3] 0
      %p1164 = scmp.lt.s32.totalorder %s15, 1
      %s1165 = scalar_select %p1164, %s15, 1
      %s1166 = smul.addr %s1165, 5
      %s1167 = smul.addr %s1166, 4
      %s1168 = scalar_lea.vmem %s4, %s1167
      // Predicated region
      $region37: #{p4m_densenet_forward.18} parent=35 // pred_check
        %p1169 = pneg %p122
      $region38: #{p4m_densenet_forward.18} parent=35 // pred_check_branch
        %1171 = sbr.rel (%p1169) target = $region40
      $region39: #{p4m_densenet_forward.18} parent=35 // pred_region
        _
      $region40: #{p4m_densenet_forward.18} parent=35 // pred_fallthru
        _
    $region36: #{p4m_densenet_forward.18} parent=5 // pred_fallthru
      _
    %p1172 = scmp.le.s32.totalorder 2, %s10
    // Predicated region
    $region41: #{p4m_densenet_forward.18} parent=5 // pred_check
      %p1173 = pneg %p1172
    $region42: #{p4m_densenet_forward.18} parent=5 // pred_check_branch
      %1175 = sbr.rel (%p1173) target = $region44
    $region43: #{p4m_densenet_forward.18} parent=5 // pred_region
      %s1176 = ssub.s32 %s10, 2
      // Predicated region
      $region45: #{p4m_densenet_forward.18} parent=43 // pred_check
        %p1177 = pneg %p128
      $region46: #{p4m_densenet_forward.18} parent=43 // pred_check_branch
        %1179 = sbr.rel (%p1177) target = $region48
      $region47: #{p4m_densenet_forward.18} parent=43 // pred_region
        %p1180 = scmp.lt.s32.totalorder %s16, 1
        %s1181 = scalar_select %p1180, %s16, 1
        %s1182 = smul.addr %s1181, 5
        %s1183 = smul.addr %s1182, 4
        %s1184 = scalar_lea.vmem %s4, %s1183
      $region48: #{p4m_densenet_forward.18} parent=43 // pred_fallthru
        _
    $region44: #{p4m_densenet_forward.18} parent=5 // pred_fallthru
      _
  $region6: #{p4m_densenet_forward.18} parent=0 // loop_footer
    %s14 = sadd.s32 1, %s10
  $region7: #{p4m_densenet_forward.18} parent=0 // loop_footer_branch
    %9 = sbr.rel target = $region3
  $region8: #{p4m_densenet_forward.18} parent=0 // loop_exit
    _

</llo_original>
